<compile_context>
chip_gen: v5e
topology: v5e:2x2
jax: 0.10.0
libtpu: 0.0.40
codegen_flags: <defaults>
</compile_context>

<pallas_src>
import functools

import jax
import jax.numpy as jnp
from jax.experimental import pallas as pl
from jax.experimental.pallas import tpu as pltpu


# ----------------------------------------------------------------------------
# Hardware-derived limits (generation-safe).
# ----------------------------------------------------------------------------
def _query_vmem_capacity():
    try:
        info = pltpu.get_tpu_info()
        cap = getattr(info, "vmem_capacity_bytes", None)
        if cap:
            return int(cap)
    except Exception:
        pass
    return 64 * 1024 * 1024  # conservative fallback: v7x per-TC VMEM


_VMEM_CAP = _query_vmem_capacity()
# Never request more than 64 MiB (v7x physical), and at most half of capacity.
_VMEM_LIMIT = int(min(_VMEM_CAP // 2, 64 * 1024 * 1024))


def _round_up(x, m):
    return ((x + m - 1) // m) * m


_TK_CANDIDATES = (512, 384, 256, 128)


def _choose_tiles(M, K, N):
    """Pick (tm, tn, tk) and padded (Mp, Np, Kp). Tile caps scale with VMEM."""
    big = _VMEM_CAP >= 100 * 1024 * 1024      # v5e/v6e (128 MiB) vs v7x (64 MiB)
    tm_max = 512 if big else 256
    tn_max = 512 if big else 256

    tm = min(tm_max, _round_up(M, 16))        # sublane-friendly for bf16 packing
    Mp = _round_up(M, tm)

    Np0 = _round_up(N, 128)                   # lane-dense stores (>=128 lanes)
    tn = min(tn_max, Np0)
    Np = _round_up(Np0, tn)

    Kp0 = _round_up(K, 128)
    best_tk, best_Kp = None, None
    for tk in _TK_CANDIDATES:                 # minimize zero-padded K work
        Kp = _round_up(Kp0, tk)
        if best_Kp is None or Kp < best_Kp:
            best_tk, best_Kp = tk, Kp
    return tm, tn, best_tk, Mp, Np, best_Kp


# ----------------------------------------------------------------------------
# Pallas kernel: tiled  y = [relu]((x @ w) [* scale] + bias)
#   bf16 operands on the MXU, f32 accumulation, f32 epilogue.
# ----------------------------------------------------------------------------
def _matmul_affine_kernel(*refs, apply_relu, has_scale):
    if has_scale:
        x_ref, w_ref, scale_ref, bias_ref, o_ref, acc_ref = refs
    else:
        x_ref, w_ref, bias_ref, o_ref, acc_ref = refs
        scale_ref = None
    k = pl.program_id(2)

    @pl.when(k == 0)
    def _():
        acc_ref[...] = jnp.zeros_like(acc_ref)

    acc_ref[...] += jnp.dot(x_ref[...], w_ref[...],
                            preferred_element_type=jnp.float32)

    @pl.when(k == pl.num_programs(2) - 1)
    def _():
        y = acc_ref[...]
        if has_scale:
            y = y * scale_ref[...]
        y = y + bias_ref[...]
        if apply_relu:
            y = jnp.maximum(y, 0.0)
        o_ref[...] = y.astype(o_ref.dtype)


def matmul_affine(x, w, bias, scale=None, *, apply_relu):
    """Tiled, pipelined matmul with fused scale/bias/ReLU epilogue."""
    M, K = x.shape
    K2, N = w.shape
    assert K == K2
    has_scale = scale is not None
    tm, tn, tk, Mp, Np, Kp = _choose_tiles(M, K, N)

    xp = jnp.pad(x, ((0, Mp - M), (0, Kp - K))).astype(jnp.bfloat16)
    wp = jnp.pad(w, ((0, Kp - K), (0, Np - N))).astype(jnp.bfloat16)
    bp = jnp.pad(bias.reshape(1, -1).astype(jnp.float32),
                 ((0, 0), (0, Np - N)))

    args = [xp, wp]
    in_specs = [pl.BlockSpec((tm, tk), lambda i, j, k: (i, k)),
                pl.BlockSpec((tk, tn), lambda i, j, k: (k, j))]
    if has_scale:
        sp = jnp.pad(scale.reshape(1, -1).astype(jnp.float32),
                     ((0, 0), (0, Np - N)))
        args.append(sp)
        in_specs.append(pl.BlockSpec((1, tn), lambda i, j, k: (0, j)))
    args.append(bp)
    in_specs.append(pl.BlockSpec((1, tn), lambda i, j, k: (0, j)))

    kernel = functools.partial(_matmul_affine_kernel,
                               apply_relu=apply_relu, has_scale=has_scale)
    out = pl.pallas_call(
        kernel,
        out_shape=jax.ShapeDtypeStruct((Mp, Np), jnp.float32),
        grid_spec=pltpu.PrefetchScalarGridSpec(
            num_scalar_prefetch=0,
            grid=(Mp // tm, Np // tn, Kp // tk),
            in_specs=in_specs,
            out_specs=pl.BlockSpec((tm, tn), lambda i, j, k: (i, j)),
            scratch_shapes=[pltpu.VMEM((tm, tn), jnp.float32)],
        ),
        compiler_params=pltpu.CompilerParams(
            dimension_semantics=("parallel", "parallel", "arbitrary"),
            vmem_limit_bytes=_VMEM_LIMIT,
        ),
    )(*args)
    return out[:M, :N]


# ----------------------------------------------------------------------------
# Glue (data movement / reshapes) in plain JAX.
# ----------------------------------------------------------------------------
def im2col_5x5_pad2(x_nhwc):
    """(N,H,W,C) -> (N*H*W, 5*5*C), patch axis ordered (kh, kw, cin)."""
    n, h, w, c = x_nhwc.shape
    xp = jnp.pad(x_nhwc, ((0, 0), (2, 2), (2, 2), (0, 0)))
    cols = []
    for kh in range(5):
        for kw in range(5):
            cols.append(xp[:, kh:kh + h, kw:kw + w, :])
    patches = jnp.concatenate(cols, axis=-1)
    return patches.reshape(n * h * w, 5 * 5 * c)


def maxpool2(x_nhwc):
    n, h, w, c = x_nhwc.shape
    return jnp.max(x_nhwc.reshape(n, h // 2, 2, w // 2, 2, c), axis=(2, 4))


def conv_bn_relu(x_nhwc, w_kkio, conv_b, bn_gamma, bn_beta, bn_mean, bn_var,
                 eps=1e-5):
    """Conv2d(5,1,2) + BatchNorm2d(eval) + ReLU; hot path in Pallas."""
    n, h, w, _ = x_nhwc.shape
    kh, kw, cin, cout = w_kkio.shape
    # Emit the 25x-inflated patch buffer in bf16 (it is a matmul operand anyway).
    patches = im2col_5x5_pad2(x_nhwc.astype(jnp.bfloat16))    # (N*H*W, 25*Cin)
    w2d = w_kkio.reshape(kh * kw * cin, cout)
    s = bn_gamma / jnp.sqrt(bn_var + eps)                     # fold BN
    bias = (conv_b - bn_mean) * s + bn_beta
    y = matmul_affine(patches, w2d, bias, s, apply_relu=True)
    return y.reshape(n, h, w, cout)


# ----------------------------------------------------------------------------
# Deterministic synthetic parameters (shapes follow the nn.Module __init__,
# with the spatial size scaled down so the demo stays small).
# ----------------------------------------------------------------------------
def init_params(key, in_hw):
    convs_io = [(1, 16), (16, 32), (32, 64), (64, 128), (128, 256), (256, 512)]
    params = {"conv": []}
    for cin, cout in convs_io:
        key, k_w, k_b, k_g, k_be, k_m = jax.random.split(key, 6)
        fan_in = cin * 25
        params["conv"].append(dict(
            w_kkio=jax.random.normal(k_w, (5, 5, cin, cout), jnp.float32)
            / jnp.sqrt(float(fan_in)),
            conv_b=0.01 * jax.random.normal(k_b, (cout,), jnp.float32),
            bn_gamma=1.0 + 0.1 * jax.random.normal(k_g, (cout,), jnp.float32),
            bn_beta=0.1 * jax.random.normal(k_be, (cout,), jnp.float32),
            bn_mean=0.1 * jax.random.normal(k_m, (cout,), jnp.float32),
            bn_var=jnp.ones((cout,), jnp.float32),
        ))
    h, w = in_hw
    flat = 512 * (h // 8) * (w // 8)   # module uses 512*15*20 for a 120x160 input
    key, k1, k2, k3, k4 = jax.random.split(key, 5)
    params["fc1_w"] = jax.random.normal(k1, (flat, 500), jnp.float32) / jnp.sqrt(float(flat))
    params["fc1_b"] = 0.01 * jax.random.normal(k2, (500,), jnp.float32)
    params["fc2_w"] = jax.random.normal(k3, (500, 3), jnp.float32) / jnp.sqrt(500.0)
    params["fc2_b"] = 0.01 * jax.random.normal(k4, (3,), jnp.float32)
    return params


# ----------------------------------------------------------------------------
# Forward pass mirroring CNN.forward  (returns (output, flattened_features)).
# ----------------------------------------------------------------------------
def cnn_forward(params, x_nchw):
    x = jnp.transpose(x_nchw.astype(jnp.float32), (0, 2, 3, 1))  # NCHW -> NHWC
    for i, layer in enumerate(params["conv"]):
        x = conv_bn_relu(x, **layer)
        if i < 3:                      # conv1/conv2/conv3 have MaxPool2d(2)
            x = maxpool2(x)
    n = x.shape[0]
    # PyTorch flattens the NCHW tensor: match (C, H, W) ordering exactly.
    feat = jnp.transpose(x, (0, 3, 1, 2)).reshape(n, -1)

    # Linear layers: no scale operand (skip the pointless multiply).
    h = matmul_affine(feat, params["fc1_w"], params["fc1_b"], apply_relu=False)
    # Dropout(0.7) -> identity in eval mode
    out = matmul_affine(h, params["fc2_w"], params["fc2_b"], apply_relu=False)
    return out, feat


if __name__ == "__main__":
    key = jax.random.PRNGKey(0)
    key, k_x = jax.random.split(key)

    # Small input consistent with the module: NCHW, 1 channel, spatial divisible by 8.
    B, C, H, W = 2, 1, 24, 32
    x = jax.random.normal(k_x, (B, C, H, W), jnp.float32)

    params = init_params(key, (H, W))
    fwd = jax.jit(cnn_forward)

    output, feat = fwd(params, x)
    jax.block_until_ready((output, feat))

    assert output.shape == (B, 3)
    assert feat.shape == (B, 512 * (H // 8) * (W // 8))
    assert bool(jnp.all(jnp.isfinite(output)))
    print("KERNEL_OK")
</pallas_src>

<mosaic_0001>
module attributes {stable_mosaic.version = 11 : i64} {
  func.func @_matmul_affine_kernel(%arg0: i32, %arg1: i32, %arg2: i32, %arg3: memref<256x128xbf16, #tpu.memory_space<vmem>>, %arg4: memref<128x128xbf16, #tpu.memory_space<vmem>>, %arg5: memref<1x128xf32, #tpu.memory_space<vmem>>, %arg6: memref<1x128xf32, #tpu.memory_space<vmem>>, %arg7: memref<256x128xf32, #tpu.memory_space<vmem>>, %arg8: memref<256x128xf32, #tpu.memory_space<vmem>>) attributes {dimension_semantics = [#tpu.dimension_semantics<parallel>, #tpu.dimension_semantics<parallel>, #tpu.dimension_semantics<arbitrary>], iteration_bounds = array<i64: 6, 1, 1>, scalar_prefetch = 0 : i64, scratch_operands = 1 : i64, tpu.core_type = #tpu.core_type<tc>, window_params = [{transform_indices = @transform_0, window_bounds = array<i64: 256, 128>}, {transform_indices = @transform_1, window_bounds = array<i64: 128, 128>}, {transform_indices = @transform_2, window_bounds = array<i64: 1, 128>}, {transform_indices = @transform_3, window_bounds = array<i64: 1, 128>}, {transform_indices = @transform_4, window_bounds = array<i64: 256, 128>}]} {
    %c0_i32 = arith.constant 0 : i32
    %0 = arith.cmpi eq, %arg2, %c0_i32 : i32
    %1 = arith.extui %0 : i1 to i32
    %c0_i32_0 = arith.constant 0 : i32
    %2 = arith.cmpi ne, %1, %c0_i32_0 : i32
    scf.if %2 {
      %cst_10 = arith.constant 0.000000e+00 : f32
      %12 = vector.broadcast %cst_10 : f32 to vector<256x128xf32>
      %c0_11 = arith.constant 0 : index
      %c0_12 = arith.constant 0 : index
      %13 = vector.load %arg8[%c0_11, %c0_12] : memref<256x128xf32, #tpu.memory_space<vmem>>, vector<256x128xf32>
      tpu.vector_store %arg8[%c0_11, %c0_12], %12 {strides = array<i32>} : memref<256x128xf32, #tpu.memory_space<vmem>>, vector<256x128xf32>,
    } else {
    }
    %c0 = arith.constant 0 : index
    %c0_1 = arith.constant 0 : index
    %3 = vector.load %arg8[%c0, %c0_1] : memref<256x128xf32, #tpu.memory_space<vmem>>, vector<256x128xf32>
    %c0_2 = arith.constant 0 : index
    %c0_3 = arith.constant 0 : index
    %4 = vector.load %arg3[%c0_2, %c0_3] : memref<256x128xbf16, #tpu.memory_space<vmem>>, vector<256x128xbf16>
    %c0_4 = arith.constant 0 : index
    %c0_5 = arith.constant 0 : index
    %5 = vector.load %arg4[%c0_4, %c0_5] : memref<128x128xbf16, #tpu.memory_space<vmem>>, vector<128x128xbf16>
    %cst = arith.constant dense<0.000000e+00> : vector<256x128xf32>
    %6 = tpu.matmul %4, %5, %cst {dimension_numbers = #tpu.dot_dimension_numbers<[1], [0], [0], [1], [0, 0, 1, 1], [], []>} : vector<256x128xbf16>, vector<128x128xbf16>, vector<256x128xf32> -> vector<256x128xf32>
    %7 = arith.addf %3, %6 : vector<256x128xf32>
    %c0_6 = arith.constant 0 : index
    %c0_7 = arith.constant 0 : index
    %8 = vector.load %arg8[%c0_6, %c0_7] : memref<256x128xf32, #tpu.memory_space<vmem>>, vector<256x128xf32>
    tpu.vector_store %arg8[%c0_6, %c0_7], %7 {strides = array<i32>} : memref<256x128xf32, #tpu.memory_space<vmem>>, vector<256x128xf32>,
    %c0_i32_8 = arith.constant 0 : i32
    %9 = arith.cmpi eq, %arg2, %c0_i32_8 : i32
    %10 = arith.extui %9 : i1 to i32
    %c0_i32_9 = arith.constant 0 : i32
    %11 = arith.cmpi ne, %10, %c0_i32_9 : i32
    scf.if %11 {
      %c0_10 = arith.constant 0 : index
      %c0_11 = arith.constant 0 : index
      %12 = vector.load %arg8[%c0_10, %c0_11] : memref<256x128xf32, #tpu.memory_space<vmem>>, vector<256x128xf32>
      %c0_12 = arith.constant 0 : index
      %c0_13 = arith.constant 0 : index
      %13 = vector.load %arg5[%c0_12, %c0_13] : memref<1x128xf32, #tpu.memory_space<vmem>>, vector<1x128xf32>
      %14 = vector.broadcast %13 : vector<1x128xf32> to vector<256x128xf32>
      %15 = arith.mulf %12, %14 : vector<256x128xf32>
      %c0_14 = arith.constant 0 : index
      %c0_15 = arith.constant 0 : index
      %16 = vector.load %arg6[%c0_14, %c0_15] : memref<1x128xf32, #tpu.memory_space<vmem>>, vector<1x128xf32>
      %17 = vector.broadcast %16 : vector<1x128xf32> to vector<256x128xf32>
      %18 = arith.addf %15, %17 : vector<256x128xf32>
      %cst_16 = arith.constant 0.000000e+00 : f32
      %19 = vector.broadcast %cst_16 : f32 to vector<256x128xf32>
      %20 = arith.maximumf %18, %19 : vector<256x128xf32>
      %c0_17 = arith.constant 0 : index
      %c0_18 = arith.constant 0 : index
      %21 = vector.load %arg7[%c0_17, %c0_18] : memref<256x128xf32, #tpu.memory_space<vmem>>, vector<256x128xf32>
      tpu.vector_store %arg7[%c0_17, %c0_18], %20 {strides = array<i32>} : memref<256x128xf32, #tpu.memory_space<vmem>>, vector<256x128xf32>,
    } else {
    }
    return
  }
  func.func @transform_0(%arg0: i32, %arg1: i32, %arg2: i32) -> (i32, i32) {
    %c0_i32 = arith.constant 0 : i32
    return %arg0, %arg2 : i32, i32
  }
  func.func @transform_1(%arg0: i32, %arg1: i32, %arg2: i32) -> (i32, i32) {
    %c0_i32 = arith.constant 0 : i32
    return %arg2, %arg1 : i32, i32
  }
  func.func @transform_2(%arg0: i32, %arg1: i32, %arg2: i32) -> (i32, i32) {
    %c0_i32 = arith.constant 0 : i32
    %c0_i32_0 = arith.constant 0 : i32
    return %c0_i32, %arg1 : i32, i32
  }
  func.func @transform_3(%arg0: i32, %arg1: i32, %arg2: i32) -> (i32, i32) {
    %c0_i32 = arith.constant 0 : i32
    %c0_i32_0 = arith.constant 0 : i32
    return %c0_i32, %arg1 : i32, i32
  }
  func.func @transform_4(%arg0: i32, %arg1: i32, %arg2: i32) -> (i32, i32) {
    %c0_i32 = arith.constant 0 : i32
    return %arg0, %arg1 : i32, i32
  }
}

module attributes {stable_mosaic.version = 11 : i64} {
  func.func @_matmul_affine_kernel(%arg0: i32, %arg1: i32, %arg2: i32, %arg3: memref<256x512xbf16, #tpu.memory_space<vmem>>, %arg4: memref<512x128xbf16, #tpu.memory_space<vmem>>, %arg5: memref<1x128xf32, #tpu.memory_space<vmem>>, %arg6: memref<1x128xf32, #tpu.memory_space<vmem>>, %arg7: memref<256x128xf32, #tpu.memory_space<vmem>>, %arg8: memref<256x128xf32, #tpu.memory_space<vmem>>) attributes {dimension_semantics = [#tpu.dimension_semantics<parallel>, #tpu.dimension_semantics<parallel>, #tpu.dimension_semantics<arbitrary>], iteration_bounds = array<i64: 2, 1, 1>, scalar_prefetch = 0 : i64, scratch_operands = 1 : i64, tpu.core_type = #tpu.core_type<tc>, window_params = [{transform_indices = @transform_0, window_bounds = array<i64: 256, 512>}, {transform_indices = @transform_1, window_bounds = array<i64: 512, 128>}, {transform_indices = @transform_2, window_bounds = array<i64: 1, 128>}, {transform_indices = @transform_3, window_bounds = array<i64: 1, 128>}, {transform_indices = @transform_4, window_bounds = array<i64: 256, 128>}]} {
    %c0_i32 = arith.constant 0 : i32
    %0 = arith.cmpi eq, %arg2, %c0_i32 : i32
    %1 = arith.extui %0 : i1 to i32
    %c0_i32_0 = arith.constant 0 : i32
    %2 = arith.cmpi ne, %1, %c0_i32_0 : i32
    scf.if %2 {
      %cst_10 = arith.constant 0.000000e+00 : f32
      %12 = vector.broadcast %cst_10 : f32 to vector<256x128xf32>
      %c0_11 = arith.constant 0 : index
      %c0_12 = arith.constant 0 : index
      %13 = vector.load %arg8[%c0_11, %c0_12] : memref<256x128xf32, #tpu.memory_space<vmem>>, vector<256x128xf32>
      tpu.vector_store %arg8[%c0_11, %c0_12], %12 {strides = array<i32>} : memref<256x128xf32, #tpu.memory_space<vmem>>, vector<256x128xf32>,
    } else {
    }
    %c0 = arith.constant 0 : index
    %c0_1 = arith.constant 0 : index
    %3 = vector.load %arg8[%c0, %c0_1] : memref<256x128xf32, #tpu.memory_space<vmem>>, vector<256x128xf32>
    %c0_2 = arith.constant 0 : index
    %c0_3 = arith.constant 0 : index
    %4 = vector.load %arg3[%c0_2, %c0_3] : memref<256x512xbf16, #tpu.memory_space<vmem>>, vector<256x512xbf16>
    %c0_4 = arith.constant 0 : index
    %c0_5 = arith.constant 0 : index
    %5 = vector.load %arg4[%c0_4, %c0_5] : memref<512x128xbf16, #tpu.memory_space<vmem>>, vector<512x128xbf16>
    %cst = arith.constant dense<0.000000e+00> : vector<256x128xf32>
    %6 = tpu.matmul %4, %5, %cst {dimension_numbers = #tpu.dot_dimension_numbers<[1], [0], [0], [1], [0, 0, 1, 1], [], []>} : vector<256x512xbf16>, vector<512x128xbf16>, vector<256x128xf32> -> vector<256x128xf32>
    %7 = arith.addf %3, %6 : vector<256x128xf32>
    %c0_6 = arith.constant 0 : index
    %c0_7 = arith.constant 0 : index
    %8 = vector.load %arg8[%c0_6, %c0_7] : memref<256x128xf32, #tpu.memory_space<vmem>>, vector<256x128xf32>
    tpu.vector_store %arg8[%c0_6, %c0_7], %7 {strides = array<i32>} : memref<256x128xf32, #tpu.memory_space<vmem>>, vector<256x128xf32>,
    %c0_i32_8 = arith.constant 0 : i32
    %9 = arith.cmpi eq, %arg2, %c0_i32_8 : i32
    %10 = arith.extui %9 : i1 to i32
    %c0_i32_9 = arith.constant 0 : i32
    %11 = arith.cmpi ne, %10, %c0_i32_9 : i32
    scf.if %11 {
      %c0_10 = arith.constant 0 : index
      %c0_11 = arith.constant 0 : index
      %12 = vector.load %arg8[%c0_10, %c0_11] : memref<256x128xf32, #tpu.memory_space<vmem>>, vector<256x128xf32>
      %c0_12 = arith.constant 0 : index
      %c0_13 = arith.constant 0 : index
      %13 = vector.load %arg5[%c0_12, %c0_13] : memref<1x128xf32, #tpu.memory_space<vmem>>, vector<1x128xf32>
      %14 = vector.broadcast %13 : vector<1x128xf32> to vector<256x128xf32>
      %15 = arith.mulf %12, %14 : vector<256x128xf32>
      %c0_14 = arith.constant 0 : index
      %c0_15 = arith.constant 0 : index
      %16 = vector.load %arg6[%c0_14, %c0_15] : memref<1x128xf32, #tpu.memory_space<vmem>>, vector<1x128xf32>
      %17 = vector.broadcast %16 : vector<1x128xf32> to vector<256x128xf32>
      %18 = arith.addf %15, %17 : vector<256x128xf32>
      %cst_16 = arith.constant 0.000000e+00 : f32
      %19 = vector.broadcast %cst_16 : f32 to vector<256x128xf32>
      %20 = arith.maximumf %18, %19 : vector<256x128xf32>
      %c0_17 = arith.constant 0 : index
      %c0_18 = arith.constant 0 : index
      %21 = vector.load %arg7[%c0_17, %c0_18] : memref<256x128xf32, #tpu.memory_space<vmem>>, vector<256x128xf32>
      tpu.vector_store %arg7[%c0_17, %c0_18], %20 {strides = array<i32>} : memref<256x128xf32, #tpu.memory_space<vmem>>, vector<256x128xf32>,
    } else {
    }
    return
  }
  func.func @transform_0(%arg0: i32, %arg1: i32, %arg2: i32) -> (i32, i32) {
    %c0_i32 = arith.constant 0 : i32
    return %arg0, %arg2 : i32, i32
  }
  func.func @transform_1(%arg0: i32, %arg1: i32, %arg2: i32) -> (i32, i32) {
    %c0_i32 = arith.constant 0 : i32
    return %arg2, %arg1 : i32, i32
  }
  func.func @transform_2(%arg0: i32, %arg1: i32, %arg2: i32) -> (i32, i32) {
    %c0_i32 = arith.constant 0 : i32
    %c0_i32_0 = arith.constant 0 : i32
    return %c0_i32, %arg1 : i32, i32
  }
  func.func @transform_3(%arg0: i32, %arg1: i32, %arg2: i32) -> (i32, i32) {
    %c0_i32 = arith.constant 0 : i32
    %c0_i32_0 = arith.constant 0 : i32
    return %c0_i32, %arg1 : i32, i32
  }
  func.func @transform_4(%arg0: i32, %arg1: i32, %arg2: i32) -> (i32, i32) {
    %c0_i32 = arith.constant 0 : i32
    return %arg0, %arg1 : i32, i32
  }
}

module attributes {stable_mosaic.version = 11 : i64} {
  func.func @_matmul_affine_kernel(%arg0: i32, %arg1: i32, %arg2: i32, %arg3: memref<96x128xbf16, #tpu.memory_space<vmem>>, %arg4: memref<128x128xbf16, #tpu.memory_space<vmem>>, %arg5: memref<1x128xf32, #tpu.memory_space<vmem>>, %arg6: memref<1x128xf32, #tpu.memory_space<vmem>>, %arg7: memref<96x128xf32, #tpu.memory_space<vmem>>, %arg8: memref<96x128xf32, #tpu.memory_space<vmem>>) attributes {dimension_semantics = [#tpu.dimension_semantics<parallel>, #tpu.dimension_semantics<parallel>, #tpu.dimension_semantics<arbitrary>], iteration_bounds = array<i64: 1, 1, 7>, scalar_prefetch = 0 : i64, scratch_operands = 1 : i64, tpu.core_type = #tpu.core_type<tc>, window_params = [{transform_indices = @transform_0, window_bounds = array<i64: 96, 128>}, {transform_indices = @transform_1, window_bounds = array<i64: 128, 128>}, {transform_indices = @transform_2, window_bounds = array<i64: 1, 128>}, {transform_indices = @transform_3, window_bounds = array<i64: 1, 128>}, {transform_indices = @transform_4, window_bounds = array<i64: 96, 128>}]} {
    %c0_i32 = arith.constant 0 : i32
    %0 = arith.cmpi eq, %arg2, %c0_i32 : i32
    %1 = arith.extui %0 : i1 to i32
    %c0_i32_0 = arith.constant 0 : i32
    %2 = arith.cmpi ne, %1, %c0_i32_0 : i32
    scf.if %2 {
      %cst_9 = arith.constant 0.000000e+00 : f32
      %12 = vector.broadcast %cst_9 : f32 to vector<96x128xf32>
      %c0_10 = arith.constant 0 : index
      %c0_11 = arith.constant 0 : index
      %13 = vector.load %arg8[%c0_10, %c0_11] : memref<96x128xf32, #tpu.memory_space<vmem>>, vector<96x128xf32>
      tpu.vector_store %arg8[%c0_10, %c0_11], %12 {strides = array<i32>} : memref<96x128xf32, #tpu.memory_space<vmem>>, vector<96x128xf32>,
    } else {
    }
    %c0 = arith.constant 0 : index
    %c0_1 = arith.constant 0 : index
    %3 = vector.load %arg8[%c0, %c0_1] : memref<96x128xf32, #tpu.memory_space<vmem>>, vector<96x128xf32>
    %c0_2 = arith.constant 0 : index
    %c0_3 = arith.constant 0 : index
    %4 = vector.load %arg3[%c0_2, %c0_3] : memref<96x128xbf16, #tpu.memory_space<vmem>>, vector<96x128xbf16>
    %c0_4 = arith.constant 0 : index
    %c0_5 = arith.constant 0 : index
    %5 = vector.load %arg4[%c0_4, %c0_5] : memref<128x128xbf16, #tpu.memory_space<vmem>>, vector<128x128xbf16>
    %cst = arith.constant dense<0.000000e+00> : vector<96x128xf32>
    %6 = tpu.matmul %4, %5, %cst {dimension_numbers = #tpu.dot_dimension_numbers<[1], [0], [0], [1], [0, 0, 1, 1], [], []>} : vector<96x128xbf16>, vector<128x128xbf16>, vector<96x128xf32> -> vector<96x128xf32>
    %7 = arith.addf %3, %6 : vector<96x128xf32>
    %c0_6 = arith.constant 0 : index
    %c0_7 = arith.constant 0 : index
    %8 = vector.load %arg8[%c0_6, %c0_7] : memref<96x128xf32, #tpu.memory_space<vmem>>, vector<96x128xf32>
    tpu.vector_store %arg8[%c0_6, %c0_7], %7 {strides = array<i32>} : memref<96x128xf32, #tpu.memory_space<vmem>>, vector<96x128xf32>,
    %c6_i32 = arith.constant 6 : i32
    %9 = arith.cmpi eq, %arg2, %c6_i32 : i32
    %10 = arith.extui %9 : i1 to i32
    %c0_i32_8 = arith.constant 0 : i32
    %11 = arith.cmpi ne, %10, %c0_i32_8 : i32
    scf.if %11 {
      %c0_9 = arith.constant 0 : index
      %c0_10 = arith.constant 0 : index
      %12 = vector.load %arg8[%c0_9, %c0_10] : memref<96x128xf32, #tpu.memory_space<vmem>>, vector<96x128xf32>
      %c0_11 = arith.constant 0 : index
      %c0_12 = arith.constant 0 : index
      %13 = vector.load %arg5[%c0_11, %c0_12] : memref<1x128xf32, #tpu.memory_space<vmem>>, vector<1x128xf32>
      %14 = vector.broadcast %13 : vector<1x128xf32> to vector<96x128xf32>
      %15 = arith.mulf %12, %14 : vector<96x128xf32>
      %c0_13 = arith.constant 0 : index
      %c0_14 = arith.constant 0 : index
      %16 = vector.load %arg6[%c0_13, %c0_14] : memref<1x128xf32, #tpu.memory_space<vmem>>, vector<1x128xf32>
      %17 = vector.broadcast %16 : vector<1x128xf32> to vector<96x128xf32>
      %18 = arith.addf %15, %17 : vector<96x128xf32>
      %cst_15 = arith.constant 0.000000e+00 : f32
      %19 = vector.broadcast %cst_15 : f32 to vector<96x128xf32>
      %20 = arith.maximumf %18, %19 : vector<96x128xf32>
      %c0_16 = arith.constant 0 : index
      %c0_17 = arith.constant 0 : index
      %21 = vector.load %arg7[%c0_16, %c0_17] : memref<96x128xf32, #tpu.memory_space<vmem>>, vector<96x128xf32>
      tpu.vector_store %arg7[%c0_16, %c0_17], %20 {strides = array<i32>} : memref<96x128xf32, #tpu.memory_space<vmem>>, vector<96x128xf32>,
    } else {
    }
    return
  }
  func.func @transform_0(%arg0: i32, %arg1: i32, %arg2: i32) -> (i32, i32) {
    %c0_i32 = arith.constant 0 : i32
    return %arg0, %arg2 : i32, i32
  }
  func.func @transform_1(%arg0: i32, %arg1: i32, %arg2: i32) -> (i32, i32) {
    %c0_i32 = arith.constant 0 : i32
    return %arg2, %arg1 : i32, i32
  }
  func.func @transform_2(%arg0: i32, %arg1: i32, %arg2: i32) -> (i32, i32) {
    %c0_i32 = arith.constant 0 : i32
    %c0_i32_0 = arith.constant 0 : i32
    return %c0_i32, %arg1 : i32, i32
  }
  func.func @transform_3(%arg0: i32, %arg1: i32, %arg2: i32) -> (i32, i32) {
    %c0_i32 = arith.constant 0 : i32
    %c0_i32_0 = arith.constant 0 : i32
    return %c0_i32, %arg1 : i32, i32
  }
  func.func @transform_4(%arg0: i32, %arg1: i32, %arg2: i32) -> (i32, i32) {
    %c0_i32 = arith.constant 0 : i32
    return %arg0, %arg1 : i32, i32
  }
}

module attributes {stable_mosaic.version = 11 : i64} {
  func.func @_matmul_affine_kernel(%arg0: i32, %arg1: i32, %arg2: i32, %arg3: memref<32x128xbf16, #tpu.memory_space<vmem>>, %arg4: memref<128x128xbf16, #tpu.memory_space<vmem>>, %arg5: memref<1x128xf32, #tpu.memory_space<vmem>>, %arg6: memref<1x128xf32, #tpu.memory_space<vmem>>, %arg7: memref<32x128xf32, #tpu.memory_space<vmem>>, %arg8: memref<32x128xf32, #tpu.memory_space<vmem>>) attributes {dimension_semantics = [#tpu.dimension_semantics<parallel>, #tpu.dimension_semantics<parallel>, #tpu.dimension_semantics<arbitrary>], iteration_bounds = array<i64: 1, 1, 13>, scalar_prefetch = 0 : i64, scratch_operands = 1 : i64, tpu.core_type = #tpu.core_type<tc>, window_params = [{transform_indices = @transform_0, window_bounds = array<i64: 32, 128>}, {transform_indices = @transform_1, window_bounds = array<i64: 128, 128>}, {transform_indices = @transform_2, window_bounds = array<i64: 1, 128>}, {transform_indices = @transform_3, window_bounds = array<i64: 1, 128>}, {transform_indices = @transform_4, window_bounds = array<i64: 32, 128>}]} {
    %c0_i32 = arith.constant 0 : i32
    %0 = arith.cmpi eq, %arg2, %c0_i32 : i32
    %1 = arith.extui %0 : i1 to i32
    %c0_i32_0 = arith.constant 0 : i32
    %2 = arith.cmpi ne, %1, %c0_i32_0 : i32
    scf.if %2 {
      %cst_9 = arith.constant 0.000000e+00 : f32
      %12 = vector.broadcast %cst_9 : f32 to vector<32x128xf32>
      %c0_10 = arith.constant 0 : index
      %c0_11 = arith.constant 0 : index
      %13 = vector.load %arg8[%c0_10, %c0_11] : memref<32x128xf32, #tpu.memory_space<vmem>>, vector<32x128xf32>
      tpu.vector_store %arg8[%c0_10, %c0_11], %12 {strides = array<i32>} : memref<32x128xf32, #tpu.memory_space<vmem>>, vector<32x128xf32>,
    } else {
    }
    %c0 = arith.constant 0 : index
    %c0_1 = arith.constant 0 : index
    %3 = vector.load %arg8[%c0, %c0_1] : memref<32x128xf32, #tpu.memory_space<vmem>>, vector<32x128xf32>
    %c0_2 = arith.constant 0 : index
    %c0_3 = arith.constant 0 : index
    %4 = vector.load %arg3[%c0_2, %c0_3] : memref<32x128xbf16, #tpu.memory_space<vmem>>, vector<32x128xbf16>
    %c0_4 = arith.constant 0 : index
    %c0_5 = arith.constant 0 : index
    %5 = vector.load %arg4[%c0_4, %c0_5] : memref<128x128xbf16, #tpu.memory_space<vmem>>, vector<128x128xbf16>
    %cst = arith.constant dense<0.000000e+00> : vector<32x128xf32>
    %6 = tpu.matmul %4, %5, %cst {dimension_numbers = #tpu.dot_dimension_numbers<[1], [0], [0], [1], [0, 0, 1, 1], [], []>} : vector<32x128xbf16>, vector<128x128xbf16>, vector<32x128xf32> -> vector<32x128xf32>
    %7 = arith.addf %3, %6 : vector<32x128xf32>
    %c0_6 = arith.constant 0 : index
    %c0_7 = arith.constant 0 : index
    %8 = vector.load %arg8[%c0_6, %c0_7] : memref<32x128xf32, #tpu.memory_space<vmem>>, vector<32x128xf32>
    tpu.vector_store %arg8[%c0_6, %c0_7], %7 {strides = array<i32>} : memref<32x128xf32, #tpu.memory_space<vmem>>, vector<32x128xf32>,
    %c12_i32 = arith.constant 12 : i32
    %9 = arith.cmpi eq, %arg2, %c12_i32 : i32
    %10 = arith.extui %9 : i1 to i32
    %c0_i32_8 = arith.constant 0 : i32
    %11 = arith.cmpi ne, %10, %c0_i32_8 : i32
    scf.if %11 {
      %c0_9 = arith.constant 0 : index
      %c0_10 = arith.constant 0 : index
      %12 = vector.load %arg8[%c0_9, %c0_10] : memref<32x128xf32, #tpu.memory_space<vmem>>, vector<32x128xf32>
      %c0_11 = arith.constant 0 : index
      %c0_12 = arith.constant 0 : index
      %13 = vector.load %arg5[%c0_11, %c0_12] : memref<1x128xf32, #tpu.memory_space<vmem>>, vector<1x128xf32>
      %14 = vector.broadcast %13 : vector<1x128xf32> to vector<32x128xf32>
      %15 = arith.mulf %12, %14 : vector<32x128xf32>
      %c0_13 = arith.constant 0 : index
      %c0_14 = arith.constant 0 : index
      %16 = vector.load %arg6[%c0_13, %c0_14] : memref<1x128xf32, #tpu.memory_space<vmem>>, vector<1x128xf32>
      %17 = vector.broadcast %16 : vector<1x128xf32> to vector<32x128xf32>
      %18 = arith.addf %15, %17 : vector<32x128xf32>
      %cst_15 = arith.constant 0.000000e+00 : f32
      %19 = vector.broadcast %cst_15 : f32 to vector<32x128xf32>
      %20 = arith.maximumf %18, %19 : vector<32x128xf32>
      %c0_16 = arith.constant 0 : index
      %c0_17 = arith.constant 0 : index
      %21 = vector.load %arg7[%c0_16, %c0_17] : memref<32x128xf32, #tpu.memory_space<vmem>>, vector<32x128xf32>
      tpu.vector_store %arg7[%c0_16, %c0_17], %20 {strides = array<i32>} : memref<32x128xf32, #tpu.memory_space<vmem>>, vector<32x128xf32>,
    } else {
    }
    return
  }
  func.func @transform_0(%arg0: i32, %arg1: i32, %arg2: i32) -> (i32, i32) {
    %c0_i32 = arith.constant 0 : i32
    return %arg0, %arg2 : i32, i32
  }
  func.func @transform_1(%arg0: i32, %arg1: i32, %arg2: i32) -> (i32, i32) {
    %c0_i32 = arith.constant 0 : i32
    return %arg2, %arg1 : i32, i32
  }
  func.func @transform_2(%arg0: i32, %arg1: i32, %arg2: i32) -> (i32, i32) {
    %c0_i32 = arith.constant 0 : i32
    %c0_i32_0 = arith.constant 0 : i32
    return %c0_i32, %arg1 : i32, i32
  }
  func.func @transform_3(%arg0: i32, %arg1: i32, %arg2: i32) -> (i32, i32) {
    %c0_i32 = arith.constant 0 : i32
    %c0_i32_0 = arith.constant 0 : i32
    return %c0_i32, %arg1 : i32, i32
  }
  func.func @transform_4(%arg0: i32, %arg1: i32, %arg2: i32) -> (i32, i32) {
    %c0_i32 = arith.constant 0 : i32
    return %arg0, %arg1 : i32, i32
  }
}

module attributes {stable_mosaic.version = 11 : i64} {
  func.func @_matmul_affine_kernel(%arg0: i32, %arg1: i32, %arg2: i32, %arg3: memref<32x128xbf16, #tpu.memory_space<vmem>>, %arg4: memref<128x256xbf16, #tpu.memory_space<vmem>>, %arg5: memref<1x256xf32, #tpu.memory_space<vmem>>, %arg6: memref<1x256xf32, #tpu.memory_space<vmem>>, %arg7: memref<32x256xf32, #tpu.memory_space<vmem>>, %arg8: memref<32x256xf32, #tpu.memory_space<vmem>>) attributes {dimension_semantics = [#tpu.dimension_semantics<parallel>, #tpu.dimension_semantics<parallel>, #tpu.dimension_semantics<arbitrary>], iteration_bounds = array<i64: 1, 1, 25>, scalar_prefetch = 0 : i64, scratch_operands = 1 : i64, tpu.core_type = #tpu.core_type<tc>, window_params = [{transform_indices = @transform_0, window_bounds = array<i64: 32, 128>}, {transform_indices = @transform_1, window_bounds = array<i64: 128, 256>}, {transform_indices = @transform_2, window_bounds = array<i64: 1, 256>}, {transform_indices = @transform_3, window_bounds = array<i64: 1, 256>}, {transform_indices = @transform_4, window_bounds = array<i64: 32, 256>}]} {
    %c0_i32 = arith.constant 0 : i32
    %0 = arith.cmpi eq, %arg2, %c0_i32 : i32
    %1 = arith.extui %0 : i1 to i32
    %c0_i32_0 = arith.constant 0 : i32
    %2 = arith.cmpi ne, %1, %c0_i32_0 : i32
    scf.if %2 {
      %cst_9 = arith.constant 0.000000e+00 : f32
      %12 = vector.broadcast %cst_9 : f32 to vector<32x256xf32>
      %c0_10 = arith.constant 0 : index
      %c0_11 = arith.constant 0 : index
      %13 = vector.load %arg8[%c0_10, %c0_11] : memref<32x256xf32, #tpu.memory_space<vmem>>, vector<32x256xf32>
      tpu.vector_store %arg8[%c0_10, %c0_11], %12 {strides = array<i32>} : memref<32x256xf32, #tpu.memory_space<vmem>>, vector<32x256xf32>,
    } else {
    }
    %c0 = arith.constant 0 : index
    %c0_1 = arith.constant 0 : index
    %3 = vector.load %arg8[%c0, %c0_1] : memref<32x256xf32, #tpu.memory_space<vmem>>, vector<32x256xf32>
    %c0_2 = arith.constant 0 : index
    %c0_3 = arith.constant 0 : index
    %4 = vector.load %arg3[%c0_2, %c0_3] : memref<32x128xbf16, #tpu.memory_space<vmem>>, vector<32x128xbf16>
    %c0_4 = arith.constant 0 : index
    %c0_5 = arith.constant 0 : index
    %5 = vector.load %arg4[%c0_4, %c0_5] : memref<128x256xbf16, #tpu.memory_space<vmem>>, vector<128x256xbf16>
    %cst = arith.constant dense<0.000000e+00> : vector<32x256xf32>
    %6 = tpu.matmul %4, %5, %cst {dimension_numbers = #tpu.dot_dimension_numbers<[1], [0], [0], [1], [0, 0, 1, 1], [], []>} : vector<32x128xbf16>, vector<128x256xbf16>, vector<32x256xf32> -> vector<32x256xf32>
    %7 = arith.addf %3, %6 : vector<32x256xf32>
    %c0_6 = arith.constant 0 : index
    %c0_7 = arith.constant 0 : index
    %8 = vector.load %arg8[%c0_6, %c0_7] : memref<32x256xf32, #tpu.memory_space<vmem>>, vector<32x256xf32>
    tpu.vector_store %arg8[%c0_6, %c0_7], %7 {strides = array<i32>} : memref<32x256xf32, #tpu.memory_space<vmem>>, vector<32x256xf32>,
    %c24_i32 = arith.constant 24 : i32
    %9 = arith.cmpi eq, %arg2, %c24_i32 : i32
    %10 = arith.extui %9 : i1 to i32
    %c0_i32_8 = arith.constant 0 : i32
    %11 = arith.cmpi ne, %10, %c0_i32_8 : i32
    scf.if %11 {
      %c0_9 = arith.constant 0 : index
      %c0_10 = arith.constant 0 : index
      %12 = vector.load %arg8[%c0_9, %c0_10] : memref<32x256xf32, #tpu.memory_space<vmem>>, vector<32x256xf32>
      %c0_11 = arith.constant 0 : index
      %c0_12 = arith.constant 0 : index
      %13 = vector.load %arg5[%c0_11, %c0_12] : memref<1x256xf32, #tpu.memory_space<vmem>>, vector<1x256xf32>
      %14 = vector.broadcast %13 : vector<1x256xf32> to vector<32x256xf32>
      %15 = arith.mulf %12, %14 : vector<32x256xf32>
      %c0_13 = arith.constant 0 : index
      %c0_14 = arith.constant 0 : index
      %16 = vector.load %arg6[%c0_13, %c0_14] : memref<1x256xf32, #tpu.memory_space<vmem>>, vector<1x256xf32>
      %17 = vector.broadcast %16 : vector<1x256xf32> to vector<32x256xf32>
      %18 = arith.addf %15, %17 : vector<32x256xf32>
      %cst_15 = arith.constant 0.000000e+00 : f32
      %19 = vector.broadcast %cst_15 : f32 to vector<32x256xf32>
      %20 = arith.maximumf %18, %19 : vector<32x256xf32>
      %c0_16 = arith.constant 0 : index
      %c0_17 = arith.constant 0 : index
      %21 = vector.load %arg7[%c0_16, %c0_17] : memref<32x256xf32, #tpu.memory_space<vmem>>, vector<32x256xf32>
      tpu.vector_store %arg7[%c0_16, %c0_17], %20 {strides = array<i32>} : memref<32x256xf32, #tpu.memory_space<vmem>>, vector<32x256xf32>,
    } else {
    }
    return
  }
  func.func @transform_0(%arg0: i32, %arg1: i32, %arg2: i32) -> (i32, i32) {
    %c0_i32 = arith.constant 0 : i32
    return %arg0, %arg2 : i32, i32
  }
  func.func @transform_1(%arg0: i32, %arg1: i32, %arg2: i32) -> (i32, i32) {
    %c0_i32 = arith.constant 0 : i32
    return %arg2, %arg1 : i32, i32
  }
  func.func @transform_2(%arg0: i32, %arg1: i32, %arg2: i32) -> (i32, i32) {
    %c0_i32 = arith.constant 0 : i32
    %c0_i32_0 = arith.constant 0 : i32
    return %c0_i32, %arg1 : i32, i32
  }
  func.func @transform_3(%arg0: i32, %arg1: i32, %arg2: i32) -> (i32, i32) {
    %c0_i32 = arith.constant 0 : i32
    %c0_i32_0 = arith.constant 0 : i32
    return %c0_i32, %arg1 : i32, i32
  }
  func.func @transform_4(%arg0: i32, %arg1: i32, %arg2: i32) -> (i32, i32) {
    %c0_i32 = arith.constant 0 : i32
    return %arg0, %arg1 : i32, i32
  }
}

module attributes {stable_mosaic.version = 11 : i64} {
  func.func @_matmul_affine_kernel(%arg0: i32, %arg1: i32, %arg2: i32, %arg3: memref<32x256xbf16, #tpu.memory_space<vmem>>, %arg4: memref<256x256xbf16, #tpu.memory_space<vmem>>, %arg5: memref<1x256xf32, #tpu.memory_space<vmem>>, %arg6: memref<1x256xf32, #tpu.memory_space<vmem>>, %arg7: memref<32x256xf32, #tpu.memory_space<vmem>>, %arg8: memref<32x256xf32, #tpu.memory_space<vmem>>) attributes {dimension_semantics = [#tpu.dimension_semantics<parallel>, #tpu.dimension_semantics<parallel>, #tpu.dimension_semantics<arbitrary>], iteration_bounds = array<i64: 1, 2, 25>, scalar_prefetch = 0 : i64, scratch_operands = 1 : i64, tpu.core_type = #tpu.core_type<tc>, window_params = [{transform_indices = @transform_0, window_bounds = array<i64: 32, 256>}, {transform_indices = @transform_1, window_bounds = array<i64: 256, 256>}, {transform_indices = @transform_2, window_bounds = array<i64: 1, 256>}, {transform_indices = @transform_3, window_bounds = array<i64: 1, 256>}, {transform_indices = @transform_4, window_bounds = array<i64: 32, 256>}]} {
    %c0_i32 = arith.constant 0 : i32
    %0 = arith.cmpi eq, %arg2, %c0_i32 : i32
    %1 = arith.extui %0 : i1 to i32
    %c0_i32_0 = arith.constant 0 : i32
    %2 = arith.cmpi ne, %1, %c0_i32_0 : i32
    scf.if %2 {
      %cst_9 = arith.constant 0.000000e+00 : f32
      %12 = vector.broadcast %cst_9 : f32 to vector<32x256xf32>
      %c0_10 = arith.constant 0 : index
      %c0_11 = arith.constant 0 : index
      %13 = vector.load %arg8[%c0_10, %c0_11] : memref<32x256xf32, #tpu.memory_space<vmem>>, vector<32x256xf32>
      tpu.vector_store %arg8[%c0_10, %c0_11], %12 {strides = array<i32>} : memref<32x256xf32, #tpu.memory_space<vmem>>, vector<32x256xf32>,
    } else {
    }
    %c0 = arith.constant 0 : index
    %c0_1 = arith.constant 0 : index
    %3 = vector.load %arg8[%c0, %c0_1] : memref<32x256xf32, #tpu.memory_space<vmem>>, vector<32x256xf32>
    %c0_2 = arith.constant 0 : index
    %c0_3 = arith.constant 0 : index
    %4 = vector.load %arg3[%c0_2, %c0_3] : memref<32x256xbf16, #tpu.memory_space<vmem>>, vector<32x256xbf16>
    %c0_4 = arith.constant 0 : index
    %c0_5 = arith.constant 0 : index
    %5 = vector.load %arg4[%c0_4, %c0_5] : memref<256x256xbf16, #tpu.memory_space<vmem>>, vector<256x256xbf16>
    %cst = arith.constant dense<0.000000e+00> : vector<32x256xf32>
    %6 = tpu.matmul %4, %5, %cst {dimension_numbers = #tpu.dot_dimension_numbers<[1], [0], [0], [1], [0, 0, 1, 1], [], []>} : vector<32x256xbf16>, vector<256x256xbf16>, vector<32x256xf32> -> vector<32x256xf32>
    %7 = arith.addf %3, %6 : vector<32x256xf32>
    %c0_6 = arith.constant 0 : index
    %c0_7 = arith.constant 0 : index
    %8 = vector.load %arg8[%c0_6, %c0_7] : memref<32x256xf32, #tpu.memory_space<vmem>>, vector<32x256xf32>
    tpu.vector_store %arg8[%c0_6, %c0_7], %7 {strides = array<i32>} : memref<32x256xf32, #tpu.memory_space<vmem>>, vector<32x256xf32>,
    %c24_i32 = arith.constant 24 : i32
    %9 = arith.cmpi eq, %arg2, %c24_i32 : i32
    %10 = arith.extui %9 : i1 to i32
    %c0_i32_8 = arith.constant 0 : i32
    %11 = arith.cmpi ne, %10, %c0_i32_8 : i32
    scf.if %11 {
      %c0_9 = arith.constant 0 : index
      %c0_10 = arith.constant 0 : index
      %12 = vector.load %arg8[%c0_9, %c0_10] : memref<32x256xf32, #tpu.memory_space<vmem>>, vector<32x256xf32>
      %c0_11 = arith.constant 0 : index
      %c0_12 = arith.constant 0 : index
      %13 = vector.load %arg5[%c0_11, %c0_12] : memref<1x256xf32, #tpu.memory_space<vmem>>, vector<1x256xf32>
      %14 = vector.broadcast %13 : vector<1x256xf32> to vector<32x256xf32>
      %15 = arith.mulf %12, %14 : vector<32x256xf32>
      %c0_13 = arith.constant 0 : index
      %c0_14 = arith.constant 0 : index
      %16 = vector.load %arg6[%c0_13, %c0_14] : memref<1x256xf32, #tpu.memory_space<vmem>>, vector<1x256xf32>
      %17 = vector.broadcast %16 : vector<1x256xf32> to vector<32x256xf32>
      %18 = arith.addf %15, %17 : vector<32x256xf32>
      %cst_15 = arith.constant 0.000000e+00 : f32
      %19 = vector.broadcast %cst_15 : f32 to vector<32x256xf32>
      %20 = arith.maximumf %18, %19 : vector<32x256xf32>
      %c0_16 = arith.constant 0 : index
      %c0_17 = arith.constant 0 : index
      %21 = vector.load %arg7[%c0_16, %c0_17] : memref<32x256xf32, #tpu.memory_space<vmem>>, vector<32x256xf32>
      tpu.vector_store %arg7[%c0_16, %c0_17], %20 {strides = array<i32>} : memref<32x256xf32, #tpu.memory_space<vmem>>, vector<32x256xf32>,
    } else {
    }
    return
  }
  func.func @transform_0(%arg0: i32, %arg1: i32, %arg2: i32) -> (i32, i32) {
    %c0_i32 = arith.constant 0 : i32
    return %arg0, %arg2 : i32, i32
  }
  func.func @transform_1(%arg0: i32, %arg1: i32, %arg2: i32) -> (i32, i32) {
    %c0_i32 = arith.constant 0 : i32
    return %arg2, %arg1 : i32, i32
  }
  func.func @transform_2(%arg0: i32, %arg1: i32, %arg2: i32) -> (i32, i32) {
    %c0_i32 = arith.constant 0 : i32
    %c0_i32_0 = arith.constant 0 : i32
    return %c0_i32, %arg1 : i32, i32
  }
  func.func @transform_3(%arg0: i32, %arg1: i32, %arg2: i32) -> (i32, i32) {
    %c0_i32 = arith.constant 0 : i32
    %c0_i32_0 = arith.constant 0 : i32
    return %c0_i32, %arg1 : i32, i32
  }
  func.func @transform_4(%arg0: i32, %arg1: i32, %arg2: i32) -> (i32, i32) {
    %c0_i32 = arith.constant 0 : i32
    return %arg0, %arg1 : i32, i32
  }
}

module attributes {stable_mosaic.version = 11 : i64} {
  func.func @_matmul_affine_kernel(%arg0: i32, %arg1: i32, %arg2: i32, %arg3: memref<16x512xbf16, #tpu.memory_space<vmem>>, %arg4: memref<512x256xbf16, #tpu.memory_space<vmem>>, %arg5: memref<1x256xf32, #tpu.memory_space<vmem>>, %arg6: memref<16x256xf32, #tpu.memory_space<vmem>>, %arg7: memref<16x256xf32, #tpu.memory_space<vmem>>) attributes {dimension_semantics = [#tpu.dimension_semantics<parallel>, #tpu.dimension_semantics<parallel>, #tpu.dimension_semantics<arbitrary>], iteration_bounds = array<i64: 1, 2, 12>, scalar_prefetch = 0 : i64, scratch_operands = 1 : i64, tpu.core_type = #tpu.core_type<tc>, window_params = [{transform_indices = @transform_0, window_bounds = array<i64: 16, 512>}, {transform_indices = @transform_1, window_bounds = array<i64: 512, 256>}, {transform_indices = @transform_2, window_bounds = array<i64: 1, 256>}, {transform_indices = @transform_3, window_bounds = array<i64: 16, 256>}]} {
    %c0_i32 = arith.constant 0 : i32
    %0 = arith.cmpi eq, %arg2, %c0_i32 : i32
    %1 = arith.extui %0 : i1 to i32
    %c0_i32_0 = arith.constant 0 : i32
    %2 = arith.cmpi ne, %1, %c0_i32_0 : i32
    scf.if %2 {
      %cst_9 = arith.constant 0.000000e+00 : f32
      %12 = vector.broadcast %cst_9 : f32 to vector<16x256xf32>
      %c0_10 = arith.constant 0 : index
      %c0_11 = arith.constant 0 : index
      %13 = vector.load %arg7[%c0_10, %c0_11] : memref<16x256xf32, #tpu.memory_space<vmem>>, vector<16x256xf32>
      tpu.vector_store %arg7[%c0_10, %c0_11], %12 {strides = array<i32>} : memref<16x256xf32, #tpu.memory_space<vmem>>, vector<16x256xf32>,
    } else {
    }
    %c0 = arith.constant 0 : index
    %c0_1 = arith.constant 0 : index
    %3 = vector.load %arg7[%c0, %c0_1] : memref<16x256xf32, #tpu.memory_space<vmem>>, vector<16x256xf32>
    %c0_2 = arith.constant 0 : index
    %c0_3 = arith.constant 0 : index
    %4 = vector.load %arg3[%c0_2, %c0_3] : memref<16x512xbf16, #tpu.memory_space<vmem>>, vector<16x512xbf16>
    %c0_4 = arith.constant 0 : index
    %c0_5 = arith.constant 0 : index
    %5 = vector.load %arg4[%c0_4, %c0_5] : memref<512x256xbf16, #tpu.memory_space<vmem>>, vector<512x256xbf16>
    %cst = arith.constant dense<0.000000e+00> : vector<16x256xf32>
    %6 = tpu.matmul %4, %5, %cst {dimension_numbers = #tpu.dot_dimension_numbers<[1], [0], [0], [1], [0, 0, 1, 1], [], []>} : vector<16x512xbf16>, vector<512x256xbf16>, vector<16x256xf32> -> vector<16x256xf32>
    %7 = arith.addf %3, %6 : vector<16x256xf32>
    %c0_6 = arith.constant 0 : index
    %c0_7 = arith.constant 0 : index
    %8 = vector.load %arg7[%c0_6, %c0_7] : memref<16x256xf32, #tpu.memory_space<vmem>>, vector<16x256xf32>
    tpu.vector_store %arg7[%c0_6, %c0_7], %7 {strides = array<i32>} : memref<16x256xf32, #tpu.memory_space<vmem>>, vector<16x256xf32>,
    %c11_i32 = arith.constant 11 : i32
    %9 = arith.cmpi eq, %arg2, %c11_i32 : i32
    %10 = arith.extui %9 : i1 to i32
    %c0_i32_8 = arith.constant 0 : i32
    %11 = arith.cmpi ne, %10, %c0_i32_8 : i32
    scf.if %11 {
      %c0_9 = arith.constant 0 : index
      %c0_10 = arith.constant 0 : index
      %12 = vector.load %arg7[%c0_9, %c0_10] : memref<16x256xf32, #tpu.memory_space<vmem>>, vector<16x256xf32>
      %c0_11 = arith.constant 0 : index
      %c0_12 = arith.constant 0 : index
      %13 = vector.load %arg5[%c0_11, %c0_12] : memref<1x256xf32, #tpu.memory_space<vmem>>, vector<1x256xf32>
      %14 = vector.broadcast %13 : vector<1x256xf32> to vector<16x256xf32>
      %15 = arith.addf %12, %14 : vector<16x256xf32>
      %c0_13 = arith.constant 0 : index
      %c0_14 = arith.constant 0 : index
      %16 = vector.load %arg6[%c0_13, %c0_14] : memref<16x256xf32, #tpu.memory_space<vmem>>, vector<16x256xf32>
      tpu.vector_store %arg6[%c0_13, %c0_14], %15 {strides = array<i32>} : memref<16x256xf32, #tpu.memory_space<vmem>>, vector<16x256xf32>,
    } else {
    }
    return
  }
  func.func @transform_0(%arg0: i32, %arg1: i32, %arg2: i32) -> (i32, i32) {
    %c0_i32 = arith.constant 0 : i32
    return %arg0, %arg2 : i32, i32
  }
  func.func @transform_1(%arg0: i32, %arg1: i32, %arg2: i32) -> (i32, i32) {
    %c0_i32 = arith.constant 0 : i32
    return %arg2, %arg1 : i32, i32
  }
  func.func @transform_2(%arg0: i32, %arg1: i32, %arg2: i32) -> (i32, i32) {
    %c0_i32 = arith.constant 0 : i32
    %c0_i32_0 = arith.constant 0 : i32
    return %c0_i32, %arg1 : i32, i32
  }
  func.func @transform_3(%arg0: i32, %arg1: i32, %arg2: i32) -> (i32, i32) {
    %c0_i32 = arith.constant 0 : i32
    return %arg0, %arg1 : i32, i32
  }
}

module attributes {stable_mosaic.version = 11 : i64} {
  func.func @_matmul_affine_kernel(%arg0: i32, %arg1: i32, %arg2: i32, %arg3: memref<16x512xbf16, #tpu.memory_space<vmem>>, %arg4: memref<512x128xbf16, #tpu.memory_space<vmem>>, %arg5: memref<1x128xf32, #tpu.memory_space<vmem>>, %arg6: memref<16x128xf32, #tpu.memory_space<vmem>>, %arg7: memref<16x128xf32, #tpu.memory_space<vmem>>) attributes {dimension_semantics = [#tpu.dimension_semantics<parallel>, #tpu.dimension_semantics<parallel>, #tpu.dimension_semantics<arbitrary>], iteration_bounds = array<i64: 1, 1, 1>, scalar_prefetch = 0 : i64, scratch_operands = 1 : i64, tpu.core_type = #tpu.core_type<tc>, window_params = [{transform_indices = @transform_0, window_bounds = array<i64: 16, 512>}, {transform_indices = @transform_1, window_bounds = array<i64: 512, 128>}, {transform_indices = @transform_2, window_bounds = array<i64: 1, 128>}, {transform_indices = @transform_3, window_bounds = array<i64: 16, 128>}]} {
    %c0_i32 = arith.constant 0 : i32
    %0 = arith.cmpi eq, %arg2, %c0_i32 : i32
    %1 = arith.extui %0 : i1 to i32
    %c0_i32_0 = arith.constant 0 : i32
    %2 = arith.cmpi ne, %1, %c0_i32_0 : i32
    scf.if %2 {
      %cst_10 = arith.constant 0.000000e+00 : f32
      %12 = vector.broadcast %cst_10 : f32 to vector<16x128xf32>
      %c0_11 = arith.constant 0 : index
      %c0_12 = arith.constant 0 : index
      %13 = vector.load %arg7[%c0_11, %c0_12] : memref<16x128xf32, #tpu.memory_space<vmem>>, vector<16x128xf32>
      tpu.vector_store %arg7[%c0_11, %c0_12], %12 {strides = array<i32>} : memref<16x128xf32, #tpu.memory_space<vmem>>, vector<16x128xf32>,
    } else {
    }
    %c0 = arith.constant 0 : index
    %c0_1 = arith.constant 0 : index
    %3 = vector.load %arg7[%c0, %c0_1] : memref<16x128xf32, #tpu.memory_space<vmem>>, vector<16x128xf32>
    %c0_2 = arith.constant 0 : index
    %c0_3 = arith.constant 0 : index
    %4 = vector.load %arg3[%c0_2, %c0_3] : memref<16x512xbf16, #tpu.memory_space<vmem>>, vector<16x512xbf16>
    %c0_4 = arith.constant 0 : index
    %c0_5 = arith.constant 0 : index
    %5 = vector.load %arg4[%c0_4, %c0_5] : memref<512x128xbf16, #tpu.memory_space<vmem>>, vector<512x128xbf16>
    %cst = arith.constant dense<0.000000e+00> : vector<16x128xf32>
    %6 = tpu.matmul %4, %5, %cst {dimension_numbers = #tpu.dot_dimension_numbers<[1], [0], [0], [1], [0, 0, 1, 1], [], []>} : vector<16x512xbf16>, vector<512x128xbf16>, vector<16x128xf32> -> vector<16x128xf32>
    %7 = arith.addf %3, %6 : vector<16x128xf32>
    %c0_6 = arith.constant 0 : index
    %c0_7 = arith.constant 0 : index
    %8 = vector.load %arg7[%c0_6, %c0_7] : memref<16x128xf32, #tpu.memory_space<vmem>>, vector<16x128xf32>
    tpu.vector_store %arg7[%c0_6, %c0_7], %7 {strides = array<i32>} : memref<16x128xf32, #tpu.memory_space<vmem>>, vector<16x128xf32>,
    %c0_i32_8 = arith.constant 0 : i32
    %9 = arith.cmpi eq, %arg2, %c0_i32_8 : i32
    %10 = arith.extui %9 : i1 to i32
    %c0_i32_9 = arith.constant 0 : i32
    %11 = arith.cmpi ne, %10, %c0_i32_9 : i32
    scf.if %11 {
      %c0_10 = arith.constant 0 : index
      %c0_11 = arith.constant 0 : index
      %12 = vector.load %arg7[%c0_10, %c0_11] : memref<16x128xf32, #tpu.memory_space<vmem>>, vector<16x128xf32>
      %c0_12 = arith.constant 0 : index
      %c0_13 = arith.constant 0 : index
      %13 = vector.load %arg5[%c0_12, %c0_13] : memref<1x128xf32, #tpu.memory_space<vmem>>, vector<1x128xf32>
      %14 = vector.broadcast %13 : vector<1x128xf32> to vector<16x128xf32>
      %15 = arith.addf %12, %14 : vector<16x128xf32>
      %c0_14 = arith.constant 0 : index
      %c0_15 = arith.constant 0 : index
      %16 = vector.load %arg6[%c0_14, %c0_15] : memref<16x128xf32, #tpu.memory_space<vmem>>, vector<16x128xf32>
      tpu.vector_store %arg6[%c0_14, %c0_15], %15 {strides = array<i32>} : memref<16x128xf32, #tpu.memory_space<vmem>>, vector<16x128xf32>,
    } else {
    }
    return
  }
  func.func @transform_0(%arg0: i32, %arg1: i32, %arg2: i32) -> (i32, i32) {
    %c0_i32 = arith.constant 0 : i32
    return %arg0, %arg2 : i32, i32
  }
  func.func @transform_1(%arg0: i32, %arg1: i32, %arg2: i32) -> (i32, i32) {
    %c0_i32 = arith.constant 0 : i32
    return %arg2, %arg1 : i32, i32
  }
  func.func @transform_2(%arg0: i32, %arg1: i32, %arg2: i32) -> (i32, i32) {
    %c0_i32 = arith.constant 0 : i32
    %c0_i32_0 = arith.constant 0 : i32
    return %c0_i32, %arg1 : i32, i32
  }
  func.func @transform_3(%arg0: i32, %arg1: i32, %arg2: i32) -> (i32, i32) {
    %c0_i32 = arith.constant 0 : i32
    return %arg0, %arg1 : i32, i32
  }
}

</mosaic_0001>

<llo_original>
// kernel: cnn_forward.8
$region0: #{cnn_forward.8}
  #allocation0 [shape = 'u32[]', space=smem, size = 0x4, offset = 0x4, fixed_abs, tag = 'smem constant byte address 0x4 - core index']
  #allocation1 [shape = 'u32[72,128]{1,0:T(1,128)}', space=vmem, size = 0x9000, scoped, tag = 'internal scratch']
  #allocation2 [shape = 'f32[256,128]{1,0:T(8,128)}', space=vmem, size = 0x20000, scoped, tag = 'scratch operand']
  %s0 = inlined_call_operand.vmem [shape: bf16[1536,128], index: 0, kind: input, shape index: {}]
  %s1 = inlined_call_operand.vmem [shape: bf16[128,128], index: 1, kind: input, shape index: {}]
  %s2 = inlined_call_operand.vmem [shape: f32[1,128], index: 2, kind: input, shape index: {}]
  %s3 = inlined_call_operand.vmem [shape: f32[1,128], index: 3, kind: input, shape index: {}]
  %s4 = inlined_call_operand.vmem [shape: f32[1536,128], index: 4, kind: output, shape index: {}]
  %s5 = sld [smem:[#allocation0]]
  $region57: #{cnn_forward.8} parent=0
    _
  %s7 = ssub.s32 1, %s5
  %s8 = scalar_select 0, %s7, %s5
  loop: start=0, step=1, limit=8
  $region2: #{cnn_forward.8} parent=0 // loop_pre_header
    _
  $region3: #{cnn_forward.8} parent=0 // loop_header
    %s10 = sphi 0, %s14
    %p11 = scmp.ge.s32.totalorder %s10, 8
    %s17 = sphi 0, %s36
    %s18 = sphi 0, %s32
    %s19 = sphi 0, %s28
    %s20 = sphi 0, %s17
    %s21 = sphi 0, %s18
    %s22 = sphi 0, %s19
    %s23 = sphi 0, %s20
    %s24 = sphi 0, %s21
    %s25 = sphi 0, %s22
    %s41 = sphi 0, %s43
    %s44 = sphi 0, %s41
    %s45 = sphi 0, %s44
    %s61 = sphi 0, %s45
    %s69 = sphi 0, %s71
    %s72 = sphi 0, %s69
    %s73 = sphi 0, %s72
    %s89 = sphi 0, %s73
    %s95 = sphi 0, %s97
    %s98 = sphi 0, %s95
    %s99 = sphi 0, %s98
    %s115 = sphi 0, %s99
    %s121 = sphi 0, %s123
    %s124 = sphi 0, %s121
    %s125 = sphi 0, %s124
    %s141 = sphi 0, %s125
    %s149 = sphi 0, %s151
    %s152 = sphi 0, %s149
    %s153 = sphi 0, %s152
    %s169 = sphi 0, %s153
  $region4: #{cnn_forward.8} parent=0 // loop_header_branch
    %13 = sbr.rel (%p11) target = $region8
  $region5: #{cnn_forward.8} parent=0 // loop_body
    %s15 = ssub.s32 %s10, 1
    %s16 = ssub.s32 %s10, 2
    %s26 = sadd.s32 1, %s19
    %p27 = scmp.ge.s32.totalorder %s26, 1
    %s28 = scalar_select %p27, 0, %s26
    %s29 = sadd.s32 1, %s18
    %s30 = scalar_select %p27, %s29, %s18
    %p31 = scmp.ge.s32.totalorder %s30, 1
    %s32 = scalar_select %p31, 0, %s30
    %s33 = sadd.s32 1, %s17
    %s34 = scalar_select %p31, %s33, %s17
    %p35 = scmp.ge.s32.totalorder %s34, 6
    %s36 = scalar_select %p35, 0, %s34
    %s37 = ssub.s32 %s17, %s36
    %s38 = ssub.s32 %s19, %s28
    %s39 = sor.u32 %s37, %s38
    %p40 = scmp.eq.s32.totalorder %s39, 0
    %s42 = sadd.s32 %s41, 1
    %s43 = scalar_select %p40, %s41, %s42
    %p46 = pneg %p40
    %p47 = scmp.eq.s32.totalorder %s10, 5
    %p48 = por %p46, %p47
    %p49 = scmp.ne.s32.totalorder %s41, %s44
    %p50 = scmp.eq.s32.totalorder %s10, 0
    %p51 = por %p49, %p50
    %p52 = scmp.ne.s32.totalorder %s41, %s44
    %p53 = scmp.eq.s32.totalorder %s15, 5
    %p54 = por %p52, %p53
    %p55 = scmp.ne.s32.totalorder %s44, %s45
    %p56 = scmp.eq.s32.totalorder %s15, 0
    %p57 = por %p55, %p56
    %p58 = scmp.ne.s32.totalorder %s44, %s45
    %p59 = scmp.eq.s32.totalorder %s16, 5
    %p60 = por %p58, %p59
    %p62 = scmp.ne.s32.totalorder %s45, %s61
    %p63 = scmp.eq.s32.totalorder %s16, 0
    %p64 = por %p62, %p63
    %s65 = ssub.s32 %s19, %s28
    %s66 = ssub.s32 %s18, %s32
    %s67 = sor.u32 %s65, %s66
    %p68 = scmp.eq.s32.totalorder %s67, 0
    %s70 = sadd.s32 %s69, 1
    %s71 = scalar_select %p68, %s69, %s70
    %p74 = pneg %p68
    %p75 = scmp.eq.s32.totalorder %s10, 5
    %p76 = por %p74, %p75
    %p77 = scmp.ne.s32.totalorder %s69, %s72
    %p78 = scmp.eq.s32.totalorder %s10, 0
    %p79 = por %p77, %p78
    %p80 = scmp.ne.s32.totalorder %s69, %s72
    %p81 = scmp.eq.s32.totalorder %s15, 5
    %p82 = por %p80, %p81
    %p83 = scmp.ne.s32.totalorder %s72, %s73
    %p84 = scmp.eq.s32.totalorder %s15, 0
    %p85 = por %p83, %p84
    %p86 = scmp.ne.s32.totalorder %s72, %s73
    %p87 = scmp.eq.s32.totalorder %s16, 5
    %p88 = por %p86, %p87
    %p90 = scmp.ne.s32.totalorder %s73, %s89
    %p91 = scmp.eq.s32.totalorder %s16, 0
    %p92 = por %p90, %p91
    %s93 = ssub.s32 %s18, %s32
    %p94 = scmp.eq.s32.totalorder %s93, 0
    %s96 = sadd.s32 %s95, 1
    %s97 = scalar_select %p94, %s95, %s96
    %p100 = pneg %p94
    %p101 = scmp.eq.s32.totalorder %s10, 5
    %p102 = por %p100, %p101
    %p103 = scmp.ne.s32.totalorder %s95, %s98
    %p104 = scmp.eq.s32.totalorder %s10, 0
    %p105 = por %p103, %p104
    %p106 = scmp.ne.s32.totalorder %s95, %s98
    %p107 = scmp.eq.s32.totalorder %s15, 5
    %p108 = por %p106, %p107
    %p109 = scmp.ne.s32.totalorder %s98, %s99
    %p110 = scmp.eq.s32.totalorder %s15, 0
    %p111 = por %p109, %p110
    %p112 = scmp.ne.s32.totalorder %s98, %s99
    %p113 = scmp.eq.s32.totalorder %s16, 5
    %p114 = por %p112, %p113
    %p116 = scmp.ne.s32.totalorder %s99, %s115
    %p117 = scmp.eq.s32.totalorder %s16, 0
    %p118 = por %p116, %p117
    %s119 = ssub.s32 %s18, %s32
    %p120 = scmp.eq.s32.totalorder %s119, 0
    %s122 = sadd.s32 %s121, 1
    %s123 = scalar_select %p120, %s121, %s122
    %p126 = pneg %p120
    %p127 = scmp.eq.s32.totalorder %s10, 5
    %p128 = por %p126, %p127
    %p129 = scmp.ne.s32.totalorder %s121, %s124
    %p130 = scmp.eq.s32.totalorder %s10, 0
    %p131 = por %p129, %p130
    %p132 = scmp.ne.s32.totalorder %s121, %s124
    %p133 = scmp.eq.s32.totalorder %s15, 5
    %p134 = por %p132, %p133
    %p135 = scmp.ne.s32.totalorder %s124, %s125
    %p136 = scmp.eq.s32.totalorder %s15, 0
    %p137 = por %p135, %p136
    %p138 = scmp.ne.s32.totalorder %s124, %s125
    %p139 = scmp.eq.s32.totalorder %s16, 5
    %p140 = por %p138, %p139
    %p142 = scmp.ne.s32.totalorder %s125, %s141
    %p143 = scmp.eq.s32.totalorder %s16, 0
    %p144 = por %p142, %p143
    %s145 = ssub.s32 %s17, %s36
    %s146 = ssub.s32 %s18, %s32
    %s147 = sor.u32 %s145, %s146
    %p148 = scmp.eq.s32.totalorder %s147, 0
    %s150 = sadd.s32 %s149, 1
    %s151 = scalar_select %p148, %s149, %s150
    %p154 = pneg %p148
    %p155 = scmp.eq.s32.totalorder %s10, 5
    %p156 = por %p154, %p155
    %p157 = scmp.ne.s32.totalorder %s149, %s152
    %p158 = scmp.eq.s32.totalorder %s10, 0
    %p159 = por %p157, %p158
    %p160 = scmp.ne.s32.totalorder %s149, %s152
    %p161 = scmp.eq.s32.totalorder %s15, 5
    %p162 = por %p160, %p161
    %p163 = scmp.ne.s32.totalorder %s152, %s153
    %p164 = scmp.eq.s32.totalorder %s15, 0
    %p165 = por %p163, %p164
    %p166 = scmp.ne.s32.totalorder %s152, %s153
    %p167 = scmp.eq.s32.totalorder %s16, 5
    %p168 = por %p166, %p167
    %p170 = scmp.ne.s32.totalorder %s153, %s169
    %p171 = scmp.eq.s32.totalorder %s16, 0
    %p172 = por %p170, %p171
    %p173 = scmp.le.s32.totalorder 1, %s10
    %p174 = scmp.lt.s32.totalorder %s10, 7
    %p175 = pnand %p173, %p174
    %p176 = pneg %p175
    // Predicated region
    $region9: #{cnn_forward.8} parent=5 // pred_check
      _
    $region10: #{cnn_forward.8} parent=5 // pred_check_branch
      %178 = sbr.rel (%p175) target = $region12
    $region11: #{cnn_forward.8} parent=5 // pred_region
      %s179 = ssub.s32 %s10, 1
      // Predicated region
      $region13: #{cnn_forward.8} parent=11 // pred_check
        %p180 = pneg %p85
      $region14: #{cnn_forward.8} parent=11 // pred_check_branch
        %182 = sbr.rel (%p180) target = $region16
      $region15: #{cnn_forward.8} parent=11 // pred_region
        %s183 = smul.u32 16, %s22
        %p184 = scmp.lt.s32.totalorder %s183, 15
        %s185 = scalar_select %p184, %s183, 15
        %p186 = scmp.lt.s32.totalorder %s21, 0
        %s187 = scalar_select %p186, %s21, 0
        %s188 = sadd.s32 %s187, %s185
        %s189 = smul.addr %s188, 4
        %s190 = scalar_lea.vmem %s1, %s189
        %s191 = smul.u32 16, %s22
      $region16: #{cnn_forward.8} parent=11 // pred_fallthru
        _
      // Predicated region
      $region17: #{cnn_forward.8} parent=11 // pred_check
        %p192 = pneg %p111
      $region18: #{cnn_forward.8} parent=11 // pred_check_branch
        %194 = sbr.rel (%p192) target = $region20
      $region19: #{cnn_forward.8} parent=11 // pred_region
        %p195 = scmp.lt.s32.totalorder %s21, 0
        %s196 = scalar_select %p195, %s21, 0
        %s197 = scalar_lea.vmem %s2, %s196
      $region20: #{cnn_forward.8} parent=11 // pred_fallthru
        _
      // Predicated region
      $region21: #{cnn_forward.8} parent=11 // pred_check
        %p198 = pneg %p137
      $region22: #{cnn_forward.8} parent=11 // pred_check_branch
        %200 = sbr.rel (%p198) target = $region24
      $region23: #{cnn_forward.8} parent=11 // pred_region
        %p201 = scmp.lt.s32.totalorder %s21, 0
        %s202 = scalar_select %p201, %s21, 0
        %s203 = scalar_lea.vmem %s3, %s202
      $region24: #{cnn_forward.8} parent=11 // pred_fallthru
        _
    $region12: #{cnn_forward.8} parent=5 // pred_fallthru
      _
    %p204 = scmp.lt.s32.totalorder %s10, 6
    // Predicated region
    $region25: #{cnn_forward.8} parent=5 // pred_check
      %p205 = pneg %p204
    $region26: #{cnn_forward.8} parent=5 // pred_check_branch
      %207 = sbr.rel (%p205) target = $region28
    $region27: #{cnn_forward.8} parent=5 // pred_region
      // Predicated region
      $region29: #{cnn_forward.8} parent=27 // pred_check
        %p208 = pneg %p51
      $region30: #{cnn_forward.8} parent=27 // pred_check_branch
        %210 = sbr.rel (%p208) target = $region32
      $region31: #{cnn_forward.8} parent=27 // pred_region
        %s211 = smul.u32 32, %s17
        %p212 = scmp.lt.s32.totalorder %s211, 191
        %s213 = scalar_select %p212, %s211, 191
        %p214 = scmp.lt.s32.totalorder %s19, 0
        %s215 = scalar_select %p214, %s19, 0
        %s216 = sadd.s32 %s215, %s213
        %s217 = smul.addr %s216, 4
        %s218 = scalar_lea.vmem %s0, %s217
        %s219 = smul.u32 32, %s17
      $region32: #{cnn_forward.8} parent=27 // pred_fallthru
        _
    $region28: #{cnn_forward.8} parent=5 // pred_fallthru
      _
    %p220 = scmp.le.s32.totalorder 1, %s10
    %p221 = scmp.lt.s32.totalorder %s10, 7
    %p222 = pnand %p220, %p221
    %p223 = pneg %p222
    // Predicated region
    $region33: #{cnn_forward.8} parent=5 // pred_check
      _
    $region34: #{cnn_forward.8} parent=5 // pred_check_branch
      %225 = sbr.rel (%p222) target = $region36
    $region35: #{cnn_forward.8} parent=5 // pred_region
      %s226 = ssub.s32 %s10, 1
      %s227 = smul.u32 32, %s20
      %p228 = scmp.lt.s32.totalorder %s227, 191
      %s229 = scalar_select %p228, %s227, 191
      %p230 = scmp.lt.s32.totalorder %s22, 0
      %s231 = scalar_select %p230, %s22, 0
      %s232 = sadd.s32 %s231, %s229
      %s233 = smul.addr %s232, 4
      %s234 = scalar_lea.vmem %s0, %s233
      %p235 = pneg %p57
      %p236 = pneg %p54
      %s237 = smul.u32 16, %s22
      %p238 = scmp.lt.s32.totalorder %s237, 15
      %s239 = scalar_select %p238, %s237, 15
      %p240 = scmp.lt.s32.totalorder %s21, 0
      %s241 = scalar_select %p240, %s21, 0
      %s242 = sadd.s32 %s241, %s239
      %s243 = smul.addr %s242, 4
      %s244 = scalar_lea.vmem %s1, %s243
      %p245 = pneg %p85
      %p246 = pneg %p82
      %p247 = scmp.lt.s32.totalorder %s21, 0
      %s248 = scalar_select %p247, %s21, 0
      %s249 = scalar_lea.vmem %s2, %s248
      %p250 = pneg %p111
      %p251 = pneg %p108
      %p252 = scmp.lt.s32.totalorder %s21, 0
      %s253 = scalar_select %p252, %s21, 0
      %s254 = scalar_lea.vmem %s3, %s253
      %p255 = pneg %p137
      %p256 = pneg %p134
      %p257 = pneg %p165
      %p258 = pneg %p162
      %s259 = smul.u32 32, %s20
      %p260 = scmp.lt.s32.totalorder %s259, 191
      %s261 = scalar_select %p260, %s259, 191
      %p262 = scmp.lt.s32.totalorder %s21, 0
      %s263 = scalar_select %p262, %s21, 0
      %s264 = sadd.s32 %s263, %s261
      %s265 = smul.addr %s264, 8
      %s266 = scalar_lea.vmem %s4, %s265
      %s267 = smul.u32 32, %s20
      %p268 = scmp.lt.s32.totalorder %s267, 191
      %s269 = scalar_select %p268, %s267, 191
      %p270 = scmp.lt.s32.totalorder %s22, 0
      %s271 = scalar_select %p270, %s22, 0
      %s272 = sadd.s32 %s271, %s269
      %s273 = smul.addr %s272, 4
      %s274 = scalar_lea.vmem %s0, %s273
      %s275 = smul.u32 32, %s20
      %s276 = smul.u32 16, %s22
      %p277 = scmp.lt.s32.totalorder %s276, 15
      %s278 = scalar_select %p277, %s276, 15
      %p279 = scmp.lt.s32.totalorder %s21, 0
      %s280 = scalar_select %p279, %s21, 0
      %s281 = sadd.s32 %s280, %s278
      %s282 = smul.addr %s281, 4
      %s283 = scalar_lea.vmem %s1, %s282
      %s284 = smul.u32 16, %s22
      %p285 = scmp.lt.s32.totalorder %s21, 0
      %s286 = scalar_select %p285, %s21, 0
      %s287 = scalar_lea.vmem %s2, %s286
      %p288 = scmp.lt.s32.totalorder %s21, 0
      %s289 = scalar_select %p288, %s21, 0
      %s290 = scalar_lea.vmem %s3, %s289
      %s291 = smul.u32 32, %s20
      %p292 = scmp.lt.s32.totalorder %s291, 191
      %s293 = scalar_select %p292, %s291, 191
      %p294 = scmp.lt.s32.totalorder %s21, 0
      %s295 = scalar_select %p294, %s21, 0
      %s296 = sadd.s32 %s295, %s293
      %s297 = smul.addr %s296, 8
      %s298 = scalar_lea.vmem %s4, %s297
      %s299 = smul.u32 32, %s20
      %p300 = scmp.eq.s32.totalorder %s22, 0
      // Predicated region
      $region37: #{cnn_forward.8} parent=35 // pred_check
        %p301 = pneg %p300
      $region38: #{cnn_forward.8} parent=35 // pred_check_branch
        %303 = sbr.rel (%p301) target = $region40
      $region39: #{cnn_forward.8} parent=35 // pred_region
        %304 = vst [vmem:[#allocation2] sm:$0xff] 0.0
        %305 = vst [vmem:[#allocation2 + $0x8] sm:$0xff] 0.0
        %306 = vst [vmem:[#allocation2 + $0x10] sm:$0xff] 0.0
        %307 = vst [vmem:[#allocation2 + $0x18] sm:$0xff] 0.0
        %308 = vst [vmem:[#allocation2 + $0x20] sm:$0xff] 0.0
        %309 = vst [vmem:[#allocation2 + $0x28] sm:$0xff] 0.0
        %310 = vst [vmem:[#allocation2 + $0x30] sm:$0xff] 0.0
        %311 = vst [vmem:[#allocation2 + $0x38] sm:$0xff] 0.0
        %312 = vst [vmem:[#allocation2 + $0x40] sm:$0xff] 0.0
        %313 = vst [vmem:[#allocation2 + $0x48] sm:$0xff] 0.0
        %314 = vst [vmem:[#allocation2 + $0x50] sm:$0xff] 0.0
        %315 = vst [vmem:[#allocation2 + $0x58] sm:$0xff] 0.0
        %316 = vst [vmem:[#allocation2 + $0x60] sm:$0xff] 0.0
        %317 = vst [vmem:[#allocation2 + $0x68] sm:$0xff] 0.0
        %318 = vst [vmem:[#allocation2 + $0x70] sm:$0xff] 0.0
        %319 = vst [vmem:[#allocation2 + $0x78] sm:$0xff] 0.0
        %320 = vst [vmem:[#allocation2 + $0x80] sm:$0xff] 0.0
        %321 = vst [vmem:[#allocation2 + $0x88] sm:$0xff] 0.0
        %322 = vst [vmem:[#allocation2 + $0x90] sm:$0xff] 0.0
        %323 = vst [vmem:[#allocation2 + $0x98] sm:$0xff] 0.0
        %324 = vst [vmem:[#allocation2 + $0xa0] sm:$0xff] 0.0
        %325 = vst [vmem:[#allocation2 + $0xa8] sm:$0xff] 0.0
        %326 = vst [vmem:[#allocation2 + $0xb0] sm:$0xff] 0.0
        %327 = vst [vmem:[#allocation2 + $0xb8] sm:$0xff] 0.0
        %328 = vst [vmem:[#allocation2 + $0xc0] sm:$0xff] 0.0
        %329 = vst [vmem:[#allocation2 + $0xc8] sm:$0xff] 0.0
        %330 = vst [vmem:[#allocation2 + $0xd0] sm:$0xff] 0.0
        %331 = vst [vmem:[#allocation2 + $0xd8] sm:$0xff] 0.0
        %332 = vst [vmem:[#allocation2 + $0xe0] sm:$0xff] 0.0
        %333 = vst [vmem:[#allocation2 + $0xe8] sm:$0xff] 0.0
        %334 = vst [vmem:[#allocation2 + $0xf0] sm:$0xff] 0.0
        %335 = vst [vmem:[#allocation2 + $0xf8] sm:$0xff] 0.0
      $region40: #{cnn_forward.8} parent=35 // pred_fallthru
        _
      %v336 = vld [vmem:[#allocation2] sm:$0xff]
      %v337 = vld [vmem:[#allocation2 + $0x8] sm:$0xff]
      %v338 = vld [vmem:[#allocation2 + $0x10] sm:$0xff]
      %v339 = vld [vmem:[#allocation2 + $0x18] sm:$0xff]
      %v340 = vld [vmem:[#allocation2 + $0x20] sm:$0xff]
      %v341 = vld [vmem:[#allocation2 + $0x28] sm:$0xff]
      %v342 = vld [vmem:[#allocation2 + $0x30] sm:$0xff]
      %v343 = vld [vmem:[#allocation2 + $0x38] sm:$0xff]
      %v344 = vld [vmem:[#allocation2 + $0x40] sm:$0xff]
      %v345 = vld [vmem:[#allocation2 + $0x48] sm:$0xff]
      %v346 = vld [vmem:[#allocation2 + $0x50] sm:$0xff]
      %v347 = vld [vmem:[#allocation2 + $0x58] sm:$0xff]
      %v348 = vld [vmem:[#allocation2 + $0x60] sm:$0xff]
      %v349 = vld [vmem:[#allocation2 + $0x68] sm:$0xff]
      %v350 = vld [vmem:[#allocation2 + $0x70] sm:$0xff]
      %v351 = vld [vmem:[#allocation2 + $0x78] sm:$0xff]
      %v352 = vld [vmem:[#allocation2 + $0x80] sm:$0xff]
      %v353 = vld [vmem:[#allocation2 + $0x88] sm:$0xff]
      %v354 = vld [vmem:[#allocation2 + $0x90] sm:$0xff]
      %v355 = vld [vmem:[#allocation2 + $0x98] sm:$0xff]
      %v356 = vld [vmem:[#allocation2 + $0xa0] sm:$0xff]
      %v357 = vld [vmem:[#allocation2 + $0xa8] sm:$0xff]
      %v358 = vld [vmem:[#allocation2 + $0xb0] sm:$0xff]
      %v359 = vld [vmem:[#allocation2 + $0xb8] sm:$0xff]
      %v360 = vld [vmem:[#allocation2 + $0xc0] sm:$0xff]
      %v361 = vld [vmem:[#allocation2 + $0xc8] sm:$0xff]
      %v362 = vld [vmem:[#allocation2 + $0xd0] sm:$0xff]
      %v363 = vld [vmem:[#allocation2 + $0xd8] sm:$0xff]
      %v364 = vld [vmem:[#allocation2 + $0xe0] sm:$0xff]
      %v365 = vld [vmem:[#allocation2 + $0xe8] sm:$0xff]
      %v366 = vld [vmem:[#allocation2 + $0xf0] sm:$0xff]
      %v367 = vld [vmem:[#allocation2 + $0xf8] sm:$0xff]
      %v368 = vld [vmem:[%s274] sm:$0xf]
      %v369 = vld [vmem:[%s274 + $0x4] sm:$0xf]
      %v370 = vld [vmem:[%s274 + $0x8] sm:$0xf]
      %v371 = vld [vmem:[%s274 + $0xc] sm:$0xf]
      %v372 = vld [vmem:[%s274 + $0x10] sm:$0xf]
      %v373 = vld [vmem:[%s274 + $0x14] sm:$0xf]
      %v374 = vld [vmem:[%s274 + $0x18] sm:$0xf]
      %v375 = vld [vmem:[%s274 + $0x1c] sm:$0xf]
      %v376 = vld [vmem:[%s274 + $0x20] sm:$0xf]
      %v377 = vld [vmem:[%s274 + $0x24] sm:$0xf]
      %v378 = vld [vmem:[%s274 + $0x28] sm:$0xf]
      %v379 = vld [vmem:[%s274 + $0x2c] sm:$0xf]
      %v380 = vld [vmem:[%s274 + $0x30] sm:$0xf]
      %v381 = vld [vmem:[%s274 + $0x34] sm:$0xf]
      %v382 = vld [vmem:[%s274 + $0x38] sm:$0xf]
      %v383 = vld [vmem:[%s274 + $0x3c] sm:$0xf]
      %v384 = vld [vmem:[%s274 + $0x40] sm:$0xf]
      %v385 = vld [vmem:[%s274 + $0x44] sm:$0xf]
      %v386 = vld [vmem:[%s274 + $0x48] sm:$0xf]
      %v387 = vld [vmem:[%s274 + $0x4c] sm:$0xf]
      %v388 = vld [vmem:[%s274 + $0x50] sm:$0xf]
      %v389 = vld [vmem:[%s274 + $0x54] sm:$0xf]
      %v390 = vld [vmem:[%s274 + $0x58] sm:$0xf]
      %v391 = vld [vmem:[%s274 + $0x5c] sm:$0xf]
      %v392 = vld [vmem:[%s274 + $0x60] sm:$0xf]
      %v393 = vld [vmem:[%s274 + $0x64] sm:$0xf]
      %v394 = vld [vmem:[%s274 + $0x68] sm:$0xf]
      %v395 = vld [vmem:[%s274 + $0x6c] sm:$0xf]
      %v396 = vld [vmem:[%s274 + $0x70] sm:$0xf]
      %v397 = vld [vmem:[%s274 + $0x74] sm:$0xf]
      %v398 = vld [vmem:[%s274 + $0x78] sm:$0xf]
      %v399 = vld [vmem:[%s274 + $0x7c] sm:$0xf]
      %v400 = vld [vmem:[%s283] sm:$0xf]
      %v401 = vld [vmem:[%s283 + $0x4] sm:$0xf]
      %v402 = vld [vmem:[%s283 + $0x8] sm:$0xf]
      %v403 = vld [vmem:[%s283 + $0xc] sm:$0xf]
      %v404 = vld [vmem:[%s283 + $0x10] sm:$0xf]
      %v405 = vld [vmem:[%s283 + $0x14] sm:$0xf]
      %v406 = vld [vmem:[%s283 + $0x18] sm:$0xf]
      %v407 = vld [vmem:[%s283 + $0x1c] sm:$0xf]
      %v408 = vld [vmem:[%s283 + $0x20] sm:$0xf]
      %v409 = vld [vmem:[%s283 + $0x24] sm:$0xf]
      %v410 = vld [vmem:[%s283 + $0x28] sm:$0xf]
      %v411 = vld [vmem:[%s283 + $0x2c] sm:$0xf]
      %v412 = vld [vmem:[%s283 + $0x30] sm:$0xf]
      %v413 = vld [vmem:[%s283 + $0x34] sm:$0xf]
      %v414 = vld [vmem:[%s283 + $0x38] sm:$0xf]
      %v415 = vld [vmem:[%s283 + $0x3c] sm:$0xf]
      %v448 = vunpack.c.l.b16 %v368
      %v449 = vunpack.c.l.b16 %v369
      %v450 = vunpack.c.l.b16 %v370
      %v451 = vunpack.c.l.b16 %v371
      %v452 = vunpack.c.l.b16 %v372
      %v453 = vunpack.c.l.b16 %v373
      %v454 = vunpack.c.l.b16 %v374
      %v455 = vunpack.c.l.b16 %v375
      %v456 = vunpack.c.l.b16 %v376
      %v457 = vunpack.c.l.b16 %v377
      %v458 = vunpack.c.l.b16 %v378
      %v459 = vunpack.c.l.b16 %v379
      %v460 = vunpack.c.l.b16 %v380
      %v461 = vunpack.c.l.b16 %v381
      %v462 = vunpack.c.l.b16 %v382
      %v463 = vunpack.c.l.b16 %v383
      %v464 = vunpack.c.l.b16 %v384
      %v465 = vunpack.c.l.b16 %v385
      %v466 = vunpack.c.l.b16 %v386
      %v467 = vunpack.c.l.b16 %v387
      %v468 = vunpack.c.l.b16 %v388
      %v469 = vunpack.c.l.b16 %v389
      %v470 = vunpack.c.l.b16 %v390
      %v471 = vunpack.c.l.b16 %v391
      %v472 = vunpack.c.l.b16 %v392
      %v473 = vunpack.c.l.b16 %v393
      %v474 = vunpack.c.l.b16 %v394
      %v475 = vunpack.c.l.b16 %v395
      %v476 = vunpack.c.l.b16 %v396
      %v477 = vunpack.c.l.b16 %v397
      %v478 = vunpack.c.l.b16 %v398
      %v479 = vunpack.c.l.b16 %v399
      %v480 = vpack.c.b16 %v449, %v448
      %v481 = vpack.c.b16 %v451, %v450
      %v482 = vpack.c.b16 %v453, %v452
      %v483 = vpack.c.b16 %v455, %v454
      %v484 = vpack.c.b16 %v457, %v456
      %v485 = vpack.c.b16 %v459, %v458
      %v486 = vpack.c.b16 %v461, %v460
      %v487 = vpack.c.b16 %v463, %v462
      %v488 = vpack.c.b16 %v465, %v464
      %v489 = vpack.c.b16 %v467, %v466
      %v490 = vpack.c.b16 %v469, %v468
      %v491 = vpack.c.b16 %v471, %v470
      %v492 = vpack.c.b16 %v473, %v472
      %v493 = vpack.c.b16 %v475, %v474
      %v494 = vpack.c.b16 %v477, %v476
      %v495 = vpack.c.b16 %v479, %v478
      %v528 = vunpack.c.l.b16 %v400
      %v529 = vunpack.c.l.b16 %v401
      %v530 = vunpack.c.l.b16 %v402
      %v531 = vunpack.c.l.b16 %v403
      %v532 = vunpack.c.l.b16 %v404
      %v533 = vunpack.c.l.b16 %v405
      %v534 = vunpack.c.l.b16 %v406
      %v535 = vunpack.c.l.b16 %v407
      %v536 = vunpack.c.l.b16 %v408
      %v537 = vunpack.c.l.b16 %v409
      %v538 = vunpack.c.l.b16 %v410
      %v539 = vunpack.c.l.b16 %v411
      %v540 = vunpack.c.l.b16 %v412
      %v541 = vunpack.c.l.b16 %v413
      %v542 = vunpack.c.l.b16 %v414
      %v543 = vunpack.c.l.b16 %v415
      %v544 = vpack.c.b16 %v529, %v528
      %v545 = vpack.c.b16 %v531, %v530
      %v546 = vpack.c.b16 %v533, %v532
      %v547 = vpack.c.b16 %v535, %v534
      %v548 = vpack.c.b16 %v537, %v536
      %v549 = vpack.c.b16 %v539, %v538
      %v550 = vpack.c.b16 %v541, %v540
      %v551 = vpack.c.b16 %v543, %v542
      %560 = vmatpush.bf16.msra.mxu0 %v551
      %561 = vmatpush.bf16.msra.mxu0 %v550
      %562 = vmatpush.bf16.msra.mxu0 %v549
      %563 = vmatpush.bf16.msra.mxu0 %v548
      %564 = vmatpush.bf16.msra.mxu0 %v547
      %565 = vmatpush.bf16.msra.mxu0 %v546
      %566 = vmatpush.bf16.msra.mxu0 %v545
      %567 = vmatpush.bf16.msra.mxu0 %v544
      %568 = vmatmul.bf16.gmra.mxu0 %v480
      %v569 = vpop.f32.mrf.mxu0
      %v570 = vadd.f32 0.0, %v569
      %v571 = vpop.f32.mrf.mxu0
      %v572 = vadd.f32 0.0, %v571
      %573 = vmatmul.bf16.gmra.mxu0 %v481
      %v574 = vpop.f32.mrf.mxu0
      %v575 = vadd.f32 0.0, %v574
      %v576 = vpop.f32.mrf.mxu0
      %v577 = vadd.f32 0.0, %v576
      %578 = vmatmul.bf16.gmra.mxu0 %v482
      %v579 = vpop.f32.mrf.mxu0
      %v580 = vadd.f32 0.0, %v579
      %v581 = vpop.f32.mrf.mxu0
      %v582 = vadd.f32 0.0, %v581
      %583 = vmatmul.bf16.gmra.mxu0 %v483
      %v584 = vpop.f32.mrf.mxu0
      %v585 = vadd.f32 0.0, %v584
      %v586 = vpop.f32.mrf.mxu0
      %v587 = vadd.f32 0.0, %v586
      %588 = vmatmul.bf16.gmra.mxu0 %v484
      %v589 = vpop.f32.mrf.mxu0
      %v590 = vadd.f32 0.0, %v589
      %v591 = vpop.f32.mrf.mxu0
      %v592 = vadd.f32 0.0, %v591
      %593 = vmatmul.bf16.gmra.mxu0 %v485
      %v594 = vpop.f32.mrf.mxu0
      %v595 = vadd.f32 0.0, %v594
      %v596 = vpop.f32.mrf.mxu0
      %v597 = vadd.f32 0.0, %v596
      %598 = vmatmul.bf16.gmra.mxu0 %v486
      %v599 = vpop.f32.mrf.mxu0
      %v600 = vadd.f32 0.0, %v599
      %v601 = vpop.f32.mrf.mxu0
      %v602 = vadd.f32 0.0, %v601
      %603 = vmatmul.bf16.gmra.mxu0 %v487
      %v604 = vpop.f32.mrf.mxu0
      %v605 = vadd.f32 0.0, %v604
      %v606 = vpop.f32.mrf.mxu0
      %v607 = vadd.f32 0.0, %v606
      %608 = vmatmul.bf16.gmra.mxu0 %v488
      %v609 = vpop.f32.mrf.mxu0
      %v610 = vadd.f32 0.0, %v609
      %v611 = vpop.f32.mrf.mxu0
      %v612 = vadd.f32 0.0, %v611
      %613 = vmatmul.bf16.gmra.mxu0 %v489
      %v614 = vpop.f32.mrf.mxu0
      %v615 = vadd.f32 0.0, %v614
      %v616 = vpop.f32.mrf.mxu0
      %v617 = vadd.f32 0.0, %v616
      %618 = vmatmul.bf16.gmra.mxu0 %v490
      %v619 = vpop.f32.mrf.mxu0
      %v620 = vadd.f32 0.0, %v619
      %v621 = vpop.f32.mrf.mxu0
      %v622 = vadd.f32 0.0, %v621
      %623 = vmatmul.bf16.gmra.mxu0 %v491
      %v624 = vpop.f32.mrf.mxu0
      %v625 = vadd.f32 0.0, %v624
      %v626 = vpop.f32.mrf.mxu0
      %v627 = vadd.f32 0.0, %v626
      %628 = vmatmul.bf16.gmra.mxu0 %v492
      %v629 = vpop.f32.mrf.mxu0
      %v630 = vadd.f32 0.0, %v629
      %v631 = vpop.f32.mrf.mxu0
      %v632 = vadd.f32 0.0, %v631
      %633 = vmatmul.bf16.gmra.mxu0 %v493
      %v634 = vpop.f32.mrf.mxu0
      %v635 = vadd.f32 0.0, %v634
      %v636 = vpop.f32.mrf.mxu0
      %v637 = vadd.f32 0.0, %v636
      %638 = vmatmul.bf16.gmra.mxu0 %v494
      %v639 = vpop.f32.mrf.mxu0
      %v640 = vadd.f32 0.0, %v639
      %v641 = vpop.f32.mrf.mxu0
      %v642 = vadd.f32 0.0, %v641
      %643 = vmatmul.bf16.gmra.mxu0 %v495
      %v644 = vpop.f32.mrf.mxu0
      %v645 = vadd.f32 0.0, %v644
      %v646 = vpop.f32.mrf.mxu0
      %v647 = vadd.f32 0.0, %v646
      %648 = vdwg.mxu0
      %v649 = vadd.f32 %v336, %v570
      %v650 = vadd.f32 %v337, %v572
      %v651 = vadd.f32 %v338, %v575
      %v652 = vadd.f32 %v339, %v577
      %v653 = vadd.f32 %v340, %v580
      %v654 = vadd.f32 %v341, %v582
      %v655 = vadd.f32 %v342, %v585
      %v656 = vadd.f32 %v343, %v587
      %v657 = vadd.f32 %v344, %v590
      %v658 = vadd.f32 %v345, %v592
      %v659 = vadd.f32 %v346, %v595
      %v660 = vadd.f32 %v347, %v597
      %v661 = vadd.f32 %v348, %v600
      %v662 = vadd.f32 %v349, %v602
      %v663 = vadd.f32 %v350, %v605
      %v664 = vadd.f32 %v351, %v607
      %v665 = vadd.f32 %v352, %v610
      %v666 = vadd.f32 %v353, %v612
      %v667 = vadd.f32 %v354, %v615
      %v668 = vadd.f32 %v355, %v617
      %v669 = vadd.f32 %v356, %v620
      %v670 = vadd.f32 %v357, %v622
      %v671 = vadd.f32 %v358, %v625
      %v672 = vadd.f32 %v359, %v627
      %v673 = vadd.f32 %v360, %v630
      %v674 = vadd.f32 %v361, %v632
      %v675 = vadd.f32 %v362, %v635
      %v676 = vadd.f32 %v363, %v637
      %v677 = vadd.f32 %v364, %v640
      %v678 = vadd.f32 %v365, %v642
      %v679 = vadd.f32 %v366, %v645
      %v680 = vadd.f32 %v367, %v647
      %681 = vst [vmem:[#allocation2] sm:$0xff] %v649
      %682 = vst [vmem:[#allocation2 + $0x8] sm:$0xff] %v650
      %683 = vst [vmem:[#allocation2 + $0x10] sm:$0xff] %v651
      %684 = vst [vmem:[#allocation2 + $0x18] sm:$0xff] %v652
      %685 = vst [vmem:[#allocation2 + $0x20] sm:$0xff] %v653
      %686 = vst [vmem:[#allocation2 + $0x28] sm:$0xff] %v654
      %687 = vst [vmem:[#allocation2 + $0x30] sm:$0xff] %v655
      %688 = vst [vmem:[#allocation2 + $0x38] sm:$0xff] %v656
      %689 = vst [vmem:[#allocation2 + $0x40] sm:$0xff] %v657
      %690 = vst [vmem:[#allocation2 + $0x48] sm:$0xff] %v658
      %691 = vst [vmem:[#allocation2 + $0x50] sm:$0xff] %v659
      %692 = vst [vmem:[#allocation2 + $0x58] sm:$0xff] %v660
      %693 = vst [vmem:[#allocation2 + $0x60] sm:$0xff] %v661
      %694 = vst [vmem:[#allocation2 + $0x68] sm:$0xff] %v662
      %695 = vst [vmem:[#allocation2 + $0x70] sm:$0xff] %v663
      %696 = vst [vmem:[#allocation2 + $0x78] sm:$0xff] %v664
      %697 = vst [vmem:[#allocation2 + $0x80] sm:$0xff] %v665
      %698 = vst [vmem:[#allocation2 + $0x88] sm:$0xff] %v666
      %699 = vst [vmem:[#allocation2 + $0x90] sm:$0xff] %v667
      %700 = vst [vmem:[#allocation2 + $0x98] sm:$0xff] %v668
      %701 = vst [vmem:[#allocation2 + $0xa0] sm:$0xff] %v669
      %702 = vst [vmem:[#allocation2 + $0xa8] sm:$0xff] %v670
      %703 = vst [vmem:[#allocation2 + $0xb0] sm:$0xff] %v671
      %704 = vst [vmem:[#allocation2 + $0xb8] sm:$0xff] %v672
      %705 = vst [vmem:[#allocation2 + $0xc0] sm:$0xff] %v673
      %706 = vst [vmem:[#allocation2 + $0xc8] sm:$0xff] %v674
      %707 = vst [vmem:[#allocation2 + $0xd0] sm:$0xff] %v675
      %708 = vst [vmem:[#allocation2 + $0xd8] sm:$0xff] %v676
      %709 = vst [vmem:[#allocation2 + $0xe0] sm:$0xff] %v677
      %710 = vst [vmem:[#allocation2 + $0xe8] sm:$0xff] %v678
      %711 = vst [vmem:[#allocation2 + $0xf0] sm:$0xff] %v679
      %712 = vst [vmem:[#allocation2 + $0xf8] sm:$0xff] %v680
      // Predicated region
      $region41: #{cnn_forward.8} parent=35 // pred_check
        %p713 = pneg %p300
      $region42: #{cnn_forward.8} parent=35 // pred_check_branch
        %715 = sbr.rel (%p713) target = $region44
      $region43: #{cnn_forward.8} parent=35 // pred_region
        %v716 = vld [vmem:[#allocation2] sm:$0xff]
        %v717 = vld [vmem:[#allocation2 + $0x8] sm:$0xff]
        %v718 = vld [vmem:[#allocation2 + $0x10] sm:$0xff]
        %v719 = vld [vmem:[#allocation2 + $0x18] sm:$0xff]
        %v720 = vld [vmem:[#allocation2 + $0x20] sm:$0xff]
        %v721 = vld [vmem:[#allocation2 + $0x28] sm:$0xff]
        %v722 = vld [vmem:[#allocation2 + $0x30] sm:$0xff]
        %v723 = vld [vmem:[#allocation2 + $0x38] sm:$0xff]
        %v724 = vld [vmem:[#allocation2 + $0x40] sm:$0xff]
        %v725 = vld [vmem:[#allocation2 + $0x48] sm:$0xff]
        %v726 = vld [vmem:[#allocation2 + $0x50] sm:$0xff]
        %v727 = vld [vmem:[#allocation2 + $0x58] sm:$0xff]
        %v728 = vld [vmem:[#allocation2 + $0x60] sm:$0xff]
        %v729 = vld [vmem:[#allocation2 + $0x68] sm:$0xff]
        %v730 = vld [vmem:[#allocation2 + $0x70] sm:$0xff]
        %v731 = vld [vmem:[#allocation2 + $0x78] sm:$0xff]
        %v732 = vld [vmem:[#allocation2 + $0x80] sm:$0xff]
        %v733 = vld [vmem:[#allocation2 + $0x88] sm:$0xff]
        %v734 = vld [vmem:[#allocation2 + $0x90] sm:$0xff]
        %v735 = vld [vmem:[#allocation2 + $0x98] sm:$0xff]
        %v736 = vld [vmem:[#allocation2 + $0xa0] sm:$0xff]
        %v737 = vld [vmem:[#allocation2 + $0xa8] sm:$0xff]
        %v738 = vld [vmem:[#allocation2 + $0xb0] sm:$0xff]
        %v739 = vld [vmem:[#allocation2 + $0xb8] sm:$0xff]
        %v740 = vld [vmem:[#allocation2 + $0xc0] sm:$0xff]
        %v741 = vld [vmem:[#allocation2 + $0xc8] sm:$0xff]
        %v742 = vld [vmem:[#allocation2 + $0xd0] sm:$0xff]
        %v743 = vld [vmem:[#allocation2 + $0xd8] sm:$0xff]
        %v744 = vld [vmem:[#allocation2 + $0xe0] sm:$0xff]
        %v745 = vld [vmem:[#allocation2 + $0xe8] sm:$0xff]
        %v746 = vld [vmem:[#allocation2 + $0xf0] sm:$0xff]
        %v747 = vld [vmem:[#allocation2 + $0xf8] sm:$0xff]
        %v748 = vld [vmem:[%s287] sm:$0x1]
        %v750 = vperm.slane %v748, 0
        %v752 = vmul.f32 %v716, %v750
        %v753 = vmul.f32 %v717, %v750
        %v754 = vmul.f32 %v718, %v750
        %v755 = vmul.f32 %v719, %v750
        %v756 = vmul.f32 %v720, %v750
        %v757 = vmul.f32 %v721, %v750
        %v758 = vmul.f32 %v722, %v750
        %v759 = vmul.f32 %v723, %v750
        %v760 = vmul.f32 %v724, %v750
        %v761 = vmul.f32 %v725, %v750
        %v762 = vmul.f32 %v726, %v750
        %v763 = vmul.f32 %v727, %v750
        %v764 = vmul.f32 %v728, %v750
        %v765 = vmul.f32 %v729, %v750
        %v766 = vmul.f32 %v730, %v750
        %v767 = vmul.f32 %v731, %v750
        %v768 = vmul.f32 %v732, %v750
        %v769 = vmul.f32 %v733, %v750
        %v770 = vmul.f32 %v734, %v750
        %v771 = vmul.f32 %v735, %v750
        %v772 = vmul.f32 %v736, %v750
        %v773 = vmul.f32 %v737, %v750
        %v774 = vmul.f32 %v738, %v750
        %v775 = vmul.f32 %v739, %v750
        %v776 = vmul.f32 %v740, %v750
        %v777 = vmul.f32 %v741, %v750
        %v778 = vmul.f32 %v742, %v750
        %v779 = vmul.f32 %v743, %v750
        %v780 = vmul.f32 %v744, %v750
        %v781 = vmul.f32 %v745, %v750
        %v782 = vmul.f32 %v746, %v750
        %v783 = vmul.f32 %v747, %v750
        %v784 = vld [vmem:[%s290] sm:$0x1]
        %v786 = vperm.slane %v784, 0
        %v788 = vadd.f32 %v752, %v786
        %v789 = vadd.f32 %v753, %v786
        %v790 = vadd.f32 %v754, %v786
        %v791 = vadd.f32 %v755, %v786
        %v792 = vadd.f32 %v756, %v786
        %v793 = vadd.f32 %v757, %v786
        %v794 = vadd.f32 %v758, %v786
        %v795 = vadd.f32 %v759, %v786
        %v796 = vadd.f32 %v760, %v786
        %v797 = vadd.f32 %v761, %v786
        %v798 = vadd.f32 %v762, %v786
        %v799 = vadd.f32 %v763, %v786
        %v800 = vadd.f32 %v764, %v786
        %v801 = vadd.f32 %v765, %v786
        %v802 = vadd.f32 %v766, %v786
        %v803 = vadd.f32 %v767, %v786
        %v804 = vadd.f32 %v768, %v786
        %v805 = vadd.f32 %v769, %v786
        %v806 = vadd.f32 %v770, %v786
        %v807 = vadd.f32 %v771, %v786
        %v808 = vadd.f32 %v772, %v786
        %v809 = vadd.f32 %v773, %v786
        %v810 = vadd.f32 %v774, %v786
        %v811 = vadd.f32 %v775, %v786
        %v812 = vadd.f32 %v776, %v786
        %v813 = vadd.f32 %v777, %v786
        %v814 = vadd.f32 %v778, %v786
        %v815 = vadd.f32 %v779, %v786
        %v816 = vadd.f32 %v780, %v786
        %v817 = vadd.f32 %v781, %v786
        %v818 = vadd.f32 %v782, %v786
        %v819 = vadd.f32 %v783, %v786
        %v820 = vmax.f32 %v788, 0.0
        %v821 = vmax.f32 %v789, 0.0
        %v822 = vmax.f32 %v790, 0.0
        %v823 = vmax.f32 %v791, 0.0
        %v824 = vmax.f32 %v792, 0.0
        %v825 = vmax.f32 %v793, 0.0
        %v826 = vmax.f32 %v794, 0.0
        %v827 = vmax.f32 %v795, 0.0
        %v828 = vmax.f32 %v796, 0.0
        %v829 = vmax.f32 %v797, 0.0
        %v830 = vmax.f32 %v798, 0.0
        %v831 = vmax.f32 %v799, 0.0
        %v832 = vmax.f32 %v800, 0.0
        %v833 = vmax.f32 %v801, 0.0
        %v834 = vmax.f32 %v802, 0.0
        %v835 = vmax.f32 %v803, 0.0
        %v836 = vmax.f32 %v804, 0.0
        %v837 = vmax.f32 %v805, 0.0
        %v838 = vmax.f32 %v806, 0.0
        %v839 = vmax.f32 %v807, 0.0
        %v840 = vmax.f32 %v808, 0.0
        %v841 = vmax.f32 %v809, 0.0
        %v842 = vmax.f32 %v810, 0.0
        %v843 = vmax.f32 %v811, 0.0
        %v844 = vmax.f32 %v812, 0.0
        %v845 = vmax.f32 %v813, 0.0
        %v846 = vmax.f32 %v814, 0.0
        %v847 = vmax.f32 %v815, 0.0
        %v848 = vmax.f32 %v816, 0.0
        %v849 = vmax.f32 %v817, 0.0
        %v850 = vmax.f32 %v818, 0.0
        %v851 = vmax.f32 %v819, 0.0
        %852 = vst [vmem:[%s298] sm:$0xff] %v820
        %853 = vst [vmem:[%s298 + $0x8] sm:$0xff] %v821
        %854 = vst [vmem:[%s298 + $0x10] sm:$0xff] %v822
        %855 = vst [vmem:[%s298 + $0x18] sm:$0xff] %v823
        %856 = vst [vmem:[%s298 + $0x20] sm:$0xff] %v824
        %857 = vst [vmem:[%s298 + $0x28] sm:$0xff] %v825
        %858 = vst [vmem:[%s298 + $0x30] sm:$0xff] %v826
        %859 = vst [vmem:[%s298 + $0x38] sm:$0xff] %v827
        %860 = vst [vmem:[%s298 + $0x40] sm:$0xff] %v828
        %861 = vst [vmem:[%s298 + $0x48] sm:$0xff] %v829
        %862 = vst [vmem:[%s298 + $0x50] sm:$0xff] %v830
        %863 = vst [vmem:[%s298 + $0x58] sm:$0xff] %v831
        %864 = vst [vmem:[%s298 + $0x60] sm:$0xff] %v832
        %865 = vst [vmem:[%s298 + $0x68] sm:$0xff] %v833
        %866 = vst [vmem:[%s298 + $0x70] sm:$0xff] %v834
        %867 = vst [vmem:[%s298 + $0x78] sm:$0xff] %v835
        %868 = vst [vmem:[%s298 + $0x80] sm:$0xff] %v836
        %869 = vst [vmem:[%s298 + $0x88] sm:$0xff] %v837
        %870 = vst [vmem:[%s298 + $0x90] sm:$0xff] %v838
        %871 = vst [vmem:[%s298 + $0x98] sm:$0xff] %v839
        %872 = vst [vmem:[%s298 + $0xa0] sm:$0xff] %v840
        %873 = vst [vmem:[%s298 + $0xa8] sm:$0xff] %v841
        %874 = vst [vmem:[%s298 + $0xb0] sm:$0xff] %v842
        %875 = vst [vmem:[%s298 + $0xb8] sm:$0xff] %v843
        %876 = vst [vmem:[%s298 + $0xc0] sm:$0xff] %v844
        %877 = vst [vmem:[%s298 + $0xc8] sm:$0xff] %v845
        %878 = vst [vmem:[%s298 + $0xd0] sm:$0xff] %v846
        %879 = vst [vmem:[%s298 + $0xd8] sm:$0xff] %v847
        %880 = vst [vmem:[%s298 + $0xe0] sm:$0xff] %v848
        %881 = vst [vmem:[%s298 + $0xe8] sm:$0xff] %v849
        %882 = vst [vmem:[%s298 + $0xf0] sm:$0xff] %v850
        %883 = vst [vmem:[%s298 + $0xf8] sm:$0xff] %v851
      $region44: #{cnn_forward.8} parent=35 // pred_fallthru
        _
      %s884 = smul.u32 32, %s20
      %p885 = scmp.lt.s32.totalorder %s884, 191
      %s886 = scalar_select %p885, %s884, 191
      %p887 = scmp.lt.s32.totalorder %s21, 0
      %s888 = scalar_select %p887, %s21, 0
      %s889 = sadd.s32 %s888, %s886
      %s890 = smul.addr %s889, 8
      %s891 = scalar_lea.vmem %s4, %s890
      // Predicated region
      $region45: #{cnn_forward.8} parent=35 // pred_check
        %p892 = pneg %p162
      $region46: #{cnn_forward.8} parent=35 // pred_check_branch
        %894 = sbr.rel (%p892) target = $region48
      $region47: #{cnn_forward.8} parent=35 // pred_region
        %s895 = smul.u32 32, %s20
      $region48: #{cnn_forward.8} parent=35 // pred_fallthru
        _
    $region36: #{cnn_forward.8} parent=5 // pred_fallthru
      _
    %p896 = scmp.le.s32.totalorder 2, %s10
    // Predicated region
    $region49: #{cnn_forward.8} parent=5 // pred_check
      %p897 = pneg %p896
    $region50: #{cnn_forward.8} parent=5 // pred_check_branch
      %899 = sbr.rel (%p897) target = $region52
    $region51: #{cnn_forward.8} parent=5 // pred_region
      %s900 = ssub.s32 %s10, 2
      // Predicated region
      $region53: #{cnn_forward.8} parent=51 // pred_check
        %p901 = pneg %p168
      $region54: #{cnn_forward.8} parent=51 // pred_check_branch
        %903 = sbr.rel (%p901) target = $region56
      $region55: #{cnn_forward.8} parent=51 // pred_region
        %s904 = smul.u32 32, %s23
        %p905 = scmp.lt.s32.totalorder %s904, 191
        %s906 = scalar_select %p905, %s904, 191
        %p907 = scmp.lt.s32.totalorder %s24, 0
        %s908 = scalar_select %p907, %s24, 0
        %s909 = sadd.s32 %s908, %s906
        %s910 = smul.addr %s909, 8
        %s911 = scalar_lea.vmem %s4, %s910
      $region56: #{cnn_forward.8} parent=51 // pred_fallthru
        _
    $region52: #{cnn_forward.8} parent=5 // pred_fallthru
      _
  $region6: #{cnn_forward.8} parent=0 // loop_footer
    %s14 = sadd.s32 1, %s10
  $region7: #{cnn_forward.8} parent=0 // loop_footer_branch
    %9 = sbr.rel target = $region3
  $region8: #{cnn_forward.8} parent=0 // loop_exit
    _

// kernel: cnn_forward.9
$region0: #{cnn_forward.9}
  #allocation0 [shape = 'u32[]', space=smem, size = 0x4, offset = 0x4, fixed_abs, tag = 'smem constant byte address 0x4 - core index']
  #allocation1 [shape = 'u32[72,128]{1,0:T(1,128)}', space=vmem, size = 0x9000, scoped, tag = 'internal scratch']
  #allocation2 [shape = 'f32[256,128]{1,0:T(8,128)}', space=vmem, size = 0x20000, scoped, tag = 'scratch operand']
  %s0 = inlined_call_operand.vmem [shape: bf16[512,512], index: 0, kind: input, shape index: {}]
  %s1 = inlined_call_operand.vmem [shape: bf16[512,128], index: 1, kind: input, shape index: {}]
  %s2 = inlined_call_operand.vmem [shape: f32[1,128], index: 2, kind: input, shape index: {}]
  %s3 = inlined_call_operand.vmem [shape: f32[1,128], index: 3, kind: input, shape index: {}]
  %s4 = inlined_call_operand.vmem [shape: f32[512,128], index: 4, kind: output, shape index: {}]
  %s5 = sld [smem:[#allocation0]]
  $region57: #{cnn_forward.9} parent=0
    _
  %s7 = ssub.s32 1, %s5
  %s8 = scalar_select 0, %s7, %s5
  loop: start=0, step=1, limit=4
  $region2: #{cnn_forward.9} parent=0 // loop_pre_header
    _
  $region3: #{cnn_forward.9} parent=0 // loop_header
    %s10 = sphi 0, %s14
    %p11 = scmp.ge.s32.totalorder %s10, 4
    %s17 = sphi 0, %s36
    %s18 = sphi 0, %s32
    %s19 = sphi 0, %s28
    %s20 = sphi 0, %s17
    %s21 = sphi 0, %s18
    %s22 = sphi 0, %s19
    %s23 = sphi 0, %s20
    %s24 = sphi 0, %s21
    %s25 = sphi 0, %s22
    %s41 = sphi 0, %s43
    %s44 = sphi 0, %s41
    %s45 = sphi 0, %s44
    %s61 = sphi 0, %s45
    %s69 = sphi 0, %s71
    %s72 = sphi 0, %s69
    %s73 = sphi 0, %s72
    %s89 = sphi 0, %s73
    %s95 = sphi 0, %s97
    %s98 = sphi 0, %s95
    %s99 = sphi 0, %s98
    %s115 = sphi 0, %s99
    %s121 = sphi 0, %s123
    %s124 = sphi 0, %s121
    %s125 = sphi 0, %s124
    %s141 = sphi 0, %s125
    %s149 = sphi 0, %s151
    %s152 = sphi 0, %s149
    %s153 = sphi 0, %s152
    %s169 = sphi 0, %s153
  $region4: #{cnn_forward.9} parent=0 // loop_header_branch
    %13 = sbr.rel (%p11) target = $region8
  $region5: #{cnn_forward.9} parent=0 // loop_body
    %s15 = ssub.s32 %s10, 1
    %s16 = ssub.s32 %s10, 2
    %s26 = sadd.s32 1, %s19
    %p27 = scmp.ge.s32.totalorder %s26, 1
    %s28 = scalar_select %p27, 0, %s26
    %s29 = sadd.s32 1, %s18
    %s30 = scalar_select %p27, %s29, %s18
    %p31 = scmp.ge.s32.totalorder %s30, 1
    %s32 = scalar_select %p31, 0, %s30
    %s33 = sadd.s32 1, %s17
    %s34 = scalar_select %p31, %s33, %s17
    %p35 = scmp.ge.s32.totalorder %s34, 2
    %s36 = scalar_select %p35, 0, %s34
    %s37 = ssub.s32 %s17, %s36
    %s38 = ssub.s32 %s19, %s28
    %s39 = sor.u32 %s37, %s38
    %p40 = scmp.eq.s32.totalorder %s39, 0
    %s42 = sadd.s32 %s41, 1
    %s43 = scalar_select %p40, %s41, %s42
    %p46 = pneg %p40
    %p47 = scmp.eq.s32.totalorder %s10, 1
    %p48 = por %p46, %p47
    %p49 = scmp.ne.s32.totalorder %s41, %s44
    %p50 = scmp.eq.s32.totalorder %s10, 0
    %p51 = por %p49, %p50
    %p52 = scmp.ne.s32.totalorder %s41, %s44
    %p53 = scmp.eq.s32.totalorder %s15, 1
    %p54 = por %p52, %p53
    %p55 = scmp.ne.s32.totalorder %s44, %s45
    %p56 = scmp.eq.s32.totalorder %s15, 0
    %p57 = por %p55, %p56
    %p58 = scmp.ne.s32.totalorder %s44, %s45
    %p59 = scmp.eq.s32.totalorder %s16, 1
    %p60 = por %p58, %p59
    %p62 = scmp.ne.s32.totalorder %s45, %s61
    %p63 = scmp.eq.s32.totalorder %s16, 0
    %p64 = por %p62, %p63
    %s65 = ssub.s32 %s19, %s28
    %s66 = ssub.s32 %s18, %s32
    %s67 = sor.u32 %s65, %s66
    %p68 = scmp.eq.s32.totalorder %s67, 0
    %s70 = sadd.s32 %s69, 1
    %s71 = scalar_select %p68, %s69, %s70
    %p74 = pneg %p68
    %p75 = scmp.eq.s32.totalorder %s10, 1
    %p76 = por %p74, %p75
    %p77 = scmp.ne.s32.totalorder %s69, %s72
    %p78 = scmp.eq.s32.totalorder %s10, 0
    %p79 = por %p77, %p78
    %p80 = scmp.ne.s32.totalorder %s69, %s72
    %p81 = scmp.eq.s32.totalorder %s15, 1
    %p82 = por %p80, %p81
    %p83 = scmp.ne.s32.totalorder %s72, %s73
    %p84 = scmp.eq.s32.totalorder %s15, 0
    %p85 = por %p83, %p84
    %p86 = scmp.ne.s32.totalorder %s72, %s73
    %p87 = scmp.eq.s32.totalorder %s16, 1
    %p88 = por %p86, %p87
    %p90 = scmp.ne.s32.totalorder %s73, %s89
    %p91 = scmp.eq.s32.totalorder %s16, 0
    %p92 = por %p90, %p91
    %s93 = ssub.s32 %s18, %s32
    %p94 = scmp.eq.s32.totalorder %s93, 0
    %s96 = sadd.s32 %s95, 1
    %s97 = scalar_select %p94, %s95, %s96
    %p100 = pneg %p94
    %p101 = scmp.eq.s32.totalorder %s10, 1
    %p102 = por %p100, %p101
    %p103 = scmp.ne.s32.totalorder %s95, %s98
    %p104 = scmp.eq.s32.totalorder %s10, 0
    %p105 = por %p103, %p104
    %p106 = scmp.ne.s32.totalorder %s95, %s98
    %p107 = scmp.eq.s32.totalorder %s15, 1
    %p108 = por %p106, %p107
    %p109 = scmp.ne.s32.totalorder %s98, %s99
    %p110 = scmp.eq.s32.totalorder %s15, 0
    %p111 = por %p109, %p110
    %p112 = scmp.ne.s32.totalorder %s98, %s99
    %p113 = scmp.eq.s32.totalorder %s16, 1
    %p114 = por %p112, %p113
    %p116 = scmp.ne.s32.totalorder %s99, %s115
    %p117 = scmp.eq.s32.totalorder %s16, 0
    %p118 = por %p116, %p117
    %s119 = ssub.s32 %s18, %s32
    %p120 = scmp.eq.s32.totalorder %s119, 0
    %s122 = sadd.s32 %s121, 1
    %s123 = scalar_select %p120, %s121, %s122
    %p126 = pneg %p120
    %p127 = scmp.eq.s32.totalorder %s10, 1
    %p128 = por %p126, %p127
    %p129 = scmp.ne.s32.totalorder %s121, %s124
    %p130 = scmp.eq.s32.totalorder %s10, 0
    %p131 = por %p129, %p130
    %p132 = scmp.ne.s32.totalorder %s121, %s124
    %p133 = scmp.eq.s32.totalorder %s15, 1
    %p134 = por %p132, %p133
    %p135 = scmp.ne.s32.totalorder %s124, %s125
    %p136 = scmp.eq.s32.totalorder %s15, 0
    %p137 = por %p135, %p136
    %p138 = scmp.ne.s32.totalorder %s124, %s125
    %p139 = scmp.eq.s32.totalorder %s16, 1
    %p140 = por %p138, %p139
    %p142 = scmp.ne.s32.totalorder %s125, %s141
    %p143 = scmp.eq.s32.totalorder %s16, 0
    %p144 = por %p142, %p143
    %s145 = ssub.s32 %s17, %s36
    %s146 = ssub.s32 %s18, %s32
    %s147 = sor.u32 %s145, %s146
    %p148 = scmp.eq.s32.totalorder %s147, 0
    %s150 = sadd.s32 %s149, 1
    %s151 = scalar_select %p148, %s149, %s150
    %p154 = pneg %p148
    %p155 = scmp.eq.s32.totalorder %s10, 1
    %p156 = por %p154, %p155
    %p157 = scmp.ne.s32.totalorder %s149, %s152
    %p158 = scmp.eq.s32.totalorder %s10, 0
    %p159 = por %p157, %p158
    %p160 = scmp.ne.s32.totalorder %s149, %s152
    %p161 = scmp.eq.s32.totalorder %s15, 1
    %p162 = por %p160, %p161
    %p163 = scmp.ne.s32.totalorder %s152, %s153
    %p164 = scmp.eq.s32.totalorder %s15, 0
    %p165 = por %p163, %p164
    %p166 = scmp.ne.s32.totalorder %s152, %s153
    %p167 = scmp.eq.s32.totalorder %s16, 1
    %p168 = por %p166, %p167
    %p170 = scmp.ne.s32.totalorder %s153, %s169
    %p171 = scmp.eq.s32.totalorder %s16, 0
    %p172 = por %p170, %p171
    %p173 = scmp.le.s32.totalorder 1, %s10
    %p174 = scmp.lt.s32.totalorder %s10, 3
    %p175 = pnand %p173, %p174
    %p176 = pneg %p175
    // Predicated region
    $region9: #{cnn_forward.9} parent=5 // pred_check
      _
    $region10: #{cnn_forward.9} parent=5 // pred_check_branch
      %178 = sbr.rel (%p175) target = $region12
    $region11: #{cnn_forward.9} parent=5 // pred_region
      %s179 = ssub.s32 %s10, 1
      // Predicated region
      $region13: #{cnn_forward.9} parent=11 // pred_check
        %p180 = pneg %p85
      $region14: #{cnn_forward.9} parent=11 // pred_check_branch
        %182 = sbr.rel (%p180) target = $region16
      $region15: #{cnn_forward.9} parent=11 // pred_region
        %s183 = smul.u32 64, %s22
        %p184 = scmp.lt.s32.totalorder %s183, 63
        %s185 = scalar_select %p184, %s183, 63
        %p186 = scmp.lt.s32.totalorder %s21, 0
        %s187 = scalar_select %p186, %s21, 0
        %s188 = sadd.s32 %s187, %s185
        %s189 = smul.addr %s188, 4
        %s190 = scalar_lea.vmem %s1, %s189
        %s191 = smul.u32 64, %s22
      $region16: #{cnn_forward.9} parent=11 // pred_fallthru
        _
      // Predicated region
      $region17: #{cnn_forward.9} parent=11 // pred_check
        %p192 = pneg %p111
      $region18: #{cnn_forward.9} parent=11 // pred_check_branch
        %194 = sbr.rel (%p192) target = $region20
      $region19: #{cnn_forward.9} parent=11 // pred_region
        %p195 = scmp.lt.s32.totalorder %s21, 0
        %s196 = scalar_select %p195, %s21, 0
        %s197 = scalar_lea.vmem %s2, %s196
      $region20: #{cnn_forward.9} parent=11 // pred_fallthru
        _
      // Predicated region
      $region21: #{cnn_forward.9} parent=11 // pred_check
        %p198 = pneg %p137
      $region22: #{cnn_forward.9} parent=11 // pred_check_branch
        %200 = sbr.rel (%p198) target = $region24
      $region23: #{cnn_forward.9} parent=11 // pred_region
        %p201 = scmp.lt.s32.totalorder %s21, 0
        %s202 = scalar_select %p201, %s21, 0
        %s203 = scalar_lea.vmem %s3, %s202
      $region24: #{cnn_forward.9} parent=11 // pred_fallthru
        _
    $region12: #{cnn_forward.9} parent=5 // pred_fallthru
      _
    %p204 = scmp.lt.s32.totalorder %s10, 2
    // Predicated region
    $region25: #{cnn_forward.9} parent=5 // pred_check
      %p205 = pneg %p204
    $region26: #{cnn_forward.9} parent=5 // pred_check_branch
      %207 = sbr.rel (%p205) target = $region28
    $region27: #{cnn_forward.9} parent=5 // pred_region
      // Predicated region
      $region29: #{cnn_forward.9} parent=27 // pred_check
        %p208 = pneg %p51
      $region30: #{cnn_forward.9} parent=27 // pred_check_branch
        %210 = sbr.rel (%p208) target = $region32
      $region31: #{cnn_forward.9} parent=27 // pred_region
        %s211 = smul.u32 32, %s17
        %s212 = smul.u32 4, %s19
        %p213 = scmp.lt.s32.totalorder %s211, 63
        %s214 = scalar_select %p213, %s211, 63
        %p215 = scmp.lt.s32.totalorder %s212, 3
        %s216 = scalar_select %p215, %s212, 3
        %s217 = smul.addr %s214, 4
        %s218 = sadd.s32 %s216, %s217
        %s219 = smul.addr %s218, 4
        %s220 = scalar_lea.vmem %s0, %s219
        %s221 = smul.u32 32, %s17
        %s222 = smul.u32 4, %s19
      $region32: #{cnn_forward.9} parent=27 // pred_fallthru
        _
    $region28: #{cnn_forward.9} parent=5 // pred_fallthru
      _
    %p223 = scmp.le.s32.totalorder 1, %s10
    %p224 = scmp.lt.s32.totalorder %s10, 3
    %p225 = pnand %p223, %p224
    %p226 = pneg %p225
    // Predicated region
    $region33: #{cnn_forward.9} parent=5 // pred_check
      _
    $region34: #{cnn_forward.9} parent=5 // pred_check_branch
      %228 = sbr.rel (%p225) target = $region36
    $region35: #{cnn_forward.9} parent=5 // pred_region
      %s229 = ssub.s32 %s10, 1
      %s230 = smul.u32 32, %s20
      %s231 = smul.u32 4, %s22
      %p232 = scmp.lt.s32.totalorder %s230, 63
      %s233 = scalar_select %p232, %s230, 63
      %p234 = scmp.lt.s32.totalorder %s231, 3
      %s235 = scalar_select %p234, %s231, 3
      %s236 = smul.addr %s233, 4
      %s237 = sadd.s32 %s235, %s236
      %s238 = smul.addr %s237, 4
      %s239 = scalar_lea.vmem %s0, %s238
      %p240 = pneg %p57
      %p241 = pneg %p54
      %s242 = smul.u32 64, %s22
      %p243 = scmp.lt.s32.totalorder %s242, 63
      %s244 = scalar_select %p243, %s242, 63
      %p245 = scmp.lt.s32.totalorder %s21, 0
      %s246 = scalar_select %p245, %s21, 0
      %s247 = sadd.s32 %s246, %s244
      %s248 = smul.addr %s247, 4
      %s249 = scalar_lea.vmem %s1, %s248
      %p250 = pneg %p85
      %p251 = pneg %p82
      %p252 = scmp.lt.s32.totalorder %s21, 0
      %s253 = scalar_select %p252, %s21, 0
      %s254 = scalar_lea.vmem %s2, %s253
      %p255 = pneg %p111
      %p256 = pneg %p108
      %p257 = scmp.lt.s32.totalorder %s21, 0
      %s258 = scalar_select %p257, %s21, 0
      %s259 = scalar_lea.vmem %s3, %s258
      %p260 = pneg %p137
      %p261 = pneg %p134
      %p262 = pneg %p165
      %p263 = pneg %p162
      %s264 = smul.u32 32, %s20
      %p265 = scmp.lt.s32.totalorder %s264, 63
      %s266 = scalar_select %p265, %s264, 63
      %p267 = scmp.lt.s32.totalorder %s21, 0
      %s268 = scalar_select %p267, %s21, 0
      %s269 = sadd.s32 %s268, %s266
      %s270 = smul.addr %s269, 8
      %s271 = scalar_lea.vmem %s4, %s270
      %s272 = smul.u32 32, %s20
      %s273 = smul.u32 4, %s22
      %p274 = scmp.lt.s32.totalorder %s272, 63
      %s275 = scalar_select %p274, %s272, 63
      %p276 = scmp.lt.s32.totalorder %s273, 3
      %s277 = scalar_select %p276, %s273, 3
      %s278 = smul.addr %s275, 4
      %s279 = sadd.s32 %s277, %s278
      %s280 = smul.addr %s279, 4
      %s281 = scalar_lea.vmem %s0, %s280
      %s282 = smul.u32 32, %s20
      %s283 = smul.u32 4, %s22
      %s284 = smul.u32 64, %s22
      %p285 = scmp.lt.s32.totalorder %s284, 63
      %s286 = scalar_select %p285, %s284, 63
      %p287 = scmp.lt.s32.totalorder %s21, 0
      %s288 = scalar_select %p287, %s21, 0
      %s289 = sadd.s32 %s288, %s286
      %s290 = smul.addr %s289, 4
      %s291 = scalar_lea.vmem %s1, %s290
      %s292 = smul.u32 64, %s22
      %p293 = scmp.lt.s32.totalorder %s21, 0
      %s294 = scalar_select %p293, %s21, 0
      %s295 = scalar_lea.vmem %s2, %s294
      %p296 = scmp.lt.s32.totalorder %s21, 0
      %s297 = scalar_select %p296, %s21, 0
      %s298 = scalar_lea.vmem %s3, %s297
      %s299 = smul.u32 32, %s20
      %p300 = scmp.lt.s32.totalorder %s299, 63
      %s301 = scalar_select %p300, %s299, 63
      %p302 = scmp.lt.s32.totalorder %s21, 0
      %s303 = scalar_select %p302, %s21, 0
      %s304 = sadd.s32 %s303, %s301
      %s305 = smul.addr %s304, 8
      %s306 = scalar_lea.vmem %s4, %s305
      %s307 = smul.u32 32, %s20
      %p308 = scmp.eq.s32.totalorder %s22, 0
      // Predicated region
      $region37: #{cnn_forward.9} parent=35 // pred_check
        %p309 = pneg %p308
      $region38: #{cnn_forward.9} parent=35 // pred_check_branch
        %311 = sbr.rel (%p309) target = $region40
      $region39: #{cnn_forward.9} parent=35 // pred_region
        %312 = vst [vmem:[#allocation2] sm:$0xff] 0.0
        %313 = vst [vmem:[#allocation2 + $0x8] sm:$0xff] 0.0
        %314 = vst [vmem:[#allocation2 + $0x10] sm:$0xff] 0.0
        %315 = vst [vmem:[#allocation2 + $0x18] sm:$0xff] 0.0
        %316 = vst [vmem:[#allocation2 + $0x20] sm:$0xff] 0.0
        %317 = vst [vmem:[#allocation2 + $0x28] sm:$0xff] 0.0
        %318 = vst [vmem:[#allocation2 + $0x30] sm:$0xff] 0.0
        %319 = vst [vmem:[#allocation2 + $0x38] sm:$0xff] 0.0
        %320 = vst [vmem:[#allocation2 + $0x40] sm:$0xff] 0.0
        %321 = vst [vmem:[#allocation2 + $0x48] sm:$0xff] 0.0
        %322 = vst [vmem:[#allocation2 + $0x50] sm:$0xff] 0.0
        %323 = vst [vmem:[#allocation2 + $0x58] sm:$0xff] 0.0
        %324 = vst [vmem:[#allocation2 + $0x60] sm:$0xff] 0.0
        %325 = vst [vmem:[#allocation2 + $0x68] sm:$0xff] 0.0
        %326 = vst [vmem:[#allocation2 + $0x70] sm:$0xff] 0.0
        %327 = vst [vmem:[#allocation2 + $0x78] sm:$0xff] 0.0
        %328 = vst [vmem:[#allocation2 + $0x80] sm:$0xff] 0.0
        %329 = vst [vmem:[#allocation2 + $0x88] sm:$0xff] 0.0
        %330 = vst [vmem:[#allocation2 + $0x90] sm:$0xff] 0.0
        %331 = vst [vmem:[#allocation2 + $0x98] sm:$0xff] 0.0
        %332 = vst [vmem:[#allocation2 + $0xa0] sm:$0xff] 0.0
        %333 = vst [vmem:[#allocation2 + $0xa8] sm:$0xff] 0.0
        %334 = vst [vmem:[#allocation2 + $0xb0] sm:$0xff] 0.0
        %335 = vst [vmem:[#allocation2 + $0xb8] sm:$0xff] 0.0
        %336 = vst [vmem:[#allocation2 + $0xc0] sm:$0xff] 0.0
        %337 = vst [vmem:[#allocation2 + $0xc8] sm:$0xff] 0.0
        %338 = vst [vmem:[#allocation2 + $0xd0] sm:$0xff] 0.0
        %339 = vst [vmem:[#allocation2 + $0xd8] sm:$0xff] 0.0
        %340 = vst [vmem:[#allocation2 + $0xe0] sm:$0xff] 0.0
        %341 = vst [vmem:[#allocation2 + $0xe8] sm:$0xff] 0.0
        %342 = vst [vmem:[#allocation2 + $0xf0] sm:$0xff] 0.0
        %343 = vst [vmem:[#allocation2 + $0xf8] sm:$0xff] 0.0
      $region40: #{cnn_forward.9} parent=35 // pred_fallthru
        _
      %v344 = vld [vmem:[#allocation2] sm:$0xff]
      %v345 = vld [vmem:[#allocation2 + $0x8] sm:$0xff]
      %v346 = vld [vmem:[#allocation2 + $0x10] sm:$0xff]
      %v347 = vld [vmem:[#allocation2 + $0x18] sm:$0xff]
      %v348 = vld [vmem:[#allocation2 + $0x20] sm:$0xff]
      %v349 = vld [vmem:[#allocation2 + $0x28] sm:$0xff]
      %v350 = vld [vmem:[#allocation2 + $0x30] sm:$0xff]
      %v351 = vld [vmem:[#allocation2 + $0x38] sm:$0xff]
      %v352 = vld [vmem:[#allocation2 + $0x40] sm:$0xff]
      %v353 = vld [vmem:[#allocation2 + $0x48] sm:$0xff]
      %v354 = vld [vmem:[#allocation2 + $0x50] sm:$0xff]
      %v355 = vld [vmem:[#allocation2 + $0x58] sm:$0xff]
      %v356 = vld [vmem:[#allocation2 + $0x60] sm:$0xff]
      %v357 = vld [vmem:[#allocation2 + $0x68] sm:$0xff]
      %v358 = vld [vmem:[#allocation2 + $0x70] sm:$0xff]
      %v359 = vld [vmem:[#allocation2 + $0x78] sm:$0xff]
      %v360 = vld [vmem:[#allocation2 + $0x80] sm:$0xff]
      %v361 = vld [vmem:[#allocation2 + $0x88] sm:$0xff]
      %v362 = vld [vmem:[#allocation2 + $0x90] sm:$0xff]
      %v363 = vld [vmem:[#allocation2 + $0x98] sm:$0xff]
      %v364 = vld [vmem:[#allocation2 + $0xa0] sm:$0xff]
      %v365 = vld [vmem:[#allocation2 + $0xa8] sm:$0xff]
      %v366 = vld [vmem:[#allocation2 + $0xb0] sm:$0xff]
      %v367 = vld [vmem:[#allocation2 + $0xb8] sm:$0xff]
      %v368 = vld [vmem:[#allocation2 + $0xc0] sm:$0xff]
      %v369 = vld [vmem:[#allocation2 + $0xc8] sm:$0xff]
      %v370 = vld [vmem:[#allocation2 + $0xd0] sm:$0xff]
      %v371 = vld [vmem:[#allocation2 + $0xd8] sm:$0xff]
      %v372 = vld [vmem:[#allocation2 + $0xe0] sm:$0xff]
      %v373 = vld [vmem:[#allocation2 + $0xe8] sm:$0xff]
      %v374 = vld [vmem:[#allocation2 + $0xf0] sm:$0xff]
      %v375 = vld [vmem:[#allocation2 + $0xf8] sm:$0xff]
      %v376 = vld [vmem:[%s281] sm:$0xff]
      %v377 = vld [vmem:[%s281 + $0x8] sm:$0xff]
      %v378 = vld [vmem:[%s281 + $0x10] sm:$0xff]
      %v379 = vld [vmem:[%s281 + $0x18] sm:$0xff]
      %v380 = vld [vmem:[%s281 + $0x20] sm:$0xff]
      %v381 = vld [vmem:[%s281 + $0x28] sm:$0xff]
      %v382 = vld [vmem:[%s281 + $0x30] sm:$0xff]
      %v383 = vld [vmem:[%s281 + $0x38] sm:$0xff]
      %v384 = vld [vmem:[%s281 + $0x40] sm:$0xff]
      %v385 = vld [vmem:[%s281 + $0x48] sm:$0xff]
      %v386 = vld [vmem:[%s281 + $0x50] sm:$0xff]
      %v387 = vld [vmem:[%s281 + $0x58] sm:$0xff]
      %v388 = vld [vmem:[%s281 + $0x60] sm:$0xff]
      %v389 = vld [vmem:[%s281 + $0x68] sm:$0xff]
      %v390 = vld [vmem:[%s281 + $0x70] sm:$0xff]
      %v391 = vld [vmem:[%s281 + $0x78] sm:$0xff]
      %v392 = vld [vmem:[%s281 + $0x80] sm:$0xff]
      %v393 = vld [vmem:[%s281 + $0x88] sm:$0xff]
      %v394 = vld [vmem:[%s281 + $0x90] sm:$0xff]
      %v395 = vld [vmem:[%s281 + $0x98] sm:$0xff]
      %v396 = vld [vmem:[%s281 + $0xa0] sm:$0xff]
      %v397 = vld [vmem:[%s281 + $0xa8] sm:$0xff]
      %v398 = vld [vmem:[%s281 + $0xb0] sm:$0xff]
      %v399 = vld [vmem:[%s281 + $0xb8] sm:$0xff]
      %v400 = vld [vmem:[%s281 + $0xc0] sm:$0xff]
      %v401 = vld [vmem:[%s281 + $0xc8] sm:$0xff]
      %v402 = vld [vmem:[%s281 + $0xd0] sm:$0xff]
      %v403 = vld [vmem:[%s281 + $0xd8] sm:$0xff]
      %v404 = vld [vmem:[%s281 + $0xe0] sm:$0xff]
      %v405 = vld [vmem:[%s281 + $0xe8] sm:$0xff]
      %v406 = vld [vmem:[%s281 + $0xf0] sm:$0xff]
      %v407 = vld [vmem:[%s281 + $0xf8] sm:$0xff]
      %v408 = vld [vmem:[%s281 + $0x100] sm:$0xff]
      %v409 = vld [vmem:[%s281 + $0x108] sm:$0xff]
      %v410 = vld [vmem:[%s281 + $0x110] sm:$0xff]
      %v411 = vld [vmem:[%s281 + $0x118] sm:$0xff]
      %v412 = vld [vmem:[%s281 + $0x120] sm:$0xff]
      %v413 = vld [vmem:[%s281 + $0x128] sm:$0xff]
      %v414 = vld [vmem:[%s281 + $0x130] sm:$0xff]
      %v415 = vld [vmem:[%s281 + $0x138] sm:$0xff]
      %v416 = vld [vmem:[%s281 + $0x140] sm:$0xff]
      %v417 = vld [vmem:[%s281 + $0x148] sm:$0xff]
      %v418 = vld [vmem:[%s281 + $0x150] sm:$0xff]
      %v419 = vld [vmem:[%s281 + $0x158] sm:$0xff]
      %v420 = vld [vmem:[%s281 + $0x160] sm:$0xff]
      %v421 = vld [vmem:[%s281 + $0x168] sm:$0xff]
      %v422 = vld [vmem:[%s281 + $0x170] sm:$0xff]
      %v423 = vld [vmem:[%s281 + $0x178] sm:$0xff]
      %v424 = vld [vmem:[%s281 + $0x180] sm:$0xff]
      %v425 = vld [vmem:[%s281 + $0x188] sm:$0xff]
      %v426 = vld [vmem:[%s281 + $0x190] sm:$0xff]
      %v427 = vld [vmem:[%s281 + $0x198] sm:$0xff]
      %v428 = vld [vmem:[%s281 + $0x1a0] sm:$0xff]
      %v429 = vld [vmem:[%s281 + $0x1a8] sm:$0xff]
      %v430 = vld [vmem:[%s281 + $0x1b0] sm:$0xff]
      %v431 = vld [vmem:[%s281 + $0x1b8] sm:$0xff]
      %v432 = vld [vmem:[%s281 + $0x1c0] sm:$0xff]
      %v433 = vld [vmem:[%s281 + $0x1c8] sm:$0xff]
      %v434 = vld [vmem:[%s281 + $0x1d0] sm:$0xff]
      %v435 = vld [vmem:[%s281 + $0x1d8] sm:$0xff]
      %v436 = vld [vmem:[%s281 + $0x1e0] sm:$0xff]
      %v437 = vld [vmem:[%s281 + $0x1e8] sm:$0xff]
      %v438 = vld [vmem:[%s281 + $0x1f0] sm:$0xff]
      %v439 = vld [vmem:[%s281 + $0x1f8] sm:$0xff]
      %v440 = vld [vmem:[%s291] sm:$0xf]
      %v441 = vld [vmem:[%s291 + $0x4] sm:$0xf]
      %v442 = vld [vmem:[%s291 + $0x8] sm:$0xf]
      %v443 = vld [vmem:[%s291 + $0xc] sm:$0xf]
      %v444 = vld [vmem:[%s291 + $0x10] sm:$0xf]
      %v445 = vld [vmem:[%s291 + $0x14] sm:$0xf]
      %v446 = vld [vmem:[%s291 + $0x18] sm:$0xf]
      %v447 = vld [vmem:[%s291 + $0x1c] sm:$0xf]
      %v448 = vld [vmem:[%s291 + $0x20] sm:$0xf]
      %v449 = vld [vmem:[%s291 + $0x24] sm:$0xf]
      %v450 = vld [vmem:[%s291 + $0x28] sm:$0xf]
      %v451 = vld [vmem:[%s291 + $0x2c] sm:$0xf]
      %v452 = vld [vmem:[%s291 + $0x30] sm:$0xf]
      %v453 = vld [vmem:[%s291 + $0x34] sm:$0xf]
      %v454 = vld [vmem:[%s291 + $0x38] sm:$0xf]
      %v455 = vld [vmem:[%s291 + $0x3c] sm:$0xf]
      %v456 = vld [vmem:[%s291 + $0x40] sm:$0xf]
      %v457 = vld [vmem:[%s291 + $0x44] sm:$0xf]
      %v458 = vld [vmem:[%s291 + $0x48] sm:$0xf]
      %v459 = vld [vmem:[%s291 + $0x4c] sm:$0xf]
      %v460 = vld [vmem:[%s291 + $0x50] sm:$0xf]
      %v461 = vld [vmem:[%s291 + $0x54] sm:$0xf]
      %v462 = vld [vmem:[%s291 + $0x58] sm:$0xf]
      %v463 = vld [vmem:[%s291 + $0x5c] sm:$0xf]
      %v464 = vld [vmem:[%s291 + $0x60] sm:$0xf]
      %v465 = vld [vmem:[%s291 + $0x64] sm:$0xf]
      %v466 = vld [vmem:[%s291 + $0x68] sm:$0xf]
      %v467 = vld [vmem:[%s291 + $0x6c] sm:$0xf]
      %v468 = vld [vmem:[%s291 + $0x70] sm:$0xf]
      %v469 = vld [vmem:[%s291 + $0x74] sm:$0xf]
      %v470 = vld [vmem:[%s291 + $0x78] sm:$0xf]
      %v471 = vld [vmem:[%s291 + $0x7c] sm:$0xf]
      %v472 = vld [vmem:[%s291 + $0x80] sm:$0xf]
      %v473 = vld [vmem:[%s291 + $0x84] sm:$0xf]
      %v474 = vld [vmem:[%s291 + $0x88] sm:$0xf]
      %v475 = vld [vmem:[%s291 + $0x8c] sm:$0xf]
      %v476 = vld [vmem:[%s291 + $0x90] sm:$0xf]
      %v477 = vld [vmem:[%s291 + $0x94] sm:$0xf]
      %v478 = vld [vmem:[%s291 + $0x98] sm:$0xf]
      %v479 = vld [vmem:[%s291 + $0x9c] sm:$0xf]
      %v480 = vld [vmem:[%s291 + $0xa0] sm:$0xf]
      %v481 = vld [vmem:[%s291 + $0xa4] sm:$0xf]
      %v482 = vld [vmem:[%s291 + $0xa8] sm:$0xf]
      %v483 = vld [vmem:[%s291 + $0xac] sm:$0xf]
      %v484 = vld [vmem:[%s291 + $0xb0] sm:$0xf]
      %v485 = vld [vmem:[%s291 + $0xb4] sm:$0xf]
      %v486 = vld [vmem:[%s291 + $0xb8] sm:$0xf]
      %v487 = vld [vmem:[%s291 + $0xbc] sm:$0xf]
      %v488 = vld [vmem:[%s291 + $0xc0] sm:$0xf]
      %v489 = vld [vmem:[%s291 + $0xc4] sm:$0xf]
      %v490 = vld [vmem:[%s291 + $0xc8] sm:$0xf]
      %v491 = vld [vmem:[%s291 + $0xcc] sm:$0xf]
      %v492 = vld [vmem:[%s291 + $0xd0] sm:$0xf]
      %v493 = vld [vmem:[%s291 + $0xd4] sm:$0xf]
      %v494 = vld [vmem:[%s291 + $0xd8] sm:$0xf]
      %v495 = vld [vmem:[%s291 + $0xdc] sm:$0xf]
      %v496 = vld [vmem:[%s291 + $0xe0] sm:$0xf]
      %v497 = vld [vmem:[%s291 + $0xe4] sm:$0xf]
      %v498 = vld [vmem:[%s291 + $0xe8] sm:$0xf]
      %v499 = vld [vmem:[%s291 + $0xec] sm:$0xf]
      %v500 = vld [vmem:[%s291 + $0xf0] sm:$0xf]
      %v501 = vld [vmem:[%s291 + $0xf4] sm:$0xf]
      %v502 = vld [vmem:[%s291 + $0xf8] sm:$0xf]
      %v503 = vld [vmem:[%s291 + $0xfc] sm:$0xf]
      %v568 = vunpack.c.l.b16 %v376
      %v569 = vunpack.c.h.b16 %v376
      %v570 = vunpack.c.l.b16 %v377
      %v571 = vunpack.c.h.b16 %v377
      %v572 = vunpack.c.l.b16 %v378
      %v573 = vunpack.c.h.b16 %v378
      %v574 = vunpack.c.l.b16 %v379
      %v575 = vunpack.c.h.b16 %v379
      %v576 = vunpack.c.l.b16 %v380
      %v577 = vunpack.c.h.b16 %v380
      %v578 = vunpack.c.l.b16 %v381
      %v579 = vunpack.c.h.b16 %v381
      %v580 = vunpack.c.l.b16 %v382
      %v581 = vunpack.c.h.b16 %v382
      %v582 = vunpack.c.l.b16 %v383
      %v583 = vunpack.c.h.b16 %v383
      %v584 = vunpack.c.l.b16 %v384
      %v585 = vunpack.c.h.b16 %v384
      %v586 = vunpack.c.l.b16 %v385
      %v587 = vunpack.c.h.b16 %v385
      %v588 = vunpack.c.l.b16 %v386
      %v589 = vunpack.c.h.b16 %v386
      %v590 = vunpack.c.l.b16 %v387
      %v591 = vunpack.c.h.b16 %v387
      %v592 = vunpack.c.l.b16 %v388
      %v593 = vunpack.c.h.b16 %v388
      %v594 = vunpack.c.l.b16 %v389
      %v595 = vunpack.c.h.b16 %v389
      %v596 = vunpack.c.l.b16 %v390
      %v597 = vunpack.c.h.b16 %v390
      %v598 = vunpack.c.l.b16 %v391
      %v599 = vunpack.c.h.b16 %v391
      %v600 = vunpack.c.l.b16 %v392
      %v601 = vunpack.c.h.b16 %v392
      %v602 = vunpack.c.l.b16 %v393
      %v603 = vunpack.c.h.b16 %v393
      %v604 = vunpack.c.l.b16 %v394
      %v605 = vunpack.c.h.b16 %v394
      %v606 = vunpack.c.l.b16 %v395
      %v607 = vunpack.c.h.b16 %v395
      %v608 = vunpack.c.l.b16 %v396
      %v609 = vunpack.c.h.b16 %v396
      %v610 = vunpack.c.l.b16 %v397
      %v611 = vunpack.c.h.b16 %v397
      %v612 = vunpack.c.l.b16 %v398
      %v613 = vunpack.c.h.b16 %v398
      %v614 = vunpack.c.l.b16 %v399
      %v615 = vunpack.c.h.b16 %v399
      %v616 = vunpack.c.l.b16 %v400
      %v617 = vunpack.c.h.b16 %v400
      %v618 = vunpack.c.l.b16 %v401
      %v619 = vunpack.c.h.b16 %v401
      %v620 = vunpack.c.l.b16 %v402
      %v621 = vunpack.c.h.b16 %v402
      %v622 = vunpack.c.l.b16 %v403
      %v623 = vunpack.c.h.b16 %v403
      %v624 = vunpack.c.l.b16 %v404
      %v625 = vunpack.c.h.b16 %v404
      %v626 = vunpack.c.l.b16 %v405
      %v627 = vunpack.c.h.b16 %v405
      %v628 = vunpack.c.l.b16 %v406
      %v629 = vunpack.c.h.b16 %v406
      %v630 = vunpack.c.l.b16 %v407
      %v631 = vunpack.c.h.b16 %v407
      %v632 = vunpack.c.l.b16 %v408
      %v633 = vunpack.c.h.b16 %v408
      %v634 = vunpack.c.l.b16 %v409
      %v635 = vunpack.c.h.b16 %v409
      %v636 = vunpack.c.l.b16 %v410
      %v637 = vunpack.c.h.b16 %v410
      %v638 = vunpack.c.l.b16 %v411
      %v639 = vunpack.c.h.b16 %v411
      %v640 = vunpack.c.l.b16 %v412
      %v641 = vunpack.c.h.b16 %v412
      %v642 = vunpack.c.l.b16 %v413
      %v643 = vunpack.c.h.b16 %v413
      %v644 = vunpack.c.l.b16 %v414
      %v645 = vunpack.c.h.b16 %v414
      %v646 = vunpack.c.l.b16 %v415
      %v647 = vunpack.c.h.b16 %v415
      %v648 = vunpack.c.l.b16 %v416
      %v649 = vunpack.c.h.b16 %v416
      %v650 = vunpack.c.l.b16 %v417
      %v651 = vunpack.c.h.b16 %v417
      %v652 = vunpack.c.l.b16 %v418
      %v653 = vunpack.c.h.b16 %v418
      %v654 = vunpack.c.l.b16 %v419
      %v655 = vunpack.c.h.b16 %v419
      %v656 = vunpack.c.l.b16 %v420
      %v657 = vunpack.c.h.b16 %v420
      %v658 = vunpack.c.l.b16 %v421
      %v659 = vunpack.c.h.b16 %v421
      %v660 = vunpack.c.l.b16 %v422
      %v661 = vunpack.c.h.b16 %v422
      %v662 = vunpack.c.l.b16 %v423
      %v663 = vunpack.c.h.b16 %v423
      %v664 = vunpack.c.l.b16 %v424
      %v665 = vunpack.c.h.b16 %v424
      %v666 = vunpack.c.l.b16 %v425
      %v667 = vunpack.c.h.b16 %v425
      %v668 = vunpack.c.l.b16 %v426
      %v669 = vunpack.c.h.b16 %v426
      %v670 = vunpack.c.l.b16 %v427
      %v671 = vunpack.c.h.b16 %v427
      %v672 = vunpack.c.l.b16 %v428
      %v673 = vunpack.c.h.b16 %v428
      %v674 = vunpack.c.l.b16 %v429
      %v675 = vunpack.c.h.b16 %v429
      %v676 = vunpack.c.l.b16 %v430
      %v677 = vunpack.c.h.b16 %v430
      %v678 = vunpack.c.l.b16 %v431
      %v679 = vunpack.c.h.b16 %v431
      %v680 = vunpack.c.l.b16 %v432
      %v681 = vunpack.c.h.b16 %v432
      %v682 = vunpack.c.l.b16 %v433
      %v683 = vunpack.c.h.b16 %v433
      %v684 = vunpack.c.l.b16 %v434
      %v685 = vunpack.c.h.b16 %v434
      %v686 = vunpack.c.l.b16 %v435
      %v687 = vunpack.c.h.b16 %v435
      %v688 = vunpack.c.l.b16 %v436
      %v689 = vunpack.c.h.b16 %v436
      %v690 = vunpack.c.l.b16 %v437
      %v691 = vunpack.c.h.b16 %v437
      %v692 = vunpack.c.l.b16 %v438
      %v693 = vunpack.c.h.b16 %v438
      %v694 = vunpack.c.l.b16 %v439
      %v695 = vunpack.c.h.b16 %v439
      %v696 = vpack.c.b16 %v572, %v568
      %v697 = vpack.c.b16 %v573, %v569
      %v698 = vpack.c.b16 %v574, %v570
      %v699 = vpack.c.b16 %v575, %v571
      %v700 = vpack.c.b16 %v580, %v576
      %v701 = vpack.c.b16 %v581, %v577
      %v702 = vpack.c.b16 %v582, %v578
      %v703 = vpack.c.b16 %v583, %v579
      %v704 = vpack.c.b16 %v588, %v584
      %v705 = vpack.c.b16 %v589, %v585
      %v706 = vpack.c.b16 %v590, %v586
      %v707 = vpack.c.b16 %v591, %v587
      %v708 = vpack.c.b16 %v596, %v592
      %v709 = vpack.c.b16 %v597, %v593
      %v710 = vpack.c.b16 %v598, %v594
      %v711 = vpack.c.b16 %v599, %v595
      %v712 = vpack.c.b16 %v604, %v600
      %v713 = vpack.c.b16 %v605, %v601
      %v714 = vpack.c.b16 %v606, %v602
      %v715 = vpack.c.b16 %v607, %v603
      %v716 = vpack.c.b16 %v612, %v608
      %v717 = vpack.c.b16 %v613, %v609
      %v718 = vpack.c.b16 %v614, %v610
      %v719 = vpack.c.b16 %v615, %v611
      %v720 = vpack.c.b16 %v620, %v616
      %v721 = vpack.c.b16 %v621, %v617
      %v722 = vpack.c.b16 %v622, %v618
      %v723 = vpack.c.b16 %v623, %v619
      %v724 = vpack.c.b16 %v628, %v624
      %v725 = vpack.c.b16 %v629, %v625
      %v726 = vpack.c.b16 %v630, %v626
      %v727 = vpack.c.b16 %v631, %v627
      %v728 = vpack.c.b16 %v636, %v632
      %v729 = vpack.c.b16 %v637, %v633
      %v730 = vpack.c.b16 %v638, %v634
      %v731 = vpack.c.b16 %v639, %v635
      %v732 = vpack.c.b16 %v644, %v640
      %v733 = vpack.c.b16 %v645, %v641
      %v734 = vpack.c.b16 %v646, %v642
      %v735 = vpack.c.b16 %v647, %v643
      %v736 = vpack.c.b16 %v652, %v648
      %v737 = vpack.c.b16 %v653, %v649
      %v738 = vpack.c.b16 %v654, %v650
      %v739 = vpack.c.b16 %v655, %v651
      %v740 = vpack.c.b16 %v660, %v656
      %v741 = vpack.c.b16 %v661, %v657
      %v742 = vpack.c.b16 %v662, %v658
      %v743 = vpack.c.b16 %v663, %v659
      %v744 = vpack.c.b16 %v668, %v664
      %v745 = vpack.c.b16 %v669, %v665
      %v746 = vpack.c.b16 %v670, %v666
      %v747 = vpack.c.b16 %v671, %v667
      %v748 = vpack.c.b16 %v676, %v672
      %v749 = vpack.c.b16 %v677, %v673
      %v750 = vpack.c.b16 %v678, %v674
      %v751 = vpack.c.b16 %v679, %v675
      %v752 = vpack.c.b16 %v684, %v680
      %v753 = vpack.c.b16 %v685, %v681
      %v754 = vpack.c.b16 %v686, %v682
      %v755 = vpack.c.b16 %v687, %v683
      %v756 = vpack.c.b16 %v692, %v688
      %v757 = vpack.c.b16 %v693, %v689
      %v758 = vpack.c.b16 %v694, %v690
      %v759 = vpack.c.b16 %v695, %v691
      %v888 = vunpack.c.l.b16 %v440
      %v889 = vunpack.c.l.b16 %v441
      %v890 = vunpack.c.l.b16 %v442
      %v891 = vunpack.c.l.b16 %v443
      %v892 = vunpack.c.l.b16 %v444
      %v893 = vunpack.c.l.b16 %v445
      %v894 = vunpack.c.l.b16 %v446
      %v895 = vunpack.c.l.b16 %v447
      %v896 = vunpack.c.l.b16 %v448
      %v897 = vunpack.c.l.b16 %v449
      %v898 = vunpack.c.l.b16 %v450
      %v899 = vunpack.c.l.b16 %v451
      %v900 = vunpack.c.l.b16 %v452
      %v901 = vunpack.c.l.b16 %v453
      %v902 = vunpack.c.l.b16 %v454
      %v903 = vunpack.c.l.b16 %v455
      %v904 = vunpack.c.l.b16 %v456
      %v905 = vunpack.c.l.b16 %v457
      %v906 = vunpack.c.l.b16 %v458
      %v907 = vunpack.c.l.b16 %v459
      %v908 = vunpack.c.l.b16 %v460
      %v909 = vunpack.c.l.b16 %v461
      %v910 = vunpack.c.l.b16 %v462
      %v911 = vunpack.c.l.b16 %v463
      %v912 = vunpack.c.l.b16 %v464
      %v913 = vunpack.c.l.b16 %v465
      %v914 = vunpack.c.l.b16 %v466
      %v915 = vunpack.c.l.b16 %v467
      %v916 = vunpack.c.l.b16 %v468
      %v917 = vunpack.c.l.b16 %v469
      %v918 = vunpack.c.l.b16 %v470
      %v919 = vunpack.c.l.b16 %v471
      %v920 = vunpack.c.l.b16 %v472
      %v921 = vunpack.c.l.b16 %v473
      %v922 = vunpack.c.l.b16 %v474
      %v923 = vunpack.c.l.b16 %v475
      %v924 = vunpack.c.l.b16 %v476
      %v925 = vunpack.c.l.b16 %v477
      %v926 = vunpack.c.l.b16 %v478
      %v927 = vunpack.c.l.b16 %v479
      %v928 = vunpack.c.l.b16 %v480
      %v929 = vunpack.c.l.b16 %v481
      %v930 = vunpack.c.l.b16 %v482
      %v931 = vunpack.c.l.b16 %v483
      %v932 = vunpack.c.l.b16 %v484
      %v933 = vunpack.c.l.b16 %v485
      %v934 = vunpack.c.l.b16 %v486
      %v935 = vunpack.c.l.b16 %v487
      %v936 = vunpack.c.l.b16 %v488
      %v937 = vunpack.c.l.b16 %v489
      %v938 = vunpack.c.l.b16 %v490
      %v939 = vunpack.c.l.b16 %v491
      %v940 = vunpack.c.l.b16 %v492
      %v941 = vunpack.c.l.b16 %v493
      %v942 = vunpack.c.l.b16 %v494
      %v943 = vunpack.c.l.b16 %v495
      %v944 = vunpack.c.l.b16 %v496
      %v945 = vunpack.c.l.b16 %v497
      %v946 = vunpack.c.l.b16 %v498
      %v947 = vunpack.c.l.b16 %v499
      %v948 = vunpack.c.l.b16 %v500
      %v949 = vunpack.c.l.b16 %v501
      %v950 = vunpack.c.l.b16 %v502
      %v951 = vunpack.c.l.b16 %v503
      %v952 = vpack.c.b16 %v889, %v888
      %v953 = vpack.c.b16 %v891, %v890
      %v954 = vpack.c.b16 %v893, %v892
      %v955 = vpack.c.b16 %v895, %v894
      %v956 = vpack.c.b16 %v897, %v896
      %v957 = vpack.c.b16 %v899, %v898
      %v958 = vpack.c.b16 %v901, %v900
      %v959 = vpack.c.b16 %v903, %v902
      %v960 = vpack.c.b16 %v905, %v904
      %v961 = vpack.c.b16 %v907, %v906
      %v962 = vpack.c.b16 %v909, %v908
      %v963 = vpack.c.b16 %v911, %v910
      %v964 = vpack.c.b16 %v913, %v912
      %v965 = vpack.c.b16 %v915, %v914
      %v966 = vpack.c.b16 %v917, %v916
      %v967 = vpack.c.b16 %v919, %v918
      %v968 = vpack.c.b16 %v921, %v920
      %v969 = vpack.c.b16 %v923, %v922
      %v970 = vpack.c.b16 %v925, %v924
      %v971 = vpack.c.b16 %v927, %v926
      %v972 = vpack.c.b16 %v929, %v928
      %v973 = vpack.c.b16 %v931, %v930
      %v974 = vpack.c.b16 %v933, %v932
      %v975 = vpack.c.b16 %v935, %v934
      %v976 = vpack.c.b16 %v937, %v936
      %v977 = vpack.c.b16 %v939, %v938
      %v978 = vpack.c.b16 %v941, %v940
      %v979 = vpack.c.b16 %v943, %v942
      %v980 = vpack.c.b16 %v945, %v944
      %v981 = vpack.c.b16 %v947, %v946
      %v982 = vpack.c.b16 %v949, %v948
      %v983 = vpack.c.b16 %v951, %v950
      %1016 = vmatpush.bf16.msra.mxu0 %v959
      %1017 = vmatpush.bf16.msra.mxu0 %v958
      %1018 = vmatpush.bf16.msra.mxu0 %v957
      %1019 = vmatpush.bf16.msra.mxu0 %v956
      %1020 = vmatpush.bf16.msra.mxu0 %v955
      %1021 = vmatpush.bf16.msra.mxu0 %v954
      %1022 = vmatpush.bf16.msra.mxu0 %v953
      %1023 = vmatpush.bf16.msra.mxu0 %v952
      %1024 = vmatmul.bf16.gmra.mxu0 %v696
      %v1025 = vpop.f32.mrf.mxu0
      %v1026 = vadd.f32 0.0, %v1025
      %v1027 = vpop.f32.mrf.mxu0
      %v1028 = vadd.f32 0.0, %v1027
      %1029 = vmatmul.bf16.gmra.mxu0 %v700
      %v1030 = vpop.f32.mrf.mxu0
      %v1031 = vadd.f32 0.0, %v1030
      %v1032 = vpop.f32.mrf.mxu0
      %v1033 = vadd.f32 0.0, %v1032
      %1034 = vmatmul.bf16.gmra.mxu0 %v704
      %v1035 = vpop.f32.mrf.mxu0
      %v1036 = vadd.f32 0.0, %v1035
      %v1037 = vpop.f32.mrf.mxu0
      %v1038 = vadd.f32 0.0, %v1037
      %1039 = vmatmul.bf16.gmra.mxu0 %v708
      %v1040 = vpop.f32.mrf.mxu0
      %v1041 = vadd.f32 0.0, %v1040
      %v1042 = vpop.f32.mrf.mxu0
      %v1043 = vadd.f32 0.0, %v1042
      %1044 = vmatmul.bf16.gmra.mxu0 %v712
      %v1045 = vpop.f32.mrf.mxu0
      %v1046 = vadd.f32 0.0, %v1045
      %v1047 = vpop.f32.mrf.mxu0
      %v1048 = vadd.f32 0.0, %v1047
      %1049 = vmatmul.bf16.gmra.mxu0 %v716
      %v1050 = vpop.f32.mrf.mxu0
      %v1051 = vadd.f32 0.0, %v1050
      %v1052 = vpop.f32.mrf.mxu0
      %v1053 = vadd.f32 0.0, %v1052
      %1054 = vmatmul.bf16.gmra.mxu0 %v720
      %v1055 = vpop.f32.mrf.mxu0
      %v1056 = vadd.f32 0.0, %v1055
      %v1057 = vpop.f32.mrf.mxu0
      %v1058 = vadd.f32 0.0, %v1057
      %1059 = vmatmul.bf16.gmra.mxu0 %v724
      %v1060 = vpop.f32.mrf.mxu0
      %v1061 = vadd.f32 0.0, %v1060
      %v1062 = vpop.f32.mrf.mxu0
      %v1063 = vadd.f32 0.0, %v1062
      %1064 = vmatmul.bf16.gmra.mxu0 %v728
      %v1065 = vpop.f32.mrf.mxu0
      %v1066 = vadd.f32 0.0, %v1065
      %v1067 = vpop.f32.mrf.mxu0
      %v1068 = vadd.f32 0.0, %v1067
      %1069 = vmatmul.bf16.gmra.mxu0 %v732
      %v1070 = vpop.f32.mrf.mxu0
      %v1071 = vadd.f32 0.0, %v1070
      %v1072 = vpop.f32.mrf.mxu0
      %v1073 = vadd.f32 0.0, %v1072
      %1074 = vmatmul.bf16.gmra.mxu0 %v736
      %v1075 = vpop.f32.mrf.mxu0
      %v1076 = vadd.f32 0.0, %v1075
      %v1077 = vpop.f32.mrf.mxu0
      %v1078 = vadd.f32 0.0, %v1077
      %1079 = vmatmul.bf16.gmra.mxu0 %v740
      %v1080 = vpop.f32.mrf.mxu0
      %v1081 = vadd.f32 0.0, %v1080
      %v1082 = vpop.f32.mrf.mxu0
      %v1083 = vadd.f32 0.0, %v1082
      %1084 = vmatmul.bf16.gmra.mxu0 %v744
      %v1085 = vpop.f32.mrf.mxu0
      %v1086 = vadd.f32 0.0, %v1085
      %v1087 = vpop.f32.mrf.mxu0
      %v1088 = vadd.f32 0.0, %v1087
      %1089 = vmatmul.bf16.gmra.mxu0 %v748
      %v1090 = vpop.f32.mrf.mxu0
      %v1091 = vadd.f32 0.0, %v1090
      %v1092 = vpop.f32.mrf.mxu0
      %v1093 = vadd.f32 0.0, %v1092
      %1094 = vmatmul.bf16.gmra.mxu0 %v752
      %v1095 = vpop.f32.mrf.mxu0
      %v1096 = vadd.f32 0.0, %v1095
      %v1097 = vpop.f32.mrf.mxu0
      %v1098 = vadd.f32 0.0, %v1097
      %1099 = vmatmul.bf16.gmra.mxu0 %v756
      %v1100 = vpop.f32.mrf.mxu0
      %v1101 = vadd.f32 0.0, %v1100
      %v1102 = vpop.f32.mrf.mxu0
      %v1103 = vadd.f32 0.0, %v1102
      %1104 = vdwg.mxu0
      %1105 = vmatpush.bf16.msra.mxu0 %v967
      %1106 = vmatpush.bf16.msra.mxu0 %v966
      %1107 = vmatpush.bf16.msra.mxu0 %v965
      %1108 = vmatpush.bf16.msra.mxu0 %v964
      %1109 = vmatpush.bf16.msra.mxu0 %v963
      %1110 = vmatpush.bf16.msra.mxu0 %v962
      %1111 = vmatpush.bf16.msra.mxu0 %v961
      %1112 = vmatpush.bf16.msra.mxu0 %v960
      %1113 = vmatmul.bf16.gmra.mxu0 %v697
      %v1114 = vpop.f32.mrf.mxu0
      %v1115 = vadd.f32 %v1026, %v1114
      %v1116 = vpop.f32.mrf.mxu0
      %v1117 = vadd.f32 %v1028, %v1116
      %1118 = vmatmul.bf16.gmra.mxu0 %v701
      %v1119 = vpop.f32.mrf.mxu0
      %v1120 = vadd.f32 %v1031, %v1119
      %v1121 = vpop.f32.mrf.mxu0
      %v1122 = vadd.f32 %v1033, %v1121
      %1123 = vmatmul.bf16.gmra.mxu0 %v705
      %v1124 = vpop.f32.mrf.mxu0
      %v1125 = vadd.f32 %v1036, %v1124
      %v1126 = vpop.f32.mrf.mxu0
      %v1127 = vadd.f32 %v1038, %v1126
      %1128 = vmatmul.bf16.gmra.mxu0 %v709
      %v1129 = vpop.f32.mrf.mxu0
      %v1130 = vadd.f32 %v1041, %v1129
      %v1131 = vpop.f32.mrf.mxu0
      %v1132 = vadd.f32 %v1043, %v1131
      %1133 = vmatmul.bf16.gmra.mxu0 %v713
      %v1134 = vpop.f32.mrf.mxu0
      %v1135 = vadd.f32 %v1046, %v1134
      %v1136 = vpop.f32.mrf.mxu0
      %v1137 = vadd.f32 %v1048, %v1136
      %1138 = vmatmul.bf16.gmra.mxu0 %v717
      %v1139 = vpop.f32.mrf.mxu0
      %v1140 = vadd.f32 %v1051, %v1139
      %v1141 = vpop.f32.mrf.mxu0
      %v1142 = vadd.f32 %v1053, %v1141
      %1143 = vmatmul.bf16.gmra.mxu0 %v721
      %v1144 = vpop.f32.mrf.mxu0
      %v1145 = vadd.f32 %v1056, %v1144
      %v1146 = vpop.f32.mrf.mxu0
      %v1147 = vadd.f32 %v1058, %v1146
      %1148 = vmatmul.bf16.gmra.mxu0 %v725
      %v1149 = vpop.f32.mrf.mxu0
      %v1150 = vadd.f32 %v1061, %v1149
      %v1151 = vpop.f32.mrf.mxu0
      %v1152 = vadd.f32 %v1063, %v1151
      %1153 = vmatmul.bf16.gmra.mxu0 %v729
      %v1154 = vpop.f32.mrf.mxu0
      %v1155 = vadd.f32 %v1066, %v1154
      %v1156 = vpop.f32.mrf.mxu0
      %v1157 = vadd.f32 %v1068, %v1156
      %1158 = vmatmul.bf16.gmra.mxu0 %v733
      %v1159 = vpop.f32.mrf.mxu0
      %v1160 = vadd.f32 %v1071, %v1159
      %v1161 = vpop.f32.mrf.mxu0
      %v1162 = vadd.f32 %v1073, %v1161
      %1163 = vmatmul.bf16.gmra.mxu0 %v737
      %v1164 = vpop.f32.mrf.mxu0
      %v1165 = vadd.f32 %v1076, %v1164
      %v1166 = vpop.f32.mrf.mxu0
      %v1167 = vadd.f32 %v1078, %v1166
      %1168 = vmatmul.bf16.gmra.mxu0 %v741
      %v1169 = vpop.f32.mrf.mxu0
      %v1170 = vadd.f32 %v1081, %v1169
      %v1171 = vpop.f32.mrf.mxu0
      %v1172 = vadd.f32 %v1083, %v1171
      %1173 = vmatmul.bf16.gmra.mxu0 %v745
      %v1174 = vpop.f32.mrf.mxu0
      %v1175 = vadd.f32 %v1086, %v1174
      %v1176 = vpop.f32.mrf.mxu0
      %v1177 = vadd.f32 %v1088, %v1176
      %1178 = vmatmul.bf16.gmra.mxu0 %v749
      %v1179 = vpop.f32.mrf.mxu0
      %v1180 = vadd.f32 %v1091, %v1179
      %v1181 = vpop.f32.mrf.mxu0
      %v1182 = vadd.f32 %v1093, %v1181
      %1183 = vmatmul.bf16.gmra.mxu0 %v753
      %v1184 = vpop.f32.mrf.mxu0
      %v1185 = vadd.f32 %v1096, %v1184
      %v1186 = vpop.f32.mrf.mxu0
      %v1187 = vadd.f32 %v1098, %v1186
      %1188 = vmatmul.bf16.gmra.mxu0 %v757
      %v1189 = vpop.f32.mrf.mxu0
      %v1190 = vadd.f32 %v1101, %v1189
      %v1191 = vpop.f32.mrf.mxu0
      %v1192 = vadd.f32 %v1103, %v1191
      %1193 = vdwg.mxu0
      %1194 = vmatpush.bf16.msra.mxu0 %v975
      %1195 = vmatpush.bf16.msra.mxu0 %v974
      %1196 = vmatpush.bf16.msra.mxu0 %v973
      %1197 = vmatpush.bf16.msra.mxu0 %v972
      %1198 = vmatpush.bf16.msra.mxu0 %v971
      %1199 = vmatpush.bf16.msra.mxu0 %v970
      %1200 = vmatpush.bf16.msra.mxu0 %v969
      %1201 = vmatpush.bf16.msra.mxu0 %v968
      %1202 = vmatmul.bf16.gmra.mxu0 %v698
      %v1203 = vpop.f32.mrf.mxu0
      %v1204 = vadd.f32 %v1115, %v1203
      %v1205 = vpop.f32.mrf.mxu0
      %v1206 = vadd.f32 %v1117, %v1205
      %1207 = vmatmul.bf16.gmra.mxu0 %v702
      %v1208 = vpop.f32.mrf.mxu0
      %v1209 = vadd.f32 %v1120, %v1208
      %v1210 = vpop.f32.mrf.mxu0
      %v1211 = vadd.f32 %v1122, %v1210
      %1212 = vmatmul.bf16.gmra.mxu0 %v706
      %v1213 = vpop.f32.mrf.mxu0
      %v1214 = vadd.f32 %v1125, %v1213
      %v1215 = vpop.f32.mrf.mxu0
      %v1216 = vadd.f32 %v1127, %v1215
      %1217 = vmatmul.bf16.gmra.mxu0 %v710
      %v1218 = vpop.f32.mrf.mxu0
      %v1219 = vadd.f32 %v1130, %v1218
      %v1220 = vpop.f32.mrf.mxu0
      %v1221 = vadd.f32 %v1132, %v1220
      %1222 = vmatmul.bf16.gmra.mxu0 %v714
      %v1223 = vpop.f32.mrf.mxu0
      %v1224 = vadd.f32 %v1135, %v1223
      %v1225 = vpop.f32.mrf.mxu0
      %v1226 = vadd.f32 %v1137, %v1225
      %1227 = vmatmul.bf16.gmra.mxu0 %v718
      %v1228 = vpop.f32.mrf.mxu0
      %v1229 = vadd.f32 %v1140, %v1228
      %v1230 = vpop.f32.mrf.mxu0
      %v1231 = vadd.f32 %v1142, %v1230
      %1232 = vmatmul.bf16.gmra.mxu0 %v722
      %v1233 = vpop.f32.mrf.mxu0
      %v1234 = vadd.f32 %v1145, %v1233
      %v1235 = vpop.f32.mrf.mxu0
      %v1236 = vadd.f32 %v1147, %v1235
      %1237 = vmatmul.bf16.gmra.mxu0 %v726
      %v1238 = vpop.f32.mrf.mxu0
      %v1239 = vadd.f32 %v1150, %v1238
      %v1240 = vpop.f32.mrf.mxu0
      %v1241 = vadd.f32 %v1152, %v1240
      %1242 = vmatmul.bf16.gmra.mxu0 %v730
      %v1243 = vpop.f32.mrf.mxu0
      %v1244 = vadd.f32 %v1155, %v1243
      %v1245 = vpop.f32.mrf.mxu0
      %v1246 = vadd.f32 %v1157, %v1245
      %1247 = vmatmul.bf16.gmra.mxu0 %v734
      %v1248 = vpop.f32.mrf.mxu0
      %v1249 = vadd.f32 %v1160, %v1248
      %v1250 = vpop.f32.mrf.mxu0
      %v1251 = vadd.f32 %v1162, %v1250
      %1252 = vmatmul.bf16.gmra.mxu0 %v738
      %v1253 = vpop.f32.mrf.mxu0
      %v1254 = vadd.f32 %v1165, %v1253
      %v1255 = vpop.f32.mrf.mxu0
      %v1256 = vadd.f32 %v1167, %v1255
      %1257 = vmatmul.bf16.gmra.mxu0 %v742
      %v1258 = vpop.f32.mrf.mxu0
      %v1259 = vadd.f32 %v1170, %v1258
      %v1260 = vpop.f32.mrf.mxu0
      %v1261 = vadd.f32 %v1172, %v1260
      %1262 = vmatmul.bf16.gmra.mxu0 %v746
      %v1263 = vpop.f32.mrf.mxu0
      %v1264 = vadd.f32 %v1175, %v1263
      %v1265 = vpop.f32.mrf.mxu0
      %v1266 = vadd.f32 %v1177, %v1265
      %1267 = vmatmul.bf16.gmra.mxu0 %v750
      %v1268 = vpop.f32.mrf.mxu0
      %v1269 = vadd.f32 %v1180, %v1268
      %v1270 = vpop.f32.mrf.mxu0
      %v1271 = vadd.f32 %v1182, %v1270
      %1272 = vmatmul.bf16.gmra.mxu0 %v754
      %v1273 = vpop.f32.mrf.mxu0
      %v1274 = vadd.f32 %v1185, %v1273
      %v1275 = vpop.f32.mrf.mxu0
      %v1276 = vadd.f32 %v1187, %v1275
      %1277 = vmatmul.bf16.gmra.mxu0 %v758
      %v1278 = vpop.f32.mrf.mxu0
      %v1279 = vadd.f32 %v1190, %v1278
      %v1280 = vpop.f32.mrf.mxu0
      %v1281 = vadd.f32 %v1192, %v1280
      %1282 = vdwg.mxu0
      %1283 = vmatpush.bf16.msra.mxu0 %v983
      %1284 = vmatpush.bf16.msra.mxu0 %v982
      %1285 = vmatpush.bf16.msra.mxu0 %v981
      %1286 = vmatpush.bf16.msra.mxu0 %v980
      %1287 = vmatpush.bf16.msra.mxu0 %v979
      %1288 = vmatpush.bf16.msra.mxu0 %v978
      %1289 = vmatpush.bf16.msra.mxu0 %v977
      %1290 = vmatpush.bf16.msra.mxu0 %v976
      %1291 = vmatmul.bf16.gmra.mxu0 %v699
      %v1292 = vpop.f32.mrf.mxu0
      %v1293 = vadd.f32 %v1204, %v1292
      %v1294 = vpop.f32.mrf.mxu0
      %v1295 = vadd.f32 %v1206, %v1294
      %1296 = vmatmul.bf16.gmra.mxu0 %v703
      %v1297 = vpop.f32.mrf.mxu0
      %v1298 = vadd.f32 %v1209, %v1297
      %v1299 = vpop.f32.mrf.mxu0
      %v1300 = vadd.f32 %v1211, %v1299
      %1301 = vmatmul.bf16.gmra.mxu0 %v707
      %v1302 = vpop.f32.mrf.mxu0
      %v1303 = vadd.f32 %v1214, %v1302
      %v1304 = vpop.f32.mrf.mxu0
      %v1305 = vadd.f32 %v1216, %v1304
      %1306 = vmatmul.bf16.gmra.mxu0 %v711
      %v1307 = vpop.f32.mrf.mxu0
      %v1308 = vadd.f32 %v1219, %v1307
      %v1309 = vpop.f32.mrf.mxu0
      %v1310 = vadd.f32 %v1221, %v1309
      %1311 = vmatmul.bf16.gmra.mxu0 %v715
      %v1312 = vpop.f32.mrf.mxu0
      %v1313 = vadd.f32 %v1224, %v1312
      %v1314 = vpop.f32.mrf.mxu0
      %v1315 = vadd.f32 %v1226, %v1314
      %1316 = vmatmul.bf16.gmra.mxu0 %v719
      %v1317 = vpop.f32.mrf.mxu0
      %v1318 = vadd.f32 %v1229, %v1317
      %v1319 = vpop.f32.mrf.mxu0
      %v1320 = vadd.f32 %v1231, %v1319
      %1321 = vmatmul.bf16.gmra.mxu0 %v723
      %v1322 = vpop.f32.mrf.mxu0
      %v1323 = vadd.f32 %v1234, %v1322
      %v1324 = vpop.f32.mrf.mxu0
      %v1325 = vadd.f32 %v1236, %v1324
      %1326 = vmatmul.bf16.gmra.mxu0 %v727
      %v1327 = vpop.f32.mrf.mxu0
      %v1328 = vadd.f32 %v1239, %v1327
      %v1329 = vpop.f32.mrf.mxu0
      %v1330 = vadd.f32 %v1241, %v1329
      %1331 = vmatmul.bf16.gmra.mxu0 %v731
      %v1332 = vpop.f32.mrf.mxu0
      %v1333 = vadd.f32 %v1244, %v1332
      %v1334 = vpop.f32.mrf.mxu0
      %v1335 = vadd.f32 %v1246, %v1334
      %1336 = vmatmul.bf16.gmra.mxu0 %v735
      %v1337 = vpop.f32.mrf.mxu0
      %v1338 = vadd.f32 %v1249, %v1337
      %v1339 = vpop.f32.mrf.mxu0
      %v1340 = vadd.f32 %v1251, %v1339
      %1341 = vmatmul.bf16.gmra.mxu0 %v739
      %v1342 = vpop.f32.mrf.mxu0
      %v1343 = vadd.f32 %v1254, %v1342
      %v1344 = vpop.f32.mrf.mxu0
      %v1345 = vadd.f32 %v1256, %v1344
      %1346 = vmatmul.bf16.gmra.mxu0 %v743
      %v1347 = vpop.f32.mrf.mxu0
      %v1348 = vadd.f32 %v1259, %v1347
      %v1349 = vpop.f32.mrf.mxu0
      %v1350 = vadd.f32 %v1261, %v1349
      %1351 = vmatmul.bf16.gmra.mxu0 %v747
      %v1352 = vpop.f32.mrf.mxu0
      %v1353 = vadd.f32 %v1264, %v1352
      %v1354 = vpop.f32.mrf.mxu0
      %v1355 = vadd.f32 %v1266, %v1354
      %1356 = vmatmul.bf16.gmra.mxu0 %v751
      %v1357 = vpop.f32.mrf.mxu0
      %v1358 = vadd.f32 %v1269, %v1357
      %v1359 = vpop.f32.mrf.mxu0
      %v1360 = vadd.f32 %v1271, %v1359
      %1361 = vmatmul.bf16.gmra.mxu0 %v755
      %v1362 = vpop.f32.mrf.mxu0
      %v1363 = vadd.f32 %v1274, %v1362
      %v1364 = vpop.f32.mrf.mxu0
      %v1365 = vadd.f32 %v1276, %v1364
      %1366 = vmatmul.bf16.gmra.mxu0 %v759
      %v1367 = vpop.f32.mrf.mxu0
      %v1368 = vadd.f32 %v1279, %v1367
      %v1369 = vpop.f32.mrf.mxu0
      %v1370 = vadd.f32 %v1281, %v1369
      %1371 = vdwg.mxu0
      %v1372 = vadd.f32 %v344, %v1293
      %v1373 = vadd.f32 %v345, %v1295
      %v1374 = vadd.f32 %v346, %v1298
      %v1375 = vadd.f32 %v347, %v1300
      %v1376 = vadd.f32 %v348, %v1303
      %v1377 = vadd.f32 %v349, %v1305
      %v1378 = vadd.f32 %v350, %v1308
      %v1379 = vadd.f32 %v351, %v1310
      %v1380 = vadd.f32 %v352, %v1313
      %v1381 = vadd.f32 %v353, %v1315
      %v1382 = vadd.f32 %v354, %v1318
      %v1383 = vadd.f32 %v355, %v1320
      %v1384 = vadd.f32 %v356, %v1323
      %v1385 = vadd.f32 %v357, %v1325
      %v1386 = vadd.f32 %v358, %v1328
      %v1387 = vadd.f32 %v359, %v1330
      %v1388 = vadd.f32 %v360, %v1333
      %v1389 = vadd.f32 %v361, %v1335
      %v1390 = vadd.f32 %v362, %v1338
      %v1391 = vadd.f32 %v363, %v1340
      %v1392 = vadd.f32 %v364, %v1343
      %v1393 = vadd.f32 %v365, %v1345
      %v1394 = vadd.f32 %v366, %v1348
      %v1395 = vadd.f32 %v367, %v1350
      %v1396 = vadd.f32 %v368, %v1353
      %v1397 = vadd.f32 %v369, %v1355
      %v1398 = vadd.f32 %v370, %v1358
      %v1399 = vadd.f32 %v371, %v1360
      %v1400 = vadd.f32 %v372, %v1363
      %v1401 = vadd.f32 %v373, %v1365
      %v1402 = vadd.f32 %v374, %v1368
      %v1403 = vadd.f32 %v375, %v1370
      %1404 = vst [vmem:[#allocation2] sm:$0xff] %v1372
      %1405 = vst [vmem:[#allocation2 + $0x8] sm:$0xff] %v1373
      %1406 = vst [vmem:[#allocation2 + $0x10] sm:$0xff] %v1374
      %1407 = vst [vmem:[#allocation2 + $0x18] sm:$0xff] %v1375
      %1408 = vst [vmem:[#allocation2 + $0x20] sm:$0xff] %v1376
      %1409 = vst [vmem:[#allocation2 + $0x28] sm:$0xff] %v1377
      %1410 = vst [vmem:[#allocation2 + $0x30] sm:$0xff] %v1378
      %1411 = vst [vmem:[#allocation2 + $0x38] sm:$0xff] %v1379
      %1412 = vst [vmem:[#allocation2 + $0x40] sm:$0xff] %v1380
      %1413 = vst [vmem:[#allocation2 + $0x48] sm:$0xff] %v1381
      %1414 = vst [vmem:[#allocation2 + $0x50] sm:$0xff] %v1382
      %1415 = vst [vmem:[#allocation2 + $0x58] sm:$0xff] %v1383
      %1416 = vst [vmem:[#allocation2 + $0x60] sm:$0xff] %v1384
      %1417 = vst [vmem:[#allocation2 + $0x68] sm:$0xff] %v1385
      %1418 = vst [vmem:[#allocation2 + $0x70] sm:$0xff] %v1386
      %1419 = vst [vmem:[#allocation2 + $0x78] sm:$0xff] %v1387
      %1420 = vst [vmem:[#allocation2 + $0x80] sm:$0xff] %v1388
      %1421 = vst [vmem:[#allocation2 + $0x88] sm:$0xff] %v1389
      %1422 = vst [vmem:[#allocation2 + $0x90] sm:$0xff] %v1390
      %1423 = vst [vmem:[#allocation2 + $0x98] sm:$0xff] %v1391
      %1424 = vst [vmem:[#allocation2 + $0xa0] sm:$0xff] %v1392
      %1425 = vst [vmem:[#allocation2 + $0xa8] sm:$0xff] %v1393
      %1426 = vst [vmem:[#allocation2 + $0xb0] sm:$0xff] %v1394
      %1427 = vst [vmem:[#allocation2 + $0xb8] sm:$0xff] %v1395
      %1428 = vst [vmem:[#allocation2 + $0xc0] sm:$0xff] %v1396
      %1429 = vst [vmem:[#allocation2 + $0xc8] sm:$0xff] %v1397
      %1430 = vst [vmem:[#allocation2 + $0xd0] sm:$0xff] %v1398
      %1431 = vst [vmem:[#allocation2 + $0xd8] sm:$0xff] %v1399
      %1432 = vst [vmem:[#allocation2 + $0xe0] sm:$0xff] %v1400
      %1433 = vst [vmem:[#allocation2 + $0xe8] sm:$0xff] %v1401
      %1434 = vst [vmem:[#allocation2 + $0xf0] sm:$0xff] %v1402
      %1435 = vst [vmem:[#allocation2 + $0xf8] sm:$0xff] %v1403
      // Predicated region
      $region41: #{cnn_forward.9} parent=35 // pred_check
        %p1436 = pneg %p308
      $region42: #{cnn_forward.9} parent=35 // pred_check_branch
        %1438 = sbr.rel (%p1436) target = $region44
      $region43: #{cnn_forward.9} parent=35 // pred_region
        %v1439 = vld [vmem:[#allocation2] sm:$0xff]
        %v1440 = vld [vmem:[#allocation2 + $0x8] sm:$0xff]
        %v1441 = vld [vmem:[#allocation2 + $0x10] sm:$0xff]
        %v1442 = vld [vmem:[#allocation2 + $0x18] sm:$0xff]
        %v1443 = vld [vmem:[#allocation2 + $0x20] sm:$0xff]
        %v1444 = vld [vmem:[#allocation2 + $0x28] sm:$0xff]
        %v1445 = vld [vmem:[#allocation2 + $0x30] sm:$0xff]
        %v1446 = vld [vmem:[#allocation2 + $0x38] sm:$0xff]
        %v1447 = vld [vmem:[#allocation2 + $0x40] sm:$0xff]
        %v1448 = vld [vmem:[#allocation2 + $0x48] sm:$0xff]
        %v1449 = vld [vmem:[#allocation2 + $0x50] sm:$0xff]
        %v1450 = vld [vmem:[#allocation2 + $0x58] sm:$0xff]
        %v1451 = vld [vmem:[#allocation2 + $0x60] sm:$0xff]
        %v1452 = vld [vmem:[#allocation2 + $0x68] sm:$0xff]
        %v1453 = vld [vmem:[#allocation2 + $0x70] sm:$0xff]
        %v1454 = vld [vmem:[#allocation2 + $0x78] sm:$0xff]
        %v1455 = vld [vmem:[#allocation2 + $0x80] sm:$0xff]
        %v1456 = vld [vmem:[#allocation2 + $0x88] sm:$0xff]
        %v1457 = vld [vmem:[#allocation2 + $0x90] sm:$0xff]
        %v1458 = vld [vmem:[#allocation2 + $0x98] sm:$0xff]
        %v1459 = vld [vmem:[#allocation2 + $0xa0] sm:$0xff]
        %v1460 = vld [vmem:[#allocation2 + $0xa8] sm:$0xff]
        %v1461 = vld [vmem:[#allocation2 + $0xb0] sm:$0xff]
        %v1462 = vld [vmem:[#allocation2 + $0xb8] sm:$0xff]
        %v1463 = vld [vmem:[#allocation2 + $0xc0] sm:$0xff]
        %v1464 = vld [vmem:[#allocation2 + $0xc8] sm:$0xff]
        %v1465 = vld [vmem:[#allocation2 + $0xd0] sm:$0xff]
        %v1466 = vld [vmem:[#allocation2 + $0xd8] sm:$0xff]
        %v1467 = vld [vmem:[#allocation2 + $0xe0] sm:$0xff]
        %v1468 = vld [vmem:[#allocation2 + $0xe8] sm:$0xff]
        %v1469 = vld [vmem:[#allocation2 + $0xf0] sm:$0xff]
        %v1470 = vld [vmem:[#allocation2 + $0xf8] sm:$0xff]
        %v1471 = vld [vmem:[%s295] sm:$0x1]
        %v1473 = vperm.slane %v1471, 0
        %v1475 = vmul.f32 %v1439, %v1473
        %v1476 = vmul.f32 %v1440, %v1473
        %v1477 = vmul.f32 %v1441, %v1473
        %v1478 = vmul.f32 %v1442, %v1473
        %v1479 = vmul.f32 %v1443, %v1473
        %v1480 = vmul.f32 %v1444, %v1473
        %v1481 = vmul.f32 %v1445, %v1473
        %v1482 = vmul.f32 %v1446, %v1473
        %v1483 = vmul.f32 %v1447, %v1473
        %v1484 = vmul.f32 %v1448, %v1473
        %v1485 = vmul.f32 %v1449, %v1473
        %v1486 = vmul.f32 %v1450, %v1473
        %v1487 = vmul.f32 %v1451, %v1473
        %v1488 = vmul.f32 %v1452, %v1473
        %v1489 = vmul.f32 %v1453, %v1473
        %v1490 = vmul.f32 %v1454, %v1473
        %v1491 = vmul.f32 %v1455, %v1473
        %v1492 = vmul.f32 %v1456, %v1473
        %v1493 = vmul.f32 %v1457, %v1473
        %v1494 = vmul.f32 %v1458, %v1473
        %v1495 = vmul.f32 %v1459, %v1473
        %v1496 = vmul.f32 %v1460, %v1473
        %v1497 = vmul.f32 %v1461, %v1473
        %v1498 = vmul.f32 %v1462, %v1473
        %v1499 = vmul.f32 %v1463, %v1473
        %v1500 = vmul.f32 %v1464, %v1473
        %v1501 = vmul.f32 %v1465, %v1473
        %v1502 = vmul.f32 %v1466, %v1473
        %v1503 = vmul.f32 %v1467, %v1473
        %v1504 = vmul.f32 %v1468, %v1473
        %v1505 = vmul.f32 %v1469, %v1473
        %v1506 = vmul.f32 %v1470, %v1473
        %v1507 = vld [vmem:[%s298] sm:$0x1]
        %v1509 = vperm.slane %v1507, 0
        %v1511 = vadd.f32 %v1475, %v1509
        %v1512 = vadd.f32 %v1476, %v1509
        %v1513 = vadd.f32 %v1477, %v1509
        %v1514 = vadd.f32 %v1478, %v1509
        %v1515 = vadd.f32 %v1479, %v1509
        %v1516 = vadd.f32 %v1480, %v1509
        %v1517 = vadd.f32 %v1481, %v1509
        %v1518 = vadd.f32 %v1482, %v1509
        %v1519 = vadd.f32 %v1483, %v1509
        %v1520 = vadd.f32 %v1484, %v1509
        %v1521 = vadd.f32 %v1485, %v1509
        %v1522 = vadd.f32 %v1486, %v1509
        %v1523 = vadd.f32 %v1487, %v1509
        %v1524 = vadd.f32 %v1488, %v1509
        %v1525 = vadd.f32 %v1489, %v1509
        %v1526 = vadd.f32 %v1490, %v1509
        %v1527 = vadd.f32 %v1491, %v1509
        %v1528 = vadd.f32 %v1492, %v1509
        %v1529 = vadd.f32 %v1493, %v1509
        %v1530 = vadd.f32 %v1494, %v1509
        %v1531 = vadd.f32 %v1495, %v1509
        %v1532 = vadd.f32 %v1496, %v1509
        %v1533 = vadd.f32 %v1497, %v1509
        %v1534 = vadd.f32 %v1498, %v1509
        %v1535 = vadd.f32 %v1499, %v1509
        %v1536 = vadd.f32 %v1500, %v1509
        %v1537 = vadd.f32 %v1501, %v1509
        %v1538 = vadd.f32 %v1502, %v1509
        %v1539 = vadd.f32 %v1503, %v1509
        %v1540 = vadd.f32 %v1504, %v1509
        %v1541 = vadd.f32 %v1505, %v1509
        %v1542 = vadd.f32 %v1506, %v1509
        %v1543 = vmax.f32 %v1511, 0.0
        %v1544 = vmax.f32 %v1512, 0.0
        %v1545 = vmax.f32 %v1513, 0.0
        %v1546 = vmax.f32 %v1514, 0.0
        %v1547 = vmax.f32 %v1515, 0.0
        %v1548 = vmax.f32 %v1516, 0.0
        %v1549 = vmax.f32 %v1517, 0.0
        %v1550 = vmax.f32 %v1518, 0.0
        %v1551 = vmax.f32 %v1519, 0.0
        %v1552 = vmax.f32 %v1520, 0.0
        %v1553 = vmax.f32 %v1521, 0.0
        %v1554 = vmax.f32 %v1522, 0.0
        %v1555 = vmax.f32 %v1523, 0.0
        %v1556 = vmax.f32 %v1524, 0.0
        %v1557 = vmax.f32 %v1525, 0.0
        %v1558 = vmax.f32 %v1526, 0.0
        %v1559 = vmax.f32 %v1527, 0.0
        %v1560 = vmax.f32 %v1528, 0.0
        %v1561 = vmax.f32 %v1529, 0.0
        %v1562 = vmax.f32 %v1530, 0.0
        %v1563 = vmax.f32 %v1531, 0.0
        %v1564 = vmax.f32 %v1532, 0.0
        %v1565 = vmax.f32 %v1533, 0.0
        %v1566 = vmax.f32 %v1534, 0.0
        %v1567 = vmax.f32 %v1535, 0.0
        %v1568 = vmax.f32 %v1536, 0.0
        %v1569 = vmax.f32 %v1537, 0.0
        %v1570 = vmax.f32 %v1538, 0.0
        %v1571 = vmax.f32 %v1539, 0.0
        %v1572 = vmax.f32 %v1540, 0.0
        %v1573 = vmax.f32 %v1541, 0.0
        %v1574 = vmax.f32 %v1542, 0.0
        %1575 = vst [vmem:[%s306] sm:$0xff] %v1543
        %1576 = vst [vmem:[%s306 + $0x8] sm:$0xff] %v1544
        %1577 = vst [vmem:[%s306 + $0x10] sm:$0xff] %v1545
        %1578 = vst [vmem:[%s306 + $0x18] sm:$0xff] %v1546
        %1579 = vst [vmem:[%s306 + $0x20] sm:$0xff] %v1547
        %1580 = vst [vmem:[%s306 + $0x28] sm:$0xff] %v1548
        %1581 = vst [vmem:[%s306 + $0x30] sm:$0xff] %v1549
        %1582 = vst [vmem:[%s306 + $0x38] sm:$0xff] %v1550
        %1583 = vst [vmem:[%s306 + $0x40] sm:$0xff] %v1551
        %1584 = vst [vmem:[%s306 + $0x48] sm:$0xff] %v1552
        %1585 = vst [vmem:[%s306 + $0x50] sm:$0xff] %v1553
        %1586 = vst [vmem:[%s306 + $0x58] sm:$0xff] %v1554
        %1587 = vst [vmem:[%s306 + $0x60] sm:$0xff] %v1555
        %1588 = vst [vmem:[%s306 + $0x68] sm:$0xff] %v1556
        %1589 = vst [vmem:[%s306 + $0x70] sm:$0xff] %v1557
        %1590 = vst [vmem:[%s306 + $0x78] sm:$0xff] %v1558
        %1591 = vst [vmem:[%s306 + $0x80] sm:$0xff] %v1559
        %1592 = vst [vmem:[%s306 + $0x88] sm:$0xff] %v1560
        %1593 = vst [vmem:[%s306 + $0x90] sm:$0xff] %v1561
        %1594 = vst [vmem:[%s306 + $0x98] sm:$0xff] %v1562
        %1595 = vst [vmem:[%s306 + $0xa0] sm:$0xff] %v1563
        %1596 = vst [vmem:[%s306 + $0xa8] sm:$0xff] %v1564
        %1597 = vst [vmem:[%s306 + $0xb0] sm:$0xff] %v1565
        %1598 = vst [vmem:[%s306 + $0xb8] sm:$0xff] %v1566
        %1599 = vst [vmem:[%s306 + $0xc0] sm:$0xff] %v1567
        %1600 = vst [vmem:[%s306 + $0xc8] sm:$0xff] %v1568
        %1601 = vst [vmem:[%s306 + $0xd0] sm:$0xff] %v1569
        %1602 = vst [vmem:[%s306 + $0xd8] sm:$0xff] %v1570
        %1603 = vst [vmem:[%s306 + $0xe0] sm:$0xff] %v1571
        %1604 = vst [vmem:[%s306 + $0xe8] sm:$0xff] %v1572
        %1605 = vst [vmem:[%s306 + $0xf0] sm:$0xff] %v1573
        %1606 = vst [vmem:[%s306 + $0xf8] sm:$0xff] %v1574
      $region44: #{cnn_forward.9} parent=35 // pred_fallthru
        _
      %s1607 = smul.u32 32, %s20
      %p1608 = scmp.lt.s32.totalorder %s1607, 63
      %s1609 = scalar_select %p1608, %s1607, 63
      %p1610 = scmp.lt.s32.totalorder %s21, 0
      %s1611 = scalar_select %p1610, %s21, 0
      %s1612 = sadd.s32 %s1611, %s1609
      %s1613 = smul.addr %s1612, 8
      %s1614 = scalar_lea.vmem %s4, %s1613
      // Predicated region
      $region45: #{cnn_forward.9} parent=35 // pred_check
        %p1615 = pneg %p162
      $region46: #{cnn_forward.9} parent=35 // pred_check_branch
        %1617 = sbr.rel (%p1615) target = $region48
      $region47: #{cnn_forward.9} parent=35 // pred_region
        %s1618 = smul.u32 32, %s20
      $region48: #{cnn_forward.9} parent=35 // pred_fallthru
        _
    $region36: #{cnn_forward.9} parent=5 // pred_fallthru
      _
    %p1619 = scmp.le.s32.totalorder 2, %s10
    // Predicated region
    $region49: #{cnn_forward.9} parent=5 // pred_check
      %p1620 = pneg %p1619
    $region50: #{cnn_forward.9} parent=5 // pred_check_branch
      %1622 = sbr.rel (%p1620) target = $region52
    $region51: #{cnn_forward.9} parent=5 // pred_region
      %s1623 = ssub.s32 %s10, 2
      // Predicated region
      $region53: #{cnn_forward.9} parent=51 // pred_check
        %p1624 = pneg %p168
      $region54: #{cnn_forward.9} parent=51 // pred_check_branch
        %1626 = sbr.rel (%p1624) target = $region56
      $region55: #{cnn_forward.9} parent=51 // pred_region
        %s1627 = smul.u32 32, %s23
        %p1628 = scmp.lt.s32.totalorder %s1627, 63
        %s1629 = scalar_select %p1628, %s1627, 63
        %p1630 = scmp.lt.s32.totalorder %s24, 0
        %s1631 = scalar_select %p1630, %s24, 0
        %s1632 = sadd.s32 %s1631, %s1629
        %s1633 = smul.addr %s1632, 8
        %s1634 = scalar_lea.vmem %s4, %s1633
      $region56: #{cnn_forward.9} parent=51 // pred_fallthru
        _
    $region52: #{cnn_forward.9} parent=5 // pred_fallthru
      _
  $region6: #{cnn_forward.9} parent=0 // loop_footer
    %s14 = sadd.s32 1, %s10
  $region7: #{cnn_forward.9} parent=0 // loop_footer_branch
    %9 = sbr.rel target = $region3
  $region8: #{cnn_forward.9} parent=0 // loop_exit
    _

// kernel: cnn_forward.10
$region0: #{cnn_forward.10}
  #allocation0 [shape = 'u32[]', space=smem, size = 0x4, offset = 0x4, fixed_abs, tag = 'smem constant byte address 0x4 - core index']
  #allocation1 [shape = 'u32[72,128]{1,0:T(1,128)}', space=vmem, size = 0x9000, scoped, tag = 'internal scratch']
  #allocation2 [shape = 'f32[96,128]{1,0:T(8,128)}', space=vmem, size = 0xc000, scoped, tag = 'scratch operand']
  %s0 = inlined_call_operand.vmem [shape: bf16[96,896], index: 0, kind: input, shape index: {}]
  %s1 = inlined_call_operand.vmem [shape: bf16[896,128], index: 1, kind: input, shape index: {}]
  %s2 = inlined_call_operand.vmem [shape: f32[1,128], index: 2, kind: input, shape index: {}]
  %s3 = inlined_call_operand.vmem [shape: f32[1,128], index: 3, kind: input, shape index: {}]
  %s4 = inlined_call_operand.vmem [shape: f32[96,128], index: 4, kind: output, shape index: {}]
  %s5 = sld [smem:[#allocation0]]
  $region98: #{cnn_forward.10} parent=0
    _
  %s7 = ssub.s32 1, %s5
  %s8 = scalar_select 0, %s7, %s5
  $region1: #{cnn_forward.10} parent=0
    #allocation3 [shape = 'u8[49152]{0}', space=vmem, size = 0xc000, scoped, tag = 'input window, operand 0']
    loop: start=0, step=1, limit=9
    $region2: #{cnn_forward.10} parent=1 // loop_pre_header
      _
    $region3: #{cnn_forward.10} parent=1 // loop_header
      %s10 = sphi 0, %s14
      %p11 = scmp.ge.s32.totalorder %s10, 9
      %s17 = sphi 0, %s36
      %s18 = sphi 0, %s32
      %s19 = sphi 0, %s28
      %s20 = sphi 0, %s17
      %s21 = sphi 0, %s18
      %s22 = sphi 0, %s19
      %s23 = sphi 0, %s20
      %s24 = sphi 0, %s21
      %s25 = sphi 0, %s22
      %s41 = sphi 0, %s43
      %s44 = sphi 0, %s41
      %s45 = sphi 0, %s44
      %s61 = sphi 0, %s45
      %s69 = sphi 0, %s71
      %s72 = sphi 0, %s69
      %s73 = sphi 0, %s72
      %s89 = sphi 0, %s73
      %s95 = sphi 0, %s97
      %s98 = sphi 0, %s95
      %s99 = sphi 0, %s98
      %s115 = sphi 0, %s99
      %s121 = sphi 0, %s123
      %s124 = sphi 0, %s121
      %s125 = sphi 0, %s124
      %s141 = sphi 0, %s125
      %s149 = sphi 0, %s151
      %s152 = sphi 0, %s149
      %s153 = sphi 0, %s152
      %s169 = sphi 0, %s153
    $region4: #{cnn_forward.10} parent=1 // loop_header_branch
      %13 = sbr.rel (%p11) target = $region8
    $region5: #{cnn_forward.10} parent=1 // loop_body
      %s15 = ssub.s32 %s10, 1
      %s16 = ssub.s32 %s10, 2
      %s26 = sadd.s32 1, %s19
      %p27 = scmp.ge.s32.totalorder %s26, 7
      %s28 = scalar_select %p27, 0, %s26
      %s29 = sadd.s32 1, %s18
      %s30 = scalar_select %p27, %s29, %s18
      %p31 = scmp.ge.s32.totalorder %s30, 1
      %s32 = scalar_select %p31, 0, %s30
      %s33 = sadd.s32 1, %s17
      %s34 = scalar_select %p31, %s33, %s17
      %p35 = scmp.ge.s32.totalorder %s34, 1
      %s36 = scalar_select %p35, 0, %s34
      %s37 = ssub.s32 %s17, %s36
      %s38 = ssub.s32 %s19, %s28
      %s39 = sor.u32 %s37, %s38
      %p40 = scmp.eq.s32.totalorder %s39, 0
      %s42 = sadd.s32 %s41, 1
      %s43 = scalar_select %p40, %s41, %s42
      %p46 = pneg %p40
      %p47 = scmp.eq.s32.totalorder %s10, 6
      %p48 = por %p46, %p47
      %p49 = scmp.ne.s32.totalorder %s41, %s44
      %p50 = scmp.eq.s32.totalorder %s10, 0
      %p51 = por %p49, %p50
      %p52 = scmp.ne.s32.totalorder %s41, %s44
      %p53 = scmp.eq.s32.totalorder %s15, 6
      %p54 = por %p52, %p53
      %p55 = scmp.ne.s32.totalorder %s44, %s45
      %p56 = scmp.eq.s32.totalorder %s15, 0
      %p57 = por %p55, %p56
      %p58 = scmp.ne.s32.totalorder %s44, %s45
      %p59 = scmp.eq.s32.totalorder %s16, 6
      %p60 = por %p58, %p59
      %p62 = scmp.ne.s32.totalorder %s45, %s61
      %p63 = scmp.eq.s32.totalorder %s16, 0
      %p64 = por %p62, %p63
      %s65 = ssub.s32 %s19, %s28
      %s66 = ssub.s32 %s18, %s32
      %s67 = sor.u32 %s65, %s66
      %p68 = scmp.eq.s32.totalorder %s67, 0
      %s70 = sadd.s32 %s69, 1
      %s71 = scalar_select %p68, %s69, %s70
      %p74 = pneg %p68
      %p75 = scmp.eq.s32.totalorder %s10, 6
      %p76 = por %p74, %p75
      %p77 = scmp.ne.s32.totalorder %s69, %s72
      %p78 = scmp.eq.s32.totalorder %s10, 0
      %p79 = por %p77, %p78
      %p80 = scmp.ne.s32.totalorder %s69, %s72
      %p81 = scmp.eq.s32.totalorder %s15, 6
      %p82 = por %p80, %p81
      %p83 = scmp.ne.s32.totalorder %s72, %s73
      %p84 = scmp.eq.s32.totalorder %s15, 0
      %p85 = por %p83, %p84
      %p86 = scmp.ne.s32.totalorder %s72, %s73
      %p87 = scmp.eq.s32.totalorder %s16, 6
      %p88 = por %p86, %p87
      %p90 = scmp.ne.s32.totalorder %s73, %s89
      %p91 = scmp.eq.s32.totalorder %s16, 0
      %p92 = por %p90, %p91
      %s93 = ssub.s32 %s18, %s32
      %p94 = scmp.eq.s32.totalorder %s93, 0
      %s96 = sadd.s32 %s95, 1
      %s97 = scalar_select %p94, %s95, %s96
      %p100 = pneg %p94
      %p101 = scmp.eq.s32.totalorder %s10, 6
      %p102 = por %p100, %p101
      %p103 = scmp.ne.s32.totalorder %s95, %s98
      %p104 = scmp.eq.s32.totalorder %s10, 0
      %p105 = por %p103, %p104
      %p106 = scmp.ne.s32.totalorder %s95, %s98
      %p107 = scmp.eq.s32.totalorder %s15, 6
      %p108 = por %p106, %p107
      %p109 = scmp.ne.s32.totalorder %s98, %s99
      %p110 = scmp.eq.s32.totalorder %s15, 0
      %p111 = por %p109, %p110
      %p112 = scmp.ne.s32.totalorder %s98, %s99
      %p113 = scmp.eq.s32.totalorder %s16, 6
      %p114 = por %p112, %p113
      %p116 = scmp.ne.s32.totalorder %s99, %s115
      %p117 = scmp.eq.s32.totalorder %s16, 0
      %p118 = por %p116, %p117
      %s119 = ssub.s32 %s18, %s32
      %p120 = scmp.eq.s32.totalorder %s119, 0
      %s122 = sadd.s32 %s121, 1
      %s123 = scalar_select %p120, %s121, %s122
      %p126 = pneg %p120
      %p127 = scmp.eq.s32.totalorder %s10, 6
      %p128 = por %p126, %p127
      %p129 = scmp.ne.s32.totalorder %s121, %s124
      %p130 = scmp.eq.s32.totalorder %s10, 0
      %p131 = por %p129, %p130
      %p132 = scmp.ne.s32.totalorder %s121, %s124
      %p133 = scmp.eq.s32.totalorder %s15, 6
      %p134 = por %p132, %p133
      %p135 = scmp.ne.s32.totalorder %s124, %s125
      %p136 = scmp.eq.s32.totalorder %s15, 0
      %p137 = por %p135, %p136
      %p138 = scmp.ne.s32.totalorder %s124, %s125
      %p139 = scmp.eq.s32.totalorder %s16, 6
      %p140 = por %p138, %p139
      %p142 = scmp.ne.s32.totalorder %s125, %s141
      %p143 = scmp.eq.s32.totalorder %s16, 0
      %p144 = por %p142, %p143
      %s145 = ssub.s32 %s17, %s36
      %s146 = ssub.s32 %s18, %s32
      %s147 = sor.u32 %s145, %s146
      %p148 = scmp.eq.s32.totalorder %s147, 0
      %s150 = sadd.s32 %s149, 1
      %s151 = scalar_select %p148, %s149, %s150
      %p154 = pneg %p148
      %p155 = scmp.eq.s32.totalorder %s10, 6
      %p156 = por %p154, %p155
      %p157 = scmp.ne.s32.totalorder %s149, %s152
      %p158 = scmp.eq.s32.totalorder %s10, 0
      %p159 = por %p157, %p158
      %p160 = scmp.ne.s32.totalorder %s149, %s152
      %p161 = scmp.eq.s32.totalorder %s15, 6
      %p162 = por %p160, %p161
      %p163 = scmp.ne.s32.totalorder %s152, %s153
      %p164 = scmp.eq.s32.totalorder %s15, 0
      %p165 = por %p163, %p164
      %p166 = scmp.ne.s32.totalorder %s152, %s153
      %p167 = scmp.eq.s32.totalorder %s16, 6
      %p168 = por %p166, %p167
      %p170 = scmp.ne.s32.totalorder %s153, %s169
      %p171 = scmp.eq.s32.totalorder %s16, 0
      %p172 = por %p170, %p171
      %p173 = scmp.le.s32.totalorder 1, %s10
      %p174 = scmp.lt.s32.totalorder %s10, 8
      %p175 = pnand %p173, %p174
      %p176 = pneg %p175
      // Predicated region
      $region9: #{cnn_forward.10} parent=5 // pred_check
        _
      $region10: #{cnn_forward.10} parent=5 // pred_check_branch
        %178 = sbr.rel (%p175) target = $region12
      $region11: #{cnn_forward.10} parent=5 // pred_region
        %s179 = ssub.s32 %s10, 1
        // Predicated region
        $region13: #{cnn_forward.10} parent=11 // pred_check
          %p180 = pneg %p111
        $region14: #{cnn_forward.10} parent=11 // pred_check_branch
          %182 = sbr.rel (%p180) target = $region16
        $region15: #{cnn_forward.10} parent=11 // pred_region
          %p183 = scmp.lt.s32.totalorder %s21, 0
          %s184 = scalar_select %p183, %s21, 0
          %s185 = scalar_lea.vmem %s2, %s184
        $region16: #{cnn_forward.10} parent=11 // pred_fallthru
          _
        // Predicated region
        $region17: #{cnn_forward.10} parent=11 // pred_check
          %p186 = pneg %p137
        $region18: #{cnn_forward.10} parent=11 // pred_check_branch
          %188 = sbr.rel (%p186) target = $region20
        $region19: #{cnn_forward.10} parent=11 // pred_region
          %p189 = scmp.lt.s32.totalorder %s21, 0
          %s190 = scalar_select %p189, %s21, 0
          %s191 = scalar_lea.vmem %s3, %s190
        $region20: #{cnn_forward.10} parent=11 // pred_fallthru
          _
      $region12: #{cnn_forward.10} parent=5 // pred_fallthru
        _
      %p192 = scmp.lt.s32.totalorder %s10, 7
      // Predicated region
      $region21: #{cnn_forward.10} parent=5 // pred_check
        %p193 = pneg %p192
      $region22: #{cnn_forward.10} parent=5 // pred_check_branch
        %195 = sbr.rel (%p193) target = $region24
      $region23: #{cnn_forward.10} parent=5 // pred_region
        // Predicated region
        $region25: #{cnn_forward.10} parent=23 // pred_check
          %p196 = pneg %p51
        $region26: #{cnn_forward.10} parent=23 // pred_check_branch
          %198 = sbr.rel (%p196) target = $region28
        $region27: #{cnn_forward.10} parent=23 // pred_region
          %s199 = sand.u32 %s41, 1
          %s200 = sand.u32 %s41, 1
          %s201 = smul.addr %s200, 48
          %s202 = scalar_lea.vmem [#allocation3], %s201
          %s203 = smul.u32 12, %s17
          %s204 = smul.addr %s203, 7
          %s205 = sadd.s32 %s19, %s204
          %s206 = smul.addr %s205, 4
          %s207 = scalar_lea.vmem %s0, %s206
          // Predicated region
          $region29: #{cnn_forward.10} parent=27 // pred_check
            _
          $region30: #{cnn_forward.10} parent=27 // pred_check_branch
            %209 = sbr.rel (0) target = $region32
          $region31: #{cnn_forward.10} parent=27 // pred_region
            // Predicated region
            $region33: #{cnn_forward.10} parent=31 // pred_check
              _
            $region34: #{cnn_forward.10} parent=31 // pred_check_branch
              %211 = sbr.rel target = $region36
            $region35: #{cnn_forward.10} parent=31 // pred_region
              // Predicated region
              $region48: #{cnn_forward.10} parent=35 // pred_check
                _
              $region49: #{cnn_forward.10} parent=35 // pred_check_branch
                %249 = sbr.rel (0) target = $region51
              $region50: #{cnn_forward.10} parent=35 // pred_region
                loop: start=0, step=1, limit=1
                $region52: #{cnn_forward.10} parent=50 // loop_pre_header
                  _
                $region53: #{cnn_forward.10} parent=50 // loop_header
                  %s251 = sphi 0, %s255
                  %p252 = scmp.ge.s32.totalorder %s251, 1
                  %s256 = sphi %s207, %s207
                  %s257 = sphi %s202, %s202
                $region54: #{cnn_forward.10} parent=50 // loop_header_branch
                  %254 = sbr.rel (%p252) target = $region58
                $region55: #{cnn_forward.10} parent=50 // loop_body
                  _
                $region56: #{cnn_forward.10} parent=50 // loop_footer
                  %s255 = sadd.s32 1, %s251
                $region57: #{cnn_forward.10} parent=50 // loop_footer_branch
                  %250 = sbr.rel target = $region53
                $region58: #{cnn_forward.10} parent=50 // loop_exit
                  _
                %s259 = ssub.s32 16, 1
                loop: start=0, step=1, limit=1
                $region59: #{cnn_forward.10} parent=50 // loop_pre_header
                  _
                $region60: #{cnn_forward.10} parent=50 // loop_header
                  %s261 = sphi 0, %s265
                  %p262 = scmp.ge.s32.totalorder %s261, 1
                  %s266 = sphi %s207, %s207
                  %s267 = sphi %s202, %s202
                $region61: #{cnn_forward.10} parent=50 // loop_header_branch
                  %264 = sbr.rel (%p262) target = $region65
                $region62: #{cnn_forward.10} parent=50 // loop_body
                  %v268 = vld [vmem:[%s266] sm:%s259]
                  %269 = vst [vmem:[%s267] sm:%s259] %v268
                  %v270 = vld [vmem:[%s266 + $0x1c] sm:%s259]
                  %271 = vst [vmem:[%s267 + $0x4] sm:%s259] %v270
                  %v272 = vld [vmem:[%s266 + $0x38] sm:%s259]
                  %273 = vst [vmem:[%s267 + $0x8] sm:%s259] %v272
                  %v274 = vld [vmem:[%s266 + $0x54] sm:%s259]
                  %275 = vst [vmem:[%s267 + $0xc] sm:%s259] %v274
                  %v276 = vld [vmem:[%s266 + $0x70] sm:%s259]
                  %277 = vst [vmem:[%s267 + $0x10] sm:%s259] %v276
                  %v278 = vld [vmem:[%s266 + $0x8c] sm:%s259]
                  %279 = vst [vmem:[%s267 + $0x14] sm:%s259] %v278
                  %v280 = vld [vmem:[%s266 + $0xa8] sm:%s259]
                  %281 = vst [vmem:[%s267 + $0x18] sm:%s259] %v280
                  %v282 = vld [vmem:[%s266 + $0xc4] sm:%s259]
                  %283 = vst [vmem:[%s267 + $0x1c] sm:%s259] %v282
                  %v284 = vld [vmem:[%s266 + $0xe0] sm:%s259]
                  %285 = vst [vmem:[%s267 + $0x20] sm:%s259] %v284
                  %v286 = vld [vmem:[%s266 + $0xfc] sm:%s259]
                  %287 = vst [vmem:[%s267 + $0x24] sm:%s259] %v286
                  %v288 = vld [vmem:[%s266 + $0x118] sm:%s259]
                  %289 = vst [vmem:[%s267 + $0x28] sm:%s259] %v288
                  %v290 = vld [vmem:[%s266 + $0x134] sm:%s259]
                  %291 = vst [vmem:[%s267 + $0x2c] sm:%s259] %v290
                $region63: #{cnn_forward.10} parent=50 // loop_footer
                  %s265 = sadd.s32 1, %s261
                $region64: #{cnn_forward.10} parent=50 // loop_footer_branch
                  %260 = sbr.rel target = $region60
                $region65: #{cnn_forward.10} parent=50 // loop_exit
                  _
              $region51: #{cnn_forward.10} parent=35 // pred_fallthru
                _
            $region36: #{cnn_forward.10} parent=31 // pred_fallthru
              _
            // Predicated region
            $region37: #{cnn_forward.10} parent=31 // pred_check
              _
            $region38: #{cnn_forward.10} parent=31 // pred_check_branch
              %213 = sbr.rel (0) target = $region40
            $region39: #{cnn_forward.10} parent=31 // pred_region
              %s215 = ssub.s32 16, 1
              loop: start=0, step=1, limit=1
              $region41: #{cnn_forward.10} parent=39 // loop_pre_header
                _
              $region42: #{cnn_forward.10} parent=39 // loop_header
                %s217 = sphi 0, %s221
                %p218 = scmp.ge.s32.totalorder %s217, 1
                %s222 = sphi %s207, %s207
                %s223 = sphi %s202, %s202
              $region43: #{cnn_forward.10} parent=39 // loop_header_branch
                %220 = sbr.rel (%p218) target = $region47
              $region44: #{cnn_forward.10} parent=39 // loop_body
                %v224 = vld [vmem:[%s222] sm:%s215]
                %225 = vst [vmem:[%s223] sm:%s215] %v224
                %v226 = vld [vmem:[%s222 + $0x1c] sm:%s215]
                %227 = vst [vmem:[%s223 + $0x4] sm:%s215] %v226
                %v228 = vld [vmem:[%s222 + $0x38] sm:%s215]
                %229 = vst [vmem:[%s223 + $0x8] sm:%s215] %v228
                %v230 = vld [vmem:[%s222 + $0x54] sm:%s215]
                %231 = vst [vmem:[%s223 + $0xc] sm:%s215] %v230
                %v232 = vld [vmem:[%s222 + $0x70] sm:%s215]
                %233 = vst [vmem:[%s223 + $0x10] sm:%s215] %v232
                %v234 = vld [vmem:[%s222 + $0x8c] sm:%s215]
                %235 = vst [vmem:[%s223 + $0x14] sm:%s215] %v234
                %v236 = vld [vmem:[%s222 + $0xa8] sm:%s215]
                %237 = vst [vmem:[%s223 + $0x18] sm:%s215] %v236
                %v238 = vld [vmem:[%s222 + $0xc4] sm:%s215]
                %239 = vst [vmem:[%s223 + $0x1c] sm:%s215] %v238
                %v240 = vld [vmem:[%s222 + $0xe0] sm:%s215]
                %241 = vst [vmem:[%s223 + $0x20] sm:%s215] %v240
                %v242 = vld [vmem:[%s222 + $0xfc] sm:%s215]
                %243 = vst [vmem:[%s223 + $0x24] sm:%s215] %v242
                %v244 = vld [vmem:[%s222 + $0x118] sm:%s215]
                %245 = vst [vmem:[%s223 + $0x28] sm:%s215] %v244
                %v246 = vld [vmem:[%s222 + $0x134] sm:%s215]
                %247 = vst [vmem:[%s223 + $0x2c] sm:%s215] %v246
              $region45: #{cnn_forward.10} parent=39 // loop_footer
                %s221 = sadd.s32 1, %s217
              $region46: #{cnn_forward.10} parent=39 // loop_footer_branch
                %216 = sbr.rel target = $region42
              $region47: #{cnn_forward.10} parent=39 // loop_exit
                _
            $region40: #{cnn_forward.10} parent=31 // pred_fallthru
              _
          $region32: #{cnn_forward.10} parent=27 // pred_fallthru
            _
          %292 = vnop
        $region28: #{cnn_forward.10} parent=23 // pred_fallthru
          _
        // Predicated region
        $region66: #{cnn_forward.10} parent=23 // pred_check
          %p293 = pneg %p79
        $region67: #{cnn_forward.10} parent=23 // pred_check_branch
          %295 = sbr.rel (%p293) target = $region69
        $region68: #{cnn_forward.10} parent=23 // pred_region
          %s296 = smul.u32 16, %s19
          %p297 = scmp.lt.s32.totalorder %s296, 111
          %s298 = scalar_select %p297, %s296, 111
          %p299 = scmp.lt.s32.totalorder %s18, 0
          %s300 = scalar_select %p299, %s18, 0
          %s301 = sadd.s32 %s300, %s298
          %s302 = smul.addr %s301, 4
          %s303 = scalar_lea.vmem %s1, %s302
          %s304 = smul.u32 16, %s19
        $region69: #{cnn_forward.10} parent=23 // pred_fallthru
          _
      $region24: #{cnn_forward.10} parent=5 // pred_fallthru
        _
      %p305 = scmp.le.s32.totalorder 1, %s10
      %p306 = scmp.lt.s32.totalorder %s10, 8
      %p307 = pnand %p305, %p306
      %p308 = pneg %p307
      // Predicated region
      $region70: #{cnn_forward.10} parent=5 // pred_check
        _
      $region71: #{cnn_forward.10} parent=5 // pred_check_branch
        %310 = sbr.rel (%p307) target = $region73
      $region72: #{cnn_forward.10} parent=5 // pred_region
        %s311 = ssub.s32 %s10, 1
        %s312 = sand.u32 %s44, 1
        %s313 = sand.u32 %s44, 1
        %s314 = smul.addr %s313, 48
        %s315 = scalar_lea.vmem [#allocation3], %s314
        // Predicated region
        $region74: #{cnn_forward.10} parent=72 // pred_check
          %p316 = pneg %p57
        $region75: #{cnn_forward.10} parent=72 // pred_check_branch
          %318 = sbr.rel (%p316) target = $region77
        $region76: #{cnn_forward.10} parent=72 // pred_region
          _
        $region77: #{cnn_forward.10} parent=72 // pred_fallthru
          _
        %s319 = sand.u32 %s44, 1
        %s320 = sand.u32 %s44, 1
        %s321 = smul.addr %s320, 48
        %s322 = scalar_lea.vmem [#allocation3], %s321
        %p323 = pneg %p57
        %p324 = pneg %p54
        %s325 = smul.u32 16, %s22
        %p326 = scmp.lt.s32.totalorder %s325, 111
        %s327 = scalar_select %p326, %s325, 111
        %p328 = scmp.lt.s32.totalorder %s21, 0
        %s329 = scalar_select %p328, %s21, 0
        %s330 = sadd.s32 %s329, %s327
        %s331 = smul.addr %s330, 4
        %s332 = scalar_lea.vmem %s1, %s331
        %p333 = pneg %p85
        %p334 = pneg %p82
        %p335 = scmp.lt.s32.totalorder %s21, 0
        %s336 = scalar_select %p335, %s21, 0
        %s337 = scalar_lea.vmem %s2, %s336
        %p338 = pneg %p111
        %p339 = pneg %p108
        %p340 = scmp.lt.s32.totalorder %s21, 0
        %s341 = scalar_select %p340, %s21, 0
        %s342 = scalar_lea.vmem %s3, %s341
        %p343 = pneg %p137
        %p344 = pneg %p134
        %p345 = pneg %p165
        %p346 = pneg %p162
        %s347 = smul.u32 12, %s20
        %p348 = scmp.lt.s32.totalorder %s347, 11
        %s349 = scalar_select %p348, %s347, 11
        %p350 = scmp.lt.s32.totalorder %s21, 0
        %s351 = scalar_select %p350, %s21, 0
        %s352 = sadd.s32 %s351, %s349
        %s353 = smul.addr %s352, 8
        %s354 = scalar_lea.vmem %s4, %s353
        %s355 = smul.u32 12, %s20
        %s356 = smul.u32 16, %s22
        %p357 = scmp.lt.s32.totalorder %s356, 111
        %s358 = scalar_select %p357, %s356, 111
        %p359 = scmp.lt.s32.totalorder %s21, 0
        %s360 = scalar_select %p359, %s21, 0
        %s361 = sadd.s32 %s360, %s358
        %s362 = smul.addr %s361, 4
        %s363 = scalar_lea.vmem %s1, %s362
        %s364 = smul.u32 16, %s22
        %p365 = scmp.lt.s32.totalorder %s21, 0
        %s366 = scalar_select %p365, %s21, 0
        %s367 = scalar_lea.vmem %s2, %s366
        %p368 = scmp.lt.s32.totalorder %s21, 0
        %s369 = scalar_select %p368, %s21, 0
        %s370 = scalar_lea.vmem %s3, %s369
        %s371 = smul.u32 12, %s20
        %p372 = scmp.lt.s32.totalorder %s371, 11
        %s373 = scalar_select %p372, %s371, 11
        %p374 = scmp.lt.s32.totalorder %s21, 0
        %s375 = scalar_select %p374, %s21, 0
        %s376 = sadd.s32 %s375, %s373
        %s377 = smul.addr %s376, 8
        %s378 = scalar_lea.vmem %s4, %s377
        %s379 = smul.u32 12, %s20
        %p380 = scmp.eq.s32.totalorder %s22, 0
        // Predicated region
        $region78: #{cnn_forward.10} parent=72 // pred_check
          %p381 = pneg %p380
        $region79: #{cnn_forward.10} parent=72 // pred_check_branch
          %383 = sbr.rel (%p381) target = $region81
        $region80: #{cnn_forward.10} parent=72 // pred_region
          %384 = vst [vmem:[#allocation2] sm:$0xff] 0.0
          %385 = vst [vmem:[#allocation2 + $0x8] sm:$0xff] 0.0
          %386 = vst [vmem:[#allocation2 + $0x10] sm:$0xff] 0.0
          %387 = vst [vmem:[#allocation2 + $0x18] sm:$0xff] 0.0
          %388 = vst [vmem:[#allocation2 + $0x20] sm:$0xff] 0.0
          %389 = vst [vmem:[#allocation2 + $0x28] sm:$0xff] 0.0
          %390 = vst [vmem:[#allocation2 + $0x30] sm:$0xff] 0.0
          %391 = vst [vmem:[#allocation2 + $0x38] sm:$0xff] 0.0
          %392 = vst [vmem:[#allocation2 + $0x40] sm:$0xff] 0.0
          %393 = vst [vmem:[#allocation2 + $0x48] sm:$0xff] 0.0
          %394 = vst [vmem:[#allocation2 + $0x50] sm:$0xff] 0.0
          %395 = vst [vmem:[#allocation2 + $0x58] sm:$0xff] 0.0
        $region81: #{cnn_forward.10} parent=72 // pred_fallthru
          _
        %v396 = vld [vmem:[#allocation2] sm:$0xff]
        %v397 = vld [vmem:[#allocation2 + $0x8] sm:$0xff]
        %v398 = vld [vmem:[#allocation2 + $0x10] sm:$0xff]
        %v399 = vld [vmem:[#allocation2 + $0x18] sm:$0xff]
        %v400 = vld [vmem:[#allocation2 + $0x20] sm:$0xff]
        %v401 = vld [vmem:[#allocation2 + $0x28] sm:$0xff]
        %v402 = vld [vmem:[#allocation2 + $0x30] sm:$0xff]
        %v403 = vld [vmem:[#allocation2 + $0x38] sm:$0xff]
        %v404 = vld [vmem:[#allocation2 + $0x40] sm:$0xff]
        %v405 = vld [vmem:[#allocation2 + $0x48] sm:$0xff]
        %v406 = vld [vmem:[#allocation2 + $0x50] sm:$0xff]
        %v407 = vld [vmem:[#allocation2 + $0x58] sm:$0xff]
        %v408 = vld [vmem:[%s315] sm:$0xf]
        %v409 = vld [vmem:[%s315 + $0x4] sm:$0xf]
        %v410 = vld [vmem:[%s315 + $0x8] sm:$0xf]
        %v411 = vld [vmem:[%s315 + $0xc] sm:$0xf]
        %v412 = vld [vmem:[%s315 + $0x10] sm:$0xf]
        %v413 = vld [vmem:[%s315 + $0x14] sm:$0xf]
        %v414 = vld [vmem:[%s315 + $0x18] sm:$0xf]
        %v415 = vld [vmem:[%s315 + $0x1c] sm:$0xf]
        %v416 = vld [vmem:[%s315 + $0x20] sm:$0xf]
        %v417 = vld [vmem:[%s315 + $0x24] sm:$0xf]
        %v418 = vld [vmem:[%s315 + $0x28] sm:$0xf]
        %v419 = vld [vmem:[%s315 + $0x2c] sm:$0xf]
        %v420 = vld [vmem:[%s363] sm:$0xf]
        %v421 = vld [vmem:[%s363 + $0x4] sm:$0xf]
        %v422 = vld [vmem:[%s363 + $0x8] sm:$0xf]
        %v423 = vld [vmem:[%s363 + $0xc] sm:$0xf]
        %v424 = vld [vmem:[%s363 + $0x10] sm:$0xf]
        %v425 = vld [vmem:[%s363 + $0x14] sm:$0xf]
        %v426 = vld [vmem:[%s363 + $0x18] sm:$0xf]
        %v427 = vld [vmem:[%s363 + $0x1c] sm:$0xf]
        %v428 = vld [vmem:[%s363 + $0x20] sm:$0xf]
        %v429 = vld [vmem:[%s363 + $0x24] sm:$0xf]
        %v430 = vld [vmem:[%s363 + $0x28] sm:$0xf]
        %v431 = vld [vmem:[%s363 + $0x2c] sm:$0xf]
        %v432 = vld [vmem:[%s363 + $0x30] sm:$0xf]
        %v433 = vld [vmem:[%s363 + $0x34] sm:$0xf]
        %v434 = vld [vmem:[%s363 + $0x38] sm:$0xf]
        %v435 = vld [vmem:[%s363 + $0x3c] sm:$0xf]
        %v448 = vunpack.c.l.b16 %v408
        %v449 = vunpack.c.l.b16 %v409
        %v450 = vunpack.c.l.b16 %v410
        %v451 = vunpack.c.l.b16 %v411
        %v452 = vunpack.c.l.b16 %v412
        %v453 = vunpack.c.l.b16 %v413
        %v454 = vunpack.c.l.b16 %v414
        %v455 = vunpack.c.l.b16 %v415
        %v456 = vunpack.c.l.b16 %v416
        %v457 = vunpack.c.l.b16 %v417
        %v458 = vunpack.c.l.b16 %v418
        %v459 = vunpack.c.l.b16 %v419
        %v460 = vpack.c.b16 %v449, %v448
        %v461 = vpack.c.b16 %v451, %v450
        %v462 = vpack.c.b16 %v453, %v452
        %v463 = vpack.c.b16 %v455, %v454
        %v464 = vpack.c.b16 %v457, %v456
        %v465 = vpack.c.b16 %v459, %v458
        %v488 = vunpack.c.l.b16 %v420
        %v489 = vunpack.c.l.b16 %v421
        %v490 = vunpack.c.l.b16 %v422
        %v491 = vunpack.c.l.b16 %v423
        %v492 = vunpack.c.l.b16 %v424
        %v493 = vunpack.c.l.b16 %v425
        %v494 = vunpack.c.l.b16 %v426
        %v495 = vunpack.c.l.b16 %v427
        %v496 = vunpack.c.l.b16 %v428
        %v497 = vunpack.c.l.b16 %v429
        %v498 = vunpack.c.l.b16 %v430
        %v499 = vunpack.c.l.b16 %v431
        %v500 = vunpack.c.l.b16 %v432
        %v501 = vunpack.c.l.b16 %v433
        %v502 = vunpack.c.l.b16 %v434
        %v503 = vunpack.c.l.b16 %v435
        %v504 = vpack.c.b16 %v489, %v488
        %v505 = vpack.c.b16 %v491, %v490
        %v506 = vpack.c.b16 %v493, %v492
        %v507 = vpack.c.b16 %v495, %v494
        %v508 = vpack.c.b16 %v497, %v496
        %v509 = vpack.c.b16 %v499, %v498
        %v510 = vpack.c.b16 %v501, %v500
        %v511 = vpack.c.b16 %v503, %v502
        %520 = vmatpush.bf16.msra.mxu0 %v511
        %521 = vmatpush.bf16.msra.mxu0 %v510
        %522 = vmatpush.bf16.msra.mxu0 %v509
        %523 = vmatpush.bf16.msra.mxu0 %v508
        %524 = vmatpush.bf16.msra.mxu0 %v507
        %525 = vmatpush.bf16.msra.mxu0 %v506
        %526 = vmatpush.bf16.msra.mxu0 %v505
        %527 = vmatpush.bf16.msra.mxu0 %v504
        %528 = vmatmul.bf16.gmra.mxu0 %v460
        %v529 = vpop.f32.mrf.mxu0
        %v530 = vadd.f32 0.0, %v529
        %v531 = vpop.f32.mrf.mxu0
        %v532 = vadd.f32 0.0, %v531
        %533 = vmatmul.bf16.gmra.mxu0 %v461
        %v534 = vpop.f32.mrf.mxu0
        %v535 = vadd.f32 0.0, %v534
        %v536 = vpop.f32.mrf.mxu0
        %v537 = vadd.f32 0.0, %v536
        %538 = vmatmul.bf16.gmra.mxu0 %v462
        %v539 = vpop.f32.mrf.mxu0
        %v540 = vadd.f32 0.0, %v539
        %v541 = vpop.f32.mrf.mxu0
        %v542 = vadd.f32 0.0, %v541
        %543 = vmatmul.bf16.gmra.mxu0 %v463
        %v544 = vpop.f32.mrf.mxu0
        %v545 = vadd.f32 0.0, %v544
        %v546 = vpop.f32.mrf.mxu0
        %v547 = vadd.f32 0.0, %v546
        %548 = vmatmul.bf16.gmra.mxu0 %v464
        %v549 = vpop.f32.mrf.mxu0
        %v550 = vadd.f32 0.0, %v549
        %v551 = vpop.f32.mrf.mxu0
        %v552 = vadd.f32 0.0, %v551
        %553 = vmatmul.bf16.gmra.mxu0 %v465
        %v554 = vpop.f32.mrf.mxu0
        %v555 = vadd.f32 0.0, %v554
        %v556 = vpop.f32.mrf.mxu0
        %v557 = vadd.f32 0.0, %v556
        %558 = vdwg.mxu0
        %v559 = vadd.f32 %v396, %v530
        %v560 = vadd.f32 %v397, %v532
        %v561 = vadd.f32 %v398, %v535
        %v562 = vadd.f32 %v399, %v537
        %v563 = vadd.f32 %v400, %v540
        %v564 = vadd.f32 %v401, %v542
        %v565 = vadd.f32 %v402, %v545
        %v566 = vadd.f32 %v403, %v547
        %v567 = vadd.f32 %v404, %v550
        %v568 = vadd.f32 %v405, %v552
        %v569 = vadd.f32 %v406, %v555
        %v570 = vadd.f32 %v407, %v557
        %571 = vst [vmem:[#allocation2] sm:$0xff] %v559
        %572 = vst [vmem:[#allocation2 + $0x8] sm:$0xff] %v560
        %573 = vst [vmem:[#allocation2 + $0x10] sm:$0xff] %v561
        %574 = vst [vmem:[#allocation2 + $0x18] sm:$0xff] %v562
        %575 = vst [vmem:[#allocation2 + $0x20] sm:$0xff] %v563
        %576 = vst [vmem:[#allocation2 + $0x28] sm:$0xff] %v564
        %577 = vst [vmem:[#allocation2 + $0x30] sm:$0xff] %v565
        %578 = vst [vmem:[#allocation2 + $0x38] sm:$0xff] %v566
        %579 = vst [vmem:[#allocation2 + $0x40] sm:$0xff] %v567
        %580 = vst [vmem:[#allocation2 + $0x48] sm:$0xff] %v568
        %581 = vst [vmem:[#allocation2 + $0x50] sm:$0xff] %v569
        %582 = vst [vmem:[#allocation2 + $0x58] sm:$0xff] %v570
        %p583 = scmp.eq.s32.totalorder %s22, 6
        // Predicated region
        $region82: #{cnn_forward.10} parent=72 // pred_check
          %p584 = pneg %p583
        $region83: #{cnn_forward.10} parent=72 // pred_check_branch
          %586 = sbr.rel (%p584) target = $region85
        $region84: #{cnn_forward.10} parent=72 // pred_region
          %v587 = vld [vmem:[#allocation2] sm:$0xff]
          %v588 = vld [vmem:[#allocation2 + $0x8] sm:$0xff]
          %v589 = vld [vmem:[#allocation2 + $0x10] sm:$0xff]
          %v590 = vld [vmem:[#allocation2 + $0x18] sm:$0xff]
          %v591 = vld [vmem:[#allocation2 + $0x20] sm:$0xff]
          %v592 = vld [vmem:[#allocation2 + $0x28] sm:$0xff]
          %v593 = vld [vmem:[#allocation2 + $0x30] sm:$0xff]
          %v594 = vld [vmem:[#allocation2 + $0x38] sm:$0xff]
          %v595 = vld [vmem:[#allocation2 + $0x40] sm:$0xff]
          %v596 = vld [vmem:[#allocation2 + $0x48] sm:$0xff]
          %v597 = vld [vmem:[#allocation2 + $0x50] sm:$0xff]
          %v598 = vld [vmem:[#allocation2 + $0x58] sm:$0xff]
          %v599 = vld [vmem:[%s367] sm:$0x1]
          %v601 = vperm.slane %v599, 0
          %v603 = vmul.f32 %v587, %v601
          %v604 = vmul.f32 %v588, %v601
          %v605 = vmul.f32 %v589, %v601
          %v606 = vmul.f32 %v590, %v601
          %v607 = vmul.f32 %v591, %v601
          %v608 = vmul.f32 %v592, %v601
          %v609 = vmul.f32 %v593, %v601
          %v610 = vmul.f32 %v594, %v601
          %v611 = vmul.f32 %v595, %v601
          %v612 = vmul.f32 %v596, %v601
          %v613 = vmul.f32 %v597, %v601
          %v614 = vmul.f32 %v598, %v601
          %v615 = vld [vmem:[%s370] sm:$0x1]
          %v617 = vperm.slane %v615, 0
          %v619 = vadd.f32 %v603, %v617
          %v620 = vadd.f32 %v604, %v617
          %v621 = vadd.f32 %v605, %v617
          %v622 = vadd.f32 %v606, %v617
          %v623 = vadd.f32 %v607, %v617
          %v624 = vadd.f32 %v608, %v617
          %v625 = vadd.f32 %v609, %v617
          %v626 = vadd.f32 %v610, %v617
          %v627 = vadd.f32 %v611, %v617
          %v628 = vadd.f32 %v612, %v617
          %v629 = vadd.f32 %v613, %v617
          %v630 = vadd.f32 %v614, %v617
          %v631 = vmax.f32 %v619, 0.0
          %v632 = vmax.f32 %v620, 0.0
          %v633 = vmax.f32 %v621, 0.0
          %v634 = vmax.f32 %v622, 0.0
          %v635 = vmax.f32 %v623, 0.0
          %v636 = vmax.f32 %v624, 0.0
          %v637 = vmax.f32 %v625, 0.0
          %v638 = vmax.f32 %v626, 0.0
          %v639 = vmax.f32 %v627, 0.0
          %v640 = vmax.f32 %v628, 0.0
          %v641 = vmax.f32 %v629, 0.0
          %v642 = vmax.f32 %v630, 0.0
          %643 = vst [vmem:[%s378] sm:$0xff] %v631
          %644 = vst [vmem:[%s378 + $0x8] sm:$0xff] %v632
          %645 = vst [vmem:[%s378 + $0x10] sm:$0xff] %v633
          %646 = vst [vmem:[%s378 + $0x18] sm:$0xff] %v634
          %647 = vst [vmem:[%s378 + $0x20] sm:$0xff] %v635
          %648 = vst [vmem:[%s378 + $0x28] sm:$0xff] %v636
          %649 = vst [vmem:[%s378 + $0x30] sm:$0xff] %v637
          %650 = vst [vmem:[%s378 + $0x38] sm:$0xff] %v638
          %651 = vst [vmem:[%s378 + $0x40] sm:$0xff] %v639
          %652 = vst [vmem:[%s378 + $0x48] sm:$0xff] %v640
          %653 = vst [vmem:[%s378 + $0x50] sm:$0xff] %v641
          %654 = vst [vmem:[%s378 + $0x58] sm:$0xff] %v642
        $region85: #{cnn_forward.10} parent=72 // pred_fallthru
          _
        %s655 = smul.u32 12, %s20
        %p656 = scmp.lt.s32.totalorder %s655, 11
        %s657 = scalar_select %p656, %s655, 11
        %p658 = scmp.lt.s32.totalorder %s21, 0
        %s659 = scalar_select %p658, %s21, 0
        %s660 = sadd.s32 %s659, %s657
        %s661 = smul.addr %s660, 8
        %s662 = scalar_lea.vmem %s4, %s661
        // Predicated region
        $region86: #{cnn_forward.10} parent=72 // pred_check
          %p663 = pneg %p162
        $region87: #{cnn_forward.10} parent=72 // pred_check_branch
          %665 = sbr.rel (%p663) target = $region89
        $region88: #{cnn_forward.10} parent=72 // pred_region
          %s666 = smul.u32 12, %s20
        $region89: #{cnn_forward.10} parent=72 // pred_fallthru
          _
        // Predicated region
        $region90: #{cnn_forward.10} parent=72 // pred_check
          %p667 = pneg %p162
        $region91: #{cnn_forward.10} parent=72 // pred_check_branch
          %669 = sbr.rel (%p667) target = $region93
        $region92: #{cnn_forward.10} parent=72 // pred_region
          %s670 = smul.u32 12, %s20
          %p671 = scmp.lt.s32.totalorder %s670, 11
          %s672 = scalar_select %p671, %s670, 11
          %p673 = scmp.lt.s32.totalorder %s21, 0
          %s674 = scalar_select %p673, %s21, 0
          %s675 = sadd.s32 %s674, %s672
          %s676 = smul.addr %s675, 8
          %s677 = scalar_lea.vmem %s4, %s676
        $region93: #{cnn_forward.10} parent=72 // pred_fallthru
          _
      $region73: #{cnn_forward.10} parent=5 // pred_fallthru
        _
      %p678 = scmp.le.s32.totalorder 2, %s10
      // Predicated region
      $region94: #{cnn_forward.10} parent=5 // pred_check
        %p679 = pneg %p678
      $region95: #{cnn_forward.10} parent=5 // pred_check_branch
        %681 = sbr.rel (%p679) target = $region97
      $region96: #{cnn_forward.10} parent=5 // pred_region
        %s682 = ssub.s32 %s10, 2
      $region97: #{cnn_forward.10} parent=5 // pred_fallthru
        _
    $region6: #{cnn_forward.10} parent=1 // loop_footer
      %s14 = sadd.s32 1, %s10
    $region7: #{cnn_forward.10} parent=1 // loop_footer_branch
      %9 = sbr.rel target = $region3
    $region8: #{cnn_forward.10} parent=1 // loop_exit
      _

// kernel: cnn_forward.11
$region0: #{cnn_forward.11}
  #allocation0 [shape = 'u32[]', space=smem, size = 0x4, offset = 0x4, fixed_abs, tag = 'smem constant byte address 0x4 - core index']
  #allocation1 [shape = 'u32[72,128]{1,0:T(1,128)}', space=vmem, size = 0x9000, scoped, tag = 'internal scratch']
  #allocation2 [shape = 'f32[32,128]{1,0:T(8,128)}', space=vmem, size = 0x4000, scoped, tag = 'scratch operand']
  %s0 = inlined_call_operand.vmem [shape: bf16[32,1664], index: 0, kind: input, shape index: {}]
  %s1 = inlined_call_operand.vmem [shape: bf16[1664,128], index: 1, kind: input, shape index: {}]
  %s2 = inlined_call_operand.vmem [shape: f32[1,128], index: 2, kind: input, shape index: {}]
  %s3 = inlined_call_operand.vmem [shape: f32[1,128], index: 3, kind: input, shape index: {}]
  %s4 = inlined_call_operand.vmem [shape: f32[32,128], index: 4, kind: output, shape index: {}]
  %s5 = sld [smem:[#allocation0]]
  $region98: #{cnn_forward.11} parent=0
    _
  %s7 = ssub.s32 1, %s5
  %s8 = scalar_select 0, %s7, %s5
  $region1: #{cnn_forward.11} parent=0
    #allocation3 [shape = 'u8[16384]{0}', space=vmem, size = 0x4000, scoped, tag = 'input window, operand 0']
    loop: start=0, step=1, limit=15
    $region2: #{cnn_forward.11} parent=1 // loop_pre_header
      _
    $region3: #{cnn_forward.11} parent=1 // loop_header
      %s10 = sphi 0, %s14
      %p11 = scmp.ge.s32.totalorder %s10, 15
      %s17 = sphi 0, %s36
      %s18 = sphi 0, %s32
      %s19 = sphi 0, %s28
      %s20 = sphi 0, %s17
      %s21 = sphi 0, %s18
      %s22 = sphi 0, %s19
      %s23 = sphi 0, %s20
      %s24 = sphi 0, %s21
      %s25 = sphi 0, %s22
      %s41 = sphi 0, %s43
      %s44 = sphi 0, %s41
      %s45 = sphi 0, %s44
      %s61 = sphi 0, %s45
      %s69 = sphi 0, %s71
      %s72 = sphi 0, %s69
      %s73 = sphi 0, %s72
      %s89 = sphi 0, %s73
      %s95 = sphi 0, %s97
      %s98 = sphi 0, %s95
      %s99 = sphi 0, %s98
      %s115 = sphi 0, %s99
      %s121 = sphi 0, %s123
      %s124 = sphi 0, %s121
      %s125 = sphi 0, %s124
      %s141 = sphi 0, %s125
      %s149 = sphi 0, %s151
      %s152 = sphi 0, %s149
      %s153 = sphi 0, %s152
      %s169 = sphi 0, %s153
    $region4: #{cnn_forward.11} parent=1 // loop_header_branch
      %13 = sbr.rel (%p11) target = $region8
    $region5: #{cnn_forward.11} parent=1 // loop_body
      %s15 = ssub.s32 %s10, 1
      %s16 = ssub.s32 %s10, 2
      %s26 = sadd.s32 1, %s19
      %p27 = scmp.ge.s32.totalorder %s26, 13
      %s28 = scalar_select %p27, 0, %s26
      %s29 = sadd.s32 1, %s18
      %s30 = scalar_select %p27, %s29, %s18
      %p31 = scmp.ge.s32.totalorder %s30, 1
      %s32 = scalar_select %p31, 0, %s30
      %s33 = sadd.s32 1, %s17
      %s34 = scalar_select %p31, %s33, %s17
      %p35 = scmp.ge.s32.totalorder %s34, 1
      %s36 = scalar_select %p35, 0, %s34
      %s37 = ssub.s32 %s17, %s36
      %s38 = ssub.s32 %s19, %s28
      %s39 = sor.u32 %s37, %s38
      %p40 = scmp.eq.s32.totalorder %s39, 0
      %s42 = sadd.s32 %s41, 1
      %s43 = scalar_select %p40, %s41, %s42
      %p46 = pneg %p40
      %p47 = scmp.eq.s32.totalorder %s10, 12
      %p48 = por %p46, %p47
      %p49 = scmp.ne.s32.totalorder %s41, %s44
      %p50 = scmp.eq.s32.totalorder %s10, 0
      %p51 = por %p49, %p50
      %p52 = scmp.ne.s32.totalorder %s41, %s44
      %p53 = scmp.eq.s32.totalorder %s15, 12
      %p54 = por %p52, %p53
      %p55 = scmp.ne.s32.totalorder %s44, %s45
      %p56 = scmp.eq.s32.totalorder %s15, 0
      %p57 = por %p55, %p56
      %p58 = scmp.ne.s32.totalorder %s44, %s45
      %p59 = scmp.eq.s32.totalorder %s16, 12
      %p60 = por %p58, %p59
      %p62 = scmp.ne.s32.totalorder %s45, %s61
      %p63 = scmp.eq.s32.totalorder %s16, 0
      %p64 = por %p62, %p63
      %s65 = ssub.s32 %s19, %s28
      %s66 = ssub.s32 %s18, %s32
      %s67 = sor.u32 %s65, %s66
      %p68 = scmp.eq.s32.totalorder %s67, 0
      %s70 = sadd.s32 %s69, 1
      %s71 = scalar_select %p68, %s69, %s70
      %p74 = pneg %p68
      %p75 = scmp.eq.s32.totalorder %s10, 12
      %p76 = por %p74, %p75
      %p77 = scmp.ne.s32.totalorder %s69, %s72
      %p78 = scmp.eq.s32.totalorder %s10, 0
      %p79 = por %p77, %p78
      %p80 = scmp.ne.s32.totalorder %s69, %s72
      %p81 = scmp.eq.s32.totalorder %s15, 12
      %p82 = por %p80, %p81
      %p83 = scmp.ne.s32.totalorder %s72, %s73
      %p84 = scmp.eq.s32.totalorder %s15, 0
      %p85 = por %p83, %p84
      %p86 = scmp.ne.s32.totalorder %s72, %s73
      %p87 = scmp.eq.s32.totalorder %s16, 12
      %p88 = por %p86, %p87
      %p90 = scmp.ne.s32.totalorder %s73, %s89
      %p91 = scmp.eq.s32.totalorder %s16, 0
      %p92 = por %p90, %p91
      %s93 = ssub.s32 %s18, %s32
      %p94 = scmp.eq.s32.totalorder %s93, 0
      %s96 = sadd.s32 %s95, 1
      %s97 = scalar_select %p94, %s95, %s96
      %p100 = pneg %p94
      %p101 = scmp.eq.s32.totalorder %s10, 12
      %p102 = por %p100, %p101
      %p103 = scmp.ne.s32.totalorder %s95, %s98
      %p104 = scmp.eq.s32.totalorder %s10, 0
      %p105 = por %p103, %p104
      %p106 = scmp.ne.s32.totalorder %s95, %s98
      %p107 = scmp.eq.s32.totalorder %s15, 12
      %p108 = por %p106, %p107
      %p109 = scmp.ne.s32.totalorder %s98, %s99
      %p110 = scmp.eq.s32.totalorder %s15, 0
      %p111 = por %p109, %p110
      %p112 = scmp.ne.s32.totalorder %s98, %s99
      %p113 = scmp.eq.s32.totalorder %s16, 12
      %p114 = por %p112, %p113
      %p116 = scmp.ne.s32.totalorder %s99, %s115
      %p117 = scmp.eq.s32.totalorder %s16, 0
      %p118 = por %p116, %p117
      %s119 = ssub.s32 %s18, %s32
      %p120 = scmp.eq.s32.totalorder %s119, 0
      %s122 = sadd.s32 %s121, 1
      %s123 = scalar_select %p120, %s121, %s122
      %p126 = pneg %p120
      %p127 = scmp.eq.s32.totalorder %s10, 12
      %p128 = por %p126, %p127
      %p129 = scmp.ne.s32.totalorder %s121, %s124
      %p130 = scmp.eq.s32.totalorder %s10, 0
      %p131 = por %p129, %p130
      %p132 = scmp.ne.s32.totalorder %s121, %s124
      %p133 = scmp.eq.s32.totalorder %s15, 12
      %p134 = por %p132, %p133
      %p135 = scmp.ne.s32.totalorder %s124, %s125
      %p136 = scmp.eq.s32.totalorder %s15, 0
      %p137 = por %p135, %p136
      %p138 = scmp.ne.s32.totalorder %s124, %s125
      %p139 = scmp.eq.s32.totalorder %s16, 12
      %p140 = por %p138, %p139
      %p142 = scmp.ne.s32.totalorder %s125, %s141
      %p143 = scmp.eq.s32.totalorder %s16, 0
      %p144 = por %p142, %p143
      %s145 = ssub.s32 %s17, %s36
      %s146 = ssub.s32 %s18, %s32
      %s147 = sor.u32 %s145, %s146
      %p148 = scmp.eq.s32.totalorder %s147, 0
      %s150 = sadd.s32 %s149, 1
      %s151 = scalar_select %p148, %s149, %s150
      %p154 = pneg %p148
      %p155 = scmp.eq.s32.totalorder %s10, 12
      %p156 = por %p154, %p155
      %p157 = scmp.ne.s32.totalorder %s149, %s152
      %p158 = scmp.eq.s32.totalorder %s10, 0
      %p159 = por %p157, %p158
      %p160 = scmp.ne.s32.totalorder %s149, %s152
      %p161 = scmp.eq.s32.totalorder %s15, 12
      %p162 = por %p160, %p161
      %p163 = scmp.ne.s32.totalorder %s152, %s153
      %p164 = scmp.eq.s32.totalorder %s15, 0
      %p165 = por %p163, %p164
      %p166 = scmp.ne.s32.totalorder %s152, %s153
      %p167 = scmp.eq.s32.totalorder %s16, 12
      %p168 = por %p166, %p167
      %p170 = scmp.ne.s32.totalorder %s153, %s169
      %p171 = scmp.eq.s32.totalorder %s16, 0
      %p172 = por %p170, %p171
      %p173 = scmp.le.s32.totalorder 1, %s10
      %p174 = scmp.lt.s32.totalorder %s10, 14
      %p175 = pnand %p173, %p174
      %p176 = pneg %p175
      // Predicated region
      $region9: #{cnn_forward.11} parent=5 // pred_check
        _
      $region10: #{cnn_forward.11} parent=5 // pred_check_branch
        %178 = sbr.rel (%p175) target = $region12
      $region11: #{cnn_forward.11} parent=5 // pred_region
        %s179 = ssub.s32 %s10, 1
        // Predicated region
        $region13: #{cnn_forward.11} parent=11 // pred_check
          %p180 = pneg %p111
        $region14: #{cnn_forward.11} parent=11 // pred_check_branch
          %182 = sbr.rel (%p180) target = $region16
        $region15: #{cnn_forward.11} parent=11 // pred_region
          %p183 = scmp.lt.s32.totalorder %s21, 0
          %s184 = scalar_select %p183, %s21, 0
          %s185 = scalar_lea.vmem %s2, %s184
        $region16: #{cnn_forward.11} parent=11 // pred_fallthru
          _
        // Predicated region
        $region17: #{cnn_forward.11} parent=11 // pred_check
          %p186 = pneg %p137
        $region18: #{cnn_forward.11} parent=11 // pred_check_branch
          %188 = sbr.rel (%p186) target = $region20
        $region19: #{cnn_forward.11} parent=11 // pred_region
          %p189 = scmp.lt.s32.totalorder %s21, 0
          %s190 = scalar_select %p189, %s21, 0
          %s191 = scalar_lea.vmem %s3, %s190
        $region20: #{cnn_forward.11} parent=11 // pred_fallthru
          _
      $region12: #{cnn_forward.11} parent=5 // pred_fallthru
        _
      %p192 = scmp.lt.s32.totalorder %s10, 13
      // Predicated region
      $region21: #{cnn_forward.11} parent=5 // pred_check
        %p193 = pneg %p192
      $region22: #{cnn_forward.11} parent=5 // pred_check_branch
        %195 = sbr.rel (%p193) target = $region24
      $region23: #{cnn_forward.11} parent=5 // pred_region
        // Predicated region
        $region25: #{cnn_forward.11} parent=23 // pred_check
          %p196 = pneg %p51
        $region26: #{cnn_forward.11} parent=23 // pred_check_branch
          %198 = sbr.rel (%p196) target = $region28
        $region27: #{cnn_forward.11} parent=23 // pred_region
          %s199 = sand.u32 %s41, 1
          %s200 = sand.u32 %s41, 1
          %s201 = smul.addr %s200, 16
          %s202 = scalar_lea.vmem [#allocation3], %s201
          %s203 = smul.u32 4, %s17
          %s204 = smul.addr %s203, 13
          %s205 = sadd.s32 %s19, %s204
          %s206 = smul.addr %s205, 4
          %s207 = scalar_lea.vmem %s0, %s206
          // Predicated region
          $region29: #{cnn_forward.11} parent=27 // pred_check
            _
          $region30: #{cnn_forward.11} parent=27 // pred_check_branch
            %209 = sbr.rel (0) target = $region32
          $region31: #{cnn_forward.11} parent=27 // pred_region
            // Predicated region
            $region33: #{cnn_forward.11} parent=31 // pred_check
              _
            $region34: #{cnn_forward.11} parent=31 // pred_check_branch
              %211 = sbr.rel target = $region36
            $region35: #{cnn_forward.11} parent=31 // pred_region
              // Predicated region
              $region48: #{cnn_forward.11} parent=35 // pred_check
                _
              $region49: #{cnn_forward.11} parent=35 // pred_check_branch
                %233 = sbr.rel (0) target = $region51
              $region50: #{cnn_forward.11} parent=35 // pred_region
                loop: start=0, step=1, limit=1
                $region52: #{cnn_forward.11} parent=50 // loop_pre_header
                  _
                $region53: #{cnn_forward.11} parent=50 // loop_header
                  %s235 = sphi 0, %s239
                  %p236 = scmp.ge.s32.totalorder %s235, 1
                  %s240 = sphi %s207, %s207
                  %s241 = sphi %s202, %s202
                $region54: #{cnn_forward.11} parent=50 // loop_header_branch
                  %238 = sbr.rel (%p236) target = $region58
                $region55: #{cnn_forward.11} parent=50 // loop_body
                  _
                $region56: #{cnn_forward.11} parent=50 // loop_footer
                  %s239 = sadd.s32 1, %s235
                $region57: #{cnn_forward.11} parent=50 // loop_footer_branch
                  %234 = sbr.rel target = $region53
                $region58: #{cnn_forward.11} parent=50 // loop_exit
                  _
                %s243 = ssub.s32 16, 1
                loop: start=0, step=1, limit=1
                $region59: #{cnn_forward.11} parent=50 // loop_pre_header
                  _
                $region60: #{cnn_forward.11} parent=50 // loop_header
                  %s245 = sphi 0, %s249
                  %p246 = scmp.ge.s32.totalorder %s245, 1
                  %s250 = sphi %s207, %s207
                  %s251 = sphi %s202, %s202
                $region61: #{cnn_forward.11} parent=50 // loop_header_branch
                  %248 = sbr.rel (%p246) target = $region65
                $region62: #{cnn_forward.11} parent=50 // loop_body
                  %v252 = vld [vmem:[%s250] sm:%s243]
                  %253 = vst [vmem:[%s251] sm:%s243] %v252
                  %v254 = vld [vmem:[%s250 + $0x34] sm:%s243]
                  %255 = vst [vmem:[%s251 + $0x4] sm:%s243] %v254
                  %v256 = vld [vmem:[%s250 + $0x68] sm:%s243]
                  %257 = vst [vmem:[%s251 + $0x8] sm:%s243] %v256
                  %v258 = vld [vmem:[%s250 + $0x9c] sm:%s243]
                  %259 = vst [vmem:[%s251 + $0xc] sm:%s243] %v258
                $region63: #{cnn_forward.11} parent=50 // loop_footer
                  %s249 = sadd.s32 1, %s245
                $region64: #{cnn_forward.11} parent=50 // loop_footer_branch
                  %244 = sbr.rel target = $region60
                $region65: #{cnn_forward.11} parent=50 // loop_exit
                  _
              $region51: #{cnn_forward.11} parent=35 // pred_fallthru
                _
            $region36: #{cnn_forward.11} parent=31 // pred_fallthru
              _
            // Predicated region
            $region37: #{cnn_forward.11} parent=31 // pred_check
              _
            $region38: #{cnn_forward.11} parent=31 // pred_check_branch
              %213 = sbr.rel (0) target = $region40
            $region39: #{cnn_forward.11} parent=31 // pred_region
              %s215 = ssub.s32 16, 1
              loop: start=0, step=1, limit=1
              $region41: #{cnn_forward.11} parent=39 // loop_pre_header
                _
              $region42: #{cnn_forward.11} parent=39 // loop_header
                %s217 = sphi 0, %s221
                %p218 = scmp.ge.s32.totalorder %s217, 1
                %s222 = sphi %s207, %s207
                %s223 = sphi %s202, %s202
              $region43: #{cnn_forward.11} parent=39 // loop_header_branch
                %220 = sbr.rel (%p218) target = $region47
              $region44: #{cnn_forward.11} parent=39 // loop_body
                %v224 = vld [vmem:[%s222] sm:%s215]
                %225 = vst [vmem:[%s223] sm:%s215] %v224
                %v226 = vld [vmem:[%s222 + $0x34] sm:%s215]
                %227 = vst [vmem:[%s223 + $0x4] sm:%s215] %v226
                %v228 = vld [vmem:[%s222 + $0x68] sm:%s215]
                %229 = vst [vmem:[%s223 + $0x8] sm:%s215] %v228
                %v230 = vld [vmem:[%s222 + $0x9c] sm:%s215]
                %231 = vst [vmem:[%s223 + $0xc] sm:%s215] %v230
              $region45: #{cnn_forward.11} parent=39 // loop_footer
                %s221 = sadd.s32 1, %s217
              $region46: #{cnn_forward.11} parent=39 // loop_footer_branch
                %216 = sbr.rel target = $region42
              $region47: #{cnn_forward.11} parent=39 // loop_exit
                _
            $region40: #{cnn_forward.11} parent=31 // pred_fallthru
              _
          $region32: #{cnn_forward.11} parent=27 // pred_fallthru
            _
          %260 = vnop
        $region28: #{cnn_forward.11} parent=23 // pred_fallthru
          _
        // Predicated region
        $region66: #{cnn_forward.11} parent=23 // pred_check
          %p261 = pneg %p79
        $region67: #{cnn_forward.11} parent=23 // pred_check_branch
          %263 = sbr.rel (%p261) target = $region69
        $region68: #{cnn_forward.11} parent=23 // pred_region
          %s264 = smul.u32 16, %s19
          %p265 = scmp.lt.s32.totalorder %s264, 207
          %s266 = scalar_select %p265, %s264, 207
          %p267 = scmp.lt.s32.totalorder %s18, 0
          %s268 = scalar_select %p267, %s18, 0
          %s269 = sadd.s32 %s268, %s266
          %s270 = smul.addr %s269, 4
          %s271 = scalar_lea.vmem %s1, %s270
          %s272 = smul.u32 16, %s19
        $region69: #{cnn_forward.11} parent=23 // pred_fallthru
          _
      $region24: #{cnn_forward.11} parent=5 // pred_fallthru
        _
      %p273 = scmp.le.s32.totalorder 1, %s10
      %p274 = scmp.lt.s32.totalorder %s10, 14
      %p275 = pnand %p273, %p274
      %p276 = pneg %p275
      // Predicated region
      $region70: #{cnn_forward.11} parent=5 // pred_check
        _
      $region71: #{cnn_forward.11} parent=5 // pred_check_branch
        %278 = sbr.rel (%p275) target = $region73
      $region72: #{cnn_forward.11} parent=5 // pred_region
        %s279 = ssub.s32 %s10, 1
        %s280 = sand.u32 %s44, 1
        %s281 = sand.u32 %s44, 1
        %s282 = smul.addr %s281, 16
        %s283 = scalar_lea.vmem [#allocation3], %s282
        // Predicated region
        $region74: #{cnn_forward.11} parent=72 // pred_check
          %p284 = pneg %p57
        $region75: #{cnn_forward.11} parent=72 // pred_check_branch
          %286 = sbr.rel (%p284) target = $region77
        $region76: #{cnn_forward.11} parent=72 // pred_region
          _
        $region77: #{cnn_forward.11} parent=72 // pred_fallthru
          _
        %s287 = sand.u32 %s44, 1
        %s288 = sand.u32 %s44, 1
        %s289 = smul.addr %s288, 16
        %s290 = scalar_lea.vmem [#allocation3], %s289
        %p291 = pneg %p57
        %p292 = pneg %p54
        %s293 = smul.u32 16, %s22
        %p294 = scmp.lt.s32.totalorder %s293, 207
        %s295 = scalar_select %p294, %s293, 207
        %p296 = scmp.lt.s32.totalorder %s21, 0
        %s297 = scalar_select %p296, %s21, 0
        %s298 = sadd.s32 %s297, %s295
        %s299 = smul.addr %s298, 4
        %s300 = scalar_lea.vmem %s1, %s299
        %p301 = pneg %p85
        %p302 = pneg %p82
        %p303 = scmp.lt.s32.totalorder %s21, 0
        %s304 = scalar_select %p303, %s21, 0
        %s305 = scalar_lea.vmem %s2, %s304
        %p306 = pneg %p111
        %p307 = pneg %p108
        %p308 = scmp.lt.s32.totalorder %s21, 0
        %s309 = scalar_select %p308, %s21, 0
        %s310 = scalar_lea.vmem %s3, %s309
        %p311 = pneg %p137
        %p312 = pneg %p134
        %p313 = pneg %p165
        %p314 = pneg %p162
        %s315 = smul.u32 4, %s20
        %p316 = scmp.lt.s32.totalorder %s315, 3
        %s317 = scalar_select %p316, %s315, 3
        %p318 = scmp.lt.s32.totalorder %s21, 0
        %s319 = scalar_select %p318, %s21, 0
        %s320 = sadd.s32 %s319, %s317
        %s321 = smul.addr %s320, 8
        %s322 = scalar_lea.vmem %s4, %s321
        %s323 = smul.u32 4, %s20
        %s324 = smul.u32 16, %s22
        %p325 = scmp.lt.s32.totalorder %s324, 207
        %s326 = scalar_select %p325, %s324, 207
        %p327 = scmp.lt.s32.totalorder %s21, 0
        %s328 = scalar_select %p327, %s21, 0
        %s329 = sadd.s32 %s328, %s326
        %s330 = smul.addr %s329, 4
        %s331 = scalar_lea.vmem %s1, %s330
        %s332 = smul.u32 16, %s22
        %p333 = scmp.lt.s32.totalorder %s21, 0
        %s334 = scalar_select %p333, %s21, 0
        %s335 = scalar_lea.vmem %s2, %s334
        %p336 = scmp.lt.s32.totalorder %s21, 0
        %s337 = scalar_select %p336, %s21, 0
        %s338 = scalar_lea.vmem %s3, %s337
        %s339 = smul.u32 4, %s20
        %p340 = scmp.lt.s32.totalorder %s339, 3
        %s341 = scalar_select %p340, %s339, 3
        %p342 = scmp.lt.s32.totalorder %s21, 0
        %s343 = scalar_select %p342, %s21, 0
        %s344 = sadd.s32 %s343, %s341
        %s345 = smul.addr %s344, 8
        %s346 = scalar_lea.vmem %s4, %s345
        %s347 = smul.u32 4, %s20
        %p348 = scmp.eq.s32.totalorder %s22, 0
        // Predicated region
        $region78: #{cnn_forward.11} parent=72 // pred_check
          %p349 = pneg %p348
        $region79: #{cnn_forward.11} parent=72 // pred_check_branch
          %351 = sbr.rel (%p349) target = $region81
        $region80: #{cnn_forward.11} parent=72 // pred_region
          %352 = vst [vmem:[#allocation2] sm:$0xff] 0.0
          %353 = vst [vmem:[#allocation2 + $0x8] sm:$0xff] 0.0
          %354 = vst [vmem:[#allocation2 + $0x10] sm:$0xff] 0.0
          %355 = vst [vmem:[#allocation2 + $0x18] sm:$0xff] 0.0
        $region81: #{cnn_forward.11} parent=72 // pred_fallthru
          _
        %v356 = vld [vmem:[#allocation2] sm:$0xff]
        %v357 = vld [vmem:[#allocation2 + $0x8] sm:$0xff]
        %v358 = vld [vmem:[#allocation2 + $0x10] sm:$0xff]
        %v359 = vld [vmem:[#allocation2 + $0x18] sm:$0xff]
        %v360 = vld [vmem:[%s283] sm:$0xf]
        %v361 = vld [vmem:[%s283 + $0x4] sm:$0xf]
        %v362 = vld [vmem:[%s283 + $0x8] sm:$0xf]
        %v363 = vld [vmem:[%s283 + $0xc] sm:$0xf]
        %v364 = vld [vmem:[%s331] sm:$0xf]
        %v365 = vld [vmem:[%s331 + $0x4] sm:$0xf]
        %v366 = vld [vmem:[%s331 + $0x8] sm:$0xf]
        %v367 = vld [vmem:[%s331 + $0xc] sm:$0xf]
        %v368 = vld [vmem:[%s331 + $0x10] sm:$0xf]
        %v369 = vld [vmem:[%s331 + $0x14] sm:$0xf]
        %v370 = vld [vmem:[%s331 + $0x18] sm:$0xf]
        %v371 = vld [vmem:[%s331 + $0x1c] sm:$0xf]
        %v372 = vld [vmem:[%s331 + $0x20] sm:$0xf]
        %v373 = vld [vmem:[%s331 + $0x24] sm:$0xf]
        %v374 = vld [vmem:[%s331 + $0x28] sm:$0xf]
        %v375 = vld [vmem:[%s331 + $0x2c] sm:$0xf]
        %v376 = vld [vmem:[%s331 + $0x30] sm:$0xf]
        %v377 = vld [vmem:[%s331 + $0x34] sm:$0xf]
        %v378 = vld [vmem:[%s331 + $0x38] sm:$0xf]
        %v379 = vld [vmem:[%s331 + $0x3c] sm:$0xf]
        %v384 = vunpack.c.l.b16 %v360
        %v385 = vunpack.c.l.b16 %v361
        %v386 = vunpack.c.l.b16 %v362
        %v387 = vunpack.c.l.b16 %v363
        %v388 = vpack.c.b16 %v385, %v384
        %v389 = vpack.c.b16 %v387, %v386
        %v408 = vunpack.c.l.b16 %v364
        %v409 = vunpack.c.l.b16 %v365
        %v410 = vunpack.c.l.b16 %v366
        %v411 = vunpack.c.l.b16 %v367
        %v412 = vunpack.c.l.b16 %v368
        %v413 = vunpack.c.l.b16 %v369
        %v414 = vunpack.c.l.b16 %v370
        %v415 = vunpack.c.l.b16 %v371
        %v416 = vunpack.c.l.b16 %v372
        %v417 = vunpack.c.l.b16 %v373
        %v418 = vunpack.c.l.b16 %v374
        %v419 = vunpack.c.l.b16 %v375
        %v420 = vunpack.c.l.b16 %v376
        %v421 = vunpack.c.l.b16 %v377
        %v422 = vunpack.c.l.b16 %v378
        %v423 = vunpack.c.l.b16 %v379
        %v424 = vpack.c.b16 %v409, %v408
        %v425 = vpack.c.b16 %v411, %v410
        %v426 = vpack.c.b16 %v413, %v412
        %v427 = vpack.c.b16 %v415, %v414
        %v428 = vpack.c.b16 %v417, %v416
        %v429 = vpack.c.b16 %v419, %v418
        %v430 = vpack.c.b16 %v421, %v420
        %v431 = vpack.c.b16 %v423, %v422
        %440 = vmatpush.bf16.msra.mxu0 %v431
        %441 = vmatpush.bf16.msra.mxu0 %v430
        %442 = vmatpush.bf16.msra.mxu0 %v429
        %443 = vmatpush.bf16.msra.mxu0 %v428
        %444 = vmatpush.bf16.msra.mxu0 %v427
        %445 = vmatpush.bf16.msra.mxu0 %v426
        %446 = vmatpush.bf16.msra.mxu0 %v425
        %447 = vmatpush.bf16.msra.mxu0 %v424
        %448 = vmatmul.bf16.gmra.mxu0 %v388
        %v449 = vpop.f32.mrf.mxu0
        %v450 = vadd.f32 0.0, %v449
        %v451 = vpop.f32.mrf.mxu0
        %v452 = vadd.f32 0.0, %v451
        %453 = vmatmul.bf16.gmra.mxu0 %v389
        %v454 = vpop.f32.mrf.mxu0
        %v455 = vadd.f32 0.0, %v454
        %v456 = vpop.f32.mrf.mxu0
        %v457 = vadd.f32 0.0, %v456
        %458 = vdwg.mxu0
        %v459 = vadd.f32 %v356, %v450
        %v460 = vadd.f32 %v357, %v452
        %v461 = vadd.f32 %v358, %v455
        %v462 = vadd.f32 %v359, %v457
        %463 = vst [vmem:[#allocation2] sm:$0xff] %v459
        %464 = vst [vmem:[#allocation2 + $0x8] sm:$0xff] %v460
        %465 = vst [vmem:[#allocation2 + $0x10] sm:$0xff] %v461
        %466 = vst [vmem:[#allocation2 + $0x18] sm:$0xff] %v462
        %p467 = scmp.eq.s32.totalorder %s22, 12
        // Predicated region
        $region82: #{cnn_forward.11} parent=72 // pred_check
          %p468 = pneg %p467
        $region83: #{cnn_forward.11} parent=72 // pred_check_branch
          %470 = sbr.rel (%p468) target = $region85
        $region84: #{cnn_forward.11} parent=72 // pred_region
          %v471 = vld [vmem:[#allocation2] sm:$0xff]
          %v472 = vld [vmem:[#allocation2 + $0x8] sm:$0xff]
          %v473 = vld [vmem:[#allocation2 + $0x10] sm:$0xff]
          %v474 = vld [vmem:[#allocation2 + $0x18] sm:$0xff]
          %v475 = vld [vmem:[%s335] sm:$0x1]
          %v477 = vperm.slane %v475, 0
          %v479 = vmul.f32 %v471, %v477
          %v480 = vmul.f32 %v472, %v477
          %v481 = vmul.f32 %v473, %v477
          %v482 = vmul.f32 %v474, %v477
          %v483 = vld [vmem:[%s338] sm:$0x1]
          %v485 = vperm.slane %v483, 0
          %v487 = vadd.f32 %v479, %v485
          %v488 = vadd.f32 %v480, %v485
          %v489 = vadd.f32 %v481, %v485
          %v490 = vadd.f32 %v482, %v485
          %v491 = vmax.f32 %v487, 0.0
          %v492 = vmax.f32 %v488, 0.0
          %v493 = vmax.f32 %v489, 0.0
          %v494 = vmax.f32 %v490, 0.0
          %495 = vst [vmem:[%s346] sm:$0xff] %v491
          %496 = vst [vmem:[%s346 + $0x8] sm:$0xff] %v492
          %497 = vst [vmem:[%s346 + $0x10] sm:$0xff] %v493
          %498 = vst [vmem:[%s346 + $0x18] sm:$0xff] %v494
        $region85: #{cnn_forward.11} parent=72 // pred_fallthru
          _
        %s499 = smul.u32 4, %s20
        %p500 = scmp.lt.s32.totalorder %s499, 3
        %s501 = scalar_select %p500, %s499, 3
        %p502 = scmp.lt.s32.totalorder %s21, 0
        %s503 = scalar_select %p502, %s21, 0
        %s504 = sadd.s32 %s503, %s501
        %s505 = smul.addr %s504, 8
        %s506 = scalar_lea.vmem %s4, %s505
        // Predicated region
        $region86: #{cnn_forward.11} parent=72 // pred_check
          %p507 = pneg %p162
        $region87: #{cnn_forward.11} parent=72 // pred_check_branch
          %509 = sbr.rel (%p507) target = $region89
        $region88: #{cnn_forward.11} parent=72 // pred_region
          %s510 = smul.u32 4, %s20
        $region89: #{cnn_forward.11} parent=72 // pred_fallthru
          _
        // Predicated region
        $region90: #{cnn_forward.11} parent=72 // pred_check
          %p511 = pneg %p162
        $region91: #{cnn_forward.11} parent=72 // pred_check_branch
          %513 = sbr.rel (%p511) target = $region93
        $region92: #{cnn_forward.11} parent=72 // pred_region
          %s514 = smul.u32 4, %s20
          %p515 = scmp.lt.s32.totalorder %s514, 3
          %s516 = scalar_select %p515, %s514, 3
          %p517 = scmp.lt.s32.totalorder %s21, 0
          %s518 = scalar_select %p517, %s21, 0
          %s519 = sadd.s32 %s518, %s516
          %s520 = smul.addr %s519, 8
          %s521 = scalar_lea.vmem %s4, %s520
        $region93: #{cnn_forward.11} parent=72 // pred_fallthru
          _
      $region73: #{cnn_forward.11} parent=5 // pred_fallthru
        _
      %p522 = scmp.le.s32.totalorder 2, %s10
      // Predicated region
      $region94: #{cnn_forward.11} parent=5 // pred_check
        %p523 = pneg %p522
      $region95: #{cnn_forward.11} parent=5 // pred_check_branch
        %525 = sbr.rel (%p523) target = $region97
      $region96: #{cnn_forward.11} parent=5 // pred_region
        %s526 = ssub.s32 %s10, 2
      $region97: #{cnn_forward.11} parent=5 // pred_fallthru
        _
    $region6: #{cnn_forward.11} parent=1 // loop_footer
      %s14 = sadd.s32 1, %s10
    $region7: #{cnn_forward.11} parent=1 // loop_footer_branch
      %9 = sbr.rel target = $region3
    $region8: #{cnn_forward.11} parent=1 // loop_exit
      _

// kernel: cnn_forward.12
$region0: #{cnn_forward.12}
  #allocation0 [shape = 'u32[]', space=smem, size = 0x4, offset = 0x4, fixed_abs, tag = 'smem constant byte address 0x4 - core index']
  #allocation1 [shape = 'u32[72,128]{1,0:T(1,128)}', space=vmem, size = 0x9000, scoped, tag = 'internal scratch']
  #allocation2 [shape = 'f32[32,256]{1,0:T(8,128)}', space=vmem, size = 0x8000, scoped, tag = 'scratch operand']
  %s0 = inlined_call_operand.vmem [shape: bf16[32,3200], index: 0, kind: input, shape index: {}]
  %s1 = inlined_call_operand.vmem [shape: bf16[3200,256], index: 1, kind: input, shape index: {}]
  %s2 = inlined_call_operand.vmem [shape: f32[1,256], index: 2, kind: input, shape index: {}]
  %s3 = inlined_call_operand.vmem [shape: f32[1,256], index: 3, kind: input, shape index: {}]
  %s4 = inlined_call_operand.vmem [shape: f32[32,256], index: 4, kind: output, shape index: {}]
  %s5 = sld [smem:[#allocation0]]
  $region98: #{cnn_forward.12} parent=0
    _
  %s7 = ssub.s32 1, %s5
  %s8 = scalar_select 0, %s7, %s5
  $region1: #{cnn_forward.12} parent=0
    #allocation3 [shape = 'u8[16384]{0}', space=vmem, size = 0x4000, scoped, tag = 'input window, operand 0']
    loop: start=0, step=1, limit=27
    $region2: #{cnn_forward.12} parent=1 // loop_pre_header
      _
    $region3: #{cnn_forward.12} parent=1 // loop_header
      %s10 = sphi 0, %s14
      %p11 = scmp.ge.s32.totalorder %s10, 27
      %s17 = sphi 0, %s36
      %s18 = sphi 0, %s32
      %s19 = sphi 0, %s28
      %s20 = sphi 0, %s17
      %s21 = sphi 0, %s18
      %s22 = sphi 0, %s19
      %s23 = sphi 0, %s20
      %s24 = sphi 0, %s21
      %s25 = sphi 0, %s22
      %s41 = sphi 0, %s43
      %s44 = sphi 0, %s41
      %s45 = sphi 0, %s44
      %s61 = sphi 0, %s45
      %s69 = sphi 0, %s71
      %s72 = sphi 0, %s69
      %s73 = sphi 0, %s72
      %s89 = sphi 0, %s73
      %s95 = sphi 0, %s97
      %s98 = sphi 0, %s95
      %s99 = sphi 0, %s98
      %s115 = sphi 0, %s99
      %s121 = sphi 0, %s123
      %s124 = sphi 0, %s121
      %s125 = sphi 0, %s124
      %s141 = sphi 0, %s125
      %s149 = sphi 0, %s151
      %s152 = sphi 0, %s149
      %s153 = sphi 0, %s152
      %s169 = sphi 0, %s153
    $region4: #{cnn_forward.12} parent=1 // loop_header_branch
      %13 = sbr.rel (%p11) target = $region8
    $region5: #{cnn_forward.12} parent=1 // loop_body
      %s15 = ssub.s32 %s10, 1
      %s16 = ssub.s32 %s10, 2
      %s26 = sadd.s32 1, %s19
      %p27 = scmp.ge.s32.totalorder %s26, 25
      %s28 = scalar_select %p27, 0, %s26
      %s29 = sadd.s32 1, %s18
      %s30 = scalar_select %p27, %s29, %s18
      %p31 = scmp.ge.s32.totalorder %s30, 1
      %s32 = scalar_select %p31, 0, %s30
      %s33 = sadd.s32 1, %s17
      %s34 = scalar_select %p31, %s33, %s17
      %p35 = scmp.ge.s32.totalorder %s34, 1
      %s36 = scalar_select %p35, 0, %s34
      %s37 = ssub.s32 %s17, %s36
      %s38 = ssub.s32 %s19, %s28
      %s39 = sor.u32 %s37, %s38
      %p40 = scmp.eq.s32.totalorder %s39, 0
      %s42 = sadd.s32 %s41, 1
      %s43 = scalar_select %p40, %s41, %s42
      %p46 = pneg %p40
      %p47 = scmp.eq.s32.totalorder %s10, 24
      %p48 = por %p46, %p47
      %p49 = scmp.ne.s32.totalorder %s41, %s44
      %p50 = scmp.eq.s32.totalorder %s10, 0
      %p51 = por %p49, %p50
      %p52 = scmp.ne.s32.totalorder %s41, %s44
      %p53 = scmp.eq.s32.totalorder %s15, 24
      %p54 = por %p52, %p53
      %p55 = scmp.ne.s32.totalorder %s44, %s45
      %p56 = scmp.eq.s32.totalorder %s15, 0
      %p57 = por %p55, %p56
      %p58 = scmp.ne.s32.totalorder %s44, %s45
      %p59 = scmp.eq.s32.totalorder %s16, 24
      %p60 = por %p58, %p59
      %p62 = scmp.ne.s32.totalorder %s45, %s61
      %p63 = scmp.eq.s32.totalorder %s16, 0
      %p64 = por %p62, %p63
      %s65 = ssub.s32 %s19, %s28
      %s66 = ssub.s32 %s18, %s32
      %s67 = sor.u32 %s65, %s66
      %p68 = scmp.eq.s32.totalorder %s67, 0
      %s70 = sadd.s32 %s69, 1
      %s71 = scalar_select %p68, %s69, %s70
      %p74 = pneg %p68
      %p75 = scmp.eq.s32.totalorder %s10, 24
      %p76 = por %p74, %p75
      %p77 = scmp.ne.s32.totalorder %s69, %s72
      %p78 = scmp.eq.s32.totalorder %s10, 0
      %p79 = por %p77, %p78
      %p80 = scmp.ne.s32.totalorder %s69, %s72
      %p81 = scmp.eq.s32.totalorder %s15, 24
      %p82 = por %p80, %p81
      %p83 = scmp.ne.s32.totalorder %s72, %s73
      %p84 = scmp.eq.s32.totalorder %s15, 0
      %p85 = por %p83, %p84
      %p86 = scmp.ne.s32.totalorder %s72, %s73
      %p87 = scmp.eq.s32.totalorder %s16, 24
      %p88 = por %p86, %p87
      %p90 = scmp.ne.s32.totalorder %s73, %s89
      %p91 = scmp.eq.s32.totalorder %s16, 0
      %p92 = por %p90, %p91
      %s93 = ssub.s32 %s18, %s32
      %p94 = scmp.eq.s32.totalorder %s93, 0
      %s96 = sadd.s32 %s95, 1
      %s97 = scalar_select %p94, %s95, %s96
      %p100 = pneg %p94
      %p101 = scmp.eq.s32.totalorder %s10, 24
      %p102 = por %p100, %p101
      %p103 = scmp.ne.s32.totalorder %s95, %s98
      %p104 = scmp.eq.s32.totalorder %s10, 0
      %p105 = por %p103, %p104
      %p106 = scmp.ne.s32.totalorder %s95, %s98
      %p107 = scmp.eq.s32.totalorder %s15, 24
      %p108 = por %p106, %p107
      %p109 = scmp.ne.s32.totalorder %s98, %s99
      %p110 = scmp.eq.s32.totalorder %s15, 0
      %p111 = por %p109, %p110
      %p112 = scmp.ne.s32.totalorder %s98, %s99
      %p113 = scmp.eq.s32.totalorder %s16, 24
      %p114 = por %p112, %p113
      %p116 = scmp.ne.s32.totalorder %s99, %s115
      %p117 = scmp.eq.s32.totalorder %s16, 0
      %p118 = por %p116, %p117
      %s119 = ssub.s32 %s18, %s32
      %p120 = scmp.eq.s32.totalorder %s119, 0
      %s122 = sadd.s32 %s121, 1
      %s123 = scalar_select %p120, %s121, %s122
      %p126 = pneg %p120
      %p127 = scmp.eq.s32.totalorder %s10, 24
      %p128 = por %p126, %p127
      %p129 = scmp.ne.s32.totalorder %s121, %s124
      %p130 = scmp.eq.s32.totalorder %s10, 0
      %p131 = por %p129, %p130
      %p132 = scmp.ne.s32.totalorder %s121, %s124
      %p133 = scmp.eq.s32.totalorder %s15, 24
      %p134 = por %p132, %p133
      %p135 = scmp.ne.s32.totalorder %s124, %s125
      %p136 = scmp.eq.s32.totalorder %s15, 0
      %p137 = por %p135, %p136
      %p138 = scmp.ne.s32.totalorder %s124, %s125
      %p139 = scmp.eq.s32.totalorder %s16, 24
      %p140 = por %p138, %p139
      %p142 = scmp.ne.s32.totalorder %s125, %s141
      %p143 = scmp.eq.s32.totalorder %s16, 0
      %p144 = por %p142, %p143
      %s145 = ssub.s32 %s17, %s36
      %s146 = ssub.s32 %s18, %s32
      %s147 = sor.u32 %s145, %s146
      %p148 = scmp.eq.s32.totalorder %s147, 0
      %s150 = sadd.s32 %s149, 1
      %s151 = scalar_select %p148, %s149, %s150
      %p154 = pneg %p148
      %p155 = scmp.eq.s32.totalorder %s10, 24
      %p156 = por %p154, %p155
      %p157 = scmp.ne.s32.totalorder %s149, %s152
      %p158 = scmp.eq.s32.totalorder %s10, 0
      %p159 = por %p157, %p158
      %p160 = scmp.ne.s32.totalorder %s149, %s152
      %p161 = scmp.eq.s32.totalorder %s15, 24
      %p162 = por %p160, %p161
      %p163 = scmp.ne.s32.totalorder %s152, %s153
      %p164 = scmp.eq.s32.totalorder %s15, 0
      %p165 = por %p163, %p164
      %p166 = scmp.ne.s32.totalorder %s152, %s153
      %p167 = scmp.eq.s32.totalorder %s16, 24
      %p168 = por %p166, %p167
      %p170 = scmp.ne.s32.totalorder %s153, %s169
      %p171 = scmp.eq.s32.totalorder %s16, 0
      %p172 = por %p170, %p171
      %p173 = scmp.le.s32.totalorder 1, %s10
      %p174 = scmp.lt.s32.totalorder %s10, 26
      %p175 = pnand %p173, %p174
      %p176 = pneg %p175
      // Predicated region
      $region9: #{cnn_forward.12} parent=5 // pred_check
        _
      $region10: #{cnn_forward.12} parent=5 // pred_check_branch
        %178 = sbr.rel (%p175) target = $region12
      $region11: #{cnn_forward.12} parent=5 // pred_region
        %s179 = ssub.s32 %s10, 1
        // Predicated region
        $region13: #{cnn_forward.12} parent=11 // pred_check
          %p180 = pneg %p111
        $region14: #{cnn_forward.12} parent=11 // pred_check_branch
          %182 = sbr.rel (%p180) target = $region16
        $region15: #{cnn_forward.12} parent=11 // pred_region
          %s183 = smul.u32 2, %s21
          %p184 = scmp.lt.s32.totalorder %s183, 1
          %s185 = scalar_select %p184, %s183, 1
          %s186 = scalar_lea.vmem %s2, %s185
          %s187 = smul.u32 2, %s21
        $region16: #{cnn_forward.12} parent=11 // pred_fallthru
          _
        // Predicated region
        $region17: #{cnn_forward.12} parent=11 // pred_check
          %p188 = pneg %p137
        $region18: #{cnn_forward.12} parent=11 // pred_check_branch
          %190 = sbr.rel (%p188) target = $region20
        $region19: #{cnn_forward.12} parent=11 // pred_region
          %s191 = smul.u32 2, %s21
          %p192 = scmp.lt.s32.totalorder %s191, 1
          %s193 = scalar_select %p192, %s191, 1
          %s194 = scalar_lea.vmem %s3, %s193
          %s195 = smul.u32 2, %s21
        $region20: #{cnn_forward.12} parent=11 // pred_fallthru
          _
      $region12: #{cnn_forward.12} parent=5 // pred_fallthru
        _
      %p196 = scmp.lt.s32.totalorder %s10, 25
      // Predicated region
      $region21: #{cnn_forward.12} parent=5 // pred_check
        %p197 = pneg %p196
      $region22: #{cnn_forward.12} parent=5 // pred_check_branch
        %199 = sbr.rel (%p197) target = $region24
      $region23: #{cnn_forward.12} parent=5 // pred_region
        // Predicated region
        $region25: #{cnn_forward.12} parent=23 // pred_check
          %p200 = pneg %p51
        $region26: #{cnn_forward.12} parent=23 // pred_check_branch
          %202 = sbr.rel (%p200) target = $region28
        $region27: #{cnn_forward.12} parent=23 // pred_region
          %s203 = sand.u32 %s41, 1
          %s204 = sand.u32 %s41, 1
          %s205 = smul.addr %s204, 16
          %s206 = scalar_lea.vmem [#allocation3], %s205
          %s207 = smul.u32 4, %s17
          %s208 = smul.addr %s207, 25
          %s209 = sadd.s32 %s19, %s208
          %s210 = smul.addr %s209, 4
          %s211 = scalar_lea.vmem %s0, %s210
          // Predicated region
          $region29: #{cnn_forward.12} parent=27 // pred_check
            _
          $region30: #{cnn_forward.12} parent=27 // pred_check_branch
            %213 = sbr.rel (0) target = $region32
          $region31: #{cnn_forward.12} parent=27 // pred_region
            // Predicated region
            $region33: #{cnn_forward.12} parent=31 // pred_check
              _
            $region34: #{cnn_forward.12} parent=31 // pred_check_branch
              %215 = sbr.rel target = $region36
            $region35: #{cnn_forward.12} parent=31 // pred_region
              // Predicated region
              $region48: #{cnn_forward.12} parent=35 // pred_check
                _
              $region49: #{cnn_forward.12} parent=35 // pred_check_branch
                %237 = sbr.rel (0) target = $region51
              $region50: #{cnn_forward.12} parent=35 // pred_region
                loop: start=0, step=1, limit=1
                $region52: #{cnn_forward.12} parent=50 // loop_pre_header
                  _
                $region53: #{cnn_forward.12} parent=50 // loop_header
                  %s239 = sphi 0, %s243
                  %p240 = scmp.ge.s32.totalorder %s239, 1
                  %s244 = sphi %s211, %s211
                  %s245 = sphi %s206, %s206
                $region54: #{cnn_forward.12} parent=50 // loop_header_branch
                  %242 = sbr.rel (%p240) target = $region58
                $region55: #{cnn_forward.12} parent=50 // loop_body
                  _
                $region56: #{cnn_forward.12} parent=50 // loop_footer
                  %s243 = sadd.s32 1, %s239
                $region57: #{cnn_forward.12} parent=50 // loop_footer_branch
                  %238 = sbr.rel target = $region53
                $region58: #{cnn_forward.12} parent=50 // loop_exit
                  _
                %s247 = ssub.s32 16, 1
                loop: start=0, step=1, limit=1
                $region59: #{cnn_forward.12} parent=50 // loop_pre_header
                  _
                $region60: #{cnn_forward.12} parent=50 // loop_header
                  %s249 = sphi 0, %s253
                  %p250 = scmp.ge.s32.totalorder %s249, 1
                  %s254 = sphi %s211, %s211
                  %s255 = sphi %s206, %s206
                $region61: #{cnn_forward.12} parent=50 // loop_header_branch
                  %252 = sbr.rel (%p250) target = $region65
                $region62: #{cnn_forward.12} parent=50 // loop_body
                  %v256 = vld [vmem:[%s254] sm:%s247]
                  %257 = vst [vmem:[%s255] sm:%s247] %v256
                  %v258 = vld [vmem:[%s254 + $0x64] sm:%s247]
                  %259 = vst [vmem:[%s255 + $0x4] sm:%s247] %v258
                  %v260 = vld [vmem:[%s254 + $0xc8] sm:%s247]
                  %261 = vst [vmem:[%s255 + $0x8] sm:%s247] %v260
                  %v262 = vld [vmem:[%s254 + $0x12c] sm:%s247]
                  %263 = vst [vmem:[%s255 + $0xc] sm:%s247] %v262
                $region63: #{cnn_forward.12} parent=50 // loop_footer
                  %s253 = sadd.s32 1, %s249
                $region64: #{cnn_forward.12} parent=50 // loop_footer_branch
                  %248 = sbr.rel target = $region60
                $region65: #{cnn_forward.12} parent=50 // loop_exit
                  _
              $region51: #{cnn_forward.12} parent=35 // pred_fallthru
                _
            $region36: #{cnn_forward.12} parent=31 // pred_fallthru
              _
            // Predicated region
            $region37: #{cnn_forward.12} parent=31 // pred_check
              _
            $region38: #{cnn_forward.12} parent=31 // pred_check_branch
              %217 = sbr.rel (0) target = $region40
            $region39: #{cnn_forward.12} parent=31 // pred_region
              %s219 = ssub.s32 16, 1
              loop: start=0, step=1, limit=1
              $region41: #{cnn_forward.12} parent=39 // loop_pre_header
                _
              $region42: #{cnn_forward.12} parent=39 // loop_header
                %s221 = sphi 0, %s225
                %p222 = scmp.ge.s32.totalorder %s221, 1
                %s226 = sphi %s211, %s211
                %s227 = sphi %s206, %s206
              $region43: #{cnn_forward.12} parent=39 // loop_header_branch
                %224 = sbr.rel (%p222) target = $region47
              $region44: #{cnn_forward.12} parent=39 // loop_body
                %v228 = vld [vmem:[%s226] sm:%s219]
                %229 = vst [vmem:[%s227] sm:%s219] %v228
                %v230 = vld [vmem:[%s226 + $0x64] sm:%s219]
                %231 = vst [vmem:[%s227 + $0x4] sm:%s219] %v230
                %v232 = vld [vmem:[%s226 + $0xc8] sm:%s219]
                %233 = vst [vmem:[%s227 + $0x8] sm:%s219] %v232
                %v234 = vld [vmem:[%s226 + $0x12c] sm:%s219]
                %235 = vst [vmem:[%s227 + $0xc] sm:%s219] %v234
              $region45: #{cnn_forward.12} parent=39 // loop_footer
                %s225 = sadd.s32 1, %s221
              $region46: #{cnn_forward.12} parent=39 // loop_footer_branch
                %220 = sbr.rel target = $region42
              $region47: #{cnn_forward.12} parent=39 // loop_exit
                _
            $region40: #{cnn_forward.12} parent=31 // pred_fallthru
              _
          $region32: #{cnn_forward.12} parent=27 // pred_fallthru
            _
          %264 = vnop
        $region28: #{cnn_forward.12} parent=23 // pred_fallthru
          _
        // Predicated region
        $region66: #{cnn_forward.12} parent=23 // pred_check
          %p265 = pneg %p79
        $region67: #{cnn_forward.12} parent=23 // pred_check_branch
          %267 = sbr.rel (%p265) target = $region69
        $region68: #{cnn_forward.12} parent=23 // pred_region
          %s268 = smul.u32 16, %s19
          %s269 = smul.u32 2, %s18
          %p270 = scmp.lt.s32.totalorder %s268, 399
          %s271 = scalar_select %p270, %s268, 399
          %p272 = scmp.lt.s32.totalorder %s269, 1
          %s273 = scalar_select %p272, %s269, 1
          %s274 = smul.addr %s271, 2
          %s275 = sadd.s32 %s273, %s274
          %s276 = smul.addr %s275, 4
          %s277 = scalar_lea.vmem %s1, %s276
          %s278 = smul.u32 16, %s19
          %s279 = smul.u32 2, %s18
        $region69: #{cnn_forward.12} parent=23 // pred_fallthru
          _
      $region24: #{cnn_forward.12} parent=5 // pred_fallthru
        _
      %p280 = scmp.le.s32.totalorder 1, %s10
      %p281 = scmp.lt.s32.totalorder %s10, 26
      %p282 = pnand %p280, %p281
      %p283 = pneg %p282
      // Predicated region
      $region70: #{cnn_forward.12} parent=5 // pred_check
        _
      $region71: #{cnn_forward.12} parent=5 // pred_check_branch
        %285 = sbr.rel (%p282) target = $region73
      $region72: #{cnn_forward.12} parent=5 // pred_region
        %s286 = ssub.s32 %s10, 1
        %s287 = sand.u32 %s44, 1
        %s288 = sand.u32 %s44, 1
        %s289 = smul.addr %s288, 16
        %s290 = scalar_lea.vmem [#allocation3], %s289
        // Predicated region
        $region74: #{cnn_forward.12} parent=72 // pred_check
          %p291 = pneg %p57
        $region75: #{cnn_forward.12} parent=72 // pred_check_branch
          %293 = sbr.rel (%p291) target = $region77
        $region76: #{cnn_forward.12} parent=72 // pred_region
          _
        $region77: #{cnn_forward.12} parent=72 // pred_fallthru
          _
        %s294 = sand.u32 %s44, 1
        %s295 = sand.u32 %s44, 1
        %s296 = smul.addr %s295, 16
        %s297 = scalar_lea.vmem [#allocation3], %s296
        %p298 = pneg %p57
        %p299 = pneg %p54
        %s300 = smul.u32 16, %s22
        %s301 = smul.u32 2, %s21
        %p302 = scmp.lt.s32.totalorder %s300, 399
        %s303 = scalar_select %p302, %s300, 399
        %p304 = scmp.lt.s32.totalorder %s301, 1
        %s305 = scalar_select %p304, %s301, 1
        %s306 = smul.addr %s303, 2
        %s307 = sadd.s32 %s305, %s306
        %s308 = smul.addr %s307, 4
        %s309 = scalar_lea.vmem %s1, %s308
        %p310 = pneg %p85
        %p311 = pneg %p82
        %s312 = smul.u32 2, %s21
        %p313 = scmp.lt.s32.totalorder %s312, 1
        %s314 = scalar_select %p313, %s312, 1
        %s315 = scalar_lea.vmem %s2, %s314
        %p316 = pneg %p111
        %p317 = pneg %p108
        %s318 = smul.u32 2, %s21
        %p319 = scmp.lt.s32.totalorder %s318, 1
        %s320 = scalar_select %p319, %s318, 1
        %s321 = scalar_lea.vmem %s3, %s320
        %p322 = pneg %p137
        %p323 = pneg %p134
        %p324 = pneg %p165
        %p325 = pneg %p162
        %s326 = smul.u32 4, %s20
        %s327 = smul.u32 2, %s21
        %p328 = scmp.lt.s32.totalorder %s326, 3
        %s329 = scalar_select %p328, %s326, 3
        %p330 = scmp.lt.s32.totalorder %s327, 1
        %s331 = scalar_select %p330, %s327, 1
        %s332 = smul.addr %s329, 2
        %s333 = sadd.s32 %s331, %s332
        %s334 = smul.addr %s333, 8
        %s335 = scalar_lea.vmem %s4, %s334
        %s336 = smul.u32 4, %s20
        %s337 = smul.u32 16, %s22
        %s338 = smul.u32 2, %s21
        %p339 = scmp.lt.s32.totalorder %s337, 399
        %s340 = scalar_select %p339, %s337, 399
        %p341 = scmp.lt.s32.totalorder %s338, 1
        %s342 = scalar_select %p341, %s338, 1
        %s343 = smul.addr %s340, 2
        %s344 = sadd.s32 %s342, %s343
        %s345 = smul.addr %s344, 4
        %s346 = scalar_lea.vmem %s1, %s345
        %s347 = smul.u32 16, %s22
        %s348 = smul.u32 2, %s21
        %s349 = smul.u32 2, %s21
        %p350 = scmp.lt.s32.totalorder %s349, 1
        %s351 = scalar_select %p350, %s349, 1
        %s352 = scalar_lea.vmem %s2, %s351
        %s353 = smul.u32 2, %s21
        %s354 = smul.u32 2, %s21
        %p355 = scmp.lt.s32.totalorder %s354, 1
        %s356 = scalar_select %p355, %s354, 1
        %s357 = scalar_lea.vmem %s3, %s356
        %s358 = smul.u32 2, %s21
        %s359 = smul.u32 4, %s20
        %s360 = smul.u32 2, %s21
        %p361 = scmp.lt.s32.totalorder %s359, 3
        %s362 = scalar_select %p361, %s359, 3
        %p363 = scmp.lt.s32.totalorder %s360, 1
        %s364 = scalar_select %p363, %s360, 1
        %s365 = smul.addr %s362, 2
        %s366 = sadd.s32 %s364, %s365
        %s367 = smul.addr %s366, 8
        %s368 = scalar_lea.vmem %s4, %s367
        %s369 = smul.u32 4, %s20
        %s370 = smul.u32 2, %s21
        %p371 = scmp.eq.s32.totalorder %s22, 0
        // Predicated region
        $region78: #{cnn_forward.12} parent=72 // pred_check
          %p372 = pneg %p371
        $region79: #{cnn_forward.12} parent=72 // pred_check_branch
          %374 = sbr.rel (%p372) target = $region81
        $region80: #{cnn_forward.12} parent=72 // pred_region
          %375 = vst [vmem:[#allocation2] sm:$0xff] 0.0
          %376 = vst [vmem:[#allocation2 + $0x8] sm:$0xff] 0.0
          %377 = vst [vmem:[#allocation2 + $0x10] sm:$0xff] 0.0
          %378 = vst [vmem:[#allocation2 + $0x18] sm:$0xff] 0.0
          %379 = vst [vmem:[#allocation2 + $0x20] sm:$0xff] 0.0
          %380 = vst [vmem:[#allocation2 + $0x28] sm:$0xff] 0.0
          %381 = vst [vmem:[#allocation2 + $0x30] sm:$0xff] 0.0
          %382 = vst [vmem:[#allocation2 + $0x38] sm:$0xff] 0.0
        $region81: #{cnn_forward.12} parent=72 // pred_fallthru
          _
        %v383 = vld [vmem:[#allocation2] sm:$0xff]
        %v384 = vld [vmem:[#allocation2 + $0x8] sm:$0xff]
        %v385 = vld [vmem:[#allocation2 + $0x10] sm:$0xff]
        %v386 = vld [vmem:[#allocation2 + $0x18] sm:$0xff]
        %v387 = vld [vmem:[#allocation2 + $0x20] sm:$0xff]
        %v388 = vld [vmem:[#allocation2 + $0x28] sm:$0xff]
        %v389 = vld [vmem:[#allocation2 + $0x30] sm:$0xff]
        %v390 = vld [vmem:[#allocation2 + $0x38] sm:$0xff]
        %v391 = vld [vmem:[%s290] sm:$0xf]
        %v392 = vld [vmem:[%s290 + $0x4] sm:$0xf]
        %v393 = vld [vmem:[%s290 + $0x8] sm:$0xf]
        %v394 = vld [vmem:[%s290 + $0xc] sm:$0xf]
        %v395 = vld [vmem:[%s346] sm:$0xff]
        %v396 = vld [vmem:[%s346 + $0x8] sm:$0xff]
        %v397 = vld [vmem:[%s346 + $0x10] sm:$0xff]
        %v398 = vld [vmem:[%s346 + $0x18] sm:$0xff]
        %v399 = vld [vmem:[%s346 + $0x20] sm:$0xff]
        %v400 = vld [vmem:[%s346 + $0x28] sm:$0xff]
        %v401 = vld [vmem:[%s346 + $0x30] sm:$0xff]
        %v402 = vld [vmem:[%s346 + $0x38] sm:$0xff]
        %v403 = vld [vmem:[%s346 + $0x40] sm:$0xff]
        %v404 = vld [vmem:[%s346 + $0x48] sm:$0xff]
        %v405 = vld [vmem:[%s346 + $0x50] sm:$0xff]
        %v406 = vld [vmem:[%s346 + $0x58] sm:$0xff]
        %v407 = vld [vmem:[%s346 + $0x60] sm:$0xff]
        %v408 = vld [vmem:[%s346 + $0x68] sm:$0xff]
        %v409 = vld [vmem:[%s346 + $0x70] sm:$0xff]
        %v410 = vld [vmem:[%s346 + $0x78] sm:$0xff]
        %v415 = vunpack.c.l.b16 %v391
        %v416 = vunpack.c.l.b16 %v392
        %v417 = vunpack.c.l.b16 %v393
        %v418 = vunpack.c.l.b16 %v394
        %v419 = vpack.c.b16 %v416, %v415
        %v420 = vpack.c.b16 %v418, %v417
        %v439 = vunpack.c.l.b16 %v395
        %v440 = vunpack.c.h.b16 %v395
        %v441 = vunpack.c.l.b16 %v396
        %v442 = vunpack.c.h.b16 %v396
        %v443 = vunpack.c.l.b16 %v397
        %v444 = vunpack.c.h.b16 %v397
        %v445 = vunpack.c.l.b16 %v398
        %v446 = vunpack.c.h.b16 %v398
        %v447 = vunpack.c.l.b16 %v399
        %v448 = vunpack.c.h.b16 %v399
        %v449 = vunpack.c.l.b16 %v400
        %v450 = vunpack.c.h.b16 %v400
        %v451 = vunpack.c.l.b16 %v401
        %v452 = vunpack.c.h.b16 %v401
        %v453 = vunpack.c.l.b16 %v402
        %v454 = vunpack.c.h.b16 %v402
        %v455 = vunpack.c.l.b16 %v403
        %v456 = vunpack.c.h.b16 %v403
        %v457 = vunpack.c.l.b16 %v404
        %v458 = vunpack.c.h.b16 %v404
        %v459 = vunpack.c.l.b16 %v405
        %v460 = vunpack.c.h.b16 %v405
        %v461 = vunpack.c.l.b16 %v406
        %v462 = vunpack.c.h.b16 %v406
        %v463 = vunpack.c.l.b16 %v407
        %v464 = vunpack.c.h.b16 %v407
        %v465 = vunpack.c.l.b16 %v408
        %v466 = vunpack.c.h.b16 %v408
        %v467 = vunpack.c.l.b16 %v409
        %v468 = vunpack.c.h.b16 %v409
        %v469 = vunpack.c.l.b16 %v410
        %v470 = vunpack.c.h.b16 %v410
        %v471 = vpack.c.b16 %v441, %v439
        %v472 = vpack.c.b16 %v442, %v440
        %v473 = vpack.c.b16 %v445, %v443
        %v474 = vpack.c.b16 %v446, %v444
        %v475 = vpack.c.b16 %v449, %v447
        %v476 = vpack.c.b16 %v450, %v448
        %v477 = vpack.c.b16 %v453, %v451
        %v478 = vpack.c.b16 %v454, %v452
        %v479 = vpack.c.b16 %v457, %v455
        %v480 = vpack.c.b16 %v458, %v456
        %v481 = vpack.c.b16 %v461, %v459
        %v482 = vpack.c.b16 %v462, %v460
        %v483 = vpack.c.b16 %v465, %v463
        %v484 = vpack.c.b16 %v466, %v464
        %v485 = vpack.c.b16 %v469, %v467
        %v486 = vpack.c.b16 %v470, %v468
        %503 = vmatpush.bf16.msra.mxu0 %v485
        %504 = vmatpush.bf16.msra.mxu0 %v483
        %505 = vmatpush.bf16.msra.mxu0 %v481
        %506 = vmatpush.bf16.msra.mxu0 %v479
        %507 = vmatpush.bf16.msra.mxu0 %v477
        %508 = vmatpush.bf16.msra.mxu0 %v475
        %509 = vmatpush.bf16.msra.mxu0 %v473
        %510 = vmatpush.bf16.msra.mxu0 %v471
        %511 = vmatmul.bf16.gmra.mxu0 %v419
        %v512 = vpop.f32.mrf.mxu0
        %v513 = vadd.f32 0.0, %v512
        %v514 = vpop.f32.mrf.mxu0
        %v515 = vadd.f32 0.0, %v514
        %516 = vmatmul.bf16.gmra.mxu0 %v420
        %v517 = vpop.f32.mrf.mxu0
        %v518 = vadd.f32 0.0, %v517
        %v519 = vpop.f32.mrf.mxu0
        %v520 = vadd.f32 0.0, %v519
        %521 = vdwg.mxu0
        %522 = vmatpush.bf16.msra.mxu0 %v486
        %523 = vmatpush.bf16.msra.mxu0 %v484
        %524 = vmatpush.bf16.msra.mxu0 %v482
        %525 = vmatpush.bf16.msra.mxu0 %v480
        %526 = vmatpush.bf16.msra.mxu0 %v478
        %527 = vmatpush.bf16.msra.mxu0 %v476
        %528 = vmatpush.bf16.msra.mxu0 %v474
        %529 = vmatpush.bf16.msra.mxu0 %v472
        %530 = vmatmul.bf16.gmra.mxu0 %v419
        %v531 = vpop.f32.mrf.mxu0
        %v532 = vadd.f32 0.0, %v531
        %v533 = vpop.f32.mrf.mxu0
        %v534 = vadd.f32 0.0, %v533
        %535 = vmatmul.bf16.gmra.mxu0 %v420
        %v536 = vpop.f32.mrf.mxu0
        %v537 = vadd.f32 0.0, %v536
        %v538 = vpop.f32.mrf.mxu0
        %v539 = vadd.f32 0.0, %v538
        %540 = vdwg.mxu0
        %v541 = vadd.f32 %v383, %v513
        %v542 = vadd.f32 %v384, %v532
        %v543 = vadd.f32 %v385, %v515
        %v544 = vadd.f32 %v386, %v534
        %v545 = vadd.f32 %v387, %v518
        %v546 = vadd.f32 %v388, %v537
        %v547 = vadd.f32 %v389, %v520
        %v548 = vadd.f32 %v390, %v539
        %549 = vst [vmem:[#allocation2] sm:$0xff] %v541
        %550 = vst [vmem:[#allocation2 + $0x8] sm:$0xff] %v542
        %551 = vst [vmem:[#allocation2 + $0x10] sm:$0xff] %v543
        %552 = vst [vmem:[#allocation2 + $0x18] sm:$0xff] %v544
        %553 = vst [vmem:[#allocation2 + $0x20] sm:$0xff] %v545
        %554 = vst [vmem:[#allocation2 + $0x28] sm:$0xff] %v546
        %555 = vst [vmem:[#allocation2 + $0x30] sm:$0xff] %v547
        %556 = vst [vmem:[#allocation2 + $0x38] sm:$0xff] %v548
        %p557 = scmp.eq.s32.totalorder %s22, 24
        // Predicated region
        $region82: #{cnn_forward.12} parent=72 // pred_check
          %p558 = pneg %p557
        $region83: #{cnn_forward.12} parent=72 // pred_check_branch
          %560 = sbr.rel (%p558) target = $region85
        $region84: #{cnn_forward.12} parent=72 // pred_region
          %v561 = vld [vmem:[#allocation2] sm:$0xff]
          %v562 = vld [vmem:[#allocation2 + $0x8] sm:$0xff]
          %v563 = vld [vmem:[#allocation2 + $0x10] sm:$0xff]
          %v564 = vld [vmem:[#allocation2 + $0x18] sm:$0xff]
          %v565 = vld [vmem:[#allocation2 + $0x20] sm:$0xff]
          %v566 = vld [vmem:[#allocation2 + $0x28] sm:$0xff]
          %v567 = vld [vmem:[#allocation2 + $0x30] sm:$0xff]
          %v568 = vld [vmem:[#allocation2 + $0x38] sm:$0xff]
          %v569 = vld [vmem:[%s352] sm:$0x3]
          %v571 = vperm.slane %v569, 0
          %v572 = vperm.slane %v569, 1
          %v575 = vmul.f32 %v561, %v571
          %v576 = vmul.f32 %v562, %v572
          %v577 = vmul.f32 %v563, %v571
          %v578 = vmul.f32 %v564, %v572
          %v579 = vmul.f32 %v565, %v571
          %v580 = vmul.f32 %v566, %v572
          %v581 = vmul.f32 %v567, %v571
          %v582 = vmul.f32 %v568, %v572
          %v583 = vld [vmem:[%s357] sm:$0x3]
          %v585 = vperm.slane %v583, 0
          %v586 = vperm.slane %v583, 1
          %v589 = vadd.f32 %v575, %v585
          %v590 = vadd.f32 %v576, %v586
          %v591 = vadd.f32 %v577, %v585
          %v592 = vadd.f32 %v578, %v586
          %v593 = vadd.f32 %v579, %v585
          %v594 = vadd.f32 %v580, %v586
          %v595 = vadd.f32 %v581, %v585
          %v596 = vadd.f32 %v582, %v586
          %v597 = vmax.f32 %v589, 0.0
          %v598 = vmax.f32 %v590, 0.0
          %v599 = vmax.f32 %v591, 0.0
          %v600 = vmax.f32 %v592, 0.0
          %v601 = vmax.f32 %v593, 0.0
          %v602 = vmax.f32 %v594, 0.0
          %v603 = vmax.f32 %v595, 0.0
          %v604 = vmax.f32 %v596, 0.0
          %605 = vst [vmem:[%s368] sm:$0xff] %v597
          %606 = vst [vmem:[%s368 + $0x8] sm:$0xff] %v598
          %607 = vst [vmem:[%s368 + $0x10] sm:$0xff] %v599
          %608 = vst [vmem:[%s368 + $0x18] sm:$0xff] %v600
          %609 = vst [vmem:[%s368 + $0x20] sm:$0xff] %v601
          %610 = vst [vmem:[%s368 + $0x28] sm:$0xff] %v602
          %611 = vst [vmem:[%s368 + $0x30] sm:$0xff] %v603
          %612 = vst [vmem:[%s368 + $0x38] sm:$0xff] %v604
        $region85: #{cnn_forward.12} parent=72 // pred_fallthru
          _
        %s613 = smul.u32 4, %s20
        %s614 = smul.u32 2, %s21
        %p615 = scmp.lt.s32.totalorder %s613, 3
        %s616 = scalar_select %p615, %s613, 3
        %p617 = scmp.lt.s32.totalorder %s614, 1
        %s618 = scalar_select %p617, %s614, 1
        %s619 = smul.addr %s616, 2
        %s620 = sadd.s32 %s618, %s619
        %s621 = smul.addr %s620, 8
        %s622 = scalar_lea.vmem %s4, %s621
        // Predicated region
        $region86: #{cnn_forward.12} parent=72 // pred_check
          %p623 = pneg %p162
        $region87: #{cnn_forward.12} parent=72 // pred_check_branch
          %625 = sbr.rel (%p623) target = $region89
        $region88: #{cnn_forward.12} parent=72 // pred_region
          %s626 = smul.u32 4, %s20
          %s627 = smul.u32 2, %s21
        $region89: #{cnn_forward.12} parent=72 // pred_fallthru
          _
        // Predicated region
        $region90: #{cnn_forward.12} parent=72 // pred_check
          %p628 = pneg %p162
        $region91: #{cnn_forward.12} parent=72 // pred_check_branch
          %630 = sbr.rel (%p628) target = $region93
        $region92: #{cnn_forward.12} parent=72 // pred_region
          %s631 = smul.u32 4, %s20
          %s632 = smul.u32 2, %s21
          %p633 = scmp.lt.s32.totalorder %s631, 3
          %s634 = scalar_select %p633, %s631, 3
          %p635 = scmp.lt.s32.totalorder %s632, 1
          %s636 = scalar_select %p635, %s632, 1
          %s637 = smul.addr %s634, 2
          %s638 = sadd.s32 %s636, %s637
          %s639 = smul.addr %s638, 8
          %s640 = scalar_lea.vmem %s4, %s639
        $region93: #{cnn_forward.12} parent=72 // pred_fallthru
          _
      $region73: #{cnn_forward.12} parent=5 // pred_fallthru
        _
      %p641 = scmp.le.s32.totalorder 2, %s10
      // Predicated region
      $region94: #{cnn_forward.12} parent=5 // pred_check
        %p642 = pneg %p641
      $region95: #{cnn_forward.12} parent=5 // pred_check_branch
        %644 = sbr.rel (%p642) target = $region97
      $region96: #{cnn_forward.12} parent=5 // pred_region
        %s645 = ssub.s32 %s10, 2
      $region97: #{cnn_forward.12} parent=5 // pred_fallthru
        _
    $region6: #{cnn_forward.12} parent=1 // loop_footer
      %s14 = sadd.s32 1, %s10
    $region7: #{cnn_forward.12} parent=1 // loop_footer_branch
      %9 = sbr.rel target = $region3
    $region8: #{cnn_forward.12} parent=1 // loop_exit
      _

// kernel: cnn_forward.13
$region0: #{cnn_forward.13}
  #allocation0 [shape = 'u32[]', space=smem, size = 0x4, offset = 0x4, fixed_abs, tag = 'smem constant byte address 0x4 - core index']
  #allocation1 [shape = 'u32[72,128]{1,0:T(1,128)}', space=vmem, size = 0x9000, scoped, tag = 'internal scratch']
  #allocation2 [shape = 'f32[32,256]{1,0:T(8,128)}', space=vmem, size = 0x8000, scoped, tag = 'scratch operand']
  %s0 = inlined_call_operand.vmem [shape: bf16[32,6400], index: 0, kind: input, shape index: {}]
  %s1 = inlined_call_operand.vmem [shape: bf16[6400,512], index: 1, kind: input, shape index: {}]
  %s2 = inlined_call_operand.vmem [shape: f32[1,512], index: 2, kind: input, shape index: {}]
  %s3 = inlined_call_operand.vmem [shape: f32[1,512], index: 3, kind: input, shape index: {}]
  %s4 = inlined_call_operand.vmem [shape: f32[32,512], index: 4, kind: output, shape index: {}]
  %s5 = sld [smem:[#allocation0]]
  $region152: #{cnn_forward.13} parent=0
    _
  %s7 = ssub.s32 1, %s5
  %s8 = scalar_select 0, %s7, %s5
  $region1: #{cnn_forward.13} parent=0
    #allocation3 [shape = 'u8[32768]{0}', space=vmem, size = 0x8000, scoped, tag = 'input window, operand 0']
    #allocation4 [shape = 'u8[262144]{0}', space=vmem, size = 0x40000, scoped, tag = 'input window, operand 1']
    #allocation5 [shape = 'u8[65536]{0}', space=vmem, size = 0x10000, scoped, tag = 'output window, operand 0']
    loop: start=0, step=1, limit=52
    $region2: #{cnn_forward.13} parent=1 // loop_pre_header
      _
    $region3: #{cnn_forward.13} parent=1 // loop_header
      %s10 = sphi 0, %s14
      %p11 = scmp.ge.s32.totalorder %s10, 52
      %s17 = sphi 0, %s36
      %s18 = sphi 0, %s32
      %s19 = sphi 0, %s28
      %s20 = sphi 0, %s17
      %s21 = sphi 0, %s18
      %s22 = sphi 0, %s19
      %s23 = sphi 0, %s20
      %s24 = sphi 0, %s21
      %s25 = sphi 0, %s22
      %s41 = sphi 0, %s43
      %s44 = sphi 0, %s41
      %s45 = sphi 0, %s44
      %s61 = sphi 0, %s45
      %s69 = sphi 0, %s71
      %s72 = sphi 0, %s69
      %s73 = sphi 0, %s72
      %s89 = sphi 0, %s73
      %s95 = sphi 0, %s97
      %s98 = sphi 0, %s95
      %s99 = sphi 0, %s98
      %s115 = sphi 0, %s99
      %s121 = sphi 0, %s123
      %s124 = sphi 0, %s121
      %s125 = sphi 0, %s124
      %s141 = sphi 0, %s125
      %s149 = sphi 0, %s151
      %s152 = sphi 0, %s149
      %s153 = sphi 0, %s152
      %s169 = sphi 0, %s153
    $region4: #{cnn_forward.13} parent=1 // loop_header_branch
      %13 = sbr.rel (%p11) target = $region8
    $region5: #{cnn_forward.13} parent=1 // loop_body
      %s15 = ssub.s32 %s10, 1
      %s16 = ssub.s32 %s10, 2
      %s26 = sadd.s32 1, %s19
      %p27 = scmp.ge.s32.totalorder %s26, 25
      %s28 = scalar_select %p27, 0, %s26
      %s29 = sadd.s32 1, %s18
      %s30 = scalar_select %p27, %s29, %s18
      %p31 = scmp.ge.s32.totalorder %s30, 2
      %s32 = scalar_select %p31, 0, %s30
      %s33 = sadd.s32 1, %s17
      %s34 = scalar_select %p31, %s33, %s17
      %p35 = scmp.ge.s32.totalorder %s34, 1
      %s36 = scalar_select %p35, 0, %s34
      %s37 = ssub.s32 %s17, %s36
      %s38 = ssub.s32 %s19, %s28
      %s39 = sor.u32 %s37, %s38
      %p40 = scmp.eq.s32.totalorder %s39, 0
      %s42 = sadd.s32 %s41, 1
      %s43 = scalar_select %p40, %s41, %s42
      %p46 = pneg %p40
      %p47 = scmp.eq.s32.totalorder %s10, 49
      %p48 = por %p46, %p47
      %p49 = scmp.ne.s32.totalorder %s41, %s44
      %p50 = scmp.eq.s32.totalorder %s10, 0
      %p51 = por %p49, %p50
      %p52 = scmp.ne.s32.totalorder %s41, %s44
      %p53 = scmp.eq.s32.totalorder %s15, 49
      %p54 = por %p52, %p53
      %p55 = scmp.ne.s32.totalorder %s44, %s45
      %p56 = scmp.eq.s32.totalorder %s15, 0
      %p57 = por %p55, %p56
      %p58 = scmp.ne.s32.totalorder %s44, %s45
      %p59 = scmp.eq.s32.totalorder %s16, 49
      %p60 = por %p58, %p59
      %p62 = scmp.ne.s32.totalorder %s45, %s61
      %p63 = scmp.eq.s32.totalorder %s16, 0
      %p64 = por %p62, %p63
      %s65 = ssub.s32 %s19, %s28
      %s66 = ssub.s32 %s18, %s32
      %s67 = sor.u32 %s65, %s66
      %p68 = scmp.eq.s32.totalorder %s67, 0
      %s70 = sadd.s32 %s69, 1
      %s71 = scalar_select %p68, %s69, %s70
      %p74 = pneg %p68
      %p75 = scmp.eq.s32.totalorder %s10, 49
      %p76 = por %p74, %p75
      %p77 = scmp.ne.s32.totalorder %s69, %s72
      %p78 = scmp.eq.s32.totalorder %s10, 0
      %p79 = por %p77, %p78
      %p80 = scmp.ne.s32.totalorder %s69, %s72
      %p81 = scmp.eq.s32.totalorder %s15, 49
      %p82 = por %p80, %p81
      %p83 = scmp.ne.s32.totalorder %s72, %s73
      %p84 = scmp.eq.s32.totalorder %s15, 0
      %p85 = por %p83, %p84
      %p86 = scmp.ne.s32.totalorder %s72, %s73
      %p87 = scmp.eq.s32.totalorder %s16, 49
      %p88 = por %p86, %p87
      %p90 = scmp.ne.s32.totalorder %s73, %s89
      %p91 = scmp.eq.s32.totalorder %s16, 0
      %p92 = por %p90, %p91
      %s93 = ssub.s32 %s18, %s32
      %p94 = scmp.eq.s32.totalorder %s93, 0
      %s96 = sadd.s32 %s95, 1
      %s97 = scalar_select %p94, %s95, %s96
      %p100 = pneg %p94
      %p101 = scmp.eq.s32.totalorder %s10, 49
      %p102 = por %p100, %p101
      %p103 = scmp.ne.s32.totalorder %s95, %s98
      %p104 = scmp.eq.s32.totalorder %s10, 0
      %p105 = por %p103, %p104
      %p106 = scmp.ne.s32.totalorder %s95, %s98
      %p107 = scmp.eq.s32.totalorder %s15, 49
      %p108 = por %p106, %p107
      %p109 = scmp.ne.s32.totalorder %s98, %s99
      %p110 = scmp.eq.s32.totalorder %s15, 0
      %p111 = por %p109, %p110
      %p112 = scmp.ne.s32.totalorder %s98, %s99
      %p113 = scmp.eq.s32.totalorder %s16, 49
      %p114 = por %p112, %p113
      %p116 = scmp.ne.s32.totalorder %s99, %s115
      %p117 = scmp.eq.s32.totalorder %s16, 0
      %p118 = por %p116, %p117
      %s119 = ssub.s32 %s18, %s32
      %p120 = scmp.eq.s32.totalorder %s119, 0
      %s122 = sadd.s32 %s121, 1
      %s123 = scalar_select %p120, %s121, %s122
      %p126 = pneg %p120
      %p127 = scmp.eq.s32.totalorder %s10, 49
      %p128 = por %p126, %p127
      %p129 = scmp.ne.s32.totalorder %s121, %s124
      %p130 = scmp.eq.s32.totalorder %s10, 0
      %p131 = por %p129, %p130
      %p132 = scmp.ne.s32.totalorder %s121, %s124
      %p133 = scmp.eq.s32.totalorder %s15, 49
      %p134 = por %p132, %p133
      %p135 = scmp.ne.s32.totalorder %s124, %s125
      %p136 = scmp.eq.s32.totalorder %s15, 0
      %p137 = por %p135, %p136
      %p138 = scmp.ne.s32.totalorder %s124, %s125
      %p139 = scmp.eq.s32.totalorder %s16, 49
      %p140 = por %p138, %p139
      %p142 = scmp.ne.s32.totalorder %s125, %s141
      %p143 = scmp.eq.s32.totalorder %s16, 0
      %p144 = por %p142, %p143
      %s145 = ssub.s32 %s17, %s36
      %s146 = ssub.s32 %s18, %s32
      %s147 = sor.u32 %s145, %s146
      %p148 = scmp.eq.s32.totalorder %s147, 0
      %s150 = sadd.s32 %s149, 1
      %s151 = scalar_select %p148, %s149, %s150
      %p154 = pneg %p148
      %p155 = scmp.eq.s32.totalorder %s10, 49
      %p156 = por %p154, %p155
      %p157 = scmp.ne.s32.totalorder %s149, %s152
      %p158 = scmp.eq.s32.totalorder %s10, 0
      %p159 = por %p157, %p158
      %p160 = scmp.ne.s32.totalorder %s149, %s152
      %p161 = scmp.eq.s32.totalorder %s15, 49
      %p162 = por %p160, %p161
      %p163 = scmp.ne.s32.totalorder %s152, %s153
      %p164 = scmp.eq.s32.totalorder %s15, 0
      %p165 = por %p163, %p164
      %p166 = scmp.ne.s32.totalorder %s152, %s153
      %p167 = scmp.eq.s32.totalorder %s16, 49
      %p168 = por %p166, %p167
      %p170 = scmp.ne.s32.totalorder %s153, %s169
      %p171 = scmp.eq.s32.totalorder %s16, 0
      %p172 = por %p170, %p171
      %p173 = scmp.le.s32.totalorder 1, %s10
      %p174 = scmp.lt.s32.totalorder %s10, 51
      %p175 = pnand %p173, %p174
      %p176 = pneg %p175
      // Predicated region
      $region9: #{cnn_forward.13} parent=5 // pred_check
        _
      $region10: #{cnn_forward.13} parent=5 // pred_check_branch
        %178 = sbr.rel (%p175) target = $region12
      $region11: #{cnn_forward.13} parent=5 // pred_region
        %s179 = ssub.s32 %s10, 1
      $region12: #{cnn_forward.13} parent=5 // pred_fallthru
        _
      %p180 = scmp.lt.s32.totalorder %s10, 50
      // Predicated region
      $region13: #{cnn_forward.13} parent=5 // pred_check
        %p181 = pneg %p180
      $region14: #{cnn_forward.13} parent=5 // pred_check_branch
        %183 = sbr.rel (%p181) target = $region16
      $region15: #{cnn_forward.13} parent=5 // pred_region
        // Predicated region
        $region17: #{cnn_forward.13} parent=15 // pred_check
          %p184 = pneg %p51
        $region18: #{cnn_forward.13} parent=15 // pred_check_branch
          %186 = sbr.rel (%p184) target = $region20
        $region19: #{cnn_forward.13} parent=15 // pred_region
          %s187 = sand.u32 %s41, 1
          %s188 = sand.u32 %s41, 1
          %s189 = smul.addr %s188, 32
          %s190 = scalar_lea.vmem [#allocation3], %s189
          %s191 = smul.u32 4, %s17
          %s192 = smul.u32 2, %s19
          %s193 = smul.addr %s191, 50
          %s194 = sadd.s32 %s192, %s193
          %s195 = smul.addr %s194, 4
          %s196 = scalar_lea.vmem %s0, %s195
          // Predicated region
          $region21: #{cnn_forward.13} parent=19 // pred_check
            _
          $region22: #{cnn_forward.13} parent=19 // pred_check_branch
            %198 = sbr.rel (0) target = $region24
          $region23: #{cnn_forward.13} parent=19 // pred_region
            // Predicated region
            $region25: #{cnn_forward.13} parent=23 // pred_check
              _
            $region26: #{cnn_forward.13} parent=23 // pred_check_branch
              %200 = sbr.rel (0) target = $region28
            $region27: #{cnn_forward.13} parent=23 // pred_region
              // Predicated region
              $region40: #{cnn_forward.13} parent=27 // pred_check
                _
              $region41: #{cnn_forward.13} parent=27 // pred_check_branch
                %222 = sbr.rel (0) target = $region43
              $region42: #{cnn_forward.13} parent=27 // pred_region
                loop: start=0, step=1, limit=1
                $region44: #{cnn_forward.13} parent=42 // loop_pre_header
                  _
                $region45: #{cnn_forward.13} parent=42 // loop_header
                  %s224 = sphi 0, %s228
                  %p225 = scmp.ge.s32.totalorder %s224, 1
                  %s229 = sphi %s196, %s196
                  %s230 = sphi %s190, %s190
                $region46: #{cnn_forward.13} parent=42 // loop_header_branch
                  %227 = sbr.rel (%p225) target = $region50
                $region47: #{cnn_forward.13} parent=42 // loop_body
                  %v231 = vld [vmem:[%s229] sm:$0xff]
                  %232 = vst [vmem:[%s230] sm:$0xff] %v231
                  %v233 = vld [vmem:[%s229 + $0xc8] sm:$0xff]
                  %234 = vst [vmem:[%s230 + $0x8] sm:$0xff] %v233
                  %v235 = vld [vmem:[%s229 + $0x190] sm:$0xff]
                  %236 = vst [vmem:[%s230 + $0x10] sm:$0xff] %v235
                  %v237 = vld [vmem:[%s229 + $0x258] sm:$0xff]
                  %238 = vst [vmem:[%s230 + $0x18] sm:$0xff] %v237
                $region48: #{cnn_forward.13} parent=42 // loop_footer
                  %s228 = sadd.s32 1, %s224
                $region49: #{cnn_forward.13} parent=42 // loop_footer_branch
                  %223 = sbr.rel target = $region45
                $region50: #{cnn_forward.13} parent=42 // loop_exit
                  _
              $region43: #{cnn_forward.13} parent=27 // pred_fallthru
                _
              // Predicated region
              $region51: #{cnn_forward.13} parent=27 // pred_check
                _
              $region52: #{cnn_forward.13} parent=27 // pred_check_branch
                %240 = sbr.rel target = $region54
              $region53: #{cnn_forward.13} parent=27 // pred_region
                _
              $region54: #{cnn_forward.13} parent=27 // pred_fallthru
                _
            $region28: #{cnn_forward.13} parent=23 // pred_fallthru
              _
            // Predicated region
            $region29: #{cnn_forward.13} parent=23 // pred_check
              _
            $region30: #{cnn_forward.13} parent=23 // pred_check_branch
              %202 = sbr.rel target = $region32
            $region31: #{cnn_forward.13} parent=23 // pred_region
              %s204 = ssub.s32 256, 1
              loop: start=0, step=1, limit=1
              $region33: #{cnn_forward.13} parent=31 // loop_pre_header
                _
              $region34: #{cnn_forward.13} parent=31 // loop_header
                %s206 = sphi 0, %s210
                %p207 = scmp.ge.s32.totalorder %s206, 1
                %s211 = sphi %s196, %s196
                %s212 = sphi %s190, %s190
              $region35: #{cnn_forward.13} parent=31 // loop_header_branch
                %209 = sbr.rel (%p207) target = $region39
              $region36: #{cnn_forward.13} parent=31 // loop_body
                %v213 = vld [vmem:[%s211] sm:%s204]
                %214 = vst [vmem:[%s212] sm:%s204] %v213
                %v215 = vld [vmem:[%s211 + $0xc8] sm:%s204]
                %216 = vst [vmem:[%s212 + $0x8] sm:%s204] %v215
                %v217 = vld [vmem:[%s211 + $0x190] sm:%s204]
                %218 = vst [vmem:[%s212 + $0x10] sm:%s204] %v217
                %v219 = vld [vmem:[%s211 + $0x258] sm:%s204]
                %220 = vst [vmem:[%s212 + $0x18] sm:%s204] %v219
              $region37: #{cnn_forward.13} parent=31 // loop_footer
                %s210 = sadd.s32 1, %s206
              $region38: #{cnn_forward.13} parent=31 // loop_footer_branch
                %205 = sbr.rel target = $region34
              $region39: #{cnn_forward.13} parent=31 // loop_exit
                _
            $region32: #{cnn_forward.13} parent=23 // pred_fallthru
              _
          $region24: #{cnn_forward.13} parent=19 // pred_fallthru
            _
          %241 = vnop
        $region20: #{cnn_forward.13} parent=15 // pred_fallthru
          _
        // Predicated region
        $region55: #{cnn_forward.13} parent=15 // pred_check
          %p242 = pneg %p79
        $region56: #{cnn_forward.13} parent=15 // pred_check_branch
          %244 = sbr.rel (%p242) target = $region58
        $region57: #{cnn_forward.13} parent=15 // pred_region
          %s245 = sand.u32 %s69, 1
          %s246 = sand.u32 %s69, 1
          %s247 = smul.addr %s246, 256
          %s248 = scalar_lea.vmem [#allocation4], %s247
          %s249 = smul.u32 32, %s19
          %s250 = smul.u32 2, %s18
          %s251 = smul.addr %s249, 4
          %s252 = sadd.s32 %s250, %s251
          %s253 = smul.addr %s252, 4
          %s254 = scalar_lea.vmem %s1, %s253
          // Predicated region
          $region59: #{cnn_forward.13} parent=57 // pred_check
            _
          $region60: #{cnn_forward.13} parent=57 // pred_check_branch
            %256 = sbr.rel (0) target = $region62
          $region61: #{cnn_forward.13} parent=57 // pred_region
            // Predicated region
            $region63: #{cnn_forward.13} parent=61 // pred_check
              _
            $region64: #{cnn_forward.13} parent=61 // pred_check_branch
              %258 = sbr.rel (0) target = $region66
            $region65: #{cnn_forward.13} parent=61 // pred_region
              // Predicated region
              $region78: #{cnn_forward.13} parent=65 // pred_check
                _
              $region79: #{cnn_forward.13} parent=65 // pred_check_branch
                %336 = sbr.rel (0) target = $region81
              $region80: #{cnn_forward.13} parent=65 // pred_region
                loop: start=0, step=1, limit=1
                $region82: #{cnn_forward.13} parent=80 // loop_pre_header
                  _
                $region83: #{cnn_forward.13} parent=80 // loop_header
                  %s338 = sphi 0, %s342
                  %p339 = scmp.ge.s32.totalorder %s338, 1
                  %s343 = sphi %s254, %s254
                  %s344 = sphi %s248, %s248
                $region84: #{cnn_forward.13} parent=80 // loop_header_branch
                  %341 = sbr.rel (%p339) target = $region88
                $region85: #{cnn_forward.13} parent=80 // loop_body
                  %v345 = vld [vmem:[%s343] sm:$0xff]
                  %346 = vst [vmem:[%s344] sm:$0xff] %v345
                  %v347 = vld [vmem:[%s343 + $0x10] sm:$0xff]
                  %348 = vst [vmem:[%s344 + $0x8] sm:$0xff] %v347
                  %v349 = vld [vmem:[%s343 + $0x20] sm:$0xff]
                  %350 = vst [vmem:[%s344 + $0x10] sm:$0xff] %v349
                  %v351 = vld [vmem:[%s343 + $0x30] sm:$0xff]
                  %352 = vst [vmem:[%s344 + $0x18] sm:$0xff] %v351
                  %v353 = vld [vmem:[%s343 + $0x40] sm:$0xff]
                  %354 = vst [vmem:[%s344 + $0x20] sm:$0xff] %v353
                  %v355 = vld [vmem:[%s343 + $0x50] sm:$0xff]
                  %356 = vst [vmem:[%s344 + $0x28] sm:$0xff] %v355
                  %v357 = vld [vmem:[%s343 + $0x60] sm:$0xff]
                  %358 = vst [vmem:[%s344 + $0x30] sm:$0xff] %v357
                  %v359 = vld [vmem:[%s343 + $0x70] sm:$0xff]
                  %360 = vst [vmem:[%s344 + $0x38] sm:$0xff] %v359
                  %v361 = vld [vmem:[%s343 + $0x80] sm:$0xff]
                  %362 = vst [vmem:[%s344 + $0x40] sm:$0xff] %v361
                  %v363 = vld [vmem:[%s343 + $0x90] sm:$0xff]
                  %364 = vst [vmem:[%s344 + $0x48] sm:$0xff] %v363
                  %v365 = vld [vmem:[%s343 + $0xa0] sm:$0xff]
                  %366 = vst [vmem:[%s344 + $0x50] sm:$0xff] %v365
                  %v367 = vld [vmem:[%s343 + $0xb0] sm:$0xff]
                  %368 = vst [vmem:[%s344 + $0x58] sm:$0xff] %v367
                  %v369 = vld [vmem:[%s343 + $0xc0] sm:$0xff]
                  %370 = vst [vmem:[%s344 + $0x60] sm:$0xff] %v369
                  %v371 = vld [vmem:[%s343 + $0xd0] sm:$0xff]
                  %372 = vst [vmem:[%s344 + $0x68] sm:$0xff] %v371
                  %v373 = vld [vmem:[%s343 + $0xe0] sm:$0xff]
                  %374 = vst [vmem:[%s344 + $0x70] sm:$0xff] %v373
                  %v375 = vld [vmem:[%s343 + $0xf0] sm:$0xff]
                  %376 = vst [vmem:[%s344 + $0x78] sm:$0xff] %v375
                  %v377 = vld [vmem:[%s343 + $0x100] sm:$0xff]
                  %378 = vst [vmem:[%s344 + $0x80] sm:$0xff] %v377
                  %v379 = vld [vmem:[%s343 + $0x110] sm:$0xff]
                  %380 = vst [vmem:[%s344 + $0x88] sm:$0xff] %v379
                  %v381 = vld [vmem:[%s343 + $0x120] sm:$0xff]
                  %382 = vst [vmem:[%s344 + $0x90] sm:$0xff] %v381
                  %v383 = vld [vmem:[%s343 + $0x130] sm:$0xff]
                  %384 = vst [vmem:[%s344 + $0x98] sm:$0xff] %v383
                  %v385 = vld [vmem:[%s343 + $0x140] sm:$0xff]
                  %386 = vst [vmem:[%s344 + $0xa0] sm:$0xff] %v385
                  %v387 = vld [vmem:[%s343 + $0x150] sm:$0xff]
                  %388 = vst [vmem:[%s344 + $0xa8] sm:$0xff] %v387
                  %v389 = vld [vmem:[%s343 + $0x160] sm:$0xff]
                  %390 = vst [vmem:[%s344 + $0xb0] sm:$0xff] %v389
                  %v391 = vld [vmem:[%s343 + $0x170] sm:$0xff]
                  %392 = vst [vmem:[%s344 + $0xb8] sm:$0xff] %v391
                  %v393 = vld [vmem:[%s343 + $0x180] sm:$0xff]
                  %394 = vst [vmem:[%s344 + $0xc0] sm:$0xff] %v393
                  %v395 = vld [vmem:[%s343 + $0x190] sm:$0xff]
                  %396 = vst [vmem:[%s344 + $0xc8] sm:$0xff] %v395
                  %v397 = vld [vmem:[%s343 + $0x1a0] sm:$0xff]
                  %398 = vst [vmem:[%s344 + $0xd0] sm:$0xff] %v397
                  %v399 = vld [vmem:[%s343 + $0x1b0] sm:$0xff]
                  %400 = vst [vmem:[%s344 + $0xd8] sm:$0xff] %v399
                  %v401 = vld [vmem:[%s343 + $0x1c0] sm:$0xff]
                  %402 = vst [vmem:[%s344 + $0xe0] sm:$0xff] %v401
                  %v403 = vld [vmem:[%s343 + $0x1d0] sm:$0xff]
                  %404 = vst [vmem:[%s344 + $0xe8] sm:$0xff] %v403
                  %v405 = vld [vmem:[%s343 + $0x1e0] sm:$0xff]
                  %406 = vst [vmem:[%s344 + $0xf0] sm:$0xff] %v405
                  %v407 = vld [vmem:[%s343 + $0x1f0] sm:$0xff]
                  %408 = vst [vmem:[%s344 + $0xf8] sm:$0xff] %v407
                $region86: #{cnn_forward.13} parent=80 // loop_footer
                  %s342 = sadd.s32 1, %s338
                $region87: #{cnn_forward.13} parent=80 // loop_footer_branch
                  %337 = sbr.rel target = $region83
                $region88: #{cnn_forward.13} parent=80 // loop_exit
                  _
              $region81: #{cnn_forward.13} parent=65 // pred_fallthru
                _
              // Predicated region
              $region89: #{cnn_forward.13} parent=65 // pred_check
                _
              $region90: #{cnn_forward.13} parent=65 // pred_check_branch
                %410 = sbr.rel target = $region92
              $region91: #{cnn_forward.13} parent=65 // pred_region
                _
              $region92: #{cnn_forward.13} parent=65 // pred_fallthru
                _
            $region66: #{cnn_forward.13} parent=61 // pred_fallthru
              _
            // Predicated region
            $region67: #{cnn_forward.13} parent=61 // pred_check
              _
            $region68: #{cnn_forward.13} parent=61 // pred_check_branch
              %260 = sbr.rel target = $region70
            $region69: #{cnn_forward.13} parent=61 // pred_region
              %s262 = ssub.s32 256, 1
              loop: start=0, step=1, limit=1
              $region71: #{cnn_forward.13} parent=69 // loop_pre_header
                _
              $region72: #{cnn_forward.13} parent=69 // loop_header
                %s264 = sphi 0, %s268
                %p265 = scmp.ge.s32.totalorder %s264, 1
                %s269 = sphi %s254, %s254
                %s270 = sphi %s248, %s248
              $region73: #{cnn_forward.13} parent=69 // loop_header_branch
                %267 = sbr.rel (%p265) target = $region77
              $region74: #{cnn_forward.13} parent=69 // loop_body
                %v271 = vld [vmem:[%s269] sm:%s262]
                %272 = vst [vmem:[%s270] sm:%s262] %v271
                %v273 = vld [vmem:[%s269 + $0x10] sm:%s262]
                %274 = vst [vmem:[%s270 + $0x8] sm:%s262] %v273
                %v275 = vld [vmem:[%s269 + $0x20] sm:%s262]
                %276 = vst [vmem:[%s270 + $0x10] sm:%s262] %v275
                %v277 = vld [vmem:[%s269 + $0x30] sm:%s262]
                %278 = vst [vmem:[%s270 + $0x18] sm:%s262] %v277
                %v279 = vld [vmem:[%s269 + $0x40] sm:%s262]
                %280 = vst [vmem:[%s270 + $0x20] sm:%s262] %v279
                %v281 = vld [vmem:[%s269 + $0x50] sm:%s262]
                %282 = vst [vmem:[%s270 + $0x28] sm:%s262] %v281
                %v283 = vld [vmem:[%s269 + $0x60] sm:%s262]
                %284 = vst [vmem:[%s270 + $0x30] sm:%s262] %v283
                %v285 = vld [vmem:[%s269 + $0x70] sm:%s262]
                %286 = vst [vmem:[%s270 + $0x38] sm:%s262] %v285
                %v287 = vld [vmem:[%s269 + $0x80] sm:%s262]
                %288 = vst [vmem:[%s270 + $0x40] sm:%s262] %v287
                %v289 = vld [vmem:[%s269 + $0x90] sm:%s262]
                %290 = vst [vmem:[%s270 + $0x48] sm:%s262] %v289
                %v291 = vld [vmem:[%s269 + $0xa0] sm:%s262]
                %292 = vst [vmem:[%s270 + $0x50] sm:%s262] %v291
                %v293 = vld [vmem:[%s269 + $0xb0] sm:%s262]
                %294 = vst [vmem:[%s270 + $0x58] sm:%s262] %v293
                %v295 = vld [vmem:[%s269 + $0xc0] sm:%s262]
                %296 = vst [vmem:[%s270 + $0x60] sm:%s262] %v295
                %v297 = vld [vmem:[%s269 + $0xd0] sm:%s262]
                %298 = vst [vmem:[%s270 + $0x68] sm:%s262] %v297
                %v299 = vld [vmem:[%s269 + $0xe0] sm:%s262]
                %300 = vst [vmem:[%s270 + $0x70] sm:%s262] %v299
                %v301 = vld [vmem:[%s269 + $0xf0] sm:%s262]
                %302 = vst [vmem:[%s270 + $0x78] sm:%s262] %v301
                %v303 = vld [vmem:[%s269 + $0x100] sm:%s262]
                %304 = vst [vmem:[%s270 + $0x80] sm:%s262] %v303
                %v305 = vld [vmem:[%s269 + $0x110] sm:%s262]
                %306 = vst [vmem:[%s270 + $0x88] sm:%s262] %v305
                %v307 = vld [vmem:[%s269 + $0x120] sm:%s262]
                %308 = vst [vmem:[%s270 + $0x90] sm:%s262] %v307
                %v309 = vld [vmem:[%s269 + $0x130] sm:%s262]
                %310 = vst [vmem:[%s270 + $0x98] sm:%s262] %v309
                %v311 = vld [vmem:[%s269 + $0x140] sm:%s262]
                %312 = vst [vmem:[%s270 + $0xa0] sm:%s262] %v311
                %v313 = vld [vmem:[%s269 + $0x150] sm:%s262]
                %314 = vst [vmem:[%s270 + $0xa8] sm:%s262] %v313
                %v315 = vld [vmem:[%s269 + $0x160] sm:%s262]
                %316 = vst [vmem:[%s270 + $0xb0] sm:%s262] %v315
                %v317 = vld [vmem:[%s269 + $0x170] sm:%s262]
                %318 = vst [vmem:[%s270 + $0xb8] sm:%s262] %v317
                %v319 = vld [vmem:[%s269 + $0x180] sm:%s262]
                %320 = vst [vmem:[%s270 + $0xc0] sm:%s262] %v319
                %v321 = vld [vmem:[%s269 + $0x190] sm:%s262]
                %322 = vst [vmem:[%s270 + $0xc8] sm:%s262] %v321
                %v323 = vld [vmem:[%s269 + $0x1a0] sm:%s262]
                %324 = vst [vmem:[%s270 + $0xd0] sm:%s262] %v323
                %v325 = vld [vmem:[%s269 + $0x1b0] sm:%s262]
                %326 = vst [vmem:[%s270 + $0xd8] sm:%s262] %v325
                %v327 = vld [vmem:[%s269 + $0x1c0] sm:%s262]
                %328 = vst [vmem:[%s270 + $0xe0] sm:%s262] %v327
                %v329 = vld [vmem:[%s269 + $0x1d0] sm:%s262]
                %330 = vst [vmem:[%s270 + $0xe8] sm:%s262] %v329
                %v331 = vld [vmem:[%s269 + $0x1e0] sm:%s262]
                %332 = vst [vmem:[%s270 + $0xf0] sm:%s262] %v331
                %v333 = vld [vmem:[%s269 + $0x1f0] sm:%s262]
                %334 = vst [vmem:[%s270 + $0xf8] sm:%s262] %v333
              $region75: #{cnn_forward.13} parent=69 // loop_footer
                %s268 = sadd.s32 1, %s264
              $region76: #{cnn_forward.13} parent=69 // loop_footer_branch
                %263 = sbr.rel target = $region72
              $region77: #{cnn_forward.13} parent=69 // loop_exit
                _
            $region70: #{cnn_forward.13} parent=61 // pred_fallthru
              _
          $region62: #{cnn_forward.13} parent=57 // pred_fallthru
            _
          %411 = vnop
        $region58: #{cnn_forward.13} parent=15 // pred_fallthru
          _
        // Predicated region
        $region93: #{cnn_forward.13} parent=15 // pred_check
          %p412 = pneg %p105
        $region94: #{cnn_forward.13} parent=15 // pred_check_branch
          %414 = sbr.rel (%p412) target = $region96
        $region95: #{cnn_forward.13} parent=15 // pred_region
          %s415 = smul.u32 2, %s18
          %p416 = scmp.lt.s32.totalorder %s415, 3
          %s417 = scalar_select %p416, %s415, 3
          %s418 = scalar_lea.vmem %s2, %s417
          %s419 = smul.u32 2, %s18
        $region96: #{cnn_forward.13} parent=15 // pred_fallthru
          _
        // Predicated region
        $region97: #{cnn_forward.13} parent=15 // pred_check
          %p420 = pneg %p131
        $region98: #{cnn_forward.13} parent=15 // pred_check_branch
          %422 = sbr.rel (%p420) target = $region100
        $region99: #{cnn_forward.13} parent=15 // pred_region
          %s423 = smul.u32 2, %s18
          %p424 = scmp.lt.s32.totalorder %s423, 3
          %s425 = scalar_select %p424, %s423, 3
          %s426 = scalar_lea.vmem %s3, %s425
          %s427 = smul.u32 2, %s18
        $region100: #{cnn_forward.13} parent=15 // pred_fallthru
          _
      $region16: #{cnn_forward.13} parent=5 // pred_fallthru
        _
      %p428 = scmp.le.s32.totalorder 1, %s10
      %p429 = scmp.lt.s32.totalorder %s10, 51
      %p430 = pnand %p428, %p429
      %p431 = pneg %p430
      // Predicated region
      $region101: #{cnn_forward.13} parent=5 // pred_check
        _
      $region102: #{cnn_forward.13} parent=5 // pred_check_branch
        %433 = sbr.rel (%p430) target = $region104
      $region103: #{cnn_forward.13} parent=5 // pred_region
        %s434 = ssub.s32 %s10, 1
        %s435 = sand.u32 %s44, 1
        %s436 = sand.u32 %s44, 1
        %s437 = smul.addr %s436, 32
        %s438 = scalar_lea.vmem [#allocation3], %s437
        // Predicated region
        $region105: #{cnn_forward.13} parent=103 // pred_check
          %p439 = pneg %p57
        $region106: #{cnn_forward.13} parent=103 // pred_check_branch
          %441 = sbr.rel (%p439) target = $region108
        $region107: #{cnn_forward.13} parent=103 // pred_region
          _
        $region108: #{cnn_forward.13} parent=103 // pred_fallthru
          _
        %s442 = sand.u32 %s72, 1
        %s443 = sand.u32 %s72, 1
        %s444 = smul.addr %s443, 256
        %s445 = scalar_lea.vmem [#allocation4], %s444
        // Predicated region
        $region109: #{cnn_forward.13} parent=103 // pred_check
          %p446 = pneg %p85
        $region110: #{cnn_forward.13} parent=103 // pred_check_branch
          %448 = sbr.rel (%p446) target = $region112
        $region111: #{cnn_forward.13} parent=103 // pred_region
          _
        $region112: #{cnn_forward.13} parent=103 // pred_fallthru
          _
        %s449 = sand.u32 %s44, 1
        %s450 = sand.u32 %s44, 1
        %s451 = smul.addr %s450, 32
        %s452 = scalar_lea.vmem [#allocation3], %s451
        %p453 = pneg %p57
        %p454 = pneg %p54
        %s455 = sand.u32 %s72, 1
        %s456 = sand.u32 %s72, 1
        %s457 = smul.addr %s456, 256
        %s458 = scalar_lea.vmem [#allocation4], %s457
        %p459 = pneg %p85
        %p460 = pneg %p82
        %s461 = smul.u32 2, %s21
        %p462 = scmp.lt.s32.totalorder %s461, 3
        %s463 = scalar_select %p462, %s461, 3
        %s464 = scalar_lea.vmem %s2, %s463
        %p465 = pneg %p111
        %p466 = pneg %p108
        %s467 = smul.u32 2, %s21
        %p468 = scmp.lt.s32.totalorder %s467, 3
        %s469 = scalar_select %p468, %s467, 3
        %s470 = scalar_lea.vmem %s3, %s469
        %p471 = pneg %p137
        %p472 = pneg %p134
        %p473 = pneg %p165
        %p474 = pneg %p162
        %s475 = sand.u32 %s152, 1
        %s476 = sand.u32 %s152, 1
        %s477 = smul.addr %s476, 64
        %s478 = scalar_lea.vmem [#allocation5], %s477
        %s479 = smul.u32 4, %s20
        %s480 = smul.u32 2, %s22
        %s481 = smul.u32 32, %s22
        %s482 = smul.u32 2, %s21
        %s483 = smul.u32 2, %s21
        %p484 = scmp.lt.s32.totalorder %s483, 3
        %s485 = scalar_select %p484, %s483, 3
        %s486 = scalar_lea.vmem %s2, %s485
        %s487 = smul.u32 2, %s21
        %s488 = smul.u32 2, %s21
        %p489 = scmp.lt.s32.totalorder %s488, 3
        %s490 = scalar_select %p489, %s488, 3
        %s491 = scalar_lea.vmem %s3, %s490
        %s492 = smul.u32 2, %s21
        %s493 = smul.u32 4, %s20
        %s494 = smul.u32 2, %s21
        %p495 = scmp.eq.s32.totalorder %s22, 0
        // Predicated region
        $region113: #{cnn_forward.13} parent=103 // pred_check
          %p496 = pneg %p495
        $region114: #{cnn_forward.13} parent=103 // pred_check_branch
          %498 = sbr.rel (%p496) target = $region116
        $region115: #{cnn_forward.13} parent=103 // pred_region
          %499 = vst [vmem:[#allocation2] sm:$0xff] 0.0
          %500 = vst [vmem:[#allocation2 + $0x8] sm:$0xff] 0.0
          %501 = vst [vmem:[#allocation2 + $0x10] sm:$0xff] 0.0
          %502 = vst [vmem:[#allocation2 + $0x18] sm:$0xff] 0.0
          %503 = vst [vmem:[#allocation2 + $0x20] sm:$0xff] 0.0
          %504 = vst [vmem:[#allocation2 + $0x28] sm:$0xff] 0.0
          %505 = vst [vmem:[#allocation2 + $0x30] sm:$0xff] 0.0
          %506 = vst [vmem:[#allocation2 + $0x38] sm:$0xff] 0.0
        $region116: #{cnn_forward.13} parent=103 // pred_fallthru
          _
        %v507 = vld [vmem:[#allocation2] sm:$0xff]
        %v508 = vld [vmem:[#allocation2 + $0x8] sm:$0xff]
        %v509 = vld [vmem:[#allocation2 + $0x10] sm:$0xff]
        %v510 = vld [vmem:[#allocation2 + $0x18] sm:$0xff]
        %v511 = vld [vmem:[#allocation2 + $0x20] sm:$0xff]
        %v512 = vld [vmem:[#allocation2 + $0x28] sm:$0xff]
        %v513 = vld [vmem:[#allocation2 + $0x30] sm:$0xff]
        %v514 = vld [vmem:[#allocation2 + $0x38] sm:$0xff]
        %v515 = vld [vmem:[%s438] sm:$0xff]
        %v516 = vld [vmem:[%s438 + $0x8] sm:$0xff]
        %v517 = vld [vmem:[%s438 + $0x10] sm:$0xff]
        %v518 = vld [vmem:[%s438 + $0x18] sm:$0xff]
        %v519 = vld [vmem:[%s445] sm:$0xff]
        %v520 = vld [vmem:[%s445 + $0x8] sm:$0xff]
        %v521 = vld [vmem:[%s445 + $0x10] sm:$0xff]
        %v522 = vld [vmem:[%s445 + $0x18] sm:$0xff]
        %v523 = vld [vmem:[%s445 + $0x20] sm:$0xff]
        %v524 = vld [vmem:[%s445 + $0x28] sm:$0xff]
        %v525 = vld [vmem:[%s445 + $0x30] sm:$0xff]
        %v526 = vld [vmem:[%s445 + $0x38] sm:$0xff]
        %v527 = vld [vmem:[%s445 + $0x40] sm:$0xff]
        %v528 = vld [vmem:[%s445 + $0x48] sm:$0xff]
        %v529 = vld [vmem:[%s445 + $0x50] sm:$0xff]
        %v530 = vld [vmem:[%s445 + $0x58] sm:$0xff]
        %v531 = vld [vmem:[%s445 + $0x60] sm:$0xff]
        %v532 = vld [vmem:[%s445 + $0x68] sm:$0xff]
        %v533 = vld [vmem:[%s445 + $0x70] sm:$0xff]
        %v534 = vld [vmem:[%s445 + $0x78] sm:$0xff]
        %v535 = vld [vmem:[%s445 + $0x80] sm:$0xff]
        %v536 = vld [vmem:[%s445 + $0x88] sm:$0xff]
        %v537 = vld [vmem:[%s445 + $0x90] sm:$0xff]
        %v538 = vld [vmem:[%s445 + $0x98] sm:$0xff]
        %v539 = vld [vmem:[%s445 + $0xa0] sm:$0xff]
        %v540 = vld [vmem:[%s445 + $0xa8] sm:$0xff]
        %v541 = vld [vmem:[%s445 + $0xb0] sm:$0xff]
        %v542 = vld [vmem:[%s445 + $0xb8] sm:$0xff]
        %v543 = vld [vmem:[%s445 + $0xc0] sm:$0xff]
        %v544 = vld [vmem:[%s445 + $0xc8] sm:$0xff]
        %v545 = vld [vmem:[%s445 + $0xd0] sm:$0xff]
        %v546 = vld [vmem:[%s445 + $0xd8] sm:$0xff]
        %v547 = vld [vmem:[%s445 + $0xe0] sm:$0xff]
        %v548 = vld [vmem:[%s445 + $0xe8] sm:$0xff]
        %v549 = vld [vmem:[%s445 + $0xf0] sm:$0xff]
        %v550 = vld [vmem:[%s445 + $0xf8] sm:$0xff]
        %v555 = vunpack.c.l.b16 %v515
        %v556 = vunpack.c.h.b16 %v515
        %v557 = vunpack.c.l.b16 %v516
        %v558 = vunpack.c.h.b16 %v516
        %v559 = vunpack.c.l.b16 %v517
        %v560 = vunpack.c.h.b16 %v517
        %v561 = vunpack.c.l.b16 %v518
        %v562 = vunpack.c.h.b16 %v518
        %v563 = vpack.c.b16 %v557, %v555
        %v564 = vpack.c.b16 %v558, %v556
        %v565 = vpack.c.b16 %v561, %v559
        %v566 = vpack.c.b16 %v562, %v560
        %v603 = vunpack.c.l.b16 %v519
        %v604 = vunpack.c.h.b16 %v519
        %v605 = vunpack.c.l.b16 %v520
        %v606 = vunpack.c.h.b16 %v520
        %v607 = vunpack.c.l.b16 %v521
        %v608 = vunpack.c.h.b16 %v521
        %v609 = vunpack.c.l.b16 %v522
        %v610 = vunpack.c.h.b16 %v522
        %v611 = vunpack.c.l.b16 %v523
        %v612 = vunpack.c.h.b16 %v523
        %v613 = vunpack.c.l.b16 %v524
        %v614 = vunpack.c.h.b16 %v524
        %v615 = vunpack.c.l.b16 %v525
        %v616 = vunpack.c.h.b16 %v525
        %v617 = vunpack.c.l.b16 %v526
        %v618 = vunpack.c.h.b16 %v526
        %v619 = vunpack.c.l.b16 %v527
        %v620 = vunpack.c.h.b16 %v527
        %v621 = vunpack.c.l.b16 %v528
        %v622 = vunpack.c.h.b16 %v528
        %v623 = vunpack.c.l.b16 %v529
        %v624 = vunpack.c.h.b16 %v529
        %v625 = vunpack.c.l.b16 %v530
        %v626 = vunpack.c.h.b16 %v530
        %v627 = vunpack.c.l.b16 %v531
        %v628 = vunpack.c.h.b16 %v531
        %v629 = vunpack.c.l.b16 %v532
        %v630 = vunpack.c.h.b16 %v532
        %v631 = vunpack.c.l.b16 %v533
        %v632 = vunpack.c.h.b16 %v533
        %v633 = vunpack.c.l.b16 %v534
        %v634 = vunpack.c.h.b16 %v534
        %v635 = vunpack.c.l.b16 %v535
        %v636 = vunpack.c.h.b16 %v535
        %v637 = vunpack.c.l.b16 %v536
        %v638 = vunpack.c.h.b16 %v536
        %v639 = vunpack.c.l.b16 %v537
        %v640 = vunpack.c.h.b16 %v537
        %v641 = vunpack.c.l.b16 %v538
        %v642 = vunpack.c.h.b16 %v538
        %v643 = vunpack.c.l.b16 %v539
        %v644 = vunpack.c.h.b16 %v539
        %v645 = vunpack.c.l.b16 %v540
        %v646 = vunpack.c.h.b16 %v540
        %v647 = vunpack.c.l.b16 %v541
        %v648 = vunpack.c.h.b16 %v541
        %v649 = vunpack.c.l.b16 %v542
        %v650 = vunpack.c.h.b16 %v542
        %v651 = vunpack.c.l.b16 %v543
        %v652 = vunpack.c.h.b16 %v543
        %v653 = vunpack.c.l.b16 %v544
        %v654 = vunpack.c.h.b16 %v544
        %v655 = vunpack.c.l.b16 %v545
        %v656 = vunpack.c.h.b16 %v545
        %v657 = vunpack.c.l.b16 %v546
        %v658 = vunpack.c.h.b16 %v546
        %v659 = vunpack.c.l.b16 %v547
        %v660 = vunpack.c.h.b16 %v547
        %v661 = vunpack.c.l.b16 %v548
        %v662 = vunpack.c.h.b16 %v548
        %v663 = vunpack.c.l.b16 %v549
        %v664 = vunpack.c.h.b16 %v549
        %v665 = vunpack.c.l.b16 %v550
        %v666 = vunpack.c.h.b16 %v550
        %v667 = vpack.c.b16 %v605, %v603
        %v668 = vpack.c.b16 %v606, %v604
        %v669 = vpack.c.b16 %v609, %v607
        %v670 = vpack.c.b16 %v610, %v608
        %v671 = vpack.c.b16 %v613, %v611
        %v672 = vpack.c.b16 %v614, %v612
        %v673 = vpack.c.b16 %v617, %v615
        %v674 = vpack.c.b16 %v618, %v616
        %v675 = vpack.c.b16 %v621, %v619
        %v676 = vpack.c.b16 %v622, %v620
        %v677 = vpack.c.b16 %v625, %v623
        %v678 = vpack.c.b16 %v626, %v624
        %v679 = vpack.c.b16 %v629, %v627
        %v680 = vpack.c.b16 %v630, %v628
        %v681 = vpack.c.b16 %v633, %v631
        %v682 = vpack.c.b16 %v634, %v632
        %v683 = vpack.c.b16 %v637, %v635
        %v684 = vpack.c.b16 %v638, %v636
        %v685 = vpack.c.b16 %v641, %v639
        %v686 = vpack.c.b16 %v642, %v640
        %v687 = vpack.c.b16 %v645, %v643
        %v688 = vpack.c.b16 %v646, %v644
        %v689 = vpack.c.b16 %v649, %v647
        %v690 = vpack.c.b16 %v650, %v648
        %v691 = vpack.c.b16 %v653, %v651
        %v692 = vpack.c.b16 %v654, %v652
        %v693 = vpack.c.b16 %v657, %v655
        %v694 = vpack.c.b16 %v658, %v656
        %v695 = vpack.c.b16 %v661, %v659
        %v696 = vpack.c.b16 %v662, %v660
        %v697 = vpack.c.b16 %v665, %v663
        %v698 = vpack.c.b16 %v666, %v664
        %731 = vmatpush.bf16.msra.mxu0 %v681
        %732 = vmatpush.bf16.msra.mxu0 %v679
        %733 = vmatpush.bf16.msra.mxu0 %v677
        %734 = vmatpush.bf16.msra.mxu0 %v675
        %735 = vmatpush.bf16.msra.mxu0 %v673
        %736 = vmatpush.bf16.msra.mxu0 %v671
        %737 = vmatpush.bf16.msra.mxu0 %v669
        %738 = vmatpush.bf16.msra.mxu0 %v667
        %739 = vmatmul.bf16.gmra.mxu0 %v563
        %v740 = vpop.f32.mrf.mxu0
        %v741 = vadd.f32 0.0, %v740
        %v742 = vpop.f32.mrf.mxu0
        %v743 = vadd.f32 0.0, %v742
        %744 = vmatmul.bf16.gmra.mxu0 %v565
        %v745 = vpop.f32.mrf.mxu0
        %v746 = vadd.f32 0.0, %v745
        %v747 = vpop.f32.mrf.mxu0
        %v748 = vadd.f32 0.0, %v747
        %749 = vdwg.mxu0
        %750 = vmatpush.bf16.msra.mxu0 %v697
        %751 = vmatpush.bf16.msra.mxu0 %v695
        %752 = vmatpush.bf16.msra.mxu0 %v693
        %753 = vmatpush.bf16.msra.mxu0 %v691
        %754 = vmatpush.bf16.msra.mxu0 %v689
        %755 = vmatpush.bf16.msra.mxu0 %v687
        %756 = vmatpush.bf16.msra.mxu0 %v685
        %757 = vmatpush.bf16.msra.mxu0 %v683
        %758 = vmatmul.bf16.gmra.mxu0 %v564
        %v759 = vpop.f32.mrf.mxu0
        %v760 = vadd.f32 %v741, %v759
        %v761 = vpop.f32.mrf.mxu0
        %v762 = vadd.f32 %v743, %v761
        %763 = vmatmul.bf16.gmra.mxu0 %v566
        %v764 = vpop.f32.mrf.mxu0
        %v765 = vadd.f32 %v746, %v764
        %v766 = vpop.f32.mrf.mxu0
        %v767 = vadd.f32 %v748, %v766
        %768 = vdwg.mxu0
        %769 = vmatpush.bf16.msra.mxu0 %v682
        %770 = vmatpush.bf16.msra.mxu0 %v680
        %771 = vmatpush.bf16.msra.mxu0 %v678
        %772 = vmatpush.bf16.msra.mxu0 %v676
        %773 = vmatpush.bf16.msra.mxu0 %v674
        %774 = vmatpush.bf16.msra.mxu0 %v672
        %775 = vmatpush.bf16.msra.mxu0 %v670
        %776 = vmatpush.bf16.msra.mxu0 %v668
        %777 = vmatmul.bf16.gmra.mxu0 %v563
        %v778 = vpop.f32.mrf.mxu0
        %v779 = vadd.f32 0.0, %v778
        %v780 = vpop.f32.mrf.mxu0
        %v781 = vadd.f32 0.0, %v780
        %782 = vmatmul.bf16.gmra.mxu0 %v565
        %v783 = vpop.f32.mrf.mxu0
        %v784 = vadd.f32 0.0, %v783
        %v785 = vpop.f32.mrf.mxu0
        %v786 = vadd.f32 0.0, %v785
        %787 = vdwg.mxu0
        %788 = vmatpush.bf16.msra.mxu0 %v698
        %789 = vmatpush.bf16.msra.mxu0 %v696
        %790 = vmatpush.bf16.msra.mxu0 %v694
        %791 = vmatpush.bf16.msra.mxu0 %v692
        %792 = vmatpush.bf16.msra.mxu0 %v690
        %793 = vmatpush.bf16.msra.mxu0 %v688
        %794 = vmatpush.bf16.msra.mxu0 %v686
        %795 = vmatpush.bf16.msra.mxu0 %v684
        %796 = vmatmul.bf16.gmra.mxu0 %v564
        %v797 = vpop.f32.mrf.mxu0
        %v798 = vadd.f32 %v779, %v797
        %v799 = vpop.f32.mrf.mxu0
        %v800 = vadd.f32 %v781, %v799
        %801 = vmatmul.bf16.gmra.mxu0 %v566
        %v802 = vpop.f32.mrf.mxu0
        %v803 = vadd.f32 %v784, %v802
        %v804 = vpop.f32.mrf.mxu0
        %v805 = vadd.f32 %v786, %v804
        %806 = vdwg.mxu0
        %v807 = vadd.f32 %v507, %v760
        %v808 = vadd.f32 %v508, %v798
        %v809 = vadd.f32 %v509, %v762
        %v810 = vadd.f32 %v510, %v800
        %v811 = vadd.f32 %v511, %v765
        %v812 = vadd.f32 %v512, %v803
        %v813 = vadd.f32 %v513, %v767
        %v814 = vadd.f32 %v514, %v805
        %815 = vst [vmem:[#allocation2] sm:$0xff] %v807
        %816 = vst [vmem:[#allocation2 + $0x8] sm:$0xff] %v808
        %817 = vst [vmem:[#allocation2 + $0x10] sm:$0xff] %v809
        %818 = vst [vmem:[#allocation2 + $0x18] sm:$0xff] %v810
        %819 = vst [vmem:[#allocation2 + $0x20] sm:$0xff] %v811
        %820 = vst [vmem:[#allocation2 + $0x28] sm:$0xff] %v812
        %821 = vst [vmem:[#allocation2 + $0x30] sm:$0xff] %v813
        %822 = vst [vmem:[#allocation2 + $0x38] sm:$0xff] %v814
        %p823 = scmp.eq.s32.totalorder %s22, 24
        // Predicated region
        $region117: #{cnn_forward.13} parent=103 // pred_check
          %p824 = pneg %p823
        $region118: #{cnn_forward.13} parent=103 // pred_check_branch
          %826 = sbr.rel (%p824) target = $region120
        $region119: #{cnn_forward.13} parent=103 // pred_region
          %v827 = vld [vmem:[#allocation2] sm:$0xff]
          %v828 = vld [vmem:[#allocation2 + $0x8] sm:$0xff]
          %v829 = vld [vmem:[#allocation2 + $0x10] sm:$0xff]
          %v830 = vld [vmem:[#allocation2 + $0x18] sm:$0xff]
          %v831 = vld [vmem:[#allocation2 + $0x20] sm:$0xff]
          %v832 = vld [vmem:[#allocation2 + $0x28] sm:$0xff]
          %v833 = vld [vmem:[#allocation2 + $0x30] sm:$0xff]
          %v834 = vld [vmem:[#allocation2 + $0x38] sm:$0xff]
          %v835 = vld [vmem:[%s486] sm:$0x3]
          %v837 = vperm.slane %v835, 0
          %v838 = vperm.slane %v835, 1
          %v841 = vmul.f32 %v827, %v837
          %v842 = vmul.f32 %v828, %v838
          %v843 = vmul.f32 %v829, %v837
          %v844 = vmul.f32 %v830, %v838
          %v845 = vmul.f32 %v831, %v837
          %v846 = vmul.f32 %v832, %v838
          %v847 = vmul.f32 %v833, %v837
          %v848 = vmul.f32 %v834, %v838
          %v849 = vld [vmem:[%s491] sm:$0x3]
          %v851 = vperm.slane %v849, 0
          %v852 = vperm.slane %v849, 1
          %v855 = vadd.f32 %v841, %v851
          %v856 = vadd.f32 %v842, %v852
          %v857 = vadd.f32 %v843, %v851
          %v858 = vadd.f32 %v844, %v852
          %v859 = vadd.f32 %v845, %v851
          %v860 = vadd.f32 %v846, %v852
          %v861 = vadd.f32 %v847, %v851
          %v862 = vadd.f32 %v848, %v852
          %v863 = vmax.f32 %v855, 0.0
          %v864 = vmax.f32 %v856, 0.0
          %v865 = vmax.f32 %v857, 0.0
          %v866 = vmax.f32 %v858, 0.0
          %v867 = vmax.f32 %v859, 0.0
          %v868 = vmax.f32 %v860, 0.0
          %v869 = vmax.f32 %v861, 0.0
          %v870 = vmax.f32 %v862, 0.0
          %871 = vst [vmem:[%s478] sm:$0xff] %v863
          %872 = vst [vmem:[%s478 + $0x8] sm:$0xff] %v864
          %873 = vst [vmem:[%s478 + $0x10] sm:$0xff] %v865
          %874 = vst [vmem:[%s478 + $0x18] sm:$0xff] %v866
          %875 = vst [vmem:[%s478 + $0x20] sm:$0xff] %v867
          %876 = vst [vmem:[%s478 + $0x28] sm:$0xff] %v868
          %877 = vst [vmem:[%s478 + $0x30] sm:$0xff] %v869
          %878 = vst [vmem:[%s478 + $0x38] sm:$0xff] %v870
        $region120: #{cnn_forward.13} parent=103 // pred_fallthru
          _
        %s879 = sand.u32 %s152, 1
        %s880 = sand.u32 %s152, 1
        %s881 = smul.addr %s880, 64
        %s882 = scalar_lea.vmem [#allocation5], %s881
        // Predicated region
        $region121: #{cnn_forward.13} parent=103 // pred_check
          %p883 = pneg %p162
        $region122: #{cnn_forward.13} parent=103 // pred_check_branch
          %885 = sbr.rel (%p883) target = $region124
        $region123: #{cnn_forward.13} parent=103 // pred_region
          %s886 = smul.u32 4, %s20
          %s887 = smul.u32 2, %s21
          %s888 = smul.addr %s886, 4
          %s889 = sadd.s32 %s887, %s888
          %s890 = smul.addr %s889, 8
          %s891 = scalar_lea.vmem %s4, %s890
          // Predicated region
          $region125: #{cnn_forward.13} parent=123 // pred_check
            _
          $region126: #{cnn_forward.13} parent=123 // pred_check_branch
            %893 = sbr.rel (0) target = $region128
          $region127: #{cnn_forward.13} parent=123 // pred_region
            // Predicated region
            $region129: #{cnn_forward.13} parent=127 // pred_check
              _
            $region130: #{cnn_forward.13} parent=127 // pred_check_branch
              %895 = sbr.rel (0) target = $region132
            $region131: #{cnn_forward.13} parent=127 // pred_region
              loop: start=0, step=1, limit=1
              $region133: #{cnn_forward.13} parent=131 // loop_pre_header
                _
              $region134: #{cnn_forward.13} parent=131 // loop_header
                %s897 = sphi 0, %s901
                %p898 = scmp.ge.s32.totalorder %s897, 1
                %s902 = sphi %s882, %s882
                %s903 = sphi %s891, %s891
              $region135: #{cnn_forward.13} parent=131 // loop_header_branch
                %900 = sbr.rel (%p898) target = $region139
              $region136: #{cnn_forward.13} parent=131 // loop_body
                %v904 = vld [vmem:[%s902] sm:$0xff]
                %905 = vst [vmem:[%s903] sm:$0xff] %v904
                %v906 = vld [vmem:[%s902 + $0x8] sm:$0xff]
                %907 = vst [vmem:[%s903 + $0x8] sm:$0xff] %v906
                %v908 = vld [vmem:[%s902 + $0x10] sm:$0xff]
                %909 = vst [vmem:[%s903 + $0x20] sm:$0xff] %v908
                %v910 = vld [vmem:[%s902 + $0x18] sm:$0xff]
                %911 = vst [vmem:[%s903 + $0x28] sm:$0xff] %v910
                %v912 = vld [vmem:[%s902 + $0x20] sm:$0xff]
                %913 = vst [vmem:[%s903 + $0x40] sm:$0xff] %v912
                %v914 = vld [vmem:[%s902 + $0x28] sm:$0xff]
                %915 = vst [vmem:[%s903 + $0x48] sm:$0xff] %v914
                %v916 = vld [vmem:[%s902 + $0x30] sm:$0xff]
                %917 = vst [vmem:[%s903 + $0x60] sm:$0xff] %v916
                %v918 = vld [vmem:[%s902 + $0x38] sm:$0xff]
                %919 = vst [vmem:[%s903 + $0x68] sm:$0xff] %v918
              $region137: #{cnn_forward.13} parent=131 // loop_footer
                %s901 = sadd.s32 1, %s897
              $region138: #{cnn_forward.13} parent=131 // loop_footer_branch
                %896 = sbr.rel target = $region134
              $region139: #{cnn_forward.13} parent=131 // loop_exit
                _
            $region132: #{cnn_forward.13} parent=127 // pred_fallthru
              _
            // Predicated region
            $region140: #{cnn_forward.13} parent=127 // pred_check
              _
            $region141: #{cnn_forward.13} parent=127 // pred_check_branch
              %921 = sbr.rel target = $region143
            $region142: #{cnn_forward.13} parent=127 // pred_region
              _
            $region143: #{cnn_forward.13} parent=127 // pred_fallthru
              _
          $region128: #{cnn_forward.13} parent=123 // pred_fallthru
            _
          %922 = vnop
        $region124: #{cnn_forward.13} parent=103 // pred_fallthru
          _
      $region104: #{cnn_forward.13} parent=5 // pred_fallthru
        _
      %p923 = scmp.le.s32.totalorder 2, %s10
      // Predicated region
      $region144: #{cnn_forward.13} parent=5 // pred_check
        %p924 = pneg %p923
      $region145: #{cnn_forward.13} parent=5 // pred_check_branch
        %926 = sbr.rel (%p924) target = $region147
      $region146: #{cnn_forward.13} parent=5 // pred_region
        %s927 = ssub.s32 %s10, 2
        // Predicated region
        $region148: #{cnn_forward.13} parent=146 // pred_check
          %p928 = pneg %p168
        $region149: #{cnn_forward.13} parent=146 // pred_check_branch
          %930 = sbr.rel (%p928) target = $region151
        $region150: #{cnn_forward.13} parent=146 // pred_region
          %s931 = sand.u32 %s153, 1
          %s932 = sand.u32 %s153, 1
          %s933 = smul.addr %s932, 64
          %s934 = scalar_lea.vmem [#allocation5], %s933
        $region151: #{cnn_forward.13} parent=146 // pred_fallthru
          _
      $region147: #{cnn_forward.13} parent=5 // pred_fallthru
        _
    $region6: #{cnn_forward.13} parent=1 // loop_footer
      %s14 = sadd.s32 1, %s10
    $region7: #{cnn_forward.13} parent=1 // loop_footer_branch
      %9 = sbr.rel target = $region3
    $region8: #{cnn_forward.13} parent=1 // loop_exit
      _

// kernel: cnn_forward.14
$region0: #{cnn_forward.14}
  #allocation0 [shape = 'u32[]', space=smem, size = 0x4, offset = 0x4, fixed_abs, tag = 'smem constant byte address 0x4 - core index']
  #allocation1 [shape = 'u32[72,128]{1,0:T(1,128)}', space=vmem, size = 0x9000, scoped, tag = 'internal scratch']
  #allocation2 [shape = 'f32[16,256]{1,0:T(8,128)}', space=vmem, size = 0x4000, scoped, tag = 'scratch operand']
  %s0 = inlined_call_operand.vmem [shape: bf16[16,6144], index: 0, kind: input, shape index: {}]
  %s1 = inlined_call_operand.vmem [shape: bf16[6144,512], index: 1, kind: input, shape index: {}]
  %s2 = inlined_call_operand.vmem [shape: f32[1,512], index: 2, kind: input, shape index: {}]
  %s3 = inlined_call_operand.vmem [shape: f32[16,512], index: 3, kind: output, shape index: {}]
  %s4 = sld [smem:[#allocation0]]
  $region133: #{cnn_forward.14} parent=0
    _
  %s6 = ssub.s32 1, %s4
  %s7 = scalar_select 0, %s6, %s4
  $region1: #{cnn_forward.14} parent=0
    #allocation3 [shape = 'u8[32768]{0}', space=vmem, size = 0x8000, scoped, tag = 'input window, operand 0']
    #allocation4 [shape = 'u8[524288]{0}', space=vmem, size = 0x80000, scoped, tag = 'input window, operand 1']
    #allocation5 [shape = 'u8[32768]{0}', space=vmem, size = 0x8000, scoped, tag = 'output window, operand 0']
    loop: start=0, step=1, limit=26
    $region2: #{cnn_forward.14} parent=1 // loop_pre_header
      _
    $region3: #{cnn_forward.14} parent=1 // loop_header
      %s9 = sphi 0, %s13
      %p10 = scmp.ge.s32.totalorder %s9, 26
      %s16 = sphi 0, %s35
      %s17 = sphi 0, %s31
      %s18 = sphi 0, %s27
      %s19 = sphi 0, %s16
      %s20 = sphi 0, %s17
      %s21 = sphi 0, %s18
      %s22 = sphi 0, %s19
      %s23 = sphi 0, %s20
      %s24 = sphi 0, %s21
      %s40 = sphi 0, %s42
      %s43 = sphi 0, %s40
      %s44 = sphi 0, %s43
      %s60 = sphi 0, %s44
      %s68 = sphi 0, %s70
      %s71 = sphi 0, %s68
      %s72 = sphi 0, %s71
      %s88 = sphi 0, %s72
      %s94 = sphi 0, %s96
      %s97 = sphi 0, %s94
      %s98 = sphi 0, %s97
      %s114 = sphi 0, %s98
      %s122 = sphi 0, %s124
      %s125 = sphi 0, %s122
      %s126 = sphi 0, %s125
      %s142 = sphi 0, %s126
    $region4: #{cnn_forward.14} parent=1 // loop_header_branch
      %12 = sbr.rel (%p10) target = $region8
    $region5: #{cnn_forward.14} parent=1 // loop_body
      %s14 = ssub.s32 %s9, 1
      %s15 = ssub.s32 %s9, 2
      %s25 = sadd.s32 1, %s18
      %p26 = scmp.ge.s32.totalorder %s25, 12
      %s27 = scalar_select %p26, 0, %s25
      %s28 = sadd.s32 1, %s17
      %s29 = scalar_select %p26, %s28, %s17
      %p30 = scmp.ge.s32.totalorder %s29, 2
      %s31 = scalar_select %p30, 0, %s29
      %s32 = sadd.s32 1, %s16
      %s33 = scalar_select %p30, %s32, %s16
      %p34 = scmp.ge.s32.totalorder %s33, 1
      %s35 = scalar_select %p34, 0, %s33
      %s36 = ssub.s32 %s16, %s35
      %s37 = ssub.s32 %s18, %s27
      %s38 = sor.u32 %s36, %s37
      %p39 = scmp.eq.s32.totalorder %s38, 0
      %s41 = sadd.s32 %s40, 1
      %s42 = scalar_select %p39, %s40, %s41
      %p45 = pneg %p39
      %p46 = scmp.eq.s32.totalorder %s9, 23
      %p47 = por %p45, %p46
      %p48 = scmp.ne.s32.totalorder %s40, %s43
      %p49 = scmp.eq.s32.totalorder %s9, 0
      %p50 = por %p48, %p49
      %p51 = scmp.ne.s32.totalorder %s40, %s43
      %p52 = scmp.eq.s32.totalorder %s14, 23
      %p53 = por %p51, %p52
      %p54 = scmp.ne.s32.totalorder %s43, %s44
      %p55 = scmp.eq.s32.totalorder %s14, 0
      %p56 = por %p54, %p55
      %p57 = scmp.ne.s32.totalorder %s43, %s44
      %p58 = scmp.eq.s32.totalorder %s15, 23
      %p59 = por %p57, %p58
      %p61 = scmp.ne.s32.totalorder %s44, %s60
      %p62 = scmp.eq.s32.totalorder %s15, 0
      %p63 = por %p61, %p62
      %s64 = ssub.s32 %s18, %s27
      %s65 = ssub.s32 %s17, %s31
      %s66 = sor.u32 %s64, %s65
      %p67 = scmp.eq.s32.totalorder %s66, 0
      %s69 = sadd.s32 %s68, 1
      %s70 = scalar_select %p67, %s68, %s69
      %p73 = pneg %p67
      %p74 = scmp.eq.s32.totalorder %s9, 23
      %p75 = por %p73, %p74
      %p76 = scmp.ne.s32.totalorder %s68, %s71
      %p77 = scmp.eq.s32.totalorder %s9, 0
      %p78 = por %p76, %p77
      %p79 = scmp.ne.s32.totalorder %s68, %s71
      %p80 = scmp.eq.s32.totalorder %s14, 23
      %p81 = por %p79, %p80
      %p82 = scmp.ne.s32.totalorder %s71, %s72
      %p83 = scmp.eq.s32.totalorder %s14, 0
      %p84 = por %p82, %p83
      %p85 = scmp.ne.s32.totalorder %s71, %s72
      %p86 = scmp.eq.s32.totalorder %s15, 23
      %p87 = por %p85, %p86
      %p89 = scmp.ne.s32.totalorder %s72, %s88
      %p90 = scmp.eq.s32.totalorder %s15, 0
      %p91 = por %p89, %p90
      %s92 = ssub.s32 %s17, %s31
      %p93 = scmp.eq.s32.totalorder %s92, 0
      %s95 = sadd.s32 %s94, 1
      %s96 = scalar_select %p93, %s94, %s95
      %p99 = pneg %p93
      %p100 = scmp.eq.s32.totalorder %s9, 23
      %p101 = por %p99, %p100
      %p102 = scmp.ne.s32.totalorder %s94, %s97
      %p103 = scmp.eq.s32.totalorder %s9, 0
      %p104 = por %p102, %p103
      %p105 = scmp.ne.s32.totalorder %s94, %s97
      %p106 = scmp.eq.s32.totalorder %s14, 23
      %p107 = por %p105, %p106
      %p108 = scmp.ne.s32.totalorder %s97, %s98
      %p109 = scmp.eq.s32.totalorder %s14, 0
      %p110 = por %p108, %p109
      %p111 = scmp.ne.s32.totalorder %s97, %s98
      %p112 = scmp.eq.s32.totalorder %s15, 23
      %p113 = por %p111, %p112
      %p115 = scmp.ne.s32.totalorder %s98, %s114
      %p116 = scmp.eq.s32.totalorder %s15, 0
      %p117 = por %p115, %p116
      %s118 = ssub.s32 %s16, %s35
      %s119 = ssub.s32 %s17, %s31
      %s120 = sor.u32 %s118, %s119
      %p121 = scmp.eq.s32.totalorder %s120, 0
      %s123 = sadd.s32 %s122, 1
      %s124 = scalar_select %p121, %s122, %s123
      %p127 = pneg %p121
      %p128 = scmp.eq.s32.totalorder %s9, 23
      %p129 = por %p127, %p128
      %p130 = scmp.ne.s32.totalorder %s122, %s125
      %p131 = scmp.eq.s32.totalorder %s9, 0
      %p132 = por %p130, %p131
      %p133 = scmp.ne.s32.totalorder %s122, %s125
      %p134 = scmp.eq.s32.totalorder %s14, 23
      %p135 = por %p133, %p134
      %p136 = scmp.ne.s32.totalorder %s125, %s126
      %p137 = scmp.eq.s32.totalorder %s14, 0
      %p138 = por %p136, %p137
      %p139 = scmp.ne.s32.totalorder %s125, %s126
      %p140 = scmp.eq.s32.totalorder %s15, 23
      %p141 = por %p139, %p140
      %p143 = scmp.ne.s32.totalorder %s126, %s142
      %p144 = scmp.eq.s32.totalorder %s15, 0
      %p145 = por %p143, %p144
      %p146 = scmp.le.s32.totalorder 1, %s9
      %p147 = scmp.lt.s32.totalorder %s9, 25
      %p148 = pnand %p146, %p147
      %p149 = pneg %p148
      // Predicated region
      $region9: #{cnn_forward.14} parent=5 // pred_check
        _
      $region10: #{cnn_forward.14} parent=5 // pred_check_branch
        %151 = sbr.rel (%p148) target = $region12
      $region11: #{cnn_forward.14} parent=5 // pred_region
        %s152 = ssub.s32 %s9, 1
      $region12: #{cnn_forward.14} parent=5 // pred_fallthru
        _
      %p153 = scmp.lt.s32.totalorder %s9, 24
      // Predicated region
      $region13: #{cnn_forward.14} parent=5 // pred_check
        %p154 = pneg %p153
      $region14: #{cnn_forward.14} parent=5 // pred_check_branch
        %156 = sbr.rel (%p154) target = $region16
      $region15: #{cnn_forward.14} parent=5 // pred_region
        // Predicated region
        $region17: #{cnn_forward.14} parent=15 // pred_check
          %p157 = pneg %p50
        $region18: #{cnn_forward.14} parent=15 // pred_check_branch
          %159 = sbr.rel (%p157) target = $region20
        $region19: #{cnn_forward.14} parent=15 // pred_region
          %s160 = sand.u32 %s40, 1
          %s161 = sand.u32 %s40, 1
          %s162 = smul.addr %s161, 32
          %s163 = scalar_lea.vmem [#allocation3], %s162
          %s164 = smul.u32 2, %s16
          %s165 = smul.u32 4, %s18
          %s166 = smul.addr %s164, 48
          %s167 = sadd.s32 %s165, %s166
          %s168 = smul.addr %s167, 4
          %s169 = scalar_lea.vmem %s0, %s168
          // Predicated region
          $region21: #{cnn_forward.14} parent=19 // pred_check
            _
          $region22: #{cnn_forward.14} parent=19 // pred_check_branch
            %171 = sbr.rel (0) target = $region24
          $region23: #{cnn_forward.14} parent=19 // pred_region
            // Predicated region
            $region25: #{cnn_forward.14} parent=23 // pred_check
              _
            $region26: #{cnn_forward.14} parent=23 // pred_check_branch
              %173 = sbr.rel (0) target = $region28
            $region27: #{cnn_forward.14} parent=23 // pred_region
              loop: start=0, step=1, limit=1
              $region29: #{cnn_forward.14} parent=27 // loop_pre_header
                _
              $region30: #{cnn_forward.14} parent=27 // loop_header
                %s175 = sphi 0, %s179
                %p176 = scmp.ge.s32.totalorder %s175, 1
                %s180 = sphi %s169, %s169
                %s181 = sphi %s163, %s163
              $region31: #{cnn_forward.14} parent=27 // loop_header_branch
                %178 = sbr.rel (%p176) target = $region35
              $region32: #{cnn_forward.14} parent=27 // loop_body
                %v182 = vld [vmem:[%s180] sm:$0xff]
                %183 = vst [vmem:[%s181] sm:$0xff] %v182
                %v184 = vld [vmem:[%s180 + $0x8] sm:$0xff]
                %185 = vst [vmem:[%s181 + $0x8] sm:$0xff] %v184
                %v186 = vld [vmem:[%s180 + $0xc0] sm:$0xff]
                %187 = vst [vmem:[%s181 + $0x10] sm:$0xff] %v186
                %v188 = vld [vmem:[%s180 + $0xc8] sm:$0xff]
                %189 = vst [vmem:[%s181 + $0x18] sm:$0xff] %v188
              $region33: #{cnn_forward.14} parent=27 // loop_footer
                %s179 = sadd.s32 1, %s175
              $region34: #{cnn_forward.14} parent=27 // loop_footer_branch
                %174 = sbr.rel target = $region30
              $region35: #{cnn_forward.14} parent=27 // loop_exit
                _
            $region28: #{cnn_forward.14} parent=23 // pred_fallthru
              _
            // Predicated region
            $region36: #{cnn_forward.14} parent=23 // pred_check
              _
            $region37: #{cnn_forward.14} parent=23 // pred_check_branch
              %191 = sbr.rel target = $region39
            $region38: #{cnn_forward.14} parent=23 // pred_region
              _
            $region39: #{cnn_forward.14} parent=23 // pred_fallthru
              _
          $region24: #{cnn_forward.14} parent=19 // pred_fallthru
            _
          %192 = vnop
        $region20: #{cnn_forward.14} parent=15 // pred_fallthru
          _
        // Predicated region
        $region40: #{cnn_forward.14} parent=15 // pred_check
          %p193 = pneg %p78
        $region41: #{cnn_forward.14} parent=15 // pred_check_branch
          %195 = sbr.rel (%p193) target = $region43
        $region42: #{cnn_forward.14} parent=15 // pred_region
          %s196 = sand.u32 %s68, 1
          %s197 = sand.u32 %s68, 1
          %s198 = smul.addr %s197, 512
          %s199 = scalar_lea.vmem [#allocation4], %s198
          %s200 = smul.u32 64, %s18
          %s201 = smul.u32 2, %s17
          %s202 = smul.addr %s200, 4
          %s203 = sadd.s32 %s201, %s202
          %s204 = smul.addr %s203, 4
          %s205 = scalar_lea.vmem %s1, %s204
          // Predicated region
          $region44: #{cnn_forward.14} parent=42 // pred_check
            _
          $region45: #{cnn_forward.14} parent=42 // pred_check_branch
            %207 = sbr.rel (0) target = $region47
          $region46: #{cnn_forward.14} parent=42 // pred_region
            // Predicated region
            $region48: #{cnn_forward.14} parent=46 // pred_check
              _
            $region49: #{cnn_forward.14} parent=46 // pred_check_branch
              %209 = sbr.rel (0) target = $region51
            $region50: #{cnn_forward.14} parent=46 // pred_region
              // Predicated region
              $region63: #{cnn_forward.14} parent=50 // pred_check
                _
              $region64: #{cnn_forward.14} parent=50 // pred_check_branch
                %351 = sbr.rel (0) target = $region66
              $region65: #{cnn_forward.14} parent=50 // pred_region
                loop: start=0, step=1, limit=1
                $region67: #{cnn_forward.14} parent=65 // loop_pre_header
                  _
                $region68: #{cnn_forward.14} parent=65 // loop_header
                  %s353 = sphi 0, %s357
                  %p354 = scmp.ge.s32.totalorder %s353, 1
                  %s358 = sphi %s205, %s205
                  %s359 = sphi %s199, %s199
                $region69: #{cnn_forward.14} parent=65 // loop_header_branch
                  %356 = sbr.rel (%p354) target = $region73
                $region70: #{cnn_forward.14} parent=65 // loop_body
                  %v360 = vld [vmem:[%s358] sm:$0xff]
                  %361 = vst [vmem:[%s359] sm:$0xff] %v360
                  %v362 = vld [vmem:[%s358 + $0x10] sm:$0xff]
                  %363 = vst [vmem:[%s359 + $0x8] sm:$0xff] %v362
                  %v364 = vld [vmem:[%s358 + $0x20] sm:$0xff]
                  %365 = vst [vmem:[%s359 + $0x10] sm:$0xff] %v364
                  %v366 = vld [vmem:[%s358 + $0x30] sm:$0xff]
                  %367 = vst [vmem:[%s359 + $0x18] sm:$0xff] %v366
                  %v368 = vld [vmem:[%s358 + $0x40] sm:$0xff]
                  %369 = vst [vmem:[%s359 + $0x20] sm:$0xff] %v368
                  %v370 = vld [vmem:[%s358 + $0x50] sm:$0xff]
                  %371 = vst [vmem:[%s359 + $0x28] sm:$0xff] %v370
                  %v372 = vld [vmem:[%s358 + $0x60] sm:$0xff]
                  %373 = vst [vmem:[%s359 + $0x30] sm:$0xff] %v372
                  %v374 = vld [vmem:[%s358 + $0x70] sm:$0xff]
                  %375 = vst [vmem:[%s359 + $0x38] sm:$0xff] %v374
                  %v376 = vld [vmem:[%s358 + $0x80] sm:$0xff]
                  %377 = vst [vmem:[%s359 + $0x40] sm:$0xff] %v376
                  %v378 = vld [vmem:[%s358 + $0x90] sm:$0xff]
                  %379 = vst [vmem:[%s359 + $0x48] sm:$0xff] %v378
                  %v380 = vld [vmem:[%s358 + $0xa0] sm:$0xff]
                  %381 = vst [vmem:[%s359 + $0x50] sm:$0xff] %v380
                  %v382 = vld [vmem:[%s358 + $0xb0] sm:$0xff]
                  %383 = vst [vmem:[%s359 + $0x58] sm:$0xff] %v382
                  %v384 = vld [vmem:[%s358 + $0xc0] sm:$0xff]
                  %385 = vst [vmem:[%s359 + $0x60] sm:$0xff] %v384
                  %v386 = vld [vmem:[%s358 + $0xd0] sm:$0xff]
                  %387 = vst [vmem:[%s359 + $0x68] sm:$0xff] %v386
                  %v388 = vld [vmem:[%s358 + $0xe0] sm:$0xff]
                  %389 = vst [vmem:[%s359 + $0x70] sm:$0xff] %v388
                  %v390 = vld [vmem:[%s358 + $0xf0] sm:$0xff]
                  %391 = vst [vmem:[%s359 + $0x78] sm:$0xff] %v390
                  %v392 = vld [vmem:[%s358 + $0x100] sm:$0xff]
                  %393 = vst [vmem:[%s359 + $0x80] sm:$0xff] %v392
                  %v394 = vld [vmem:[%s358 + $0x110] sm:$0xff]
                  %395 = vst [vmem:[%s359 + $0x88] sm:$0xff] %v394
                  %v396 = vld [vmem:[%s358 + $0x120] sm:$0xff]
                  %397 = vst [vmem:[%s359 + $0x90] sm:$0xff] %v396
                  %v398 = vld [vmem:[%s358 + $0x130] sm:$0xff]
                  %399 = vst [vmem:[%s359 + $0x98] sm:$0xff] %v398
                  %v400 = vld [vmem:[%s358 + $0x140] sm:$0xff]
                  %401 = vst [vmem:[%s359 + $0xa0] sm:$0xff] %v400
                  %v402 = vld [vmem:[%s358 + $0x150] sm:$0xff]
                  %403 = vst [vmem:[%s359 + $0xa8] sm:$0xff] %v402
                  %v404 = vld [vmem:[%s358 + $0x160] sm:$0xff]
                  %405 = vst [vmem:[%s359 + $0xb0] sm:$0xff] %v404
                  %v406 = vld [vmem:[%s358 + $0x170] sm:$0xff]
                  %407 = vst [vmem:[%s359 + $0xb8] sm:$0xff] %v406
                  %v408 = vld [vmem:[%s358 + $0x180] sm:$0xff]
                  %409 = vst [vmem:[%s359 + $0xc0] sm:$0xff] %v408
                  %v410 = vld [vmem:[%s358 + $0x190] sm:$0xff]
                  %411 = vst [vmem:[%s359 + $0xc8] sm:$0xff] %v410
                  %v412 = vld [vmem:[%s358 + $0x1a0] sm:$0xff]
                  %413 = vst [vmem:[%s359 + $0xd0] sm:$0xff] %v412
                  %v414 = vld [vmem:[%s358 + $0x1b0] sm:$0xff]
                  %415 = vst [vmem:[%s359 + $0xd8] sm:$0xff] %v414
                  %v416 = vld [vmem:[%s358 + $0x1c0] sm:$0xff]
                  %417 = vst [vmem:[%s359 + $0xe0] sm:$0xff] %v416
                  %v418 = vld [vmem:[%s358 + $0x1d0] sm:$0xff]
                  %419 = vst [vmem:[%s359 + $0xe8] sm:$0xff] %v418
                  %v420 = vld [vmem:[%s358 + $0x1e0] sm:$0xff]
                  %421 = vst [vmem:[%s359 + $0xf0] sm:$0xff] %v420
                  %v422 = vld [vmem:[%s358 + $0x1f0] sm:$0xff]
                  %423 = vst [vmem:[%s359 + $0xf8] sm:$0xff] %v422
                  %v424 = vld [vmem:[%s358 + $0x200] sm:$0xff]
                  %425 = vst [vmem:[%s359 + $0x100] sm:$0xff] %v424
                  %v426 = vld [vmem:[%s358 + $0x210] sm:$0xff]
                  %427 = vst [vmem:[%s359 + $0x108] sm:$0xff] %v426
                  %v428 = vld [vmem:[%s358 + $0x220] sm:$0xff]
                  %429 = vst [vmem:[%s359 + $0x110] sm:$0xff] %v428
                  %v430 = vld [vmem:[%s358 + $0x230] sm:$0xff]
                  %431 = vst [vmem:[%s359 + $0x118] sm:$0xff] %v430
                  %v432 = vld [vmem:[%s358 + $0x240] sm:$0xff]
                  %433 = vst [vmem:[%s359 + $0x120] sm:$0xff] %v432
                  %v434 = vld [vmem:[%s358 + $0x250] sm:$0xff]
                  %435 = vst [vmem:[%s359 + $0x128] sm:$0xff] %v434
                  %v436 = vld [vmem:[%s358 + $0x260] sm:$0xff]
                  %437 = vst [vmem:[%s359 + $0x130] sm:$0xff] %v436
                  %v438 = vld [vmem:[%s358 + $0x270] sm:$0xff]
                  %439 = vst [vmem:[%s359 + $0x138] sm:$0xff] %v438
                  %v440 = vld [vmem:[%s358 + $0x280] sm:$0xff]
                  %441 = vst [vmem:[%s359 + $0x140] sm:$0xff] %v440
                  %v442 = vld [vmem:[%s358 + $0x290] sm:$0xff]
                  %443 = vst [vmem:[%s359 + $0x148] sm:$0xff] %v442
                  %v444 = vld [vmem:[%s358 + $0x2a0] sm:$0xff]
                  %445 = vst [vmem:[%s359 + $0x150] sm:$0xff] %v444
                  %v446 = vld [vmem:[%s358 + $0x2b0] sm:$0xff]
                  %447 = vst [vmem:[%s359 + $0x158] sm:$0xff] %v446
                  %v448 = vld [vmem:[%s358 + $0x2c0] sm:$0xff]
                  %449 = vst [vmem:[%s359 + $0x160] sm:$0xff] %v448
                  %v450 = vld [vmem:[%s358 + $0x2d0] sm:$0xff]
                  %451 = vst [vmem:[%s359 + $0x168] sm:$0xff] %v450
                  %v452 = vld [vmem:[%s358 + $0x2e0] sm:$0xff]
                  %453 = vst [vmem:[%s359 + $0x170] sm:$0xff] %v452
                  %v454 = vld [vmem:[%s358 + $0x2f0] sm:$0xff]
                  %455 = vst [vmem:[%s359 + $0x178] sm:$0xff] %v454
                  %v456 = vld [vmem:[%s358 + $0x300] sm:$0xff]
                  %457 = vst [vmem:[%s359 + $0x180] sm:$0xff] %v456
                  %v458 = vld [vmem:[%s358 + $0x310] sm:$0xff]
                  %459 = vst [vmem:[%s359 + $0x188] sm:$0xff] %v458
                  %v460 = vld [vmem:[%s358 + $0x320] sm:$0xff]
                  %461 = vst [vmem:[%s359 + $0x190] sm:$0xff] %v460
                  %v462 = vld [vmem:[%s358 + $0x330] sm:$0xff]
                  %463 = vst [vmem:[%s359 + $0x198] sm:$0xff] %v462
                  %v464 = vld [vmem:[%s358 + $0x340] sm:$0xff]
                  %465 = vst [vmem:[%s359 + $0x1a0] sm:$0xff] %v464
                  %v466 = vld [vmem:[%s358 + $0x350] sm:$0xff]
                  %467 = vst [vmem:[%s359 + $0x1a8] sm:$0xff] %v466
                  %v468 = vld [vmem:[%s358 + $0x360] sm:$0xff]
                  %469 = vst [vmem:[%s359 + $0x1b0] sm:$0xff] %v468
                  %v470 = vld [vmem:[%s358 + $0x370] sm:$0xff]
                  %471 = vst [vmem:[%s359 + $0x1b8] sm:$0xff] %v470
                  %v472 = vld [vmem:[%s358 + $0x380] sm:$0xff]
                  %473 = vst [vmem:[%s359 + $0x1c0] sm:$0xff] %v472
                  %v474 = vld [vmem:[%s358 + $0x390] sm:$0xff]
                  %475 = vst [vmem:[%s359 + $0x1c8] sm:$0xff] %v474
                  %v476 = vld [vmem:[%s358 + $0x3a0] sm:$0xff]
                  %477 = vst [vmem:[%s359 + $0x1d0] sm:$0xff] %v476
                  %v478 = vld [vmem:[%s358 + $0x3b0] sm:$0xff]
                  %479 = vst [vmem:[%s359 + $0x1d8] sm:$0xff] %v478
                  %v480 = vld [vmem:[%s358 + $0x3c0] sm:$0xff]
                  %481 = vst [vmem:[%s359 + $0x1e0] sm:$0xff] %v480
                  %v482 = vld [vmem:[%s358 + $0x3d0] sm:$0xff]
                  %483 = vst [vmem:[%s359 + $0x1e8] sm:$0xff] %v482
                  %v484 = vld [vmem:[%s358 + $0x3e0] sm:$0xff]
                  %485 = vst [vmem:[%s359 + $0x1f0] sm:$0xff] %v484
                  %v486 = vld [vmem:[%s358 + $0x3f0] sm:$0xff]
                  %487 = vst [vmem:[%s359 + $0x1f8] sm:$0xff] %v486
                $region71: #{cnn_forward.14} parent=65 // loop_footer
                  %s357 = sadd.s32 1, %s353
                $region72: #{cnn_forward.14} parent=65 // loop_footer_branch
                  %352 = sbr.rel target = $region68
                $region73: #{cnn_forward.14} parent=65 // loop_exit
                  _
              $region66: #{cnn_forward.14} parent=50 // pred_fallthru
                _
              // Predicated region
              $region74: #{cnn_forward.14} parent=50 // pred_check
                _
              $region75: #{cnn_forward.14} parent=50 // pred_check_branch
                %489 = sbr.rel target = $region77
              $region76: #{cnn_forward.14} parent=50 // pred_region
                _
              $region77: #{cnn_forward.14} parent=50 // pred_fallthru
                _
            $region51: #{cnn_forward.14} parent=46 // pred_fallthru
              _
            // Predicated region
            $region52: #{cnn_forward.14} parent=46 // pred_check
              _
            $region53: #{cnn_forward.14} parent=46 // pred_check_branch
              %211 = sbr.rel target = $region55
            $region54: #{cnn_forward.14} parent=46 // pred_region
              %s213 = ssub.s32 256, 1
              loop: start=0, step=1, limit=1
              $region56: #{cnn_forward.14} parent=54 // loop_pre_header
                _
              $region57: #{cnn_forward.14} parent=54 // loop_header
                %s215 = sphi 0, %s219
                %p216 = scmp.ge.s32.totalorder %s215, 1
                %s220 = sphi %s205, %s205
                %s221 = sphi %s199, %s199
              $region58: #{cnn_forward.14} parent=54 // loop_header_branch
                %218 = sbr.rel (%p216) target = $region62
              $region59: #{cnn_forward.14} parent=54 // loop_body
                %v222 = vld [vmem:[%s220] sm:%s213]
                %223 = vst [vmem:[%s221] sm:%s213] %v222
                %v224 = vld [vmem:[%s220 + $0x10] sm:%s213]
                %225 = vst [vmem:[%s221 + $0x8] sm:%s213] %v224
                %v226 = vld [vmem:[%s220 + $0x20] sm:%s213]
                %227 = vst [vmem:[%s221 + $0x10] sm:%s213] %v226
                %v228 = vld [vmem:[%s220 + $0x30] sm:%s213]
                %229 = vst [vmem:[%s221 + $0x18] sm:%s213] %v228
                %v230 = vld [vmem:[%s220 + $0x40] sm:%s213]
                %231 = vst [vmem:[%s221 + $0x20] sm:%s213] %v230
                %v232 = vld [vmem:[%s220 + $0x50] sm:%s213]
                %233 = vst [vmem:[%s221 + $0x28] sm:%s213] %v232
                %v234 = vld [vmem:[%s220 + $0x60] sm:%s213]
                %235 = vst [vmem:[%s221 + $0x30] sm:%s213] %v234
                %v236 = vld [vmem:[%s220 + $0x70] sm:%s213]
                %237 = vst [vmem:[%s221 + $0x38] sm:%s213] %v236
                %v238 = vld [vmem:[%s220 + $0x80] sm:%s213]
                %239 = vst [vmem:[%s221 + $0x40] sm:%s213] %v238
                %v240 = vld [vmem:[%s220 + $0x90] sm:%s213]
                %241 = vst [vmem:[%s221 + $0x48] sm:%s213] %v240
                %v242 = vld [vmem:[%s220 + $0xa0] sm:%s213]
                %243 = vst [vmem:[%s221 + $0x50] sm:%s213] %v242
                %v244 = vld [vmem:[%s220 + $0xb0] sm:%s213]
                %245 = vst [vmem:[%s221 + $0x58] sm:%s213] %v244
                %v246 = vld [vmem:[%s220 + $0xc0] sm:%s213]
                %247 = vst [vmem:[%s221 + $0x60] sm:%s213] %v246
                %v248 = vld [vmem:[%s220 + $0xd0] sm:%s213]
                %249 = vst [vmem:[%s221 + $0x68] sm:%s213] %v248
                %v250 = vld [vmem:[%s220 + $0xe0] sm:%s213]
                %251 = vst [vmem:[%s221 + $0x70] sm:%s213] %v250
                %v252 = vld [vmem:[%s220 + $0xf0] sm:%s213]
                %253 = vst [vmem:[%s221 + $0x78] sm:%s213] %v252
                %v254 = vld [vmem:[%s220 + $0x100] sm:%s213]
                %255 = vst [vmem:[%s221 + $0x80] sm:%s213] %v254
                %v256 = vld [vmem:[%s220 + $0x110] sm:%s213]
                %257 = vst [vmem:[%s221 + $0x88] sm:%s213] %v256
                %v258 = vld [vmem:[%s220 + $0x120] sm:%s213]
                %259 = vst [vmem:[%s221 + $0x90] sm:%s213] %v258
                %v260 = vld [vmem:[%s220 + $0x130] sm:%s213]
                %261 = vst [vmem:[%s221 + $0x98] sm:%s213] %v260
                %v262 = vld [vmem:[%s220 + $0x140] sm:%s213]
                %263 = vst [vmem:[%s221 + $0xa0] sm:%s213] %v262
                %v264 = vld [vmem:[%s220 + $0x150] sm:%s213]
                %265 = vst [vmem:[%s221 + $0xa8] sm:%s213] %v264
                %v266 = vld [vmem:[%s220 + $0x160] sm:%s213]
                %267 = vst [vmem:[%s221 + $0xb0] sm:%s213] %v266
                %v268 = vld [vmem:[%s220 + $0x170] sm:%s213]
                %269 = vst [vmem:[%s221 + $0xb8] sm:%s213] %v268
                %v270 = vld [vmem:[%s220 + $0x180] sm:%s213]
                %271 = vst [vmem:[%s221 + $0xc0] sm:%s213] %v270
                %v272 = vld [vmem:[%s220 + $0x190] sm:%s213]
                %273 = vst [vmem:[%s221 + $0xc8] sm:%s213] %v272
                %v274 = vld [vmem:[%s220 + $0x1a0] sm:%s213]
                %275 = vst [vmem:[%s221 + $0xd0] sm:%s213] %v274
                %v276 = vld [vmem:[%s220 + $0x1b0] sm:%s213]
                %277 = vst [vmem:[%s221 + $0xd8] sm:%s213] %v276
                %v278 = vld [vmem:[%s220 + $0x1c0] sm:%s213]
                %279 = vst [vmem:[%s221 + $0xe0] sm:%s213] %v278
                %v280 = vld [vmem:[%s220 + $0x1d0] sm:%s213]
                %281 = vst [vmem:[%s221 + $0xe8] sm:%s213] %v280
                %v282 = vld [vmem:[%s220 + $0x1e0] sm:%s213]
                %283 = vst [vmem:[%s221 + $0xf0] sm:%s213] %v282
                %v284 = vld [vmem:[%s220 + $0x1f0] sm:%s213]
                %285 = vst [vmem:[%s221 + $0xf8] sm:%s213] %v284
                %v286 = vld [vmem:[%s220 + $0x200] sm:%s213]
                %287 = vst [vmem:[%s221 + $0x100] sm:%s213] %v286
                %v288 = vld [vmem:[%s220 + $0x210] sm:%s213]
                %289 = vst [vmem:[%s221 + $0x108] sm:%s213] %v288
                %v290 = vld [vmem:[%s220 + $0x220] sm:%s213]
                %291 = vst [vmem:[%s221 + $0x110] sm:%s213] %v290
                %v292 = vld [vmem:[%s220 + $0x230] sm:%s213]
                %293 = vst [vmem:[%s221 + $0x118] sm:%s213] %v292
                %v294 = vld [vmem:[%s220 + $0x240] sm:%s213]
                %295 = vst [vmem:[%s221 + $0x120] sm:%s213] %v294
                %v296 = vld [vmem:[%s220 + $0x250] sm:%s213]
                %297 = vst [vmem:[%s221 + $0x128] sm:%s213] %v296
                %v298 = vld [vmem:[%s220 + $0x260] sm:%s213]
                %299 = vst [vmem:[%s221 + $0x130] sm:%s213] %v298
                %v300 = vld [vmem:[%s220 + $0x270] sm:%s213]
                %301 = vst [vmem:[%s221 + $0x138] sm:%s213] %v300
                %v302 = vld [vmem:[%s220 + $0x280] sm:%s213]
                %303 = vst [vmem:[%s221 + $0x140] sm:%s213] %v302
                %v304 = vld [vmem:[%s220 + $0x290] sm:%s213]
                %305 = vst [vmem:[%s221 + $0x148] sm:%s213] %v304
                %v306 = vld [vmem:[%s220 + $0x2a0] sm:%s213]
                %307 = vst [vmem:[%s221 + $0x150] sm:%s213] %v306
                %v308 = vld [vmem:[%s220 + $0x2b0] sm:%s213]
                %309 = vst [vmem:[%s221 + $0x158] sm:%s213] %v308
                %v310 = vld [vmem:[%s220 + $0x2c0] sm:%s213]
                %311 = vst [vmem:[%s221 + $0x160] sm:%s213] %v310
                %v312 = vld [vmem:[%s220 + $0x2d0] sm:%s213]
                %313 = vst [vmem:[%s221 + $0x168] sm:%s213] %v312
                %v314 = vld [vmem:[%s220 + $0x2e0] sm:%s213]
                %315 = vst [vmem:[%s221 + $0x170] sm:%s213] %v314
                %v316 = vld [vmem:[%s220 + $0x2f0] sm:%s213]
                %317 = vst [vmem:[%s221 + $0x178] sm:%s213] %v316
                %v318 = vld [vmem:[%s220 + $0x300] sm:%s213]
                %319 = vst [vmem:[%s221 + $0x180] sm:%s213] %v318
                %v320 = vld [vmem:[%s220 + $0x310] sm:%s213]
                %321 = vst [vmem:[%s221 + $0x188] sm:%s213] %v320
                %v322 = vld [vmem:[%s220 + $0x320] sm:%s213]
                %323 = vst [vmem:[%s221 + $0x190] sm:%s213] %v322
                %v324 = vld [vmem:[%s220 + $0x330] sm:%s213]
                %325 = vst [vmem:[%s221 + $0x198] sm:%s213] %v324
                %v326 = vld [vmem:[%s220 + $0x340] sm:%s213]
                %327 = vst [vmem:[%s221 + $0x1a0] sm:%s213] %v326
                %v328 = vld [vmem:[%s220 + $0x350] sm:%s213]
                %329 = vst [vmem:[%s221 + $0x1a8] sm:%s213] %v328
                %v330 = vld [vmem:[%s220 + $0x360] sm:%s213]
                %331 = vst [vmem:[%s221 + $0x1b0] sm:%s213] %v330
                %v332 = vld [vmem:[%s220 + $0x370] sm:%s213]
                %333 = vst [vmem:[%s221 + $0x1b8] sm:%s213] %v332
                %v334 = vld [vmem:[%s220 + $0x380] sm:%s213]
                %335 = vst [vmem:[%s221 + $0x1c0] sm:%s213] %v334
                %v336 = vld [vmem:[%s220 + $0x390] sm:%s213]
                %337 = vst [vmem:[%s221 + $0x1c8] sm:%s213] %v336
                %v338 = vld [vmem:[%s220 + $0x3a0] sm:%s213]
                %339 = vst [vmem:[%s221 + $0x1d0] sm:%s213] %v338
                %v340 = vld [vmem:[%s220 + $0x3b0] sm:%s213]
                %341 = vst [vmem:[%s221 + $0x1d8] sm:%s213] %v340
                %v342 = vld [vmem:[%s220 + $0x3c0] sm:%s213]
                %343 = vst [vmem:[%s221 + $0x1e0] sm:%s213] %v342
                %v344 = vld [vmem:[%s220 + $0x3d0] sm:%s213]
                %345 = vst [vmem:[%s221 + $0x1e8] sm:%s213] %v344
                %v346 = vld [vmem:[%s220 + $0x3e0] sm:%s213]
                %347 = vst [vmem:[%s221 + $0x1f0] sm:%s213] %v346
                %v348 = vld [vmem:[%s220 + $0x3f0] sm:%s213]
                %349 = vst [vmem:[%s221 + $0x1f8] sm:%s213] %v348
              $region60: #{cnn_forward.14} parent=54 // loop_footer
                %s219 = sadd.s32 1, %s215
              $region61: #{cnn_forward.14} parent=54 // loop_footer_branch
                %214 = sbr.rel target = $region57
              $region62: #{cnn_forward.14} parent=54 // loop_exit
                _
            $region55: #{cnn_forward.14} parent=46 // pred_fallthru
              _
          $region47: #{cnn_forward.14} parent=42 // pred_fallthru
            _
          %490 = vnop
        $region43: #{cnn_forward.14} parent=15 // pred_fallthru
          _
        // Predicated region
        $region78: #{cnn_forward.14} parent=15 // pred_check
          %p491 = pneg %p104
        $region79: #{cnn_forward.14} parent=15 // pred_check_branch
          %493 = sbr.rel (%p491) target = $region81
        $region80: #{cnn_forward.14} parent=15 // pred_region
          %s494 = smul.u32 2, %s17
          %p495 = scmp.lt.s32.totalorder %s494, 3
          %s496 = scalar_select %p495, %s494, 3
          %s497 = scalar_lea.vmem %s2, %s496
          %s498 = smul.u32 2, %s17
        $region81: #{cnn_forward.14} parent=15 // pred_fallthru
          _
      $region16: #{cnn_forward.14} parent=5 // pred_fallthru
        _
      %p499 = scmp.le.s32.totalorder 1, %s9
      %p500 = scmp.lt.s32.totalorder %s9, 25
      %p501 = pnand %p499, %p500
      %p502 = pneg %p501
      // Predicated region
      $region82: #{cnn_forward.14} parent=5 // pred_check
        _
      $region83: #{cnn_forward.14} parent=5 // pred_check_branch
        %504 = sbr.rel (%p501) target = $region85
      $region84: #{cnn_forward.14} parent=5 // pred_region
        %s505 = ssub.s32 %s9, 1
        %s506 = sand.u32 %s43, 1
        %s507 = sand.u32 %s43, 1
        %s508 = smul.addr %s507, 32
        %s509 = scalar_lea.vmem [#allocation3], %s508
        // Predicated region
        $region86: #{cnn_forward.14} parent=84 // pred_check
          %p510 = pneg %p56
        $region87: #{cnn_forward.14} parent=84 // pred_check_branch
          %512 = sbr.rel (%p510) target = $region89
        $region88: #{cnn_forward.14} parent=84 // pred_region
          _
        $region89: #{cnn_forward.14} parent=84 // pred_fallthru
          _
        %s513 = sand.u32 %s71, 1
        %s514 = sand.u32 %s71, 1
        %s515 = smul.addr %s514, 512
        %s516 = scalar_lea.vmem [#allocation4], %s515
        // Predicated region
        $region90: #{cnn_forward.14} parent=84 // pred_check
          %p517 = pneg %p84
        $region91: #{cnn_forward.14} parent=84 // pred_check_branch
          %519 = sbr.rel (%p517) target = $region93
        $region92: #{cnn_forward.14} parent=84 // pred_region
          _
        $region93: #{cnn_forward.14} parent=84 // pred_fallthru
          _
        %s520 = sand.u32 %s43, 1
        %s521 = sand.u32 %s43, 1
        %s522 = smul.addr %s521, 32
        %s523 = scalar_lea.vmem [#allocation3], %s522
        %p524 = pneg %p56
        %p525 = pneg %p53
        %s526 = sand.u32 %s71, 1
        %s527 = sand.u32 %s71, 1
        %s528 = smul.addr %s527, 512
        %s529 = scalar_lea.vmem [#allocation4], %s528
        %p530 = pneg %p84
        %p531 = pneg %p81
        %s532 = smul.u32 2, %s20
        %p533 = scmp.lt.s32.totalorder %s532, 3
        %s534 = scalar_select %p533, %s532, 3
        %s535 = scalar_lea.vmem %s2, %s534
        %p536 = pneg %p110
        %p537 = pneg %p107
        %p538 = pneg %p138
        %p539 = pneg %p135
        %s540 = sand.u32 %s125, 1
        %s541 = sand.u32 %s125, 1
        %s542 = smul.addr %s541, 32
        %s543 = scalar_lea.vmem [#allocation5], %s542
        %s544 = smul.u32 2, %s19
        %s545 = smul.u32 4, %s21
        %s546 = smul.u32 64, %s21
        %s547 = smul.u32 2, %s20
        %s548 = smul.u32 2, %s20
        %p549 = scmp.lt.s32.totalorder %s548, 3
        %s550 = scalar_select %p549, %s548, 3
        %s551 = scalar_lea.vmem %s2, %s550
        %s552 = smul.u32 2, %s20
        %s553 = smul.u32 2, %s19
        %s554 = smul.u32 2, %s20
        %p555 = scmp.eq.s32.totalorder %s21, 0
        // Predicated region
        $region94: #{cnn_forward.14} parent=84 // pred_check
          %p556 = pneg %p555
        $region95: #{cnn_forward.14} parent=84 // pred_check_branch
          %558 = sbr.rel (%p556) target = $region97
        $region96: #{cnn_forward.14} parent=84 // pred_region
          %559 = vst [vmem:[#allocation2] sm:$0xff] 0.0
          %560 = vst [vmem:[#allocation2 + $0x8] sm:$0xff] 0.0
          %561 = vst [vmem:[#allocation2 + $0x10] sm:$0xff] 0.0
          %562 = vst [vmem:[#allocation2 + $0x18] sm:$0xff] 0.0
        $region97: #{cnn_forward.14} parent=84 // pred_fallthru
          _
        %v563 = vld [vmem:[#allocation2] sm:$0xff]
        %v564 = vld [vmem:[#allocation2 + $0x8] sm:$0xff]
        %v565 = vld [vmem:[#allocation2 + $0x10] sm:$0xff]
        %v566 = vld [vmem:[#allocation2 + $0x18] sm:$0xff]
        %v567 = vld [vmem:[%s509] sm:$0xff]
        %v568 = vld [vmem:[%s509 + $0x8] sm:$0xff]
        %v569 = vld [vmem:[%s509 + $0x10] sm:$0xff]
        %v570 = vld [vmem:[%s509 + $0x18] sm:$0xff]
        %v571 = vld [vmem:[%s516] sm:$0xff]
        %v572 = vld [vmem:[%s516 + $0x8] sm:$0xff]
        %v573 = vld [vmem:[%s516 + $0x10] sm:$0xff]
        %v574 = vld [vmem:[%s516 + $0x18] sm:$0xff]
        %v575 = vld [vmem:[%s516 + $0x20] sm:$0xff]
        %v576 = vld [vmem:[%s516 + $0x28] sm:$0xff]
        %v577 = vld [vmem:[%s516 + $0x30] sm:$0xff]
        %v578 = vld [vmem:[%s516 + $0x38] sm:$0xff]
        %v579 = vld [vmem:[%s516 + $0x40] sm:$0xff]
        %v580 = vld [vmem:[%s516 + $0x48] sm:$0xff]
        %v581 = vld [vmem:[%s516 + $0x50] sm:$0xff]
        %v582 = vld [vmem:[%s516 + $0x58] sm:$0xff]
        %v583 = vld [vmem:[%s516 + $0x60] sm:$0xff]
        %v584 = vld [vmem:[%s516 + $0x68] sm:$0xff]
        %v585 = vld [vmem:[%s516 + $0x70] sm:$0xff]
        %v586 = vld [vmem:[%s516 + $0x78] sm:$0xff]
        %v587 = vld [vmem:[%s516 + $0x80] sm:$0xff]
        %v588 = vld [vmem:[%s516 + $0x88] sm:$0xff]
        %v589 = vld [vmem:[%s516 + $0x90] sm:$0xff]
        %v590 = vld [vmem:[%s516 + $0x98] sm:$0xff]
        %v591 = vld [vmem:[%s516 + $0xa0] sm:$0xff]
        %v592 = vld [vmem:[%s516 + $0xa8] sm:$0xff]
        %v593 = vld [vmem:[%s516 + $0xb0] sm:$0xff]
        %v594 = vld [vmem:[%s516 + $0xb8] sm:$0xff]
        %v595 = vld [vmem:[%s516 + $0xc0] sm:$0xff]
        %v596 = vld [vmem:[%s516 + $0xc8] sm:$0xff]
        %v597 = vld [vmem:[%s516 + $0xd0] sm:$0xff]
        %v598 = vld [vmem:[%s516 + $0xd8] sm:$0xff]
        %v599 = vld [vmem:[%s516 + $0xe0] sm:$0xff]
        %v600 = vld [vmem:[%s516 + $0xe8] sm:$0xff]
        %v601 = vld [vmem:[%s516 + $0xf0] sm:$0xff]
        %v602 = vld [vmem:[%s516 + $0xf8] sm:$0xff]
        %v603 = vld [vmem:[%s516 + $0x100] sm:$0xff]
        %v604 = vld [vmem:[%s516 + $0x108] sm:$0xff]
        %v605 = vld [vmem:[%s516 + $0x110] sm:$0xff]
        %v606 = vld [vmem:[%s516 + $0x118] sm:$0xff]
        %v607 = vld [vmem:[%s516 + $0x120] sm:$0xff]
        %v608 = vld [vmem:[%s516 + $0x128] sm:$0xff]
        %v609 = vld [vmem:[%s516 + $0x130] sm:$0xff]
        %v610 = vld [vmem:[%s516 + $0x138] sm:$0xff]
        %v611 = vld [vmem:[%s516 + $0x140] sm:$0xff]
        %v612 = vld [vmem:[%s516 + $0x148] sm:$0xff]
        %v613 = vld [vmem:[%s516 + $0x150] sm:$0xff]
        %v614 = vld [vmem:[%s516 + $0x158] sm:$0xff]
        %v615 = vld [vmem:[%s516 + $0x160] sm:$0xff]
        %v616 = vld [vmem:[%s516 + $0x168] sm:$0xff]
        %v617 = vld [vmem:[%s516 + $0x170] sm:$0xff]
        %v618 = vld [vmem:[%s516 + $0x178] sm:$0xff]
        %v619 = vld [vmem:[%s516 + $0x180] sm:$0xff]
        %v620 = vld [vmem:[%s516 + $0x188] sm:$0xff]
        %v621 = vld [vmem:[%s516 + $0x190] sm:$0xff]
        %v622 = vld [vmem:[%s516 + $0x198] sm:$0xff]
        %v623 = vld [vmem:[%s516 + $0x1a0] sm:$0xff]
        %v624 = vld [vmem:[%s516 + $0x1a8] sm:$0xff]
        %v625 = vld [vmem:[%s516 + $0x1b0] sm:$0xff]
        %v626 = vld [vmem:[%s516 + $0x1b8] sm:$0xff]
        %v627 = vld [vmem:[%s516 + $0x1c0] sm:$0xff]
        %v628 = vld [vmem:[%s516 + $0x1c8] sm:$0xff]
        %v629 = vld [vmem:[%s516 + $0x1d0] sm:$0xff]
        %v630 = vld [vmem:[%s516 + $0x1d8] sm:$0xff]
        %v631 = vld [vmem:[%s516 + $0x1e0] sm:$0xff]
        %v632 = vld [vmem:[%s516 + $0x1e8] sm:$0xff]
        %v633 = vld [vmem:[%s516 + $0x1f0] sm:$0xff]
        %v634 = vld [vmem:[%s516 + $0x1f8] sm:$0xff]
        %v639 = vunpack.c.l.b16 %v567
        %v640 = vunpack.c.h.b16 %v567
        %v641 = vunpack.c.l.b16 %v568
        %v642 = vunpack.c.h.b16 %v568
        %v643 = vunpack.c.l.b16 %v569
        %v644 = vunpack.c.h.b16 %v569
        %v645 = vunpack.c.l.b16 %v570
        %v646 = vunpack.c.h.b16 %v570
        %v647 = vpack.c.b16 %v643, %v639
        %v648 = vpack.c.b16 %v644, %v640
        %v649 = vpack.c.b16 %v645, %v641
        %v650 = vpack.c.b16 %v646, %v642
        %v719 = vunpack.c.l.b16 %v571
        %v720 = vunpack.c.h.b16 %v571
        %v721 = vunpack.c.l.b16 %v572
        %v722 = vunpack.c.h.b16 %v572
        %v723 = vunpack.c.l.b16 %v573
        %v724 = vunpack.c.h.b16 %v573
        %v725 = vunpack.c.l.b16 %v574
        %v726 = vunpack.c.h.b16 %v574
        %v727 = vunpack.c.l.b16 %v575
        %v728 = vunpack.c.h.b16 %v575
        %v729 = vunpack.c.l.b16 %v576
        %v730 = vunpack.c.h.b16 %v576
        %v731 = vunpack.c.l.b16 %v577
        %v732 = vunpack.c.h.b16 %v577
        %v733 = vunpack.c.l.b16 %v578
        %v734 = vunpack.c.h.b16 %v578
        %v735 = vunpack.c.l.b16 %v579
        %v736 = vunpack.c.h.b16 %v579
        %v737 = vunpack.c.l.b16 %v580
        %v738 = vunpack.c.h.b16 %v580
        %v739 = vunpack.c.l.b16 %v581
        %v740 = vunpack.c.h.b16 %v581
        %v741 = vunpack.c.l.b16 %v582
        %v742 = vunpack.c.h.b16 %v582
        %v743 = vunpack.c.l.b16 %v583
        %v744 = vunpack.c.h.b16 %v583
        %v745 = vunpack.c.l.b16 %v584
        %v746 = vunpack.c.h.b16 %v584
        %v747 = vunpack.c.l.b16 %v585
        %v748 = vunpack.c.h.b16 %v585
        %v749 = vunpack.c.l.b16 %v586
        %v750 = vunpack.c.h.b16 %v586
        %v751 = vunpack.c.l.b16 %v587
        %v752 = vunpack.c.h.b16 %v587
        %v753 = vunpack.c.l.b16 %v588
        %v754 = vunpack.c.h.b16 %v588
        %v755 = vunpack.c.l.b16 %v589
        %v756 = vunpack.c.h.b16 %v589
        %v757 = vunpack.c.l.b16 %v590
        %v758 = vunpack.c.h.b16 %v590
        %v759 = vunpack.c.l.b16 %v591
        %v760 = vunpack.c.h.b16 %v591
        %v761 = vunpack.c.l.b16 %v592
        %v762 = vunpack.c.h.b16 %v592
        %v763 = vunpack.c.l.b16 %v593
        %v764 = vunpack.c.h.b16 %v593
        %v765 = vunpack.c.l.b16 %v594
        %v766 = vunpack.c.h.b16 %v594
        %v767 = vunpack.c.l.b16 %v595
        %v768 = vunpack.c.h.b16 %v595
        %v769 = vunpack.c.l.b16 %v596
        %v770 = vunpack.c.h.b16 %v596
        %v771 = vunpack.c.l.b16 %v597
        %v772 = vunpack.c.h.b16 %v597
        %v773 = vunpack.c.l.b16 %v598
        %v774 = vunpack.c.h.b16 %v598
        %v775 = vunpack.c.l.b16 %v599
        %v776 = vunpack.c.h.b16 %v599
        %v777 = vunpack.c.l.b16 %v600
        %v778 = vunpack.c.h.b16 %v600
        %v779 = vunpack.c.l.b16 %v601
        %v780 = vunpack.c.h.b16 %v601
        %v781 = vunpack.c.l.b16 %v602
        %v782 = vunpack.c.h.b16 %v602
        %v783 = vunpack.c.l.b16 %v603
        %v784 = vunpack.c.h.b16 %v603
        %v785 = vunpack.c.l.b16 %v604
        %v786 = vunpack.c.h.b16 %v604
        %v787 = vunpack.c.l.b16 %v605
        %v788 = vunpack.c.h.b16 %v605
        %v789 = vunpack.c.l.b16 %v606
        %v790 = vunpack.c.h.b16 %v606
        %v791 = vunpack.c.l.b16 %v607
        %v792 = vunpack.c.h.b16 %v607
        %v793 = vunpack.c.l.b16 %v608
        %v794 = vunpack.c.h.b16 %v608
        %v795 = vunpack.c.l.b16 %v609
        %v796 = vunpack.c.h.b16 %v609
        %v797 = vunpack.c.l.b16 %v610
        %v798 = vunpack.c.h.b16 %v610
        %v799 = vunpack.c.l.b16 %v611
        %v800 = vunpack.c.h.b16 %v611
        %v801 = vunpack.c.l.b16 %v612
        %v802 = vunpack.c.h.b16 %v612
        %v803 = vunpack.c.l.b16 %v613
        %v804 = vunpack.c.h.b16 %v613
        %v805 = vunpack.c.l.b16 %v614
        %v806 = vunpack.c.h.b16 %v614
        %v807 = vunpack.c.l.b16 %v615
        %v808 = vunpack.c.h.b16 %v615
        %v809 = vunpack.c.l.b16 %v616
        %v810 = vunpack.c.h.b16 %v616
        %v811 = vunpack.c.l.b16 %v617
        %v812 = vunpack.c.h.b16 %v617
        %v813 = vunpack.c.l.b16 %v618
        %v814 = vunpack.c.h.b16 %v618
        %v815 = vunpack.c.l.b16 %v619
        %v816 = vunpack.c.h.b16 %v619
        %v817 = vunpack.c.l.b16 %v620
        %v818 = vunpack.c.h.b16 %v620
        %v819 = vunpack.c.l.b16 %v621
        %v820 = vunpack.c.h.b16 %v621
        %v821 = vunpack.c.l.b16 %v622
        %v822 = vunpack.c.h.b16 %v622
        %v823 = vunpack.c.l.b16 %v623
        %v824 = vunpack.c.h.b16 %v623
        %v825 = vunpack.c.l.b16 %v624
        %v826 = vunpack.c.h.b16 %v624
        %v827 = vunpack.c.l.b16 %v625
        %v828 = vunpack.c.h.b16 %v625
        %v829 = vunpack.c.l.b16 %v626
        %v830 = vunpack.c.h.b16 %v626
        %v831 = vunpack.c.l.b16 %v627
        %v832 = vunpack.c.h.b16 %v627
        %v833 = vunpack.c.l.b16 %v628
        %v834 = vunpack.c.h.b16 %v628
        %v835 = vunpack.c.l.b16 %v629
        %v836 = vunpack.c.h.b16 %v629
        %v837 = vunpack.c.l.b16 %v630
        %v838 = vunpack.c.h.b16 %v630
        %v839 = vunpack.c.l.b16 %v631
        %v840 = vunpack.c.h.b16 %v631
        %v841 = vunpack.c.l.b16 %v632
        %v842 = vunpack.c.h.b16 %v632
        %v843 = vunpack.c.l.b16 %v633
        %v844 = vunpack.c.h.b16 %v633
        %v845 = vunpack.c.l.b16 %v634
        %v846 = vunpack.c.h.b16 %v634
        %v847 = vpack.c.b16 %v721, %v719
        %v848 = vpack.c.b16 %v722, %v720
        %v849 = vpack.c.b16 %v725, %v723
        %v850 = vpack.c.b16 %v726, %v724
        %v851 = vpack.c.b16 %v729, %v727
        %v852 = vpack.c.b16 %v730, %v728
        %v853 = vpack.c.b16 %v733, %v731
        %v854 = vpack.c.b16 %v734, %v732
        %v855 = vpack.c.b16 %v737, %v735
        %v856 = vpack.c.b16 %v738, %v736
        %v857 = vpack.c.b16 %v741, %v739
        %v858 = vpack.c.b16 %v742, %v740
        %v859 = vpack.c.b16 %v745, %v743
        %v860 = vpack.c.b16 %v746, %v744
        %v861 = vpack.c.b16 %v749, %v747
        %v862 = vpack.c.b16 %v750, %v748
        %v863 = vpack.c.b16 %v753, %v751
        %v864 = vpack.c.b16 %v754, %v752
        %v865 = vpack.c.b16 %v757, %v755
        %v866 = vpack.c.b16 %v758, %v756
        %v867 = vpack.c.b16 %v761, %v759
        %v868 = vpack.c.b16 %v762, %v760
        %v869 = vpack.c.b16 %v765, %v763
        %v870 = vpack.c.b16 %v766, %v764
        %v871 = vpack.c.b16 %v769, %v767
        %v872 = vpack.c.b16 %v770, %v768
        %v873 = vpack.c.b16 %v773, %v771
        %v874 = vpack.c.b16 %v774, %v772
        %v875 = vpack.c.b16 %v777, %v775
        %v876 = vpack.c.b16 %v778, %v776
        %v877 = vpack.c.b16 %v781, %v779
        %v878 = vpack.c.b16 %v782, %v780
        %v879 = vpack.c.b16 %v785, %v783
        %v880 = vpack.c.b16 %v786, %v784
        %v881 = vpack.c.b16 %v789, %v787
        %v882 = vpack.c.b16 %v790, %v788
        %v883 = vpack.c.b16 %v793, %v791
        %v884 = vpack.c.b16 %v794, %v792
        %v885 = vpack.c.b16 %v797, %v795
        %v886 = vpack.c.b16 %v798, %v796
        %v887 = vpack.c.b16 %v801, %v799
        %v888 = vpack.c.b16 %v802, %v800
        %v889 = vpack.c.b16 %v805, %v803
        %v890 = vpack.c.b16 %v806, %v804
        %v891 = vpack.c.b16 %v809, %v807
        %v892 = vpack.c.b16 %v810, %v808
        %v893 = vpack.c.b16 %v813, %v811
        %v894 = vpack.c.b16 %v814, %v812
        %v895 = vpack.c.b16 %v817, %v815
        %v896 = vpack.c.b16 %v818, %v816
        %v897 = vpack.c.b16 %v821, %v819
        %v898 = vpack.c.b16 %v822, %v820
        %v899 = vpack.c.b16 %v825, %v823
        %v900 = vpack.c.b16 %v826, %v824
        %v901 = vpack.c.b16 %v829, %v827
        %v902 = vpack.c.b16 %v830, %v828
        %v903 = vpack.c.b16 %v833, %v831
        %v904 = vpack.c.b16 %v834, %v832
        %v905 = vpack.c.b16 %v837, %v835
        %v906 = vpack.c.b16 %v838, %v836
        %v907 = vpack.c.b16 %v841, %v839
        %v908 = vpack.c.b16 %v842, %v840
        %v909 = vpack.c.b16 %v845, %v843
        %v910 = vpack.c.b16 %v846, %v844
        %975 = vmatpush.bf16.msra.mxu0 %v861
        %976 = vmatpush.bf16.msra.mxu0 %v859
        %977 = vmatpush.bf16.msra.mxu0 %v857
        %978 = vmatpush.bf16.msra.mxu0 %v855
        %979 = vmatpush.bf16.msra.mxu0 %v853
        %980 = vmatpush.bf16.msra.mxu0 %v851
        %981 = vmatpush.bf16.msra.mxu0 %v849
        %982 = vmatpush.bf16.msra.mxu0 %v847
        %983 = vmatmul.bf16.gmra.mxu0 %v647
        %v984 = vpop.f32.mrf.mxu0
        %v985 = vadd.f32 0.0, %v984
        %v986 = vpop.f32.mrf.mxu0
        %v987 = vadd.f32 0.0, %v986
        %988 = vdwg.mxu0
        %989 = vmatpush.bf16.msra.mxu0 %v877
        %990 = vmatpush.bf16.msra.mxu0 %v875
        %991 = vmatpush.bf16.msra.mxu0 %v873
        %992 = vmatpush.bf16.msra.mxu0 %v871
        %993 = vmatpush.bf16.msra.mxu0 %v869
        %994 = vmatpush.bf16.msra.mxu0 %v867
        %995 = vmatpush.bf16.msra.mxu0 %v865
        %996 = vmatpush.bf16.msra.mxu0 %v863
        %997 = vmatmul.bf16.gmra.mxu0 %v648
        %v998 = vpop.f32.mrf.mxu0
        %v999 = vadd.f32 %v985, %v998
        %v1000 = vpop.f32.mrf.mxu0
        %v1001 = vadd.f32 %v987, %v1000
        %1002 = vdwg.mxu0
        %1003 = vmatpush.bf16.msra.mxu0 %v893
        %1004 = vmatpush.bf16.msra.mxu0 %v891
        %1005 = vmatpush.bf16.msra.mxu0 %v889
        %1006 = vmatpush.bf16.msra.mxu0 %v887
        %1007 = vmatpush.bf16.msra.mxu0 %v885
        %1008 = vmatpush.bf16.msra.mxu0 %v883
        %1009 = vmatpush.bf16.msra.mxu0 %v881
        %1010 = vmatpush.bf16.msra.mxu0 %v879
        %1011 = vmatmul.bf16.gmra.mxu0 %v649
        %v1012 = vpop.f32.mrf.mxu0
        %v1013 = vadd.f32 %v999, %v1012
        %v1014 = vpop.f32.mrf.mxu0
        %v1015 = vadd.f32 %v1001, %v1014
        %1016 = vdwg.mxu0
        %1017 = vmatpush.bf16.msra.mxu0 %v909
        %1018 = vmatpush.bf16.msra.mxu0 %v907
        %1019 = vmatpush.bf16.msra.mxu0 %v905
        %1020 = vmatpush.bf16.msra.mxu0 %v903
        %1021 = vmatpush.bf16.msra.mxu0 %v901
        %1022 = vmatpush.bf16.msra.mxu0 %v899
        %1023 = vmatpush.bf16.msra.mxu0 %v897
        %1024 = vmatpush.bf16.msra.mxu0 %v895
        %1025 = vmatmul.bf16.gmra.mxu0 %v650
        %v1026 = vpop.f32.mrf.mxu0
        %v1027 = vadd.f32 %v1013, %v1026
        %v1028 = vpop.f32.mrf.mxu0
        %v1029 = vadd.f32 %v1015, %v1028
        %1030 = vdwg.mxu0
        %1031 = vmatpush.bf16.msra.mxu0 %v862
        %1032 = vmatpush.bf16.msra.mxu0 %v860
        %1033 = vmatpush.bf16.msra.mxu0 %v858
        %1034 = vmatpush.bf16.msra.mxu0 %v856
        %1035 = vmatpush.bf16.msra.mxu0 %v854
        %1036 = vmatpush.bf16.msra.mxu0 %v852
        %1037 = vmatpush.bf16.msra.mxu0 %v850
        %1038 = vmatpush.bf16.msra.mxu0 %v848
        %1039 = vmatmul.bf16.gmra.mxu0 %v647
        %v1040 = vpop.f32.mrf.mxu0
        %v1041 = vadd.f32 0.0, %v1040
        %v1042 = vpop.f32.mrf.mxu0
        %v1043 = vadd.f32 0.0, %v1042
        %1044 = vdwg.mxu0
        %1045 = vmatpush.bf16.msra.mxu0 %v878
        %1046 = vmatpush.bf16.msra.mxu0 %v876
        %1047 = vmatpush.bf16.msra.mxu0 %v874
        %1048 = vmatpush.bf16.msra.mxu0 %v872
        %1049 = vmatpush.bf16.msra.mxu0 %v870
        %1050 = vmatpush.bf16.msra.mxu0 %v868
        %1051 = vmatpush.bf16.msra.mxu0 %v866
        %1052 = vmatpush.bf16.msra.mxu0 %v864
        %1053 = vmatmul.bf16.gmra.mxu0 %v648
        %v1054 = vpop.f32.mrf.mxu0
        %v1055 = vadd.f32 %v1041, %v1054
        %v1056 = vpop.f32.mrf.mxu0
        %v1057 = vadd.f32 %v1043, %v1056
        %1058 = vdwg.mxu0
        %1059 = vmatpush.bf16.msra.mxu0 %v894
        %1060 = vmatpush.bf16.msra.mxu0 %v892
        %1061 = vmatpush.bf16.msra.mxu0 %v890
        %1062 = vmatpush.bf16.msra.mxu0 %v888
        %1063 = vmatpush.bf16.msra.mxu0 %v886
        %1064 = vmatpush.bf16.msra.mxu0 %v884
        %1065 = vmatpush.bf16.msra.mxu0 %v882
        %1066 = vmatpush.bf16.msra.mxu0 %v880
        %1067 = vmatmul.bf16.gmra.mxu0 %v649
        %v1068 = vpop.f32.mrf.mxu0
        %v1069 = vadd.f32 %v1055, %v1068
        %v1070 = vpop.f32.mrf.mxu0
        %v1071 = vadd.f32 %v1057, %v1070
        %1072 = vdwg.mxu0
        %1073 = vmatpush.bf16.msra.mxu0 %v910
        %1074 = vmatpush.bf16.msra.mxu0 %v908
        %1075 = vmatpush.bf16.msra.mxu0 %v906
        %1076 = vmatpush.bf16.msra.mxu0 %v904
        %1077 = vmatpush.bf16.msra.mxu0 %v902
        %1078 = vmatpush.bf16.msra.mxu0 %v900
        %1079 = vmatpush.bf16.msra.mxu0 %v898
        %1080 = vmatpush.bf16.msra.mxu0 %v896
        %1081 = vmatmul.bf16.gmra.mxu0 %v650
        %v1082 = vpop.f32.mrf.mxu0
        %v1083 = vadd.f32 %v1069, %v1082
        %v1084 = vpop.f32.mrf.mxu0
        %v1085 = vadd.f32 %v1071, %v1084
        %1086 = vdwg.mxu0
        %v1087 = vadd.f32 %v563, %v1027
        %v1088 = vadd.f32 %v564, %v1083
        %v1089 = vadd.f32 %v565, %v1029
        %v1090 = vadd.f32 %v566, %v1085
        %1091 = vst [vmem:[#allocation2] sm:$0xff] %v1087
        %1092 = vst [vmem:[#allocation2 + $0x8] sm:$0xff] %v1088
        %1093 = vst [vmem:[#allocation2 + $0x10] sm:$0xff] %v1089
        %1094 = vst [vmem:[#allocation2 + $0x18] sm:$0xff] %v1090
        %p1095 = scmp.eq.s32.totalorder %s21, 11
        // Predicated region
        $region98: #{cnn_forward.14} parent=84 // pred_check
          %p1096 = pneg %p1095
        $region99: #{cnn_forward.14} parent=84 // pred_check_branch
          %1098 = sbr.rel (%p1096) target = $region101
        $region100: #{cnn_forward.14} parent=84 // pred_region
          %v1099 = vld [vmem:[#allocation2] sm:$0xff]
          %v1100 = vld [vmem:[#allocation2 + $0x8] sm:$0xff]
          %v1101 = vld [vmem:[#allocation2 + $0x10] sm:$0xff]
          %v1102 = vld [vmem:[#allocation2 + $0x18] sm:$0xff]
          %v1103 = vld [vmem:[%s551] sm:$0x3]
          %v1105 = vperm.slane %v1103, 0
          %v1106 = vperm.slane %v1103, 1
          %v1109 = vadd.f32 %v1099, %v1105
          %v1110 = vadd.f32 %v1100, %v1106
          %v1111 = vadd.f32 %v1101, %v1105
          %v1112 = vadd.f32 %v1102, %v1106
          %1113 = vst [vmem:[%s543] sm:$0xff] %v1109
          %1114 = vst [vmem:[%s543 + $0x8] sm:$0xff] %v1110
          %1115 = vst [vmem:[%s543 + $0x10] sm:$0xff] %v1111
          %1116 = vst [vmem:[%s543 + $0x18] sm:$0xff] %v1112
        $region101: #{cnn_forward.14} parent=84 // pred_fallthru
          _
        %s1117 = sand.u32 %s125, 1
        %s1118 = sand.u32 %s125, 1
        %s1119 = smul.addr %s1118, 32
        %s1120 = scalar_lea.vmem [#allocation5], %s1119
        // Predicated region
        $region102: #{cnn_forward.14} parent=84 // pred_check
          %p1121 = pneg %p135
        $region103: #{cnn_forward.14} parent=84 // pred_check_branch
          %1123 = sbr.rel (%p1121) target = $region105
        $region104: #{cnn_forward.14} parent=84 // pred_region
          %s1124 = smul.u32 2, %s19
          %s1125 = smul.u32 2, %s20
          %s1126 = smul.addr %s1124, 4
          %s1127 = sadd.s32 %s1125, %s1126
          %s1128 = smul.addr %s1127, 8
          %s1129 = scalar_lea.vmem %s3, %s1128
          // Predicated region
          $region106: #{cnn_forward.14} parent=104 // pred_check
            _
          $region107: #{cnn_forward.14} parent=104 // pred_check_branch
            %1131 = sbr.rel (0) target = $region109
          $region108: #{cnn_forward.14} parent=104 // pred_region
            // Predicated region
            $region110: #{cnn_forward.14} parent=108 // pred_check
              _
            $region111: #{cnn_forward.14} parent=108 // pred_check_branch
              %1133 = sbr.rel (0) target = $region113
            $region112: #{cnn_forward.14} parent=108 // pred_region
              loop: start=0, step=1, limit=1
              $region114: #{cnn_forward.14} parent=112 // loop_pre_header
                _
              $region115: #{cnn_forward.14} parent=112 // loop_header
                %s1135 = sphi 0, %s1139
                %p1136 = scmp.ge.s32.totalorder %s1135, 1
                %s1140 = sphi %s1120, %s1120
                %s1141 = sphi %s1129, %s1129
              $region116: #{cnn_forward.14} parent=112 // loop_header_branch
                %1138 = sbr.rel (%p1136) target = $region120
              $region117: #{cnn_forward.14} parent=112 // loop_body
                %v1142 = vld [vmem:[%s1140] sm:$0xff]
                %1143 = vst [vmem:[%s1141] sm:$0xff] %v1142
                %v1144 = vld [vmem:[%s1140 + $0x8] sm:$0xff]
                %1145 = vst [vmem:[%s1141 + $0x8] sm:$0xff] %v1144
                %v1146 = vld [vmem:[%s1140 + $0x10] sm:$0xff]
                %1147 = vst [vmem:[%s1141 + $0x20] sm:$0xff] %v1146
                %v1148 = vld [vmem:[%s1140 + $0x18] sm:$0xff]
                %1149 = vst [vmem:[%s1141 + $0x28] sm:$0xff] %v1148
              $region118: #{cnn_forward.14} parent=112 // loop_footer
                %s1139 = sadd.s32 1, %s1135
              $region119: #{cnn_forward.14} parent=112 // loop_footer_branch
                %1134 = sbr.rel target = $region115
              $region120: #{cnn_forward.14} parent=112 // loop_exit
                _
            $region113: #{cnn_forward.14} parent=108 // pred_fallthru
              _
            // Predicated region
            $region121: #{cnn_forward.14} parent=108 // pred_check
              _
            $region122: #{cnn_forward.14} parent=108 // pred_check_branch
              %1151 = sbr.rel target = $region124
            $region123: #{cnn_forward.14} parent=108 // pred_region
              _
            $region124: #{cnn_forward.14} parent=108 // pred_fallthru
              _
          $region109: #{cnn_forward.14} parent=104 // pred_fallthru
            _
          %1152 = vnop
        $region105: #{cnn_forward.14} parent=84 // pred_fallthru
          _
      $region85: #{cnn_forward.14} parent=5 // pred_fallthru
        _
      %p1153 = scmp.le.s32.totalorder 2, %s9
      // Predicated region
      $region125: #{cnn_forward.14} parent=5 // pred_check
        %p1154 = pneg %p1153
      $region126: #{cnn_forward.14} parent=5 // pred_check_branch
        %1156 = sbr.rel (%p1154) target = $region128
      $region127: #{cnn_forward.14} parent=5 // pred_region
        %s1157 = ssub.s32 %s9, 2
        // Predicated region
        $region129: #{cnn_forward.14} parent=127 // pred_check
          %p1158 = pneg %p141
        $region130: #{cnn_forward.14} parent=127 // pred_check_branch
          %1160 = sbr.rel (%p1158) target = $region132
        $region131: #{cnn_forward.14} parent=127 // pred_region
          %s1161 = sand.u32 %s126, 1
          %s1162 = sand.u32 %s126, 1
          %s1163 = smul.addr %s1162, 32
          %s1164 = scalar_lea.vmem [#allocation5], %s1163
        $region132: #{cnn_forward.14} parent=127 // pred_fallthru
          _
      $region128: #{cnn_forward.14} parent=5 // pred_fallthru
        _
    $region6: #{cnn_forward.14} parent=1 // loop_footer
      %s13 = sadd.s32 1, %s9
    $region7: #{cnn_forward.14} parent=1 // loop_footer_branch
      %8 = sbr.rel target = $region3
    $region8: #{cnn_forward.14} parent=1 // loop_exit
      _

// kernel: cnn_forward.15
$region0: #{cnn_forward.15}
  #allocation0 [shape = 'u32[]', space=smem, size = 0x4, offset = 0x4, fixed_abs, tag = 'smem constant byte address 0x4 - core index']
  #allocation1 [shape = 'u32[72,128]{1,0:T(1,128)}', space=vmem, size = 0x9000, scoped, tag = 'internal scratch']
  #allocation2 [shape = 'f32[16,128]{1,0:T(8,128)}', space=vmem, size = 0x2000, scoped, tag = 'scratch operand']
  %s0 = inlined_call_operand.vmem [shape: bf16[16,512], index: 0, kind: input, shape index: {}]
  %s1 = inlined_call_operand.vmem [shape: bf16[512,128], index: 1, kind: input, shape index: {}]
  %s2 = inlined_call_operand.vmem [shape: f32[1,128], index: 2, kind: input, shape index: {}]
  %s3 = inlined_call_operand.vmem [shape: f32[16,128], index: 3, kind: output, shape index: {}]
  %s4 = sld [smem:[#allocation0]]
  $region30: #{cnn_forward.15} parent=0
    _
  %s6 = ssub.s32 1, %s4
  %s7 = scalar_select 0, %s6, %s4
  // Predicated region
  $region2: #{cnn_forward.15} parent=0 // pred_check
    _
  $region3: #{cnn_forward.15} parent=0 // pred_check_branch
    %9 = sbr.rel (0) target = $region5
  $region4: #{cnn_forward.15} parent=0 // pred_region
    _
  $region5: #{cnn_forward.15} parent=0 // pred_fallthru
    _
  // Predicated region
  $region6: #{cnn_forward.15} parent=0 // pred_check
    _
  $region7: #{cnn_forward.15} parent=0 // pred_check_branch
    %11 = sbr.rel (0) target = $region9
  $region8: #{cnn_forward.15} parent=0 // pred_region
    _
  $region9: #{cnn_forward.15} parent=0 // pred_fallthru
    _
  // Predicated region
  $region10: #{cnn_forward.15} parent=0 // pred_check
    _
  $region11: #{cnn_forward.15} parent=0 // pred_check_branch
    %13 = sbr.rel (0) target = $region13
  $region12: #{cnn_forward.15} parent=0 // pred_region
    _
  $region13: #{cnn_forward.15} parent=0 // pred_fallthru
    _
  %p14 = scmp.eq.s32.totalorder 0, 0
  // Predicated region
  $region14: #{cnn_forward.15} parent=0 // pred_check
    %p15 = pneg %p14
  $region15: #{cnn_forward.15} parent=0 // pred_check_branch
    %17 = sbr.rel (%p15) target = $region17
  $region16: #{cnn_forward.15} parent=0 // pred_region
    %18 = vst [vmem:[#allocation2] sm:$0xff] 0.0
    %19 = vst [vmem:[#allocation2 + $0x8] sm:$0xff] 0.0
  $region17: #{cnn_forward.15} parent=0 // pred_fallthru
    _
  %v20 = vld [vmem:[#allocation2] sm:$0xff]
  %v21 = vld [vmem:[#allocation2 + $0x8] sm:$0xff]
  %v22 = vld [vmem:[%s0] sm:$0xff]
  %v23 = vld [vmem:[%s0 + $0x8] sm:$0xff]
  %v24 = vld [vmem:[%s0 + $0x10] sm:$0xff]
  %v25 = vld [vmem:[%s0 + $0x18] sm:$0xff]
  %v26 = vld [vmem:[%s1] sm:$0xf]
  %v27 = vld [vmem:[%s1 + $0x4] sm:$0xf]
  %v28 = vld [vmem:[%s1 + $0x8] sm:$0xf]
  %v29 = vld [vmem:[%s1 + $0xc] sm:$0xf]
  %v30 = vld [vmem:[%s1 + $0x10] sm:$0xf]
  %v31 = vld [vmem:[%s1 + $0x14] sm:$0xf]
  %v32 = vld [vmem:[%s1 + $0x18] sm:$0xf]
  %v33 = vld [vmem:[%s1 + $0x1c] sm:$0xf]
  %v34 = vld [vmem:[%s1 + $0x20] sm:$0xf]
  %v35 = vld [vmem:[%s1 + $0x24] sm:$0xf]
  %v36 = vld [vmem:[%s1 + $0x28] sm:$0xf]
  %v37 = vld [vmem:[%s1 + $0x2c] sm:$0xf]
  %v38 = vld [vmem:[%s1 + $0x30] sm:$0xf]
  %v39 = vld [vmem:[%s1 + $0x34] sm:$0xf]
  %v40 = vld [vmem:[%s1 + $0x38] sm:$0xf]
  %v41 = vld [vmem:[%s1 + $0x3c] sm:$0xf]
  %v42 = vld [vmem:[%s1 + $0x40] sm:$0xf]
  %v43 = vld [vmem:[%s1 + $0x44] sm:$0xf]
  %v44 = vld [vmem:[%s1 + $0x48] sm:$0xf]
  %v45 = vld [vmem:[%s1 + $0x4c] sm:$0xf]
  %v46 = vld [vmem:[%s1 + $0x50] sm:$0xf]
  %v47 = vld [vmem:[%s1 + $0x54] sm:$0xf]
  %v48 = vld [vmem:[%s1 + $0x58] sm:$0xf]
  %v49 = vld [vmem:[%s1 + $0x5c] sm:$0xf]
  %v50 = vld [vmem:[%s1 + $0x60] sm:$0xf]
  %v51 = vld [vmem:[%s1 + $0x64] sm:$0xf]
  %v52 = vld [vmem:[%s1 + $0x68] sm:$0xf]
  %v53 = vld [vmem:[%s1 + $0x6c] sm:$0xf]
  %v54 = vld [vmem:[%s1 + $0x70] sm:$0xf]
  %v55 = vld [vmem:[%s1 + $0x74] sm:$0xf]
  %v56 = vld [vmem:[%s1 + $0x78] sm:$0xf]
  %v57 = vld [vmem:[%s1 + $0x7c] sm:$0xf]
  %v58 = vld [vmem:[%s1 + $0x80] sm:$0xf]
  %v59 = vld [vmem:[%s1 + $0x84] sm:$0xf]
  %v60 = vld [vmem:[%s1 + $0x88] sm:$0xf]
  %v61 = vld [vmem:[%s1 + $0x8c] sm:$0xf]
  %v62 = vld [vmem:[%s1 + $0x90] sm:$0xf]
  %v63 = vld [vmem:[%s1 + $0x94] sm:$0xf]
  %v64 = vld [vmem:[%s1 + $0x98] sm:$0xf]
  %v65 = vld [vmem:[%s1 + $0x9c] sm:$0xf]
  %v66 = vld [vmem:[%s1 + $0xa0] sm:$0xf]
  %v67 = vld [vmem:[%s1 + $0xa4] sm:$0xf]
  %v68 = vld [vmem:[%s1 + $0xa8] sm:$0xf]
  %v69 = vld [vmem:[%s1 + $0xac] sm:$0xf]
  %v70 = vld [vmem:[%s1 + $0xb0] sm:$0xf]
  %v71 = vld [vmem:[%s1 + $0xb4] sm:$0xf]
  %v72 = vld [vmem:[%s1 + $0xb8] sm:$0xf]
  %v73 = vld [vmem:[%s1 + $0xbc] sm:$0xf]
  %v74 = vld [vmem:[%s1 + $0xc0] sm:$0xf]
  %v75 = vld [vmem:[%s1 + $0xc4] sm:$0xf]
  %v76 = vld [vmem:[%s1 + $0xc8] sm:$0xf]
  %v77 = vld [vmem:[%s1 + $0xcc] sm:$0xf]
  %v78 = vld [vmem:[%s1 + $0xd0] sm:$0xf]
  %v79 = vld [vmem:[%s1 + $0xd4] sm:$0xf]
  %v80 = vld [vmem:[%s1 + $0xd8] sm:$0xf]
  %v81 = vld [vmem:[%s1 + $0xdc] sm:$0xf]
  %v82 = vld [vmem:[%s1 + $0xe0] sm:$0xf]
  %v83 = vld [vmem:[%s1 + $0xe4] sm:$0xf]
  %v84 = vld [vmem:[%s1 + $0xe8] sm:$0xf]
  %v85 = vld [vmem:[%s1 + $0xec] sm:$0xf]
  %v86 = vld [vmem:[%s1 + $0xf0] sm:$0xf]
  %v87 = vld [vmem:[%s1 + $0xf4] sm:$0xf]
  %v88 = vld [vmem:[%s1 + $0xf8] sm:$0xf]
  %v89 = vld [vmem:[%s1 + $0xfc] sm:$0xf]
  %v94 = vunpack.c.l.b16 %v22
  %v95 = vunpack.c.h.b16 %v22
  %v96 = vunpack.c.l.b16 %v23
  %v97 = vunpack.c.h.b16 %v23
  %v98 = vunpack.c.l.b16 %v24
  %v99 = vunpack.c.h.b16 %v24
  %v100 = vunpack.c.l.b16 %v25
  %v101 = vunpack.c.h.b16 %v25
  %v102 = vpack.c.b16 %v98, %v94
  %v103 = vpack.c.b16 %v99, %v95
  %v104 = vpack.c.b16 %v100, %v96
  %v105 = vpack.c.b16 %v101, %v97
  %v174 = vunpack.c.l.b16 %v26
  %v175 = vunpack.c.l.b16 %v27
  %v176 = vunpack.c.l.b16 %v28
  %v177 = vunpack.c.l.b16 %v29
  %v178 = vunpack.c.l.b16 %v30
  %v179 = vunpack.c.l.b16 %v31
  %v180 = vunpack.c.l.b16 %v32
  %v181 = vunpack.c.l.b16 %v33
  %v182 = vunpack.c.l.b16 %v34
  %v183 = vunpack.c.l.b16 %v35
  %v184 = vunpack.c.l.b16 %v36
  %v185 = vunpack.c.l.b16 %v37
  %v186 = vunpack.c.l.b16 %v38
  %v187 = vunpack.c.l.b16 %v39
  %v188 = vunpack.c.l.b16 %v40
  %v189 = vunpack.c.l.b16 %v41
  %v190 = vunpack.c.l.b16 %v42
  %v191 = vunpack.c.l.b16 %v43
  %v192 = vunpack.c.l.b16 %v44
  %v193 = vunpack.c.l.b16 %v45
  %v194 = vunpack.c.l.b16 %v46
  %v195 = vunpack.c.l.b16 %v47
  %v196 = vunpack.c.l.b16 %v48
  %v197 = vunpack.c.l.b16 %v49
  %v198 = vunpack.c.l.b16 %v50
  %v199 = vunpack.c.l.b16 %v51
  %v200 = vunpack.c.l.b16 %v52
  %v201 = vunpack.c.l.b16 %v53
  %v202 = vunpack.c.l.b16 %v54
  %v203 = vunpack.c.l.b16 %v55
  %v204 = vunpack.c.l.b16 %v56
  %v205 = vunpack.c.l.b16 %v57
  %v206 = vunpack.c.l.b16 %v58
  %v207 = vunpack.c.l.b16 %v59
  %v208 = vunpack.c.l.b16 %v60
  %v209 = vunpack.c.l.b16 %v61
  %v210 = vunpack.c.l.b16 %v62
  %v211 = vunpack.c.l.b16 %v63
  %v212 = vunpack.c.l.b16 %v64
  %v213 = vunpack.c.l.b16 %v65
  %v214 = vunpack.c.l.b16 %v66
  %v215 = vunpack.c.l.b16 %v67
  %v216 = vunpack.c.l.b16 %v68
  %v217 = vunpack.c.l.b16 %v69
  %v218 = vunpack.c.l.b16 %v70
  %v219 = vunpack.c.l.b16 %v71
  %v220 = vunpack.c.l.b16 %v72
  %v221 = vunpack.c.l.b16 %v73
  %v222 = vunpack.c.l.b16 %v74
  %v223 = vunpack.c.l.b16 %v75
  %v224 = vunpack.c.l.b16 %v76
  %v225 = vunpack.c.l.b16 %v77
  %v226 = vunpack.c.l.b16 %v78
  %v227 = vunpack.c.l.b16 %v79
  %v228 = vunpack.c.l.b16 %v80
  %v229 = vunpack.c.l.b16 %v81
  %v230 = vunpack.c.l.b16 %v82
  %v231 = vunpack.c.l.b16 %v83
  %v232 = vunpack.c.l.b16 %v84
  %v233 = vunpack.c.l.b16 %v85
  %v234 = vunpack.c.l.b16 %v86
  %v235 = vunpack.c.l.b16 %v87
  %v236 = vunpack.c.l.b16 %v88
  %v237 = vunpack.c.l.b16 %v89
  %v238 = vpack.c.b16 %v175, %v174
  %v239 = vpack.c.b16 %v177, %v176
  %v240 = vpack.c.b16 %v179, %v178
  %v241 = vpack.c.b16 %v181, %v180
  %v242 = vpack.c.b16 %v183, %v182
  %v243 = vpack.c.b16 %v185, %v184
  %v244 = vpack.c.b16 %v187, %v186
  %v245 = vpack.c.b16 %v189, %v188
  %v246 = vpack.c.b16 %v191, %v190
  %v247 = vpack.c.b16 %v193, %v192
  %v248 = vpack.c.b16 %v195, %v194
  %v249 = vpack.c.b16 %v197, %v196
  %v250 = vpack.c.b16 %v199, %v198
  %v251 = vpack.c.b16 %v201, %v200
  %v252 = vpack.c.b16 %v203, %v202
  %v253 = vpack.c.b16 %v205, %v204
  %v254 = vpack.c.b16 %v207, %v206
  %v255 = vpack.c.b16 %v209, %v208
  %v256 = vpack.c.b16 %v211, %v210
  %v257 = vpack.c.b16 %v213, %v212
  %v258 = vpack.c.b16 %v215, %v214
  %v259 = vpack.c.b16 %v217, %v216
  %v260 = vpack.c.b16 %v219, %v218
  %v261 = vpack.c.b16 %v221, %v220
  %v262 = vpack.c.b16 %v223, %v222
  %v263 = vpack.c.b16 %v225, %v224
  %v264 = vpack.c.b16 %v227, %v226
  %v265 = vpack.c.b16 %v229, %v228
  %v266 = vpack.c.b16 %v231, %v230
  %v267 = vpack.c.b16 %v233, %v232
  %v268 = vpack.c.b16 %v235, %v234
  %v269 = vpack.c.b16 %v237, %v236
  %302 = vmatpush.bf16.msra.mxu0 %v245
  %303 = vmatpush.bf16.msra.mxu0 %v244
  %304 = vmatpush.bf16.msra.mxu0 %v243
  %305 = vmatpush.bf16.msra.mxu0 %v242
  %306 = vmatpush.bf16.msra.mxu0 %v241
  %307 = vmatpush.bf16.msra.mxu0 %v240
  %308 = vmatpush.bf16.msra.mxu0 %v239
  %309 = vmatpush.bf16.msra.mxu0 %v238
  %310 = vmatmul.bf16.gmra.mxu0 %v102
  %v311 = vpop.f32.mrf.mxu0
  %v312 = vadd.f32 0.0, %v311
  %v313 = vpop.f32.mrf.mxu0
  %v314 = vadd.f32 0.0, %v313
  %315 = vdwg.mxu0
  %316 = vmatpush.bf16.msra.mxu0 %v253
  %317 = vmatpush.bf16.msra.mxu0 %v252
  %318 = vmatpush.bf16.msra.mxu0 %v251
  %319 = vmatpush.bf16.msra.mxu0 %v250
  %320 = vmatpush.bf16.msra.mxu0 %v249
  %321 = vmatpush.bf16.msra.mxu0 %v248
  %322 = vmatpush.bf16.msra.mxu0 %v247
  %323 = vmatpush.bf16.msra.mxu0 %v246
  %324 = vmatmul.bf16.gmra.mxu0 %v103
  %v325 = vpop.f32.mrf.mxu0
  %v326 = vadd.f32 %v312, %v325
  %v327 = vpop.f32.mrf.mxu0
  %v328 = vadd.f32 %v314, %v327
  %329 = vdwg.mxu0
  %330 = vmatpush.bf16.msra.mxu0 %v261
  %331 = vmatpush.bf16.msra.mxu0 %v260
  %332 = vmatpush.bf16.msra.mxu0 %v259
  %333 = vmatpush.bf16.msra.mxu0 %v258
  %334 = vmatpush.bf16.msra.mxu0 %v257
  %335 = vmatpush.bf16.msra.mxu0 %v256
  %336 = vmatpush.bf16.msra.mxu0 %v255
  %337 = vmatpush.bf16.msra.mxu0 %v254
  %338 = vmatmul.bf16.gmra.mxu0 %v104
  %v339 = vpop.f32.mrf.mxu0
  %v340 = vadd.f32 %v326, %v339
  %v341 = vpop.f32.mrf.mxu0
  %v342 = vadd.f32 %v328, %v341
  %343 = vdwg.mxu0
  %344 = vmatpush.bf16.msra.mxu0 %v269
  %345 = vmatpush.bf16.msra.mxu0 %v268
  %346 = vmatpush.bf16.msra.mxu0 %v267
  %347 = vmatpush.bf16.msra.mxu0 %v266
  %348 = vmatpush.bf16.msra.mxu0 %v265
  %349 = vmatpush.bf16.msra.mxu0 %v264
  %350 = vmatpush.bf16.msra.mxu0 %v263
  %351 = vmatpush.bf16.msra.mxu0 %v262
  %352 = vmatmul.bf16.gmra.mxu0 %v105
  %v353 = vpop.f32.mrf.mxu0
  %v354 = vadd.f32 %v340, %v353
  %v355 = vpop.f32.mrf.mxu0
  %v356 = vadd.f32 %v342, %v355
  %357 = vdwg.mxu0
  %v358 = vadd.f32 %v20, %v354
  %v359 = vadd.f32 %v21, %v356
  %360 = vst [vmem:[#allocation2] sm:$0xff] %v358
  %361 = vst [vmem:[#allocation2 + $0x8] sm:$0xff] %v359
  // Predicated region
  $region18: #{cnn_forward.15} parent=0 // pred_check
    %p362 = pneg %p14
  $region19: #{cnn_forward.15} parent=0 // pred_check_branch
    %364 = sbr.rel (%p362) target = $region21
  $region20: #{cnn_forward.15} parent=0 // pred_region
    %v365 = vld [vmem:[#allocation2] sm:$0xff]
    %v366 = vld [vmem:[#allocation2 + $0x8] sm:$0xff]
    %v367 = vld [vmem:[%s2] sm:$0x1]
    %v369 = vperm.slane %v367, 0
    %v371 = vadd.f32 %v365, %v369
    %v372 = vadd.f32 %v366, %v369
    %373 = vst [vmem:[%s3] sm:$0xff] %v371
    %374 = vst [vmem:[%s3 + $0x8] sm:$0xff] %v372
  $region21: #{cnn_forward.15} parent=0 // pred_fallthru
    _
  // Predicated region
  $region22: #{cnn_forward.15} parent=0 // pred_check
    _
  $region23: #{cnn_forward.15} parent=0 // pred_check_branch
    %376 = sbr.rel (0) target = $region25
  $region24: #{cnn_forward.15} parent=0 // pred_region
    _
  $region25: #{cnn_forward.15} parent=0 // pred_fallthru
    _
  // Predicated region
  $region26: #{cnn_forward.15} parent=0 // pred_check
    _
  $region27: #{cnn_forward.15} parent=0 // pred_check_branch
    %378 = sbr.rel (0) target = $region29
  $region28: #{cnn_forward.15} parent=0 // pred_region
    _
  $region29: #{cnn_forward.15} parent=0 // pred_fallthru
    _

</llo_original>
